<compile_context>
chip_gen: v7x
topology: tpu7x:2x2x1
jax: 0.10.0
libtpu: 0.0.40
codegen_flags: <defaults>
</compile_context>

<pallas_src>
import functools

import jax
import jax.numpy as jnp
import numpy as np
from jax.experimental import pallas as pl
from jax.experimental.pallas import tpu as pltpu

_EPS = 1e-5
_LANE = 128
_VMEM_LIMIT = 32 * 1024 * 1024  # scoped-VMEM cap; safe on v5e/v6e (128 MiB) and v7x (64 MiB)


def _round_up(v, m):
    return (v + m - 1) // m * m


def _pick_row_tile(n_rows, bytes_per_row, max_tile=1024):
    """Return (tile, padded_n_rows).

    Picks the largest multiple-of-8 divisor of n_rows that fits both the
    max_tile cap and a VMEM-footprint cap; if none exists, n_rows is padded up
    to a tile multiple (so we never fall back to one giant unpipelined block).
    """
    cap = (_VMEM_LIMIT // 3) // max(bytes_per_row, 1)
    cap = min(max_tile, cap)
    cap -= cap % 8
    cap = max(cap, 8)
    t = min(n_rows, cap)
    t -= t % 8
    while t >= 8:
        if n_rows % t == 0:
            return t, n_rows
        t -= 8
    t = min(cap, _round_up(n_rows, 8))
    return t, _round_up(n_rows, t)


# ---------------------------------------------------------------------------
# Kernel A/C: row-tiled [BN(scale,shift) -> ReLU ->] 1x1 conv (matmul)
#             + per-tile (sum, sum_sq) partials for the NEXT BatchNorm.
# ---------------------------------------------------------------------------
def _conv1x1_stats_kernel(x_ref, scale_ref, shift_ref, w_ref, o_ref, stats_ref,
                          *, apply_bn_relu, n_valid_rows, mask_stats):
    h = x_ref[...].astype(jnp.float32)                     # (TR, Ci)
    if apply_bn_relu:
        # BN as one FMA (scale/shift precomputed from global stats) + ReLU.
        h = jnp.maximum(h * scale_ref[...] + shift_ref[...], 0.0)
    # bf16 operands on the MXU, f32 accumulation.
    o = jnp.dot(h.astype(jnp.bfloat16), w_ref[...],
                preferred_element_type=jnp.float32)        # (TR, Co) f32
    o_ref[...] = o.astype(o_ref.dtype)                     # bf16 intermediate

    # Per-tile partial stats (reduced in the wrapper) -> grid axis can be
    # "parallel".  Stats are taken from the f32 value, pre-cast.
    if mask_stats:
        tile = o.shape[0]
        row0 = pl.program_id(0) * tile
        ridx = row0 + jax.lax.broadcasted_iota(jnp.int32, (tile, 1), 0)
        o = jnp.where(ridx < n_valid_rows, o, 0.0)
    cout = o.shape[1]
    stats_ref[...] = jnp.concatenate(
        [jnp.sum(o, axis=0, keepdims=True),
         jnp.sum(o * o, axis=0, keepdims=True)], axis=0).reshape(1, 2, cout)


def _conv1x1_stats(x_rows, scale, shift, w, *, apply_bn_relu, tile,
                   n_valid_rows):
    n_rows, cin = x_rows.shape
    cout = w.shape[1]
    num_tiles = n_rows // tile
    # Padded rows only pollute the stats when the ReLU(shift) pre-activation
    # makes zero rows non-zero; mask them out in that case.
    mask_stats = apply_bn_relu and (n_valid_rows != n_rows)
    kernel = functools.partial(_conv1x1_stats_kernel,
                               apply_bn_relu=apply_bn_relu,
                               n_valid_rows=n_valid_rows,
                               mask_stats=mask_stats)
    h, stats = pl.pallas_call(
        kernel,
        grid=(num_tiles,),
        in_specs=[pl.BlockSpec((tile, cin), lambda i: (i, 0)),
                  pl.BlockSpec((1, cin), lambda i: (0, 0)),
                  pl.BlockSpec((1, cin), lambda i: (0, 0)),
                  pl.BlockSpec((cin, cout), lambda i: (0, 0))],
        out_specs=[pl.BlockSpec((tile, cout), lambda i: (i, 0)),
                   pl.BlockSpec((1, 2, cout), lambda i: (i, 0, 0))],
        out_shape=[jax.ShapeDtypeStruct((n_rows, cout), jnp.bfloat16),
                   jax.ShapeDtypeStruct((num_tiles, 2, cout), jnp.float32)],
        compiler_params=pltpu.CompilerParams(
            dimension_semantics=("parallel",),
            vmem_limit_bytes=_VMEM_LIMIT),
    )(x_rows, scale, shift, w)
    return h, jnp.sum(stats, axis=0)                       # (2, cout)


# ---------------------------------------------------------------------------
# Kernel B: per-image BN1 -> ReLU -> 3x3 conv (pad=1) + per-image stats.
# ---------------------------------------------------------------------------
def _conv3x3_stats_kernel(h_ref, scale_ref, shift_ref, w2_ref, o_ref,
                          stats_ref, pad_ref):
    _, H, W, C = h_ref.shape

    # BN1 as one FMA + ReLU (f32 elementwise on the bf16 input).
    act = jnp.maximum(h_ref[0].astype(jnp.float32) * scale_ref[...]
                      + shift_ref[...], 0.0)

    # Padded bf16 scratch: zero only the 1-pixel border (cheap), every step —
    # no cross-step scratch dependence, so the grid axis stays "parallel".
    zrow = jnp.zeros((1, W + 2, C), pad_ref.dtype)
    zcol = jnp.zeros((H, 1, C), pad_ref.dtype)
    pad_ref[0:1, :, :] = zrow
    pad_ref[H + 1:H + 2, :, :] = zrow
    pad_ref[1:H + 1, 0:1, :] = zcol
    pad_ref[1:H + 1, W + 1:W + 2, :] = zcol
    pad_ref[1:H + 1, 1:W + 1, :] = act.astype(pad_ref.dtype)

    # 3x3 conv = 9 shifted matmuls chained as one jnp accumulation expression
    # (no VMEM accumulator RMW); the sublane (W-axis) shift is hoisted out of
    # the dy loop (3 unaligned slices instead of 9).
    # TODO(synk): per-dx im2col (K = 3*C) to fill the 256-deep MXU on v6e/v7x.
    acc = None
    for dx in range(3):
        shifted = pad_ref[:, dx:dx + W, :]                 # (H+2, W, C) bf16
        for dy in range(3):
            patch = shifted[dy:dy + H].reshape(H * W, C)
            d = jnp.dot(patch, w2_ref[dy, dx],
                        preferred_element_type=jnp.float32)
            acc = d if acc is None else acc + d            # (H*W, C) f32

    o_ref[...] = acc.reshape(1, H, W, C).astype(o_ref.dtype)   # bf16 out
    stats_ref[...] = jnp.concatenate(
        [jnp.sum(acc, axis=0, keepdims=True),
         jnp.sum(acc * acc, axis=0, keepdims=True)], axis=0).reshape(1, 2, C)


def _conv3x3_stats(h_imgs, scale, shift, w2):
    N, H, W, C = h_imgs.shape
    h2, stats = pl.pallas_call(
        _conv3x3_stats_kernel,
        grid=(N,),
        in_specs=[pl.BlockSpec((1, H, W, C), lambda n: (n, 0, 0, 0)),
                  pl.BlockSpec((1, C), lambda n: (0, 0)),
                  pl.BlockSpec((1, C), lambda n: (0, 0)),
                  pl.BlockSpec((3, 3, C, C), lambda n: (0, 0, 0, 0))],
        out_specs=[pl.BlockSpec((1, H, W, C), lambda n: (n, 0, 0, 0)),
                   pl.BlockSpec((1, 2, C), lambda n: (n, 0, 0))],
        out_shape=[jax.ShapeDtypeStruct((N, H, W, C), jnp.bfloat16),
                   jax.ShapeDtypeStruct((N, 2, C), jnp.float32)],
        scratch_shapes=[pltpu.VMEM((H + 2, W + 2, C), jnp.bfloat16)],
        compiler_params=pltpu.CompilerParams(
            dimension_semantics=("parallel",),
            vmem_limit_bytes=_VMEM_LIMIT),
    )(h_imgs, scale, shift, w2)
    return h2, jnp.sum(stats, axis=0)                      # (2, C)


# ---------------------------------------------------------------------------
# Kernel D: BN3 + identity residual + final ReLU (row-tiled, lane-dense).
# ---------------------------------------------------------------------------
def _bn_add_relu_kernel(h_ref, scale_ref, shift_ref, x_ref, o_ref):
    h = h_ref[...].astype(jnp.float32)
    o_ref[...] = jnp.maximum(
        h * scale_ref[...] + shift_ref[...] + x_ref[...], 0.0)


def _bn_add_relu(h_rows, scale, shift, x_rows, *, tile):
    n_rows, c = h_rows.shape
    return pl.pallas_call(
        _bn_add_relu_kernel,
        grid=(n_rows // tile,),
        in_specs=[pl.BlockSpec((tile, c), lambda i: (i, 0)),
                  pl.BlockSpec((1, c), lambda i: (0, 0)),
                  pl.BlockSpec((1, c), lambda i: (0, 0)),
                  pl.BlockSpec((tile, c), lambda i: (i, 0))],
        out_specs=pl.BlockSpec((tile, c), lambda i: (i, 0)),
        out_shape=jax.ShapeDtypeStruct((n_rows, c), jnp.float32),
        compiler_params=pltpu.CompilerParams(
            dimension_semantics=("parallel",),
            vmem_limit_bytes=_VMEM_LIMIT),
    )(h_rows, scale, shift, x_rows)


def _finalize_bn(stats, gamma, beta, n_rows):
    """(sum, sum_sq) -> BN scale/shift so normalization is one FMA pass.

    NOTE: E[x^2] - E[x]^2 from f32 accumulators is cancellation-prone for very
    large, strongly offset activations; acceptable here (post-conv, ~zero-mean).
    """
    mean = stats[0] / n_rows
    var = jnp.maximum(stats[1] / n_rows - mean * mean, 0.0)   # biased variance
    scale = gamma * jax.lax.rsqrt(var + _EPS)
    shift = beta - mean * scale
    return scale.reshape(1, -1), shift.reshape(1, -1)


@jax.jit
def bottleneck_forward(x_nchw, params):
    """x_nchw: (N, C, H, W) float32 (PyTorch layout).  Returns NCHW float32."""
    x = jnp.transpose(x_nchw, (0, 2, 3, 1))                   # NHWC
    N, H, W, cin = x.shape
    width = params["w1"].shape[1]
    cout = params["w3"].shape[1]
    assert cin == cout, "identity residual (downsample=None) needs Cin == Cout"

    cin_p = _round_up(cin, _LANE)
    wid_p = _round_up(width, _LANE)
    cout_p = _round_up(cout, _LANE)

    # Lane-pad channels to multiples of 128 (skip the copy when already
    # aligned, e.g. real ResNet channel counts).  Zero-padded channels stay
    # exactly zero through every stage and are sliced off at the end.
    if cin_p != cin:
        x = jnp.pad(x, ((0, 0), (0, 0), (0, 0), (0, cin_p - cin)))
    w1 = jnp.pad(params["w1"], ((0, cin_p - cin), (0, wid_p - width))
                 ).astype(jnp.bfloat16)
    w2 = jnp.pad(params["w2"], ((0, 0), (0, 0), (0, wid_p - width),
                                (0, wid_p - width))).astype(jnp.bfloat16)
    w3 = jnp.pad(params["w3"], ((0, wid_p - width), (0, cout_p - cout))
                 ).astype(jnp.bfloat16)
    g1 = jnp.pad(params["g1"], (0, wid_p - width), constant_values=1.0)
    b1 = jnp.pad(params["b1"], (0, wid_p - width))
    g2 = jnp.pad(params["g2"], (0, wid_p - width), constant_values=1.0)
    b2 = jnp.pad(params["b2"], (0, wid_p - width))
    g3 = jnp.pad(params["g3"], (0, cout_p - cout), constant_values=1.0)
    b3 = jnp.pad(params["b3"], (0, cout_p - cout))

    n_rows = N * H * W
    x_rows = x.reshape(n_rows, cin_p)
    # Row tile sized against a VMEM budget at the widest pass (f32 input +
    # bf16 output, double-buffered).
    bytes_per_row = 2 * (max(cin_p, wid_p, cout_p) * 4 + max(wid_p, cout_p) * 2)
    tile, n_rows_p = _pick_row_tile(n_rows, bytes_per_row)
    if n_rows_p != n_rows:
        x_rows_p = jnp.pad(x_rows, ((0, n_rows_p - n_rows), (0, 0)))
    else:
        x_rows_p = x_rows

    ones = jnp.ones((1, cin_p), jnp.float32)
    zeros = jnp.zeros((1, cin_p), jnp.float32)

    # Pass 1: conv1 (1x1) + partial stats for BN1 (bf16 h1).
    h1, s1 = _conv1x1_stats(x_rows_p, ones, zeros, w1,
                            apply_bn_relu=False, tile=tile, n_valid_rows=n_rows)
    scale1, shift1 = _finalize_bn(s1, g1, b1, float(n_rows))

    # Pass 2: BN1 + ReLU + conv2 (3x3, pad=1) + partial stats for BN2 (bf16 h2).
    h1_img = h1[:n_rows].reshape(N, H, W, wid_p)
    h2, s2 = _conv3x3_stats(h1_img, scale1, shift1, w2)
    scale2, shift2 = _finalize_bn(s2, g2, b2, float(n_rows))

    # Pass 3: BN2 + ReLU + conv3 (1x1) + partial stats for BN3 (bf16 h3).
    h2_rows = h2.reshape(n_rows, wid_p)
    if n_rows_p != n_rows:
        h2_rows = jnp.pad(h2_rows, ((0, n_rows_p - n_rows), (0, 0)))
    h3, s3 = _conv1x1_stats(h2_rows, scale2, shift2, w3,
                            apply_bn_relu=True, tile=tile, n_valid_rows=n_rows)
    scale3, shift3 = _finalize_bn(s3, g3, b3, float(n_rows))

    # Pass 4: BN3 + identity residual (f32 x re-read here, not kept live) + ReLU.
    out_rows = _bn_add_relu(h3, scale3, shift3, x_rows_p, tile=tile)

    out = out_rows[:n_rows].reshape(N, H, W, cout_p)[..., :cout]
    return jnp.transpose(out, (0, 3, 1, 2))                   # NCHW


# ---------------------- pure-JAX f32 reference (for checking) ----------------
def _bn_nhwc(x, g, b):
    mean = jnp.mean(x, axis=(0, 1, 2), keepdims=True)
    var = jnp.mean((x - mean) ** 2, axis=(0, 1, 2), keepdims=True)
    return (x - mean) * jax.lax.rsqrt(var + _EPS) * g.reshape(1, 1, 1, -1) \
        + b.reshape(1, 1, 1, -1)


def bottleneck_reference(x_nchw, p):
    dn = ("NHWC", "HWIO", "NHWC")
    x = jnp.transpose(x_nchw, (0, 2, 3, 1))
    h = jax.lax.conv_general_dilated(
        x, p["w1"].reshape(1, 1, *p["w1"].shape), (1, 1), "VALID",
        dimension_numbers=dn)
    h = jax.nn.relu(_bn_nhwc(h, p["g1"], p["b1"]))
    h = jax.lax.conv_general_dilated(h, p["w2"], (1, 1), "SAME",
                                     dimension_numbers=dn)
    h = jax.nn.relu(_bn_nhwc(h, p["g2"], p["b2"]))
    h = jax.lax.conv_general_dilated(
        h, p["w3"].reshape(1, 1, *p["w3"].shape), (1, 1), "VALID",
        dimension_numbers=dn)
    h = _bn_nhwc(h, p["g3"], p["b3"])
    return jnp.transpose(jax.nn.relu(h + x), (0, 3, 1, 2))


def init_params(key, in_channel, out_channel, width_per_group=64, groups=1,
                expansion=4):
    width = int(out_channel * (width_per_group / 64.0)) * groups
    cout = out_channel * expansion
    k1, k2, k3 = jax.random.split(key, 3)
    # Conv weights stored ready for the kernel:
    #   1x1 conv (out,in,1,1) -> (in,out);  3x3 conv (out,in,3,3) -> (3,3,in,out)
    return {
        "w1": jax.random.normal(k1, (in_channel, width), jnp.float32) * 0.1,
        "w2": jax.random.normal(k2, (3, 3, width, width), jnp.float32) * 0.1,
        "w3": jax.random.normal(k3, (width, cout), jnp.float32) * 0.1,
        "g1": jnp.ones((width,), jnp.float32),
        "b1": jnp.zeros((width,), jnp.float32),
        "g2": jnp.ones((width,), jnp.float32),
        "b2": jnp.zeros((width,), jnp.float32),
        "g3": jnp.ones((cout,), jnp.float32),
        "b3": jnp.zeros((cout,), jnp.float32),
    }


if __name__ == "__main__":
    # in_channel == out_channel * expansion so the identity path
    # (downsample=None) is shape-compatible, as in ResNet inner blocks.
    N, in_channel, out_channel, H, W = 2, 32, 8, 16, 16

    key = jax.random.PRNGKey(0)
    kx, kp = jax.random.split(key)
    x = jax.random.normal(kx, (N, in_channel, H, W), jnp.float32)  # NCHW
    params = init_params(kp, in_channel, out_channel)

    out = jax.block_until_ready(bottleneck_forward(x, params))
    ref = jax.block_until_ready(bottleneck_reference(x, params))

    # Tolerance accounts for bf16 matmul operands + bf16 inter-pass
    # activations vs the all-f32 reference.
    np.testing.assert_allclose(np.asarray(out), np.asarray(ref),
                               rtol=5e-2, atol=5e-2)
    print("KERNEL_OK")
</pallas_src>

<mosaic_0001>
module attributes {stable_mosaic.version = 11 : i64} {
  func.func @_conv1x1_stats_kernel(%arg0: i32, %arg1: memref<512x128xf32, #tpu.memory_space<vmem>>, %arg2: memref<1x128xf32, #tpu.memory_space<vmem>>, %arg3: memref<1x128xf32, #tpu.memory_space<vmem>>, %arg4: memref<128x128xbf16, #tpu.memory_space<vmem>>, %arg5: memref<512x128xbf16, #tpu.memory_space<vmem>>, %arg6: memref<1x2x128xf32, #tpu.memory_space<vmem>>) attributes {dimension_semantics = [#tpu.dimension_semantics<parallel>], iteration_bounds = array<i64: 1>, scalar_prefetch = 0 : i64, scratch_operands = 0 : i64, tpu.core_type = #tpu.core_type<tc>, window_params = [{transform_indices = @transform_0, window_bounds = array<i64: 512, 128>}, {pipeline_mode = #tpu.pipeline_mode<synchronous>, transform_indices = @transform_1, window_bounds = array<i64: 1, 128>}, {pipeline_mode = #tpu.pipeline_mode<synchronous>, transform_indices = @transform_2, window_bounds = array<i64: 1, 128>}, {pipeline_mode = #tpu.pipeline_mode<synchronous>, transform_indices = @transform_3, window_bounds = array<i64: 128, 128>}, {transform_indices = @transform_4, window_bounds = array<i64: 512, 128>}, {transform_indices = @transform_5, window_bounds = array<i64: 1, 2, 128>}]} {
    %c0 = arith.constant 0 : index
    %c0_0 = arith.constant 0 : index
    %0 = vector.load %arg1[%c0, %c0_0] : memref<512x128xf32, #tpu.memory_space<vmem>>, vector<512x128xf32>
    %1 = arith.truncf %0 : vector<512x128xf32> to vector<512x128xbf16>
    %c0_1 = arith.constant 0 : index
    %c0_2 = arith.constant 0 : index
    %2 = vector.load %arg4[%c0_1, %c0_2] : memref<128x128xbf16, #tpu.memory_space<vmem>>, vector<128x128xbf16>
    %cst = arith.constant dense<0.000000e+00> : vector<512x128xf32>
    %3 = tpu.matmul %1, %2, %cst {dimension_numbers = #tpu.dot_dimension_numbers<[1], [0], [0], [1], [0, 0, 1, 1], [], []>} : vector<512x128xbf16>, vector<128x128xbf16>, vector<512x128xf32> -> vector<512x128xf32>
    %4 = arith.truncf %3 : vector<512x128xf32> to vector<512x128xbf16>
    %c0_3 = arith.constant 0 : index
    %c0_4 = arith.constant 0 : index
    %5 = vector.load %arg5[%c0_3, %c0_4] : memref<512x128xbf16, #tpu.memory_space<vmem>>, vector<512x128xbf16>
    tpu.vector_store %arg5[%c0_3, %c0_4], %4 {strides = array<i32>} : memref<512x128xbf16, #tpu.memory_space<vmem>>, vector<512x128xbf16>,
    %cst_5 = arith.constant dense<0.000000e+00> : vector<128xf32>
    %6 = vector.multi_reduction <add>, %3, %cst_5 [0] : vector<512x128xf32> to vector<128xf32>
    %7 = vector.shape_cast %6 : vector<128xf32> to vector<1x128xf32>
    %8 = arith.mulf %3, %3 : vector<512x128xf32>
    %cst_6 = arith.constant dense<0.000000e+00> : vector<128xf32>
    %9 = vector.multi_reduction <add>, %8, %cst_6 [0] : vector<512x128xf32> to vector<128xf32>
    %10 = vector.shape_cast %9 : vector<128xf32> to vector<1x128xf32>
    %11 = tpu.concatenate %7, %10 in 0 : vector<1x128xf32>, vector<1x128xf32> -> vector<2x128xf32>
    %12 = vector.shape_cast %11 : vector<2x128xf32> to vector<1x2x128xf32>
    %c0_7 = arith.constant 0 : index
    %c0_8 = arith.constant 0 : index
    %c0_9 = arith.constant 0 : index
    %13 = vector.load %arg6[%c0_7, %c0_8, %c0_9] : memref<1x2x128xf32, #tpu.memory_space<vmem>>, vector<1x2x128xf32>
    tpu.vector_store %arg6[%c0_7, %c0_8, %c0_9], %12 {strides = array<i32>} : memref<1x2x128xf32, #tpu.memory_space<vmem>>, vector<1x2x128xf32>,
    return
  }
  func.func @transform_0(%arg0: i32) -> (i32, i32) {
    %c0_i32 = arith.constant 0 : i32
    %c0_i32_0 = arith.constant 0 : i32
    return %arg0, %c0_i32 : i32, i32
  }
  func.func @transform_1(%arg0: i32) -> (i32, i32) {
    %c0_i32 = arith.constant 0 : i32
    %c0_i32_0 = arith.constant 0 : i32
    %c0_i32_1 = arith.constant 0 : i32
    return %c0_i32, %c0_i32_0 : i32, i32
  }
  func.func @transform_2(%arg0: i32) -> (i32, i32) {
    %c0_i32 = arith.constant 0 : i32
    %c0_i32_0 = arith.constant 0 : i32
    %c0_i32_1 = arith.constant 0 : i32
    return %c0_i32, %c0_i32_0 : i32, i32
  }
  func.func @transform_3(%arg0: i32) -> (i32, i32) {
    %c0_i32 = arith.constant 0 : i32
    %c0_i32_0 = arith.constant 0 : i32
    %c0_i32_1 = arith.constant 0 : i32
    return %c0_i32, %c0_i32_0 : i32, i32
  }
  func.func @transform_4(%arg0: i32) -> (i32, i32) {
    %c0_i32 = arith.constant 0 : i32
    %c0_i32_0 = arith.constant 0 : i32
    return %arg0, %c0_i32 : i32, i32
  }
  func.func @transform_5(%arg0: i32) -> (i32, i32, i32) {
    %c0_i32 = arith.constant 0 : i32
    %c0_i32_0 = arith.constant 0 : i32
    %c0_i32_1 = arith.constant 0 : i32
    return %arg0, %c0_i32, %c0_i32_0 : i32, i32, i32
  }
}

module attributes {stable_mosaic.version = 11 : i64} {
  func.func @_conv1x1_stats_kernel(%arg0: i32, %arg1: memref<512x128xbf16, #tpu.memory_space<vmem>>, %arg2: memref<1x128xf32, #tpu.memory_space<vmem>>, %arg3: memref<1x128xf32, #tpu.memory_space<vmem>>, %arg4: memref<128x128xbf16, #tpu.memory_space<vmem>>, %arg5: memref<512x128xbf16, #tpu.memory_space<vmem>>, %arg6: memref<1x2x128xf32, #tpu.memory_space<vmem>>) attributes {dimension_semantics = [#tpu.dimension_semantics<parallel>], iteration_bounds = array<i64: 1>, scalar_prefetch = 0 : i64, scratch_operands = 0 : i64, tpu.core_type = #tpu.core_type<tc>, window_params = [{transform_indices = @transform_0, window_bounds = array<i64: 512, 128>}, {pipeline_mode = #tpu.pipeline_mode<synchronous>, transform_indices = @transform_1, window_bounds = array<i64: 1, 128>}, {pipeline_mode = #tpu.pipeline_mode<synchronous>, transform_indices = @transform_2, window_bounds = array<i64: 1, 128>}, {pipeline_mode = #tpu.pipeline_mode<synchronous>, transform_indices = @transform_3, window_bounds = array<i64: 128, 128>}, {transform_indices = @transform_4, window_bounds = array<i64: 512, 128>}, {transform_indices = @transform_5, window_bounds = array<i64: 1, 2, 128>}]} {
    %c0 = arith.constant 0 : index
    %c0_0 = arith.constant 0 : index
    %0 = vector.load %arg1[%c0, %c0_0] : memref<512x128xbf16, #tpu.memory_space<vmem>>, vector<512x128xbf16>
    %1 = arith.extf %0 : vector<512x128xbf16> to vector<512x128xf32>
    %c0_1 = arith.constant 0 : index
    %c0_2 = arith.constant 0 : index
    %2 = vector.load %arg2[%c0_1, %c0_2] : memref<1x128xf32, #tpu.memory_space<vmem>>, vector<1x128xf32>
    %3 = vector.broadcast %2 : vector<1x128xf32> to vector<512x128xf32>
    %4 = arith.mulf %1, %3 : vector<512x128xf32>
    %c0_3 = arith.constant 0 : index
    %c0_4 = arith.constant 0 : index
    %5 = vector.load %arg3[%c0_3, %c0_4] : memref<1x128xf32, #tpu.memory_space<vmem>>, vector<1x128xf32>
    %6 = vector.broadcast %5 : vector<1x128xf32> to vector<512x128xf32>
    %7 = arith.addf %4, %6 : vector<512x128xf32>
    %cst = arith.constant 0.000000e+00 : f32
    %8 = vector.broadcast %cst : f32 to vector<512x128xf32>
    %9 = arith.maximumf %7, %8 : vector<512x128xf32>
    %10 = arith.truncf %9 : vector<512x128xf32> to vector<512x128xbf16>
    %c0_5 = arith.constant 0 : index
    %c0_6 = arith.constant 0 : index
    %11 = vector.load %arg4[%c0_5, %c0_6] : memref<128x128xbf16, #tpu.memory_space<vmem>>, vector<128x128xbf16>
    %cst_7 = arith.constant dense<0.000000e+00> : vector<512x128xf32>
    %12 = tpu.matmul %10, %11, %cst_7 {dimension_numbers = #tpu.dot_dimension_numbers<[1], [0], [0], [1], [0, 0, 1, 1], [], []>} : vector<512x128xbf16>, vector<128x128xbf16>, vector<512x128xf32> -> vector<512x128xf32>
    %13 = arith.truncf %12 : vector<512x128xf32> to vector<512x128xbf16>
    %c0_8 = arith.constant 0 : index
    %c0_9 = arith.constant 0 : index
    %14 = vector.load %arg5[%c0_8, %c0_9] : memref<512x128xbf16, #tpu.memory_space<vmem>>, vector<512x128xbf16>
    tpu.vector_store %arg5[%c0_8, %c0_9], %13 {strides = array<i32>} : memref<512x128xbf16, #tpu.memory_space<vmem>>, vector<512x128xbf16>,
    %cst_10 = arith.constant dense<0.000000e+00> : vector<128xf32>
    %15 = vector.multi_reduction <add>, %12, %cst_10 [0] : vector<512x128xf32> to vector<128xf32>
    %16 = vector.shape_cast %15 : vector<128xf32> to vector<1x128xf32>
    %17 = arith.mulf %12, %12 : vector<512x128xf32>
    %cst_11 = arith.constant dense<0.000000e+00> : vector<128xf32>
    %18 = vector.multi_reduction <add>, %17, %cst_11 [0] : vector<512x128xf32> to vector<128xf32>
    %19 = vector.shape_cast %18 : vector<128xf32> to vector<1x128xf32>
    %20 = tpu.concatenate %16, %19 in 0 : vector<1x128xf32>, vector<1x128xf32> -> vector<2x128xf32>
    %21 = vector.shape_cast %20 : vector<2x128xf32> to vector<1x2x128xf32>
    %c0_12 = arith.constant 0 : index
    %c0_13 = arith.constant 0 : index
    %c0_14 = arith.constant 0 : index
    %22 = vector.load %arg6[%c0_12, %c0_13, %c0_14] : memref<1x2x128xf32, #tpu.memory_space<vmem>>, vector<1x2x128xf32>
    tpu.vector_store %arg6[%c0_12, %c0_13, %c0_14], %21 {strides = array<i32>} : memref<1x2x128xf32, #tpu.memory_space<vmem>>, vector<1x2x128xf32>,
    return
  }
  func.func @transform_0(%arg0: i32) -> (i32, i32) {
    %c0_i32 = arith.constant 0 : i32
    %c0_i32_0 = arith.constant 0 : i32
    return %arg0, %c0_i32 : i32, i32
  }
  func.func @transform_1(%arg0: i32) -> (i32, i32) {
    %c0_i32 = arith.constant 0 : i32
    %c0_i32_0 = arith.constant 0 : i32
    %c0_i32_1 = arith.constant 0 : i32
    return %c0_i32, %c0_i32_0 : i32, i32
  }
  func.func @transform_2(%arg0: i32) -> (i32, i32) {
    %c0_i32 = arith.constant 0 : i32
    %c0_i32_0 = arith.constant 0 : i32
    %c0_i32_1 = arith.constant 0 : i32
    return %c0_i32, %c0_i32_0 : i32, i32
  }
  func.func @transform_3(%arg0: i32) -> (i32, i32) {
    %c0_i32 = arith.constant 0 : i32
    %c0_i32_0 = arith.constant 0 : i32
    %c0_i32_1 = arith.constant 0 : i32
    return %c0_i32, %c0_i32_0 : i32, i32
  }
  func.func @transform_4(%arg0: i32) -> (i32, i32) {
    %c0_i32 = arith.constant 0 : i32
    %c0_i32_0 = arith.constant 0 : i32
    return %arg0, %c0_i32 : i32, i32
  }
  func.func @transform_5(%arg0: i32) -> (i32, i32, i32) {
    %c0_i32 = arith.constant 0 : i32
    %c0_i32_0 = arith.constant 0 : i32
    %c0_i32_1 = arith.constant 0 : i32
    return %arg0, %c0_i32, %c0_i32_0 : i32, i32, i32
  }
}

module attributes {stable_mosaic.version = 11 : i64} {
  func.func @_conv3x3_stats_kernel(%arg0: i32, %arg1: memref<1x16x16x128xbf16, #tpu.memory_space<vmem>>, %arg2: memref<1x128xf32, #tpu.memory_space<vmem>>, %arg3: memref<1x128xf32, #tpu.memory_space<vmem>>, %arg4: memref<3x3x128x128xbf16, #tpu.memory_space<vmem>>, %arg5: memref<1x16x16x128xbf16, #tpu.memory_space<vmem>>, %arg6: memref<1x2x128xf32, #tpu.memory_space<vmem>>, %arg7: memref<18x18x128xbf16, #tpu.memory_space<vmem>>) attributes {dimension_semantics = [#tpu.dimension_semantics<parallel>], iteration_bounds = array<i64: 2>, scalar_prefetch = 0 : i64, scratch_operands = 1 : i64, tpu.core_type = #tpu.core_type<tc>, window_params = [{transform_indices = @transform_0, window_bounds = array<i64: 1, 16, 16, 128>}, {pipeline_mode = #tpu.pipeline_mode<synchronous>, transform_indices = @transform_1, window_bounds = array<i64: 1, 128>}, {pipeline_mode = #tpu.pipeline_mode<synchronous>, transform_indices = @transform_2, window_bounds = array<i64: 1, 128>}, {pipeline_mode = #tpu.pipeline_mode<synchronous>, transform_indices = @transform_3, window_bounds = array<i64: 3, 3, 128, 128>}, {transform_indices = @transform_4, window_bounds = array<i64: 1, 16, 16, 128>}, {transform_indices = @transform_5, window_bounds = array<i64: 1, 2, 128>}]} {
    %c0 = arith.constant 0 : index
    %c0_0 = arith.constant 0 : index
    %c0_1 = arith.constant 0 : index
    %c0_2 = arith.constant 0 : index
    %0 = vector.load %arg1[%c0, %c0_0, %c0_1, %c0_2] : memref<1x16x16x128xbf16, #tpu.memory_space<vmem>>, vector<1x16x16x128xbf16>
    %1 = vector.shape_cast %0 : vector<1x16x16x128xbf16> to vector<16x16x128xbf16>
    %2 = arith.extf %1 : vector<16x16x128xbf16> to vector<16x16x128xf32>
    %c0_3 = arith.constant 0 : index
    %c0_4 = arith.constant 0 : index
    %3 = vector.load %arg2[%c0_3, %c0_4] : memref<1x128xf32, #tpu.memory_space<vmem>>, vector<1x128xf32>
    %4 = vector.shape_cast %3 : vector<1x128xf32> to vector<1x1x128xf32>
    %5 = vector.broadcast %4 : vector<1x1x128xf32> to vector<16x16x128xf32>
    %6 = arith.mulf %2, %5 : vector<16x16x128xf32>
    %c0_5 = arith.constant 0 : index
    %c0_6 = arith.constant 0 : index
    %7 = vector.load %arg3[%c0_5, %c0_6] : memref<1x128xf32, #tpu.memory_space<vmem>>, vector<1x128xf32>
    %8 = vector.shape_cast %7 : vector<1x128xf32> to vector<1x1x128xf32>
    %9 = vector.broadcast %8 : vector<1x1x128xf32> to vector<16x16x128xf32>
    %10 = arith.addf %6, %9 : vector<16x16x128xf32>
    %cst = arith.constant 0.000000e+00 : f32
    %11 = vector.broadcast %cst : f32 to vector<16x16x128xf32>
    %12 = arith.maximumf %10, %11 : vector<16x16x128xf32>
    %cst_7 = arith.constant 0.000000e+00 : bf16
    %13 = vector.broadcast %cst_7 : bf16 to vector<1x18x128xbf16>
    %cst_8 = arith.constant 0.000000e+00 : bf16
    %14 = vector.broadcast %cst_8 : bf16 to vector<16x1x128xbf16>
    %c0_9 = arith.constant 0 : index
    %c0_10 = arith.constant 0 : index
    %c0_11 = arith.constant 0 : index
    %15 = vector.load %arg7[%c0_9, %c0_10, %c0_11] : memref<18x18x128xbf16, #tpu.memory_space<vmem>>, vector<1x18x128xbf16>
    tpu.vector_store %arg7[%c0_9, %c0_10, %c0_11], %13 {strides = array<i32>} : memref<18x18x128xbf16, #tpu.memory_space<vmem>>, vector<1x18x128xbf16>,
    %c17 = arith.constant 17 : index
    %c0_12 = arith.constant 0 : index
    %c0_13 = arith.constant 0 : index
    %16 = vector.load %arg7[%c17, %c0_12, %c0_13] : memref<18x18x128xbf16, #tpu.memory_space<vmem>>, vector<1x18x128xbf16>
    tpu.vector_store %arg7[%c17, %c0_12, %c0_13], %13 {strides = array<i32>} : memref<18x18x128xbf16, #tpu.memory_space<vmem>>, vector<1x18x128xbf16>,
    %c1 = arith.constant 1 : index
    %c0_14 = arith.constant 0 : index
    %c0_15 = arith.constant 0 : index
    %17 = vector.load %arg7[%c1, %c0_14, %c0_15] : memref<18x18x128xbf16, #tpu.memory_space<vmem>>, vector<16x1x128xbf16>
    tpu.vector_store %arg7[%c1, %c0_14, %c0_15], %14 {strides = array<i32>} : memref<18x18x128xbf16, #tpu.memory_space<vmem>>, vector<16x1x128xbf16>,
    %c1_16 = arith.constant 1 : index
    %c17_17 = arith.constant 17 : index
    %c0_18 = arith.constant 0 : index
    %18 = vector.load %arg7[%c1_16, %c17_17, %c0_18] : memref<18x18x128xbf16, #tpu.memory_space<vmem>>, vector<16x1x128xbf16>
    tpu.vector_store %arg7[%c1_16, %c17_17, %c0_18], %14 {strides = array<i32>} : memref<18x18x128xbf16, #tpu.memory_space<vmem>>, vector<16x1x128xbf16>,
    %19 = arith.truncf %12 : vector<16x16x128xf32> to vector<16x16x128xbf16>
    %c1_19 = arith.constant 1 : index
    %c1_20 = arith.constant 1 : index
    %c0_21 = arith.constant 0 : index
    %20 = vector.load %arg7[%c1_19, %c1_20, %c0_21] : memref<18x18x128xbf16, #tpu.memory_space<vmem>>, vector<16x16x128xbf16>
    tpu.vector_store %arg7[%c1_19, %c1_20, %c0_21], %19 {strides = array<i32>} : memref<18x18x128xbf16, #tpu.memory_space<vmem>>, vector<16x16x128xbf16>,
    %c0_22 = arith.constant 0 : index
    %c0_23 = arith.constant 0 : index
    %c0_24 = arith.constant 0 : index
    %21 = vector.load %arg7[%c0_22, %c0_23, %c0_24] : memref<18x18x128xbf16, #tpu.memory_space<vmem>>, vector<18x16x128xbf16>
    %22 = vector.extract_strided_slice %21 {offsets = [0, 0, 0], sizes = [16, 16, 128], strides = [1, 1, 1]} : vector<18x16x128xbf16> to vector<16x16x128xbf16>
    %23 = vector.shape_cast %22 : vector<16x16x128xbf16> to vector<256x128xbf16>
    %c0_25 = arith.constant 0 : index
    %c0_26 = arith.constant 0 : index
    %c0_27 = arith.constant 0 : index
    %c0_28 = arith.constant 0 : index
    %24 = vector.load %arg4[%c0_25, %c0_26, %c0_27, %c0_28] : memref<3x3x128x128xbf16, #tpu.memory_space<vmem>>, vector<1x1x128x128xbf16>
    %25 = vector.shape_cast %24 : vector<1x1x128x128xbf16> to vector<128x128xbf16>
    %cst_29 = arith.constant dense<0.000000e+00> : vector<256x128xf32>
    %26 = tpu.matmul %23, %25, %cst_29 {dimension_numbers = #tpu.dot_dimension_numbers<[1], [0], [0], [1], [0, 0, 1, 1], [], []>} : vector<256x128xbf16>, vector<128x128xbf16>, vector<256x128xf32> -> vector<256x128xf32>
    %27 = vector.extract_strided_slice %21 {offsets = [1, 0, 0], sizes = [16, 16, 128], strides = [1, 1, 1]} : vector<18x16x128xbf16> to vector<16x16x128xbf16>
    %28 = vector.shape_cast %27 : vector<16x16x128xbf16> to vector<256x128xbf16>
    %c1_30 = arith.constant 1 : index
    %c0_31 = arith.constant 0 : index
    %c0_32 = arith.constant 0 : index
    %c0_33 = arith.constant 0 : index
    %29 = vector.load %arg4[%c1_30, %c0_31, %c0_32, %c0_33] : memref<3x3x128x128xbf16, #tpu.memory_space<vmem>>, vector<1x1x128x128xbf16>
    %30 = vector.shape_cast %29 : vector<1x1x128x128xbf16> to vector<128x128xbf16>
    %cst_34 = arith.constant dense<0.000000e+00> : vector<256x128xf32>
    %31 = tpu.matmul %28, %30, %cst_34 {dimension_numbers = #tpu.dot_dimension_numbers<[1], [0], [0], [1], [0, 0, 1, 1], [], []>} : vector<256x128xbf16>, vector<128x128xbf16>, vector<256x128xf32> -> vector<256x128xf32>
    %32 = arith.addf %26, %31 : vector<256x128xf32>
    %33 = vector.extract_strided_slice %21 {offsets = [2, 0, 0], sizes = [16, 16, 128], strides = [1, 1, 1]} : vector<18x16x128xbf16> to vector<16x16x128xbf16>
    %34 = vector.shape_cast %33 : vector<16x16x128xbf16> to vector<256x128xbf16>
    %c2 = arith.constant 2 : index
    %c0_35 = arith.constant 0 : index
    %c0_36 = arith.constant 0 : index
    %c0_37 = arith.constant 0 : index
    %35 = vector.load %arg4[%c2, %c0_35, %c0_36, %c0_37] : memref<3x3x128x128xbf16, #tpu.memory_space<vmem>>, vector<1x1x128x128xbf16>
    %36 = vector.shape_cast %35 : vector<1x1x128x128xbf16> to vector<128x128xbf16>
    %cst_38 = arith.constant dense<0.000000e+00> : vector<256x128xf32>
    %37 = tpu.matmul %34, %36, %cst_38 {dimension_numbers = #tpu.dot_dimension_numbers<[1], [0], [0], [1], [0, 0, 1, 1], [], []>} : vector<256x128xbf16>, vector<128x128xbf16>, vector<256x128xf32> -> vector<256x128xf32>
    %38 = arith.addf %32, %37 : vector<256x128xf32>
    %c0_39 = arith.constant 0 : index
    %c1_40 = arith.constant 1 : index
    %c0_41 = arith.constant 0 : index
    %39 = vector.load %arg7[%c0_39, %c1_40, %c0_41] : memref<18x18x128xbf16, #tpu.memory_space<vmem>>, vector<18x16x128xbf16>
    %40 = vector.extract_strided_slice %39 {offsets = [0, 0, 0], sizes = [16, 16, 128], strides = [1, 1, 1]} : vector<18x16x128xbf16> to vector<16x16x128xbf16>
    %41 = vector.shape_cast %40 : vector<16x16x128xbf16> to vector<256x128xbf16>
    %c0_42 = arith.constant 0 : index
    %c1_43 = arith.constant 1 : index
    %c0_44 = arith.constant 0 : index
    %c0_45 = arith.constant 0 : index
    %42 = vector.load %arg4[%c0_42, %c1_43, %c0_44, %c0_45] : memref<3x3x128x128xbf16, #tpu.memory_space<vmem>>, vector<1x1x128x128xbf16>
    %43 = vector.shape_cast %42 : vector<1x1x128x128xbf16> to vector<128x128xbf16>
    %cst_46 = arith.constant dense<0.000000e+00> : vector<256x128xf32>
    %44 = tpu.matmul %41, %43, %cst_46 {dimension_numbers = #tpu.dot_dimension_numbers<[1], [0], [0], [1], [0, 0, 1, 1], [], []>} : vector<256x128xbf16>, vector<128x128xbf16>, vector<256x128xf32> -> vector<256x128xf32>
    %45 = arith.addf %38, %44 : vector<256x128xf32>
    %46 = vector.extract_strided_slice %39 {offsets = [1, 0, 0], sizes = [16, 16, 128], strides = [1, 1, 1]} : vector<18x16x128xbf16> to vector<16x16x128xbf16>
    %47 = vector.shape_cast %46 : vector<16x16x128xbf16> to vector<256x128xbf16>
    %c1_47 = arith.constant 1 : index
    %c1_48 = arith.constant 1 : index
    %c0_49 = arith.constant 0 : index
    %c0_50 = arith.constant 0 : index
    %48 = vector.load %arg4[%c1_47, %c1_48, %c0_49, %c0_50] : memref<3x3x128x128xbf16, #tpu.memory_space<vmem>>, vector<1x1x128x128xbf16>
    %49 = vector.shape_cast %48 : vector<1x1x128x128xbf16> to vector<128x128xbf16>
    %cst_51 = arith.constant dense<0.000000e+00> : vector<256x128xf32>
    %50 = tpu.matmul %47, %49, %cst_51 {dimension_numbers = #tpu.dot_dimension_numbers<[1], [0], [0], [1], [0, 0, 1, 1], [], []>} : vector<256x128xbf16>, vector<128x128xbf16>, vector<256x128xf32> -> vector<256x128xf32>
    %51 = arith.addf %45, %50 : vector<256x128xf32>
    %52 = vector.extract_strided_slice %39 {offsets = [2, 0, 0], sizes = [16, 16, 128], strides = [1, 1, 1]} : vector<18x16x128xbf16> to vector<16x16x128xbf16>
    %53 = vector.shape_cast %52 : vector<16x16x128xbf16> to vector<256x128xbf16>
    %c2_52 = arith.constant 2 : index
    %c1_53 = arith.constant 1 : index
    %c0_54 = arith.constant 0 : index
    %c0_55 = arith.constant 0 : index
    %54 = vector.load %arg4[%c2_52, %c1_53, %c0_54, %c0_55] : memref<3x3x128x128xbf16, #tpu.memory_space<vmem>>, vector<1x1x128x128xbf16>
    %55 = vector.shape_cast %54 : vector<1x1x128x128xbf16> to vector<128x128xbf16>
    %cst_56 = arith.constant dense<0.000000e+00> : vector<256x128xf32>
    %56 = tpu.matmul %53, %55, %cst_56 {dimension_numbers = #tpu.dot_dimension_numbers<[1], [0], [0], [1], [0, 0, 1, 1], [], []>} : vector<256x128xbf16>, vector<128x128xbf16>, vector<256x128xf32> -> vector<256x128xf32>
    %57 = arith.addf %51, %56 : vector<256x128xf32>
    %c0_57 = arith.constant 0 : index
    %c2_58 = arith.constant 2 : index
    %c0_59 = arith.constant 0 : index
    %58 = vector.load %arg7[%c0_57, %c2_58, %c0_59] : memref<18x18x128xbf16, #tpu.memory_space<vmem>>, vector<18x16x128xbf16>
    %59 = vector.extract_strided_slice %58 {offsets = [0, 0, 0], sizes = [16, 16, 128], strides = [1, 1, 1]} : vector<18x16x128xbf16> to vector<16x16x128xbf16>
    %60 = vector.shape_cast %59 : vector<16x16x128xbf16> to vector<256x128xbf16>
    %c0_60 = arith.constant 0 : index
    %c2_61 = arith.constant 2 : index
    %c0_62 = arith.constant 0 : index
    %c0_63 = arith.constant 0 : index
    %61 = vector.load %arg4[%c0_60, %c2_61, %c0_62, %c0_63] : memref<3x3x128x128xbf16, #tpu.memory_space<vmem>>, vector<1x1x128x128xbf16>
    %62 = vector.shape_cast %61 : vector<1x1x128x128xbf16> to vector<128x128xbf16>
    %cst_64 = arith.constant dense<0.000000e+00> : vector<256x128xf32>
    %63 = tpu.matmul %60, %62, %cst_64 {dimension_numbers = #tpu.dot_dimension_numbers<[1], [0], [0], [1], [0, 0, 1, 1], [], []>} : vector<256x128xbf16>, vector<128x128xbf16>, vector<256x128xf32> -> vector<256x128xf32>
    %64 = arith.addf %57, %63 : vector<256x128xf32>
    %65 = vector.extract_strided_slice %58 {offsets = [1, 0, 0], sizes = [16, 16, 128], strides = [1, 1, 1]} : vector<18x16x128xbf16> to vector<16x16x128xbf16>
    %66 = vector.shape_cast %65 : vector<16x16x128xbf16> to vector<256x128xbf16>
    %c1_65 = arith.constant 1 : index
    %c2_66 = arith.constant 2 : index
    %c0_67 = arith.constant 0 : index
    %c0_68 = arith.constant 0 : index
    %67 = vector.load %arg4[%c1_65, %c2_66, %c0_67, %c0_68] : memref<3x3x128x128xbf16, #tpu.memory_space<vmem>>, vector<1x1x128x128xbf16>
    %68 = vector.shape_cast %67 : vector<1x1x128x128xbf16> to vector<128x128xbf16>
    %cst_69 = arith.constant dense<0.000000e+00> : vector<256x128xf32>
    %69 = tpu.matmul %66, %68, %cst_69 {dimension_numbers = #tpu.dot_dimension_numbers<[1], [0], [0], [1], [0, 0, 1, 1], [], []>} : vector<256x128xbf16>, vector<128x128xbf16>, vector<256x128xf32> -> vector<256x128xf32>
    %70 = arith.addf %64, %69 : vector<256x128xf32>
    %71 = vector.extract_strided_slice %58 {offsets = [2, 0, 0], sizes = [16, 16, 128], strides = [1, 1, 1]} : vector<18x16x128xbf16> to vector<16x16x128xbf16>
    %72 = vector.shape_cast %71 : vector<16x16x128xbf16> to vector<256x128xbf16>
    %c2_70 = arith.constant 2 : index
    %c2_71 = arith.constant 2 : index
    %c0_72 = arith.constant 0 : index
    %c0_73 = arith.constant 0 : index
    %73 = vector.load %arg4[%c2_70, %c2_71, %c0_72, %c0_73] : memref<3x3x128x128xbf16, #tpu.memory_space<vmem>>, vector<1x1x128x128xbf16>
    %74 = vector.shape_cast %73 : vector<1x1x128x128xbf16> to vector<128x128xbf16>
    %cst_74 = arith.constant dense<0.000000e+00> : vector<256x128xf32>
    %75 = tpu.matmul %72, %74, %cst_74 {dimension_numbers = #tpu.dot_dimension_numbers<[1], [0], [0], [1], [0, 0, 1, 1], [], []>} : vector<256x128xbf16>, vector<128x128xbf16>, vector<256x128xf32> -> vector<256x128xf32>
    %76 = arith.addf %70, %75 : vector<256x128xf32>
    %77 = vector.shape_cast %76 : vector<256x128xf32> to vector<1x16x16x128xf32>
    %78 = arith.truncf %77 : vector<1x16x16x128xf32> to vector<1x16x16x128xbf16>
    %c0_75 = arith.constant 0 : index
    %c0_76 = arith.constant 0 : index
    %c0_77 = arith.constant 0 : index
    %c0_78 = arith.constant 0 : index
    %79 = vector.load %arg5[%c0_75, %c0_76, %c0_77, %c0_78] : memref<1x16x16x128xbf16, #tpu.memory_space<vmem>>, vector<1x16x16x128xbf16>
    tpu.vector_store %arg5[%c0_75, %c0_76, %c0_77, %c0_78], %78 {strides = array<i32>} : memref<1x16x16x128xbf16, #tpu.memory_space<vmem>>, vector<1x16x16x128xbf16>,
    %cst_79 = arith.constant dense<0.000000e+00> : vector<128xf32>
    %80 = vector.multi_reduction <add>, %76, %cst_79 [0] : vector<256x128xf32> to vector<128xf32>
    %81 = vector.shape_cast %80 : vector<128xf32> to vector<1x128xf32>
    %82 = arith.mulf %76, %76 : vector<256x128xf32>
    %cst_80 = arith.constant dense<0.000000e+00> : vector<128xf32>
    %83 = vector.multi_reduction <add>, %82, %cst_80 [0] : vector<256x128xf32> to vector<128xf32>
    %84 = vector.shape_cast %83 : vector<128xf32> to vector<1x128xf32>
    %85 = tpu.concatenate %81, %84 in 0 : vector<1x128xf32>, vector<1x128xf32> -> vector<2x128xf32>
    %86 = vector.shape_cast %85 : vector<2x128xf32> to vector<1x2x128xf32>
    %c0_81 = arith.constant 0 : index
    %c0_82 = arith.constant 0 : index
    %c0_83 = arith.constant 0 : index
    %87 = vector.load %arg6[%c0_81, %c0_82, %c0_83] : memref<1x2x128xf32, #tpu.memory_space<vmem>>, vector<1x2x128xf32>
    tpu.vector_store %arg6[%c0_81, %c0_82, %c0_83], %86 {strides = array<i32>} : memref<1x2x128xf32, #tpu.memory_space<vmem>>, vector<1x2x128xf32>,
    return
  }
  func.func @transform_0(%arg0: i32) -> (i32, i32, i32, i32) {
    %c0_i32 = arith.constant 0 : i32
    %c0_i32_0 = arith.constant 0 : i32
    %c0_i32_1 = arith.constant 0 : i32
    %c0_i32_2 = arith.constant 0 : i32
    return %arg0, %c0_i32, %c0_i32_0, %c0_i32_1 : i32, i32, i32, i32
  }
  func.func @transform_1(%arg0: i32) -> (i32, i32) {
    %c0_i32 = arith.constant 0 : i32
    %c0_i32_0 = arith.constant 0 : i32
    %c0_i32_1 = arith.constant 0 : i32
    return %c0_i32, %c0_i32_0 : i32, i32
  }
  func.func @transform_2(%arg0: i32) -> (i32, i32) {
    %c0_i32 = arith.constant 0 : i32
    %c0_i32_0 = arith.constant 0 : i32
    %c0_i32_1 = arith.constant 0 : i32
    return %c0_i32, %c0_i32_0 : i32, i32
  }
  func.func @transform_3(%arg0: i32) -> (i32, i32, i32, i32) {
    %c0_i32 = arith.constant 0 : i32
    %c0_i32_0 = arith.constant 0 : i32
    %c0_i32_1 = arith.constant 0 : i32
    %c0_i32_2 = arith.constant 0 : i32
    %c0_i32_3 = arith.constant 0 : i32
    return %c0_i32, %c0_i32_0, %c0_i32_1, %c0_i32_2 : i32, i32, i32, i32
  }
  func.func @transform_4(%arg0: i32) -> (i32, i32, i32, i32) {
    %c0_i32 = arith.constant 0 : i32
    %c0_i32_0 = arith.constant 0 : i32
    %c0_i32_1 = arith.constant 0 : i32
    %c0_i32_2 = arith.constant 0 : i32
    return %arg0, %c0_i32, %c0_i32_0, %c0_i32_1 : i32, i32, i32, i32
  }
  func.func @transform_5(%arg0: i32) -> (i32, i32, i32) {
    %c0_i32 = arith.constant 0 : i32
    %c0_i32_0 = arith.constant 0 : i32
    %c0_i32_1 = arith.constant 0 : i32
    return %arg0, %c0_i32, %c0_i32_0 : i32, i32, i32
  }
}

module attributes {stable_mosaic.version = 11 : i64} {
  func.func @_bn_add_relu_kernel(%arg0: i32, %arg1: memref<512x128xbf16, #tpu.memory_space<vmem>>, %arg2: memref<1x128xf32, #tpu.memory_space<vmem>>, %arg3: memref<1x128xf32, #tpu.memory_space<vmem>>, %arg4: memref<512x128xf32, #tpu.memory_space<vmem>>, %arg5: memref<512x128xf32, #tpu.memory_space<vmem>>) attributes {dimension_semantics = [#tpu.dimension_semantics<parallel>], iteration_bounds = array<i64: 1>, scalar_prefetch = 0 : i64, scratch_operands = 0 : i64, tpu.core_type = #tpu.core_type<tc>, window_params = [{transform_indices = @transform_0, window_bounds = array<i64: 512, 128>}, {pipeline_mode = #tpu.pipeline_mode<synchronous>, transform_indices = @transform_1, window_bounds = array<i64: 1, 128>}, {pipeline_mode = #tpu.pipeline_mode<synchronous>, transform_indices = @transform_2, window_bounds = array<i64: 1, 128>}, {transform_indices = @transform_3, window_bounds = array<i64: 512, 128>}, {transform_indices = @transform_4, window_bounds = array<i64: 512, 128>}]} {
    %c0 = arith.constant 0 : index
    %c0_0 = arith.constant 0 : index
    %0 = vector.load %arg1[%c0, %c0_0] : memref<512x128xbf16, #tpu.memory_space<vmem>>, vector<512x128xbf16>
    %1 = arith.extf %0 : vector<512x128xbf16> to vector<512x128xf32>
    %c0_1 = arith.constant 0 : index
    %c0_2 = arith.constant 0 : index
    %2 = vector.load %arg2[%c0_1, %c0_2] : memref<1x128xf32, #tpu.memory_space<vmem>>, vector<1x128xf32>
    %3 = vector.broadcast %2 : vector<1x128xf32> to vector<512x128xf32>
    %4 = arith.mulf %1, %3 : vector<512x128xf32>
    %c0_3 = arith.constant 0 : index
    %c0_4 = arith.constant 0 : index
    %5 = vector.load %arg3[%c0_3, %c0_4] : memref<1x128xf32, #tpu.memory_space<vmem>>, vector<1x128xf32>
    %6 = vector.broadcast %5 : vector<1x128xf32> to vector<512x128xf32>
    %7 = arith.addf %4, %6 : vector<512x128xf32>
    %c0_5 = arith.constant 0 : index
    %c0_6 = arith.constant 0 : index
    %8 = vector.load %arg4[%c0_5, %c0_6] : memref<512x128xf32, #tpu.memory_space<vmem>>, vector<512x128xf32>
    %9 = arith.addf %7, %8 : vector<512x128xf32>
    %cst = arith.constant 0.000000e+00 : f32
    %10 = vector.broadcast %cst : f32 to vector<512x128xf32>
    %11 = arith.maximumf %9, %10 : vector<512x128xf32>
    %c0_7 = arith.constant 0 : index
    %c0_8 = arith.constant 0 : index
    %12 = vector.load %arg5[%c0_7, %c0_8] : memref<512x128xf32, #tpu.memory_space<vmem>>, vector<512x128xf32>
    tpu.vector_store %arg5[%c0_7, %c0_8], %11 {strides = array<i32>} : memref<512x128xf32, #tpu.memory_space<vmem>>, vector<512x128xf32>,
    return
  }
  func.func @transform_0(%arg0: i32) -> (i32, i32) {
    %c0_i32 = arith.constant 0 : i32
    %c0_i32_0 = arith.constant 0 : i32
    return %arg0, %c0_i32 : i32, i32
  }
  func.func @transform_1(%arg0: i32) -> (i32, i32) {
    %c0_i32 = arith.constant 0 : i32
    %c0_i32_0 = arith.constant 0 : i32
    %c0_i32_1 = arith.constant 0 : i32
    return %c0_i32, %c0_i32_0 : i32, i32
  }
  func.func @transform_2(%arg0: i32) -> (i32, i32) {
    %c0_i32 = arith.constant 0 : i32
    %c0_i32_0 = arith.constant 0 : i32
    %c0_i32_1 = arith.constant 0 : i32
    return %c0_i32, %c0_i32_0 : i32, i32
  }
  func.func @transform_3(%arg0: i32) -> (i32, i32) {
    %c0_i32 = arith.constant 0 : i32
    %c0_i32_0 = arith.constant 0 : i32
    return %arg0, %c0_i32 : i32, i32
  }
  func.func @transform_4(%arg0: i32) -> (i32, i32) {
    %c0_i32 = arith.constant 0 : i32
    %c0_i32_0 = arith.constant 0 : i32
    return %arg0, %c0_i32 : i32, i32
  }
}

</mosaic_0001>

<llo_original>
// kernel: bottleneck_forward.7
$region0: #{bottleneck_forward.7}
  #allocation0 [shape = 'u32[]', space=smem, size = 0x4, offset = 0x4, fixed_abs, tag = 'smem constant byte address 0x4 - core index']
  #allocation1 [shape = 'u32[144,128]{1,0:T(1,128)}', space=vmem, size = 0x12000, scoped, tag = 'internal scratch']
  %s0 = inlined_call_operand.vmem [shape: bf16[512,128], index: 0, kind: input, shape index: {}]
  %s1 = inlined_call_operand.vmem [shape: f32[1,128], index: 1, kind: input, shape index: {}]
  %s2 = inlined_call_operand.vmem [shape: f32[1,128], index: 2, kind: input, shape index: {}]
  %s3 = inlined_call_operand.vmem [shape: f32[512,128], index: 3, kind: input, shape index: {}]
  %s4 = inlined_call_operand.vmem [shape: f32[512,128], index: 4, kind: output, shape index: {}]
  %s5 = sld [smem:[#allocation0]]
  $region26: #{bottleneck_forward.7} parent=0
    _
  %s7 = ssub.s32 1, %s5
  %s8 = scalar_select 0, %s7, %s5
  // Predicated region
  $region2: #{bottleneck_forward.7} parent=0 // pred_check
    _
  $region3: #{bottleneck_forward.7} parent=0 // pred_check_branch
    %10 = sbr.rel (0) target = $region5
  $region4: #{bottleneck_forward.7} parent=0 // pred_region
    _
  $region5: #{bottleneck_forward.7} parent=0 // pred_fallthru
    _
  // Predicated region
  $region6: #{bottleneck_forward.7} parent=0 // pred_check
    _
  $region7: #{bottleneck_forward.7} parent=0 // pred_check_branch
    %12 = sbr.rel (0) target = $region9
  $region8: #{bottleneck_forward.7} parent=0 // pred_region
    _
  $region9: #{bottleneck_forward.7} parent=0 // pred_fallthru
    _
  // Predicated region
  $region10: #{bottleneck_forward.7} parent=0 // pred_check
    _
  $region11: #{bottleneck_forward.7} parent=0 // pred_check_branch
    %14 = sbr.rel (0) target = $region13
  $region12: #{bottleneck_forward.7} parent=0 // pred_region
    _
  $region13: #{bottleneck_forward.7} parent=0 // pred_fallthru
    _
  // Predicated region
  $region14: #{bottleneck_forward.7} parent=0 // pred_check
    _
  $region15: #{bottleneck_forward.7} parent=0 // pred_check_branch
    %16 = sbr.rel (0) target = $region17
  $region16: #{bottleneck_forward.7} parent=0 // pred_region
    _
  $region17: #{bottleneck_forward.7} parent=0 // pred_fallthru
    _
  %v17 = vld [vmem:[%s0] sm:$0xf]
  %v18 = vld [vmem:[%s0 + $0x4] sm:$0xf]
  %v19 = vld [vmem:[%s0 + $0x8] sm:$0xf]
  %v20 = vld [vmem:[%s0 + $0xc] sm:$0xf]
  %v21 = vld [vmem:[%s0 + $0x10] sm:$0xf]
  %v22 = vld [vmem:[%s0 + $0x14] sm:$0xf]
  %v23 = vld [vmem:[%s0 + $0x18] sm:$0xf]
  %v24 = vld [vmem:[%s0 + $0x1c] sm:$0xf]
  %v25 = vld [vmem:[%s0 + $0x20] sm:$0xf]
  %v26 = vld [vmem:[%s0 + $0x24] sm:$0xf]
  %v27 = vld [vmem:[%s0 + $0x28] sm:$0xf]
  %v28 = vld [vmem:[%s0 + $0x2c] sm:$0xf]
  %v29 = vld [vmem:[%s0 + $0x30] sm:$0xf]
  %v30 = vld [vmem:[%s0 + $0x34] sm:$0xf]
  %v31 = vld [vmem:[%s0 + $0x38] sm:$0xf]
  %v32 = vld [vmem:[%s0 + $0x3c] sm:$0xf]
  %v33 = vld [vmem:[%s0 + $0x40] sm:$0xf]
  %v34 = vld [vmem:[%s0 + $0x44] sm:$0xf]
  %v35 = vld [vmem:[%s0 + $0x48] sm:$0xf]
  %v36 = vld [vmem:[%s0 + $0x4c] sm:$0xf]
  %v37 = vld [vmem:[%s0 + $0x50] sm:$0xf]
  %v38 = vld [vmem:[%s0 + $0x54] sm:$0xf]
  %v39 = vld [vmem:[%s0 + $0x58] sm:$0xf]
  %v40 = vld [vmem:[%s0 + $0x5c] sm:$0xf]
  %v41 = vld [vmem:[%s0 + $0x60] sm:$0xf]
  %v42 = vld [vmem:[%s0 + $0x64] sm:$0xf]
  %v43 = vld [vmem:[%s0 + $0x68] sm:$0xf]
  %v44 = vld [vmem:[%s0 + $0x6c] sm:$0xf]
  %v45 = vld [vmem:[%s0 + $0x70] sm:$0xf]
  %v46 = vld [vmem:[%s0 + $0x74] sm:$0xf]
  %v47 = vld [vmem:[%s0 + $0x78] sm:$0xf]
  %v48 = vld [vmem:[%s0 + $0x7c] sm:$0xf]
  %v49 = vld [vmem:[%s0 + $0x80] sm:$0xf]
  %v50 = vld [vmem:[%s0 + $0x84] sm:$0xf]
  %v51 = vld [vmem:[%s0 + $0x88] sm:$0xf]
  %v52 = vld [vmem:[%s0 + $0x8c] sm:$0xf]
  %v53 = vld [vmem:[%s0 + $0x90] sm:$0xf]
  %v54 = vld [vmem:[%s0 + $0x94] sm:$0xf]
  %v55 = vld [vmem:[%s0 + $0x98] sm:$0xf]
  %v56 = vld [vmem:[%s0 + $0x9c] sm:$0xf]
  %v57 = vld [vmem:[%s0 + $0xa0] sm:$0xf]
  %v58 = vld [vmem:[%s0 + $0xa4] sm:$0xf]
  %v59 = vld [vmem:[%s0 + $0xa8] sm:$0xf]
  %v60 = vld [vmem:[%s0 + $0xac] sm:$0xf]
  %v61 = vld [vmem:[%s0 + $0xb0] sm:$0xf]
  %v62 = vld [vmem:[%s0 + $0xb4] sm:$0xf]
  %v63 = vld [vmem:[%s0 + $0xb8] sm:$0xf]
  %v64 = vld [vmem:[%s0 + $0xbc] sm:$0xf]
  %v65 = vld [vmem:[%s0 + $0xc0] sm:$0xf]
  %v66 = vld [vmem:[%s0 + $0xc4] sm:$0xf]
  %v67 = vld [vmem:[%s0 + $0xc8] sm:$0xf]
  %v68 = vld [vmem:[%s0 + $0xcc] sm:$0xf]
  %v69 = vld [vmem:[%s0 + $0xd0] sm:$0xf]
  %v70 = vld [vmem:[%s0 + $0xd4] sm:$0xf]
  %v71 = vld [vmem:[%s0 + $0xd8] sm:$0xf]
  %v72 = vld [vmem:[%s0 + $0xdc] sm:$0xf]
  %v73 = vld [vmem:[%s0 + $0xe0] sm:$0xf]
  %v74 = vld [vmem:[%s0 + $0xe4] sm:$0xf]
  %v75 = vld [vmem:[%s0 + $0xe8] sm:$0xf]
  %v76 = vld [vmem:[%s0 + $0xec] sm:$0xf]
  %v77 = vld [vmem:[%s0 + $0xf0] sm:$0xf]
  %v78 = vld [vmem:[%s0 + $0xf4] sm:$0xf]
  %v79 = vld [vmem:[%s0 + $0xf8] sm:$0xf]
  %v80 = vld [vmem:[%s0 + $0xfc] sm:$0xf]
  %v81 = vunpack.c.l.bf16 %v17
  %v82 = vunpack.c.l.bf16 %v18
  %v83 = vunpack.c.l.bf16 %v19
  %v84 = vunpack.c.l.bf16 %v20
  %v85 = vunpack.c.l.bf16 %v21
  %v86 = vunpack.c.l.bf16 %v22
  %v87 = vunpack.c.l.bf16 %v23
  %v88 = vunpack.c.l.bf16 %v24
  %v89 = vunpack.c.l.bf16 %v25
  %v90 = vunpack.c.l.bf16 %v26
  %v91 = vunpack.c.l.bf16 %v27
  %v92 = vunpack.c.l.bf16 %v28
  %v93 = vunpack.c.l.bf16 %v29
  %v94 = vunpack.c.l.bf16 %v30
  %v95 = vunpack.c.l.bf16 %v31
  %v96 = vunpack.c.l.bf16 %v32
  %v97 = vunpack.c.l.bf16 %v33
  %v98 = vunpack.c.l.bf16 %v34
  %v99 = vunpack.c.l.bf16 %v35
  %v100 = vunpack.c.l.bf16 %v36
  %v101 = vunpack.c.l.bf16 %v37
  %v102 = vunpack.c.l.bf16 %v38
  %v103 = vunpack.c.l.bf16 %v39
  %v104 = vunpack.c.l.bf16 %v40
  %v105 = vunpack.c.l.bf16 %v41
  %v106 = vunpack.c.l.bf16 %v42
  %v107 = vunpack.c.l.bf16 %v43
  %v108 = vunpack.c.l.bf16 %v44
  %v109 = vunpack.c.l.bf16 %v45
  %v110 = vunpack.c.l.bf16 %v46
  %v111 = vunpack.c.l.bf16 %v47
  %v112 = vunpack.c.l.bf16 %v48
  %v113 = vunpack.c.l.bf16 %v49
  %v114 = vunpack.c.l.bf16 %v50
  %v115 = vunpack.c.l.bf16 %v51
  %v116 = vunpack.c.l.bf16 %v52
  %v117 = vunpack.c.l.bf16 %v53
  %v118 = vunpack.c.l.bf16 %v54
  %v119 = vunpack.c.l.bf16 %v55
  %v120 = vunpack.c.l.bf16 %v56
  %v121 = vunpack.c.l.bf16 %v57
  %v122 = vunpack.c.l.bf16 %v58
  %v123 = vunpack.c.l.bf16 %v59
  %v124 = vunpack.c.l.bf16 %v60
  %v125 = vunpack.c.l.bf16 %v61
  %v126 = vunpack.c.l.bf16 %v62
  %v127 = vunpack.c.l.bf16 %v63
  %v128 = vunpack.c.l.bf16 %v64
  %v129 = vunpack.c.l.bf16 %v65
  %v130 = vunpack.c.l.bf16 %v66
  %v131 = vunpack.c.l.bf16 %v67
  %v132 = vunpack.c.l.bf16 %v68
  %v133 = vunpack.c.l.bf16 %v69
  %v134 = vunpack.c.l.bf16 %v70
  %v135 = vunpack.c.l.bf16 %v71
  %v136 = vunpack.c.l.bf16 %v72
  %v137 = vunpack.c.l.bf16 %v73
  %v138 = vunpack.c.l.bf16 %v74
  %v139 = vunpack.c.l.bf16 %v75
  %v140 = vunpack.c.l.bf16 %v76
  %v141 = vunpack.c.l.bf16 %v77
  %v142 = vunpack.c.l.bf16 %v78
  %v143 = vunpack.c.l.bf16 %v79
  %v144 = vunpack.c.l.bf16 %v80
  %v145 = vld [vmem:[%s1] sm:$0x1]
  %v147 = vlaneseq
  %v148 = vshrl.u32 %v147, 7
  %v149 = vsub.s32 0, %v148
  %v150 = vrot.slane %v145, %v149
  %v152 = vmul.f32 %v81, %v150
  %v153 = vmul.f32 %v82, %v150
  %v154 = vmul.f32 %v83, %v150
  %v155 = vmul.f32 %v84, %v150
  %v156 = vmul.f32 %v85, %v150
  %v157 = vmul.f32 %v86, %v150
  %v158 = vmul.f32 %v87, %v150
  %v159 = vmul.f32 %v88, %v150
  %v160 = vmul.f32 %v89, %v150
  %v161 = vmul.f32 %v90, %v150
  %v162 = vmul.f32 %v91, %v150
  %v163 = vmul.f32 %v92, %v150
  %v164 = vmul.f32 %v93, %v150
  %v165 = vmul.f32 %v94, %v150
  %v166 = vmul.f32 %v95, %v150
  %v167 = vmul.f32 %v96, %v150
  %v168 = vmul.f32 %v97, %v150
  %v169 = vmul.f32 %v98, %v150
  %v170 = vmul.f32 %v99, %v150
  %v171 = vmul.f32 %v100, %v150
  %v172 = vmul.f32 %v101, %v150
  %v173 = vmul.f32 %v102, %v150
  %v174 = vmul.f32 %v103, %v150
  %v175 = vmul.f32 %v104, %v150
  %v176 = vmul.f32 %v105, %v150
  %v177 = vmul.f32 %v106, %v150
  %v178 = vmul.f32 %v107, %v150
  %v179 = vmul.f32 %v108, %v150
  %v180 = vmul.f32 %v109, %v150
  %v181 = vmul.f32 %v110, %v150
  %v182 = vmul.f32 %v111, %v150
  %v183 = vmul.f32 %v112, %v150
  %v184 = vmul.f32 %v113, %v150
  %v185 = vmul.f32 %v114, %v150
  %v186 = vmul.f32 %v115, %v150
  %v187 = vmul.f32 %v116, %v150
  %v188 = vmul.f32 %v117, %v150
  %v189 = vmul.f32 %v118, %v150
  %v190 = vmul.f32 %v119, %v150
  %v191 = vmul.f32 %v120, %v150
  %v192 = vmul.f32 %v121, %v150
  %v193 = vmul.f32 %v122, %v150
  %v194 = vmul.f32 %v123, %v150
  %v195 = vmul.f32 %v124, %v150
  %v196 = vmul.f32 %v125, %v150
  %v197 = vmul.f32 %v126, %v150
  %v198 = vmul.f32 %v127, %v150
  %v199 = vmul.f32 %v128, %v150
  %v200 = vmul.f32 %v129, %v150
  %v201 = vmul.f32 %v130, %v150
  %v202 = vmul.f32 %v131, %v150
  %v203 = vmul.f32 %v132, %v150
  %v204 = vmul.f32 %v133, %v150
  %v205 = vmul.f32 %v134, %v150
  %v206 = vmul.f32 %v135, %v150
  %v207 = vmul.f32 %v136, %v150
  %v208 = vmul.f32 %v137, %v150
  %v209 = vmul.f32 %v138, %v150
  %v210 = vmul.f32 %v139, %v150
  %v211 = vmul.f32 %v140, %v150
  %v212 = vmul.f32 %v141, %v150
  %v213 = vmul.f32 %v142, %v150
  %v214 = vmul.f32 %v143, %v150
  %v215 = vmul.f32 %v144, %v150
  %v216 = vld [vmem:[%s2] sm:$0x1]
  %v218 = vlaneseq
  %v219 = vshrl.u32 %v218, 7
  %v220 = vsub.s32 0, %v219
  %v221 = vrot.slane %v216, %v220
  %v223 = vadd.f32 %v152, %v221
  %v224 = vadd.f32 %v153, %v221
  %v225 = vadd.f32 %v154, %v221
  %v226 = vadd.f32 %v155, %v221
  %v227 = vadd.f32 %v156, %v221
  %v228 = vadd.f32 %v157, %v221
  %v229 = vadd.f32 %v158, %v221
  %v230 = vadd.f32 %v159, %v221
  %v231 = vadd.f32 %v160, %v221
  %v232 = vadd.f32 %v161, %v221
  %v233 = vadd.f32 %v162, %v221
  %v234 = vadd.f32 %v163, %v221
  %v235 = vadd.f32 %v164, %v221
  %v236 = vadd.f32 %v165, %v221
  %v237 = vadd.f32 %v166, %v221
  %v238 = vadd.f32 %v167, %v221
  %v239 = vadd.f32 %v168, %v221
  %v240 = vadd.f32 %v169, %v221
  %v241 = vadd.f32 %v170, %v221
  %v242 = vadd.f32 %v171, %v221
  %v243 = vadd.f32 %v172, %v221
  %v244 = vadd.f32 %v173, %v221
  %v245 = vadd.f32 %v174, %v221
  %v246 = vadd.f32 %v175, %v221
  %v247 = vadd.f32 %v176, %v221
  %v248 = vadd.f32 %v177, %v221
  %v249 = vadd.f32 %v178, %v221
  %v250 = vadd.f32 %v179, %v221
  %v251 = vadd.f32 %v180, %v221
  %v252 = vadd.f32 %v181, %v221
  %v253 = vadd.f32 %v182, %v221
  %v254 = vadd.f32 %v183, %v221
  %v255 = vadd.f32 %v184, %v221
  %v256 = vadd.f32 %v185, %v221
  %v257 = vadd.f32 %v186, %v221
  %v258 = vadd.f32 %v187, %v221
  %v259 = vadd.f32 %v188, %v221
  %v260 = vadd.f32 %v189, %v221
  %v261 = vadd.f32 %v190, %v221
  %v262 = vadd.f32 %v191, %v221
  %v263 = vadd.f32 %v192, %v221
  %v264 = vadd.f32 %v193, %v221
  %v265 = vadd.f32 %v194, %v221
  %v266 = vadd.f32 %v195, %v221
  %v267 = vadd.f32 %v196, %v221
  %v268 = vadd.f32 %v197, %v221
  %v269 = vadd.f32 %v198, %v221
  %v270 = vadd.f32 %v199, %v221
  %v271 = vadd.f32 %v200, %v221
  %v272 = vadd.f32 %v201, %v221
  %v273 = vadd.f32 %v202, %v221
  %v274 = vadd.f32 %v203, %v221
  %v275 = vadd.f32 %v204, %v221
  %v276 = vadd.f32 %v205, %v221
  %v277 = vadd.f32 %v206, %v221
  %v278 = vadd.f32 %v207, %v221
  %v279 = vadd.f32 %v208, %v221
  %v280 = vadd.f32 %v209, %v221
  %v281 = vadd.f32 %v210, %v221
  %v282 = vadd.f32 %v211, %v221
  %v283 = vadd.f32 %v212, %v221
  %v284 = vadd.f32 %v213, %v221
  %v285 = vadd.f32 %v214, %v221
  %v286 = vadd.f32 %v215, %v221
  %v287 = vld [vmem:[%s3] sm:$0xff]
  %v288 = vld [vmem:[%s3 + $0x8] sm:$0xff]
  %v289 = vld [vmem:[%s3 + $0x10] sm:$0xff]
  %v290 = vld [vmem:[%s3 + $0x18] sm:$0xff]
  %v291 = vld [vmem:[%s3 + $0x20] sm:$0xff]
  %v292 = vld [vmem:[%s3 + $0x28] sm:$0xff]
  %v293 = vld [vmem:[%s3 + $0x30] sm:$0xff]
  %v294 = vld [vmem:[%s3 + $0x38] sm:$0xff]
  %v295 = vld [vmem:[%s3 + $0x40] sm:$0xff]
  %v296 = vld [vmem:[%s3 + $0x48] sm:$0xff]
  %v297 = vld [vmem:[%s3 + $0x50] sm:$0xff]
  %v298 = vld [vmem:[%s3 + $0x58] sm:$0xff]
  %v299 = vld [vmem:[%s3 + $0x60] sm:$0xff]
  %v300 = vld [vmem:[%s3 + $0x68] sm:$0xff]
  %v301 = vld [vmem:[%s3 + $0x70] sm:$0xff]
  %v302 = vld [vmem:[%s3 + $0x78] sm:$0xff]
  %v303 = vld [vmem:[%s3 + $0x80] sm:$0xff]
  %v304 = vld [vmem:[%s3 + $0x88] sm:$0xff]
  %v305 = vld [vmem:[%s3 + $0x90] sm:$0xff]
  %v306 = vld [vmem:[%s3 + $0x98] sm:$0xff]
  %v307 = vld [vmem:[%s3 + $0xa0] sm:$0xff]
  %v308 = vld [vmem:[%s3 + $0xa8] sm:$0xff]
  %v309 = vld [vmem:[%s3 + $0xb0] sm:$0xff]
  %v310 = vld [vmem:[%s3 + $0xb8] sm:$0xff]
  %v311 = vld [vmem:[%s3 + $0xc0] sm:$0xff]
  %v312 = vld [vmem:[%s3 + $0xc8] sm:$0xff]
  %v313 = vld [vmem:[%s3 + $0xd0] sm:$0xff]
  %v314 = vld [vmem:[%s3 + $0xd8] sm:$0xff]
  %v315 = vld [vmem:[%s3 + $0xe0] sm:$0xff]
  %v316 = vld [vmem:[%s3 + $0xe8] sm:$0xff]
  %v317 = vld [vmem:[%s3 + $0xf0] sm:$0xff]
  %v318 = vld [vmem:[%s3 + $0xf8] sm:$0xff]
  %v319 = vld [vmem:[%s3 + $0x100] sm:$0xff]
  %v320 = vld [vmem:[%s3 + $0x108] sm:$0xff]
  %v321 = vld [vmem:[%s3 + $0x110] sm:$0xff]
  %v322 = vld [vmem:[%s3 + $0x118] sm:$0xff]
  %v323 = vld [vmem:[%s3 + $0x120] sm:$0xff]
  %v324 = vld [vmem:[%s3 + $0x128] sm:$0xff]
  %v325 = vld [vmem:[%s3 + $0x130] sm:$0xff]
  %v326 = vld [vmem:[%s3 + $0x138] sm:$0xff]
  %v327 = vld [vmem:[%s3 + $0x140] sm:$0xff]
  %v328 = vld [vmem:[%s3 + $0x148] sm:$0xff]
  %v329 = vld [vmem:[%s3 + $0x150] sm:$0xff]
  %v330 = vld [vmem:[%s3 + $0x158] sm:$0xff]
  %v331 = vld [vmem:[%s3 + $0x160] sm:$0xff]
  %v332 = vld [vmem:[%s3 + $0x168] sm:$0xff]
  %v333 = vld [vmem:[%s3 + $0x170] sm:$0xff]
  %v334 = vld [vmem:[%s3 + $0x178] sm:$0xff]
  %v335 = vld [vmem:[%s3 + $0x180] sm:$0xff]
  %v336 = vld [vmem:[%s3 + $0x188] sm:$0xff]
  %v337 = vld [vmem:[%s3 + $0x190] sm:$0xff]
  %v338 = vld [vmem:[%s3 + $0x198] sm:$0xff]
  %v339 = vld [vmem:[%s3 + $0x1a0] sm:$0xff]
  %v340 = vld [vmem:[%s3 + $0x1a8] sm:$0xff]
  %v341 = vld [vmem:[%s3 + $0x1b0] sm:$0xff]
  %v342 = vld [vmem:[%s3 + $0x1b8] sm:$0xff]
  %v343 = vld [vmem:[%s3 + $0x1c0] sm:$0xff]
  %v344 = vld [vmem:[%s3 + $0x1c8] sm:$0xff]
  %v345 = vld [vmem:[%s3 + $0x1d0] sm:$0xff]
  %v346 = vld [vmem:[%s3 + $0x1d8] sm:$0xff]
  %v347 = vld [vmem:[%s3 + $0x1e0] sm:$0xff]
  %v348 = vld [vmem:[%s3 + $0x1e8] sm:$0xff]
  %v349 = vld [vmem:[%s3 + $0x1f0] sm:$0xff]
  %v350 = vld [vmem:[%s3 + $0x1f8] sm:$0xff]
  %v351 = vadd.f32 %v223, %v287
  %v352 = vadd.f32 %v224, %v288
  %v353 = vadd.f32 %v225, %v289
  %v354 = vadd.f32 %v226, %v290
  %v355 = vadd.f32 %v227, %v291
  %v356 = vadd.f32 %v228, %v292
  %v357 = vadd.f32 %v229, %v293
  %v358 = vadd.f32 %v230, %v294
  %v359 = vadd.f32 %v231, %v295
  %v360 = vadd.f32 %v232, %v296
  %v361 = vadd.f32 %v233, %v297
  %v362 = vadd.f32 %v234, %v298
  %v363 = vadd.f32 %v235, %v299
  %v364 = vadd.f32 %v236, %v300
  %v365 = vadd.f32 %v237, %v301
  %v366 = vadd.f32 %v238, %v302
  %v367 = vadd.f32 %v239, %v303
  %v368 = vadd.f32 %v240, %v304
  %v369 = vadd.f32 %v241, %v305
  %v370 = vadd.f32 %v242, %v306
  %v371 = vadd.f32 %v243, %v307
  %v372 = vadd.f32 %v244, %v308
  %v373 = vadd.f32 %v245, %v309
  %v374 = vadd.f32 %v246, %v310
  %v375 = vadd.f32 %v247, %v311
  %v376 = vadd.f32 %v248, %v312
  %v377 = vadd.f32 %v249, %v313
  %v378 = vadd.f32 %v250, %v314
  %v379 = vadd.f32 %v251, %v315
  %v380 = vadd.f32 %v252, %v316
  %v381 = vadd.f32 %v253, %v317
  %v382 = vadd.f32 %v254, %v318
  %v383 = vadd.f32 %v255, %v319
  %v384 = vadd.f32 %v256, %v320
  %v385 = vadd.f32 %v257, %v321
  %v386 = vadd.f32 %v258, %v322
  %v387 = vadd.f32 %v259, %v323
  %v388 = vadd.f32 %v260, %v324
  %v389 = vadd.f32 %v261, %v325
  %v390 = vadd.f32 %v262, %v326
  %v391 = vadd.f32 %v263, %v327
  %v392 = vadd.f32 %v264, %v328
  %v393 = vadd.f32 %v265, %v329
  %v394 = vadd.f32 %v266, %v330
  %v395 = vadd.f32 %v267, %v331
  %v396 = vadd.f32 %v268, %v332
  %v397 = vadd.f32 %v269, %v333
  %v398 = vadd.f32 %v270, %v334
  %v399 = vadd.f32 %v271, %v335
  %v400 = vadd.f32 %v272, %v336
  %v401 = vadd.f32 %v273, %v337
  %v402 = vadd.f32 %v274, %v338
  %v403 = vadd.f32 %v275, %v339
  %v404 = vadd.f32 %v276, %v340
  %v405 = vadd.f32 %v277, %v341
  %v406 = vadd.f32 %v278, %v342
  %v407 = vadd.f32 %v279, %v343
  %v408 = vadd.f32 %v280, %v344
  %v409 = vadd.f32 %v281, %v345
  %v410 = vadd.f32 %v282, %v346
  %v411 = vadd.f32 %v283, %v347
  %v412 = vadd.f32 %v284, %v348
  %v413 = vadd.f32 %v285, %v349
  %v414 = vadd.f32 %v286, %v350
  %v415 = vmax.f32 %v351, 0.0
  %v416 = vmax.f32 %v352, 0.0
  %v417 = vmax.f32 %v353, 0.0
  %v418 = vmax.f32 %v354, 0.0
  %v419 = vmax.f32 %v355, 0.0
  %v420 = vmax.f32 %v356, 0.0
  %v421 = vmax.f32 %v357, 0.0
  %v422 = vmax.f32 %v358, 0.0
  %v423 = vmax.f32 %v359, 0.0
  %v424 = vmax.f32 %v360, 0.0
  %v425 = vmax.f32 %v361, 0.0
  %v426 = vmax.f32 %v362, 0.0
  %v427 = vmax.f32 %v363, 0.0
  %v428 = vmax.f32 %v364, 0.0
  %v429 = vmax.f32 %v365, 0.0
  %v430 = vmax.f32 %v366, 0.0
  %v431 = vmax.f32 %v367, 0.0
  %v432 = vmax.f32 %v368, 0.0
  %v433 = vmax.f32 %v369, 0.0
  %v434 = vmax.f32 %v370, 0.0
  %v435 = vmax.f32 %v371, 0.0
  %v436 = vmax.f32 %v372, 0.0
  %v437 = vmax.f32 %v373, 0.0
  %v438 = vmax.f32 %v374, 0.0
  %v439 = vmax.f32 %v375, 0.0
  %v440 = vmax.f32 %v376, 0.0
  %v441 = vmax.f32 %v377, 0.0
  %v442 = vmax.f32 %v378, 0.0
  %v443 = vmax.f32 %v379, 0.0
  %v444 = vmax.f32 %v380, 0.0
  %v445 = vmax.f32 %v381, 0.0
  %v446 = vmax.f32 %v382, 0.0
  %v447 = vmax.f32 %v383, 0.0
  %v448 = vmax.f32 %v384, 0.0
  %v449 = vmax.f32 %v385, 0.0
  %v450 = vmax.f32 %v386, 0.0
  %v451 = vmax.f32 %v387, 0.0
  %v452 = vmax.f32 %v388, 0.0
  %v453 = vmax.f32 %v389, 0.0
  %v454 = vmax.f32 %v390, 0.0
  %v455 = vmax.f32 %v391, 0.0
  %v456 = vmax.f32 %v392, 0.0
  %v457 = vmax.f32 %v393, 0.0
  %v458 = vmax.f32 %v394, 0.0
  %v459 = vmax.f32 %v395, 0.0
  %v460 = vmax.f32 %v396, 0.0
  %v461 = vmax.f32 %v397, 0.0
  %v462 = vmax.f32 %v398, 0.0
  %v463 = vmax.f32 %v399, 0.0
  %v464 = vmax.f32 %v400, 0.0
  %v465 = vmax.f32 %v401, 0.0
  %v466 = vmax.f32 %v402, 0.0
  %v467 = vmax.f32 %v403, 0.0
  %v468 = vmax.f32 %v404, 0.0
  %v469 = vmax.f32 %v405, 0.0
  %v470 = vmax.f32 %v406, 0.0
  %v471 = vmax.f32 %v407, 0.0
  %v472 = vmax.f32 %v408, 0.0
  %v473 = vmax.f32 %v409, 0.0
  %v474 = vmax.f32 %v410, 0.0
  %v475 = vmax.f32 %v411, 0.0
  %v476 = vmax.f32 %v412, 0.0
  %v477 = vmax.f32 %v413, 0.0
  %v478 = vmax.f32 %v414, 0.0
  %479 = vst [vmem:[%s4] sm:$0xff] %v415
  %480 = vst [vmem:[%s4 + $0x8] sm:$0xff] %v416
  %481 = vst [vmem:[%s4 + $0x10] sm:$0xff] %v417
  %482 = vst [vmem:[%s4 + $0x18] sm:$0xff] %v418
  %483 = vst [vmem:[%s4 + $0x20] sm:$0xff] %v419
  %484 = vst [vmem:[%s4 + $0x28] sm:$0xff] %v420
  %485 = vst [vmem:[%s4 + $0x30] sm:$0xff] %v421
  %486 = vst [vmem:[%s4 + $0x38] sm:$0xff] %v422
  %487 = vst [vmem:[%s4 + $0x40] sm:$0xff] %v423
  %488 = vst [vmem:[%s4 + $0x48] sm:$0xff] %v424
  %489 = vst [vmem:[%s4 + $0x50] sm:$0xff] %v425
  %490 = vst [vmem:[%s4 + $0x58] sm:$0xff] %v426
  %491 = vst [vmem:[%s4 + $0x60] sm:$0xff] %v427
  %492 = vst [vmem:[%s4 + $0x68] sm:$0xff] %v428
  %493 = vst [vmem:[%s4 + $0x70] sm:$0xff] %v429
  %494 = vst [vmem:[%s4 + $0x78] sm:$0xff] %v430
  %495 = vst [vmem:[%s4 + $0x80] sm:$0xff] %v431
  %496 = vst [vmem:[%s4 + $0x88] sm:$0xff] %v432
  %497 = vst [vmem:[%s4 + $0x90] sm:$0xff] %v433
  %498 = vst [vmem:[%s4 + $0x98] sm:$0xff] %v434
  %499 = vst [vmem:[%s4 + $0xa0] sm:$0xff] %v435
  %500 = vst [vmem:[%s4 + $0xa8] sm:$0xff] %v436
  %501 = vst [vmem:[%s4 + $0xb0] sm:$0xff] %v437
  %502 = vst [vmem:[%s4 + $0xb8] sm:$0xff] %v438
  %503 = vst [vmem:[%s4 + $0xc0] sm:$0xff] %v439
  %504 = vst [vmem:[%s4 + $0xc8] sm:$0xff] %v440
  %505 = vst [vmem:[%s4 + $0xd0] sm:$0xff] %v441
  %506 = vst [vmem:[%s4 + $0xd8] sm:$0xff] %v442
  %507 = vst [vmem:[%s4 + $0xe0] sm:$0xff] %v443
  %508 = vst [vmem:[%s4 + $0xe8] sm:$0xff] %v444
  %509 = vst [vmem:[%s4 + $0xf0] sm:$0xff] %v445
  %510 = vst [vmem:[%s4 + $0xf8] sm:$0xff] %v446
  %511 = vst [vmem:[%s4 + $0x100] sm:$0xff] %v447
  %512 = vst [vmem:[%s4 + $0x108] sm:$0xff] %v448
  %513 = vst [vmem:[%s4 + $0x110] sm:$0xff] %v449
  %514 = vst [vmem:[%s4 + $0x118] sm:$0xff] %v450
  %515 = vst [vmem:[%s4 + $0x120] sm:$0xff] %v451
  %516 = vst [vmem:[%s4 + $0x128] sm:$0xff] %v452
  %517 = vst [vmem:[%s4 + $0x130] sm:$0xff] %v453
  %518 = vst [vmem:[%s4 + $0x138] sm:$0xff] %v454
  %519 = vst [vmem:[%s4 + $0x140] sm:$0xff] %v455
  %520 = vst [vmem:[%s4 + $0x148] sm:$0xff] %v456
  %521 = vst [vmem:[%s4 + $0x150] sm:$0xff] %v457
  %522 = vst [vmem:[%s4 + $0x158] sm:$0xff] %v458
  %523 = vst [vmem:[%s4 + $0x160] sm:$0xff] %v459
  %524 = vst [vmem:[%s4 + $0x168] sm:$0xff] %v460
  %525 = vst [vmem:[%s4 + $0x170] sm:$0xff] %v461
  %526 = vst [vmem:[%s4 + $0x178] sm:$0xff] %v462
  %527 = vst [vmem:[%s4 + $0x180] sm:$0xff] %v463
  %528 = vst [vmem:[%s4 + $0x188] sm:$0xff] %v464
  %529 = vst [vmem:[%s4 + $0x190] sm:$0xff] %v465
  %530 = vst [vmem:[%s4 + $0x198] sm:$0xff] %v466
  %531 = vst [vmem:[%s4 + $0x1a0] sm:$0xff] %v467
  %532 = vst [vmem:[%s4 + $0x1a8] sm:$0xff] %v468
  %533 = vst [vmem:[%s4 + $0x1b0] sm:$0xff] %v469
  %534 = vst [vmem:[%s4 + $0x1b8] sm:$0xff] %v470
  %535 = vst [vmem:[%s4 + $0x1c0] sm:$0xff] %v471
  %536 = vst [vmem:[%s4 + $0x1c8] sm:$0xff] %v472
  %537 = vst [vmem:[%s4 + $0x1d0] sm:$0xff] %v473
  %538 = vst [vmem:[%s4 + $0x1d8] sm:$0xff] %v474
  %539 = vst [vmem:[%s4 + $0x1e0] sm:$0xff] %v475
  %540 = vst [vmem:[%s4 + $0x1e8] sm:$0xff] %v476
  %541 = vst [vmem:[%s4 + $0x1f0] sm:$0xff] %v477
  %542 = vst [vmem:[%s4 + $0x1f8] sm:$0xff] %v478
  // Predicated region
  $region18: #{bottleneck_forward.7} parent=0 // pred_check
    _
  $region19: #{bottleneck_forward.7} parent=0 // pred_check_branch
    %544 = sbr.rel (0) target = $region21
  $region20: #{bottleneck_forward.7} parent=0 // pred_region
    _
  $region21: #{bottleneck_forward.7} parent=0 // pred_fallthru
    _
  // Predicated region
  $region22: #{bottleneck_forward.7} parent=0 // pred_check
    _
  $region23: #{bottleneck_forward.7} parent=0 // pred_check_branch
    %546 = sbr.rel (0) target = $region25
  $region24: #{bottleneck_forward.7} parent=0 // pred_region
    _
  $region25: #{bottleneck_forward.7} parent=0 // pred_fallthru
    _

// kernel: bottleneck_forward.4
$region0: #{bottleneck_forward.4}
  #allocation0 [shape = 'u32[]', space=smem, size = 0x4, offset = 0x4, fixed_abs, tag = 'smem constant byte address 0x4 - core index']
  #allocation1 [shape = 'u32[144,128]{1,0:T(1,128)}', space=vmem, size = 0x12000, scoped, tag = 'internal scratch']
  %s0 = inlined_call_operand.vmem [shape: f32[512,128], index: 0, kind: input, shape index: {}]
  %s1 = inlined_call_operand.vmem [shape: f32[1,128], index: 1, kind: input, shape index: {}]
  %s2 = inlined_call_operand.vmem [shape: f32[1,128], index: 2, kind: input, shape index: {}]
  %s3 = inlined_call_operand.vmem [shape: bf16[128,128], index: 3, kind: input, shape index: {}]
  %s4 = inlined_call_operand.vmem [shape: bf16[512,128], index: 4, kind: output, shape index: {0}]
  %s5 = inlined_call_operand.vmem [shape: f32[1,2,128], index: 5, kind: output, shape index: {1}]
  %6 = xla_tuple %s4, %s5
  %s7 = sld [smem:[#allocation0]]
  $region34: #{bottleneck_forward.4} parent=0
    _
  %s9 = ssub.s32 1, %s7
  %s10 = scalar_select 0, %s9, %s7
  // Predicated region
  $region2: #{bottleneck_forward.4} parent=0 // pred_check
    _
  $region3: #{bottleneck_forward.4} parent=0 // pred_check_branch
    %12 = sbr.rel (0) target = $region5
  $region4: #{bottleneck_forward.4} parent=0 // pred_region
    _
  $region5: #{bottleneck_forward.4} parent=0 // pred_fallthru
    _
  // Predicated region
  $region6: #{bottleneck_forward.4} parent=0 // pred_check
    _
  $region7: #{bottleneck_forward.4} parent=0 // pred_check_branch
    %14 = sbr.rel (0) target = $region9
  $region8: #{bottleneck_forward.4} parent=0 // pred_region
    _
  $region9: #{bottleneck_forward.4} parent=0 // pred_fallthru
    _
  // Predicated region
  $region10: #{bottleneck_forward.4} parent=0 // pred_check
    _
  $region11: #{bottleneck_forward.4} parent=0 // pred_check_branch
    %16 = sbr.rel (0) target = $region13
  $region12: #{bottleneck_forward.4} parent=0 // pred_region
    _
  $region13: #{bottleneck_forward.4} parent=0 // pred_fallthru
    _
  // Predicated region
  $region14: #{bottleneck_forward.4} parent=0 // pred_check
    _
  $region15: #{bottleneck_forward.4} parent=0 // pred_check_branch
    %18 = sbr.rel (0) target = $region17
  $region16: #{bottleneck_forward.4} parent=0 // pred_region
    _
  $region17: #{bottleneck_forward.4} parent=0 // pred_fallthru
    _
  %v20 = vld [vmem:[%s0] sm:$0xff]
  %v21 = vld [vmem:[%s0 + $0x8] sm:$0xff]
  %v22 = vld [vmem:[%s0 + $0x10] sm:$0xff]
  %v23 = vld [vmem:[%s0 + $0x18] sm:$0xff]
  %v24 = vld [vmem:[%s0 + $0x20] sm:$0xff]
  %v25 = vld [vmem:[%s0 + $0x28] sm:$0xff]
  %v26 = vld [vmem:[%s0 + $0x30] sm:$0xff]
  %v27 = vld [vmem:[%s0 + $0x38] sm:$0xff]
  %v28 = vld [vmem:[%s0 + $0x40] sm:$0xff]
  %v29 = vld [vmem:[%s0 + $0x48] sm:$0xff]
  %v30 = vld [vmem:[%s0 + $0x50] sm:$0xff]
  %v31 = vld [vmem:[%s0 + $0x58] sm:$0xff]
  %v32 = vld [vmem:[%s0 + $0x60] sm:$0xff]
  %v33 = vld [vmem:[%s0 + $0x68] sm:$0xff]
  %v34 = vld [vmem:[%s0 + $0x70] sm:$0xff]
  %v35 = vld [vmem:[%s0 + $0x78] sm:$0xff]
  %v36 = vld [vmem:[%s0 + $0x80] sm:$0xff]
  %v37 = vld [vmem:[%s0 + $0x88] sm:$0xff]
  %v38 = vld [vmem:[%s0 + $0x90] sm:$0xff]
  %v39 = vld [vmem:[%s0 + $0x98] sm:$0xff]
  %v40 = vld [vmem:[%s0 + $0xa0] sm:$0xff]
  %v41 = vld [vmem:[%s0 + $0xa8] sm:$0xff]
  %v42 = vld [vmem:[%s0 + $0xb0] sm:$0xff]
  %v43 = vld [vmem:[%s0 + $0xb8] sm:$0xff]
  %v44 = vld [vmem:[%s0 + $0xc0] sm:$0xff]
  %v45 = vld [vmem:[%s0 + $0xc8] sm:$0xff]
  %v46 = vld [vmem:[%s0 + $0xd0] sm:$0xff]
  %v47 = vld [vmem:[%s0 + $0xd8] sm:$0xff]
  %v48 = vld [vmem:[%s0 + $0xe0] sm:$0xff]
  %v49 = vld [vmem:[%s0 + $0xe8] sm:$0xff]
  %v50 = vld [vmem:[%s0 + $0xf0] sm:$0xff]
  %v51 = vld [vmem:[%s0 + $0xf8] sm:$0xff]
  %v52 = vld [vmem:[%s0 + $0x100] sm:$0xff]
  %v53 = vld [vmem:[%s0 + $0x108] sm:$0xff]
  %v54 = vld [vmem:[%s0 + $0x110] sm:$0xff]
  %v55 = vld [vmem:[%s0 + $0x118] sm:$0xff]
  %v56 = vld [vmem:[%s0 + $0x120] sm:$0xff]
  %v57 = vld [vmem:[%s0 + $0x128] sm:$0xff]
  %v58 = vld [vmem:[%s0 + $0x130] sm:$0xff]
  %v59 = vld [vmem:[%s0 + $0x138] sm:$0xff]
  %v60 = vld [vmem:[%s0 + $0x140] sm:$0xff]
  %v61 = vld [vmem:[%s0 + $0x148] sm:$0xff]
  %v62 = vld [vmem:[%s0 + $0x150] sm:$0xff]
  %v63 = vld [vmem:[%s0 + $0x158] sm:$0xff]
  %v64 = vld [vmem:[%s0 + $0x160] sm:$0xff]
  %v65 = vld [vmem:[%s0 + $0x168] sm:$0xff]
  %v66 = vld [vmem:[%s0 + $0x170] sm:$0xff]
  %v67 = vld [vmem:[%s0 + $0x178] sm:$0xff]
  %v68 = vld [vmem:[%s0 + $0x180] sm:$0xff]
  %v69 = vld [vmem:[%s0 + $0x188] sm:$0xff]
  %v70 = vld [vmem:[%s0 + $0x190] sm:$0xff]
  %v71 = vld [vmem:[%s0 + $0x198] sm:$0xff]
  %v72 = vld [vmem:[%s0 + $0x1a0] sm:$0xff]
  %v73 = vld [vmem:[%s0 + $0x1a8] sm:$0xff]
  %v74 = vld [vmem:[%s0 + $0x1b0] sm:$0xff]
  %v75 = vld [vmem:[%s0 + $0x1b8] sm:$0xff]
  %v76 = vld [vmem:[%s0 + $0x1c0] sm:$0xff]
  %v77 = vld [vmem:[%s0 + $0x1c8] sm:$0xff]
  %v78 = vld [vmem:[%s0 + $0x1d0] sm:$0xff]
  %v79 = vld [vmem:[%s0 + $0x1d8] sm:$0xff]
  %v80 = vld [vmem:[%s0 + $0x1e0] sm:$0xff]
  %v81 = vld [vmem:[%s0 + $0x1e8] sm:$0xff]
  %v82 = vld [vmem:[%s0 + $0x1f0] sm:$0xff]
  %v83 = vld [vmem:[%s0 + $0x1f8] sm:$0xff]
  %v84 = vpack.c.bf16 %v21, %v20
  %v85 = vpack.c.bf16 %v23, %v22
  %v86 = vpack.c.bf16 %v25, %v24
  %v87 = vpack.c.bf16 %v27, %v26
  %v88 = vpack.c.bf16 %v29, %v28
  %v89 = vpack.c.bf16 %v31, %v30
  %v90 = vpack.c.bf16 %v33, %v32
  %v91 = vpack.c.bf16 %v35, %v34
  %v92 = vpack.c.bf16 %v37, %v36
  %v93 = vpack.c.bf16 %v39, %v38
  %v94 = vpack.c.bf16 %v41, %v40
  %v95 = vpack.c.bf16 %v43, %v42
  %v96 = vpack.c.bf16 %v45, %v44
  %v97 = vpack.c.bf16 %v47, %v46
  %v98 = vpack.c.bf16 %v49, %v48
  %v99 = vpack.c.bf16 %v51, %v50
  %v100 = vpack.c.bf16 %v53, %v52
  %v101 = vpack.c.bf16 %v55, %v54
  %v102 = vpack.c.bf16 %v57, %v56
  %v103 = vpack.c.bf16 %v59, %v58
  %v104 = vpack.c.bf16 %v61, %v60
  %v105 = vpack.c.bf16 %v63, %v62
  %v106 = vpack.c.bf16 %v65, %v64
  %v107 = vpack.c.bf16 %v67, %v66
  %v108 = vpack.c.bf16 %v69, %v68
  %v109 = vpack.c.bf16 %v71, %v70
  %v110 = vpack.c.bf16 %v73, %v72
  %v111 = vpack.c.bf16 %v75, %v74
  %v112 = vpack.c.bf16 %v77, %v76
  %v113 = vpack.c.bf16 %v79, %v78
  %v114 = vpack.c.bf16 %v81, %v80
  %v115 = vpack.c.bf16 %v83, %v82
  %v116 = vld [vmem:[%s3] sm:$0xf]
  %v117 = vld [vmem:[%s3 + $0x4] sm:$0xf]
  %v118 = vld [vmem:[%s3 + $0x8] sm:$0xf]
  %v119 = vld [vmem:[%s3 + $0xc] sm:$0xf]
  %v120 = vld [vmem:[%s3 + $0x10] sm:$0xf]
  %v121 = vld [vmem:[%s3 + $0x14] sm:$0xf]
  %v122 = vld [vmem:[%s3 + $0x18] sm:$0xf]
  %v123 = vld [vmem:[%s3 + $0x1c] sm:$0xf]
  %v124 = vld [vmem:[%s3 + $0x20] sm:$0xf]
  %v125 = vld [vmem:[%s3 + $0x24] sm:$0xf]
  %v126 = vld [vmem:[%s3 + $0x28] sm:$0xf]
  %v127 = vld [vmem:[%s3 + $0x2c] sm:$0xf]
  %v128 = vld [vmem:[%s3 + $0x30] sm:$0xf]
  %v129 = vld [vmem:[%s3 + $0x34] sm:$0xf]
  %v130 = vld [vmem:[%s3 + $0x38] sm:$0xf]
  %v131 = vld [vmem:[%s3 + $0x3c] sm:$0xf]
  %v148 = vunpack.c.l.b16 %v116
  %v149 = vunpack.c.l.b16 %v117
  %v150 = vunpack.c.l.b16 %v118
  %v151 = vunpack.c.l.b16 %v119
  %v152 = vunpack.c.l.b16 %v120
  %v153 = vunpack.c.l.b16 %v121
  %v154 = vunpack.c.l.b16 %v122
  %v155 = vunpack.c.l.b16 %v123
  %v156 = vunpack.c.l.b16 %v124
  %v157 = vunpack.c.l.b16 %v125
  %v158 = vunpack.c.l.b16 %v126
  %v159 = vunpack.c.l.b16 %v127
  %v160 = vunpack.c.l.b16 %v128
  %v161 = vunpack.c.l.b16 %v129
  %v162 = vunpack.c.l.b16 %v130
  %v163 = vunpack.c.l.b16 %v131
  %v164 = vpack.c.b16 %v149, %v148
  %v165 = vpack.c.b16 %v151, %v150
  %v166 = vpack.c.b16 %v153, %v152
  %v167 = vpack.c.b16 %v155, %v154
  %v168 = vpack.c.b16 %v157, %v156
  %v169 = vpack.c.b16 %v159, %v158
  %v170 = vpack.c.b16 %v161, %v160
  %v171 = vpack.c.b16 %v163, %v162
  %180 = vmatprep.subr.bf16.mxu0 0
  %181 = vmatpush1.bf16.msra.mxu0 %v164
  %182 = vmatprep.subr.bf16.mxu0 0
  %183 = vmatpush1.bf16.msra.mxu0 %v165
  %184 = vmatprep.subr.bf16.mxu0 0
  %185 = vmatpush1.bf16.msra.mxu0 %v166
  %186 = vmatprep.subr.bf16.mxu0 0
  %187 = vmatpush1.bf16.msra.mxu0 %v167
  %188 = vmatprep.subr.bf16.mxu0 0
  %189 = vmatpush1.bf16.msra.mxu0 %v168
  %190 = vmatprep.subr.bf16.mxu0 0
  %191 = vmatpush1.bf16.msra.mxu0 %v169
  %192 = vmatprep.subr.bf16.mxu0 0
  %193 = vmatpush1.bf16.msra.mxu0 %v170
  %194 = vmatprep.subr.bf16.mxu0 0
  %195 = vmatpush1.bf16.msra.mxu0 %v171
  %196 = vmatprep.subr.bf16.mxu0 0
  %197 = vmatpush1.bf16.msra.mxu0 0
  %198 = vmatprep.subr.bf16.mxu0 0
  %199 = vmatpush1.bf16.msra.mxu0 0
  %200 = vmatprep.subr.bf16.mxu0 0
  %201 = vmatpush1.bf16.msra.mxu0 0
  %202 = vmatprep.subr.bf16.mxu0 0
  %203 = vmatpush1.bf16.msra.mxu0 0
  %204 = vmatprep.subr.bf16.mxu0 0
  %205 = vmatpush1.bf16.msra.mxu0 0
  %206 = vmatprep.subr.bf16.mxu0 0
  %207 = vmatpush1.bf16.msra.mxu0 0
  %208 = vmatprep.subr.bf16.mxu0 0
  %209 = vmatpush1.bf16.msra.mxu0 0
  %210 = vmatprep.subr.bf16.mxu0 0
  %211 = vmatpush1.bf16.msra.mxu0 0
  %212 = vmatprep.mubr.bf16.mxu0 0
  %213 = vmatmul.mubr.bf16.gmra.mrb[0].mxu0 %v84
  %v214 = vpop.f32.mrb[0].mxu0
  %v215 = vadd.f32 0.0, %v214
  %v216 = vpop.f32.mrb[0].mxu0
  %v217 = vpop.f32.mrb[0].mxu0
  %v218 = vadd.f32 0.0, %v217
  %v219 = vpop.f32.mrb[0].mxu0
  %220 = vmatprep.mubr.bf16.mxu0 0
  %221 = vmatmul.mubr.bf16.gmra.mrb[0].mxu0 %v85
  %v222 = vpop.f32.mrb[0].mxu0
  %v223 = vadd.f32 0.0, %v222
  %v224 = vpop.f32.mrb[0].mxu0
  %v225 = vpop.f32.mrb[0].mxu0
  %v226 = vadd.f32 0.0, %v225
  %v227 = vpop.f32.mrb[0].mxu0
  %228 = vmatprep.mubr.bf16.mxu0 0
  %229 = vmatmul.mubr.bf16.gmra.mrb[0].mxu0 %v86
  %v230 = vpop.f32.mrb[0].mxu0
  %v231 = vadd.f32 0.0, %v230
  %v232 = vpop.f32.mrb[0].mxu0
  %v233 = vpop.f32.mrb[0].mxu0
  %v234 = vadd.f32 0.0, %v233
  %v235 = vpop.f32.mrb[0].mxu0
  %236 = vmatprep.mubr.bf16.mxu0 0
  %237 = vmatmul.mubr.bf16.gmra.mrb[0].mxu0 %v87
  %v238 = vpop.f32.mrb[0].mxu0
  %v239 = vadd.f32 0.0, %v238
  %v240 = vpop.f32.mrb[0].mxu0
  %v241 = vpop.f32.mrb[0].mxu0
  %v242 = vadd.f32 0.0, %v241
  %v243 = vpop.f32.mrb[0].mxu0
  %244 = vmatprep.mubr.bf16.mxu0 0
  %245 = vmatmul.mubr.bf16.gmra.mrb[0].mxu0 %v88
  %v246 = vpop.f32.mrb[0].mxu0
  %v247 = vadd.f32 0.0, %v246
  %v248 = vpop.f32.mrb[0].mxu0
  %v249 = vpop.f32.mrb[0].mxu0
  %v250 = vadd.f32 0.0, %v249
  %v251 = vpop.f32.mrb[0].mxu0
  %252 = vmatprep.mubr.bf16.mxu0 0
  %253 = vmatmul.mubr.bf16.gmra.mrb[0].mxu0 %v89
  %v254 = vpop.f32.mrb[0].mxu0
  %v255 = vadd.f32 0.0, %v254
  %v256 = vpop.f32.mrb[0].mxu0
  %v257 = vpop.f32.mrb[0].mxu0
  %v258 = vadd.f32 0.0, %v257
  %v259 = vpop.f32.mrb[0].mxu0
  %260 = vmatprep.mubr.bf16.mxu0 0
  %261 = vmatmul.mubr.bf16.gmra.mrb[0].mxu0 %v90
  %v262 = vpop.f32.mrb[0].mxu0
  %v263 = vadd.f32 0.0, %v262
  %v264 = vpop.f32.mrb[0].mxu0
  %v265 = vpop.f32.mrb[0].mxu0
  %v266 = vadd.f32 0.0, %v265
  %v267 = vpop.f32.mrb[0].mxu0
  %268 = vmatprep.mubr.bf16.mxu0 0
  %269 = vmatmul.mubr.bf16.gmra.mrb[0].mxu0 %v91
  %v270 = vpop.f32.mrb[0].mxu0
  %v271 = vadd.f32 0.0, %v270
  %v272 = vpop.f32.mrb[0].mxu0
  %v273 = vpop.f32.mrb[0].mxu0
  %v274 = vadd.f32 0.0, %v273
  %v275 = vpop.f32.mrb[0].mxu0
  %276 = vmatprep.mubr.bf16.mxu0 0
  %277 = vmatmul.mubr.bf16.gmra.mrb[0].mxu0 %v92
  %v278 = vpop.f32.mrb[0].mxu0
  %v279 = vadd.f32 0.0, %v278
  %v280 = vpop.f32.mrb[0].mxu0
  %v281 = vpop.f32.mrb[0].mxu0
  %v282 = vadd.f32 0.0, %v281
  %v283 = vpop.f32.mrb[0].mxu0
  %284 = vmatprep.mubr.bf16.mxu0 0
  %285 = vmatmul.mubr.bf16.gmra.mrb[0].mxu0 %v93
  %v286 = vpop.f32.mrb[0].mxu0
  %v287 = vadd.f32 0.0, %v286
  %v288 = vpop.f32.mrb[0].mxu0
  %v289 = vpop.f32.mrb[0].mxu0
  %v290 = vadd.f32 0.0, %v289
  %v291 = vpop.f32.mrb[0].mxu0
  %292 = vmatprep.mubr.bf16.mxu0 0
  %293 = vmatmul.mubr.bf16.gmra.mrb[0].mxu0 %v94
  %v294 = vpop.f32.mrb[0].mxu0
  %v295 = vadd.f32 0.0, %v294
  %v296 = vpop.f32.mrb[0].mxu0
  %v297 = vpop.f32.mrb[0].mxu0
  %v298 = vadd.f32 0.0, %v297
  %v299 = vpop.f32.mrb[0].mxu0
  %300 = vmatprep.mubr.bf16.mxu0 0
  %301 = vmatmul.mubr.bf16.gmra.mrb[0].mxu0 %v95
  %v302 = vpop.f32.mrb[0].mxu0
  %v303 = vadd.f32 0.0, %v302
  %v304 = vpop.f32.mrb[0].mxu0
  %v305 = vpop.f32.mrb[0].mxu0
  %v306 = vadd.f32 0.0, %v305
  %v307 = vpop.f32.mrb[0].mxu0
  %308 = vmatprep.mubr.bf16.mxu0 0
  %309 = vmatmul.mubr.bf16.gmra.mrb[0].mxu0 %v96
  %v310 = vpop.f32.mrb[0].mxu0
  %v311 = vadd.f32 0.0, %v310
  %v312 = vpop.f32.mrb[0].mxu0
  %v313 = vpop.f32.mrb[0].mxu0
  %v314 = vadd.f32 0.0, %v313
  %v315 = vpop.f32.mrb[0].mxu0
  %316 = vmatprep.mubr.bf16.mxu0 0
  %317 = vmatmul.mubr.bf16.gmra.mrb[0].mxu0 %v97
  %v318 = vpop.f32.mrb[0].mxu0
  %v319 = vadd.f32 0.0, %v318
  %v320 = vpop.f32.mrb[0].mxu0
  %v321 = vpop.f32.mrb[0].mxu0
  %v322 = vadd.f32 0.0, %v321
  %v323 = vpop.f32.mrb[0].mxu0
  %324 = vmatprep.mubr.bf16.mxu0 0
  %325 = vmatmul.mubr.bf16.gmra.mrb[0].mxu0 %v98
  %v326 = vpop.f32.mrb[0].mxu0
  %v327 = vadd.f32 0.0, %v326
  %v328 = vpop.f32.mrb[0].mxu0
  %v329 = vpop.f32.mrb[0].mxu0
  %v330 = vadd.f32 0.0, %v329
  %v331 = vpop.f32.mrb[0].mxu0
  %332 = vmatprep.mubr.bf16.mxu0 0
  %333 = vmatmul.mubr.bf16.gmra.mrb[0].mxu0 %v99
  %v334 = vpop.f32.mrb[0].mxu0
  %v335 = vadd.f32 0.0, %v334
  %v336 = vpop.f32.mrb[0].mxu0
  %v337 = vpop.f32.mrb[0].mxu0
  %v338 = vadd.f32 0.0, %v337
  %v339 = vpop.f32.mrb[0].mxu0
  %340 = vmatprep.mubr.bf16.mxu0 0
  %341 = vmatmul.mubr.bf16.gmra.mrb[0].mxu0 %v100
  %v342 = vpop.f32.mrb[0].mxu0
  %v343 = vadd.f32 0.0, %v342
  %v344 = vpop.f32.mrb[0].mxu0
  %v345 = vpop.f32.mrb[0].mxu0
  %v346 = vadd.f32 0.0, %v345
  %v347 = vpop.f32.mrb[0].mxu0
  %348 = vmatprep.mubr.bf16.mxu0 0
  %349 = vmatmul.mubr.bf16.gmra.mrb[0].mxu0 %v101
  %v350 = vpop.f32.mrb[0].mxu0
  %v351 = vadd.f32 0.0, %v350
  %v352 = vpop.f32.mrb[0].mxu0
  %v353 = vpop.f32.mrb[0].mxu0
  %v354 = vadd.f32 0.0, %v353
  %v355 = vpop.f32.mrb[0].mxu0
  %356 = vmatprep.mubr.bf16.mxu0 0
  %357 = vmatmul.mubr.bf16.gmra.mrb[0].mxu0 %v102
  %v358 = vpop.f32.mrb[0].mxu0
  %v359 = vadd.f32 0.0, %v358
  %v360 = vpop.f32.mrb[0].mxu0
  %v361 = vpop.f32.mrb[0].mxu0
  %v362 = vadd.f32 0.0, %v361
  %v363 = vpop.f32.mrb[0].mxu0
  %364 = vmatprep.mubr.bf16.mxu0 0
  %365 = vmatmul.mubr.bf16.gmra.mrb[0].mxu0 %v103
  %v366 = vpop.f32.mrb[0].mxu0
  %v367 = vadd.f32 0.0, %v366
  %v368 = vpop.f32.mrb[0].mxu0
  %v369 = vpop.f32.mrb[0].mxu0
  %v370 = vadd.f32 0.0, %v369
  %v371 = vpop.f32.mrb[0].mxu0
  %372 = vmatprep.mubr.bf16.mxu0 0
  %373 = vmatmul.mubr.bf16.gmra.mrb[0].mxu0 %v104
  %v374 = vpop.f32.mrb[0].mxu0
  %v375 = vadd.f32 0.0, %v374
  %v376 = vpop.f32.mrb[0].mxu0
  %v377 = vpop.f32.mrb[0].mxu0
  %v378 = vadd.f32 0.0, %v377
  %v379 = vpop.f32.mrb[0].mxu0
  %380 = vmatprep.mubr.bf16.mxu0 0
  %381 = vmatmul.mubr.bf16.gmra.mrb[0].mxu0 %v105
  %v382 = vpop.f32.mrb[0].mxu0
  %v383 = vadd.f32 0.0, %v382
  %v384 = vpop.f32.mrb[0].mxu0
  %v385 = vpop.f32.mrb[0].mxu0
  %v386 = vadd.f32 0.0, %v385
  %v387 = vpop.f32.mrb[0].mxu0
  %388 = vmatprep.mubr.bf16.mxu0 0
  %389 = vmatmul.mubr.bf16.gmra.mrb[0].mxu0 %v106
  %v390 = vpop.f32.mrb[0].mxu0
  %v391 = vadd.f32 0.0, %v390
  %v392 = vpop.f32.mrb[0].mxu0
  %v393 = vpop.f32.mrb[0].mxu0
  %v394 = vadd.f32 0.0, %v393
  %v395 = vpop.f32.mrb[0].mxu0
  %396 = vmatprep.mubr.bf16.mxu0 0
  %397 = vmatmul.mubr.bf16.gmra.mrb[0].mxu0 %v107
  %v398 = vpop.f32.mrb[0].mxu0
  %v399 = vadd.f32 0.0, %v398
  %v400 = vpop.f32.mrb[0].mxu0
  %v401 = vpop.f32.mrb[0].mxu0
  %v402 = vadd.f32 0.0, %v401
  %v403 = vpop.f32.mrb[0].mxu0
  %404 = vmatprep.mubr.bf16.mxu0 0
  %405 = vmatmul.mubr.bf16.gmra.mrb[0].mxu0 %v108
  %v406 = vpop.f32.mrb[0].mxu0
  %v407 = vadd.f32 0.0, %v406
  %v408 = vpop.f32.mrb[0].mxu0
  %v409 = vpop.f32.mrb[0].mxu0
  %v410 = vadd.f32 0.0, %v409
  %v411 = vpop.f32.mrb[0].mxu0
  %412 = vmatprep.mubr.bf16.mxu0 0
  %413 = vmatmul.mubr.bf16.gmra.mrb[0].mxu0 %v109
  %v414 = vpop.f32.mrb[0].mxu0
  %v415 = vadd.f32 0.0, %v414
  %v416 = vpop.f32.mrb[0].mxu0
  %v417 = vpop.f32.mrb[0].mxu0
  %v418 = vadd.f32 0.0, %v417
  %v419 = vpop.f32.mrb[0].mxu0
  %420 = vmatprep.mubr.bf16.mxu0 0
  %421 = vmatmul.mubr.bf16.gmra.mrb[0].mxu0 %v110
  %v422 = vpop.f32.mrb[0].mxu0
  %v423 = vadd.f32 0.0, %v422
  %v424 = vpop.f32.mrb[0].mxu0
  %v425 = vpop.f32.mrb[0].mxu0
  %v426 = vadd.f32 0.0, %v425
  %v427 = vpop.f32.mrb[0].mxu0
  %428 = vmatprep.mubr.bf16.mxu0 0
  %429 = vmatmul.mubr.bf16.gmra.mrb[0].mxu0 %v111
  %v430 = vpop.f32.mrb[0].mxu0
  %v431 = vadd.f32 0.0, %v430
  %v432 = vpop.f32.mrb[0].mxu0
  %v433 = vpop.f32.mrb[0].mxu0
  %v434 = vadd.f32 0.0, %v433
  %v435 = vpop.f32.mrb[0].mxu0
  %436 = vmatprep.mubr.bf16.mxu0 0
  %437 = vmatmul.mubr.bf16.gmra.mrb[0].mxu0 %v112
  %v438 = vpop.f32.mrb[0].mxu0
  %v439 = vadd.f32 0.0, %v438
  %v440 = vpop.f32.mrb[0].mxu0
  %v441 = vpop.f32.mrb[0].mxu0
  %v442 = vadd.f32 0.0, %v441
  %v443 = vpop.f32.mrb[0].mxu0
  %444 = vmatprep.mubr.bf16.mxu0 0
  %445 = vmatmul.mubr.bf16.gmra.mrb[0].mxu0 %v113
  %v446 = vpop.f32.mrb[0].mxu0
  %v447 = vadd.f32 0.0, %v446
  %v448 = vpop.f32.mrb[0].mxu0
  %v449 = vpop.f32.mrb[0].mxu0
  %v450 = vadd.f32 0.0, %v449
  %v451 = vpop.f32.mrb[0].mxu0
  %452 = vmatprep.mubr.bf16.mxu0 0
  %453 = vmatmul.mubr.bf16.gmra.mrb[0].mxu0 %v114
  %v454 = vpop.f32.mrb[0].mxu0
  %v455 = vadd.f32 0.0, %v454
  %v456 = vpop.f32.mrb[0].mxu0
  %v457 = vpop.f32.mrb[0].mxu0
  %v458 = vadd.f32 0.0, %v457
  %v459 = vpop.f32.mrb[0].mxu0
  %460 = vmatprep.mubr.bf16.mxu0 0
  %461 = vmatmul.mubr.bf16.gmra.mrb[0].mxu0 %v115
  %v462 = vpop.f32.mrb[0].mxu0
  %v463 = vadd.f32 0.0, %v462
  %v464 = vpop.f32.mrb[0].mxu0
  %v465 = vpop.f32.mrb[0].mxu0
  %v466 = vadd.f32 0.0, %v465
  %v467 = vpop.f32.mrb[0].mxu0
  %468 = vdwg.mxu0
  %v469 = vpack.c.bf16 %v218, %v215
  %v470 = vpack.c.bf16 %v226, %v223
  %v471 = vpack.c.bf16 %v234, %v231
  %v472 = vpack.c.bf16 %v242, %v239
  %v473 = vpack.c.bf16 %v250, %v247
  %v474 = vpack.c.bf16 %v258, %v255
  %v475 = vpack.c.bf16 %v266, %v263
  %v476 = vpack.c.bf16 %v274, %v271
  %v477 = vpack.c.bf16 %v282, %v279
  %v478 = vpack.c.bf16 %v290, %v287
  %v479 = vpack.c.bf16 %v298, %v295
  %v480 = vpack.c.bf16 %v306, %v303
  %v481 = vpack.c.bf16 %v314, %v311
  %v482 = vpack.c.bf16 %v322, %v319
  %v483 = vpack.c.bf16 %v330, %v327
  %v484 = vpack.c.bf16 %v338, %v335
  %v485 = vpack.c.bf16 %v346, %v343
  %v486 = vpack.c.bf16 %v354, %v351
  %v487 = vpack.c.bf16 %v362, %v359
  %v488 = vpack.c.bf16 %v370, %v367
  %v489 = vpack.c.bf16 %v378, %v375
  %v490 = vpack.c.bf16 %v386, %v383
  %v491 = vpack.c.bf16 %v394, %v391
  %v492 = vpack.c.bf16 %v402, %v399
  %v493 = vpack.c.bf16 %v410, %v407
  %v494 = vpack.c.bf16 %v418, %v415
  %v495 = vpack.c.bf16 %v426, %v423
  %v496 = vpack.c.bf16 %v434, %v431
  %v497 = vpack.c.bf16 %v442, %v439
  %v498 = vpack.c.bf16 %v450, %v447
  %v499 = vpack.c.bf16 %v458, %v455
  %v500 = vpack.c.bf16 %v466, %v463
  %v533 = vunpack.c.l.b16 %v469
  %v534 = vunpack.c.h.b16 %v469
  %v535 = vunpack.c.l.b16 %v470
  %v536 = vunpack.c.h.b16 %v470
  %v537 = vunpack.c.l.b16 %v471
  %v538 = vunpack.c.h.b16 %v471
  %v539 = vunpack.c.l.b16 %v472
  %v540 = vunpack.c.h.b16 %v472
  %v541 = vunpack.c.l.b16 %v473
  %v542 = vunpack.c.h.b16 %v473
  %v543 = vunpack.c.l.b16 %v474
  %v544 = vunpack.c.h.b16 %v474
  %v545 = vunpack.c.l.b16 %v475
  %v546 = vunpack.c.h.b16 %v475
  %v547 = vunpack.c.l.b16 %v476
  %v548 = vunpack.c.h.b16 %v476
  %v549 = vunpack.c.l.b16 %v477
  %v550 = vunpack.c.h.b16 %v477
  %v551 = vunpack.c.l.b16 %v478
  %v552 = vunpack.c.h.b16 %v478
  %v553 = vunpack.c.l.b16 %v479
  %v554 = vunpack.c.h.b16 %v479
  %v555 = vunpack.c.l.b16 %v480
  %v556 = vunpack.c.h.b16 %v480
  %v557 = vunpack.c.l.b16 %v481
  %v558 = vunpack.c.h.b16 %v481
  %v559 = vunpack.c.l.b16 %v482
  %v560 = vunpack.c.h.b16 %v482
  %v561 = vunpack.c.l.b16 %v483
  %v562 = vunpack.c.h.b16 %v483
  %v563 = vunpack.c.l.b16 %v484
  %v564 = vunpack.c.h.b16 %v484
  %v565 = vunpack.c.l.b16 %v485
  %v566 = vunpack.c.h.b16 %v485
  %v567 = vunpack.c.l.b16 %v486
  %v568 = vunpack.c.h.b16 %v486
  %v569 = vunpack.c.l.b16 %v487
  %v570 = vunpack.c.h.b16 %v487
  %v571 = vunpack.c.l.b16 %v488
  %v572 = vunpack.c.h.b16 %v488
  %v573 = vunpack.c.l.b16 %v489
  %v574 = vunpack.c.h.b16 %v489
  %v575 = vunpack.c.l.b16 %v490
  %v576 = vunpack.c.h.b16 %v490
  %v577 = vunpack.c.l.b16 %v491
  %v578 = vunpack.c.h.b16 %v491
  %v579 = vunpack.c.l.b16 %v492
  %v580 = vunpack.c.h.b16 %v492
  %v581 = vunpack.c.l.b16 %v493
  %v582 = vunpack.c.h.b16 %v493
  %v583 = vunpack.c.l.b16 %v494
  %v584 = vunpack.c.h.b16 %v494
  %v585 = vunpack.c.l.b16 %v495
  %v586 = vunpack.c.h.b16 %v495
  %v587 = vunpack.c.l.b16 %v496
  %v588 = vunpack.c.h.b16 %v496
  %v589 = vunpack.c.l.b16 %v497
  %v590 = vunpack.c.h.b16 %v497
  %v591 = vunpack.c.l.b16 %v498
  %v592 = vunpack.c.h.b16 %v498
  %v593 = vunpack.c.l.b16 %v499
  %v594 = vunpack.c.h.b16 %v499
  %v595 = vunpack.c.l.b16 %v500
  %v596 = vunpack.c.h.b16 %v500
  %v597 = vpack.c.b16 %v533, %v533
  %v598 = vpack.c.b16 %v534, %v534
  %v599 = vpack.c.b16 %v535, %v535
  %v600 = vpack.c.b16 %v536, %v536
  %v601 = vpack.c.b16 %v537, %v537
  %v602 = vpack.c.b16 %v538, %v538
  %v603 = vpack.c.b16 %v539, %v539
  %v604 = vpack.c.b16 %v540, %v540
  %v605 = vpack.c.b16 %v541, %v541
  %v606 = vpack.c.b16 %v542, %v542
  %v607 = vpack.c.b16 %v543, %v543
  %v608 = vpack.c.b16 %v544, %v544
  %v609 = vpack.c.b16 %v545, %v545
  %v610 = vpack.c.b16 %v546, %v546
  %v611 = vpack.c.b16 %v547, %v547
  %v612 = vpack.c.b16 %v548, %v548
  %v613 = vpack.c.b16 %v549, %v549
  %v614 = vpack.c.b16 %v550, %v550
  %v615 = vpack.c.b16 %v551, %v551
  %v616 = vpack.c.b16 %v552, %v552
  %v617 = vpack.c.b16 %v553, %v553
  %v618 = vpack.c.b16 %v554, %v554
  %v619 = vpack.c.b16 %v555, %v555
  %v620 = vpack.c.b16 %v556, %v556
  %v621 = vpack.c.b16 %v557, %v557
  %v622 = vpack.c.b16 %v558, %v558
  %v623 = vpack.c.b16 %v559, %v559
  %v624 = vpack.c.b16 %v560, %v560
  %v625 = vpack.c.b16 %v561, %v561
  %v626 = vpack.c.b16 %v562, %v562
  %v627 = vpack.c.b16 %v563, %v563
  %v628 = vpack.c.b16 %v564, %v564
  %v629 = vpack.c.b16 %v565, %v565
  %v630 = vpack.c.b16 %v566, %v566
  %v631 = vpack.c.b16 %v567, %v567
  %v632 = vpack.c.b16 %v568, %v568
  %v633 = vpack.c.b16 %v569, %v569
  %v634 = vpack.c.b16 %v570, %v570
  %v635 = vpack.c.b16 %v571, %v571
  %v636 = vpack.c.b16 %v572, %v572
  %v637 = vpack.c.b16 %v573, %v573
  %v638 = vpack.c.b16 %v574, %v574
  %v639 = vpack.c.b16 %v575, %v575
  %v640 = vpack.c.b16 %v576, %v576
  %v641 = vpack.c.b16 %v577, %v577
  %v642 = vpack.c.b16 %v578, %v578
  %v643 = vpack.c.b16 %v579, %v579
  %v644 = vpack.c.b16 %v580, %v580
  %v645 = vpack.c.b16 %v581, %v581
  %v646 = vpack.c.b16 %v582, %v582
  %v647 = vpack.c.b16 %v583, %v583
  %v648 = vpack.c.b16 %v584, %v584
  %v649 = vpack.c.b16 %v585, %v585
  %v650 = vpack.c.b16 %v586, %v586
  %v651 = vpack.c.b16 %v587, %v587
  %v652 = vpack.c.b16 %v588, %v588
  %v653 = vpack.c.b16 %v589, %v589
  %v654 = vpack.c.b16 %v590, %v590
  %v655 = vpack.c.b16 %v591, %v591
  %v656 = vpack.c.b16 %v592, %v592
  %v657 = vpack.c.b16 %v593, %v593
  %v658 = vpack.c.b16 %v594, %v594
  %v659 = vpack.c.b16 %v595, %v595
  %v660 = vpack.c.b16 %v596, %v596
  %725 = vst [vmem:[%s4] sm:$0xf] %v597
  %726 = vst [vmem:[%s4 + $0x4] sm:$0xf] %v598
  %727 = vst [vmem:[%s4 + $0x8] sm:$0xf] %v599
  %728 = vst [vmem:[%s4 + $0xc] sm:$0xf] %v600
  %729 = vst [vmem:[%s4 + $0x10] sm:$0xf] %v601
  %730 = vst [vmem:[%s4 + $0x14] sm:$0xf] %v602
  %731 = vst [vmem:[%s4 + $0x18] sm:$0xf] %v603
  %732 = vst [vmem:[%s4 + $0x1c] sm:$0xf] %v604
  %733 = vst [vmem:[%s4 + $0x20] sm:$0xf] %v605
  %734 = vst [vmem:[%s4 + $0x24] sm:$0xf] %v606
  %735 = vst [vmem:[%s4 + $0x28] sm:$0xf] %v607
  %736 = vst [vmem:[%s4 + $0x2c] sm:$0xf] %v608
  %737 = vst [vmem:[%s4 + $0x30] sm:$0xf] %v609
  %738 = vst [vmem:[%s4 + $0x34] sm:$0xf] %v610
  %739 = vst [vmem:[%s4 + $0x38] sm:$0xf] %v611
  %740 = vst [vmem:[%s4 + $0x3c] sm:$0xf] %v612
  %741 = vst [vmem:[%s4 + $0x40] sm:$0xf] %v613
  %742 = vst [vmem:[%s4 + $0x44] sm:$0xf] %v614
  %743 = vst [vmem:[%s4 + $0x48] sm:$0xf] %v615
  %744 = vst [vmem:[%s4 + $0x4c] sm:$0xf] %v616
  %745 = vst [vmem:[%s4 + $0x50] sm:$0xf] %v617
  %746 = vst [vmem:[%s4 + $0x54] sm:$0xf] %v618
  %747 = vst [vmem:[%s4 + $0x58] sm:$0xf] %v619
  %748 = vst [vmem:[%s4 + $0x5c] sm:$0xf] %v620
  %749 = vst [vmem:[%s4 + $0x60] sm:$0xf] %v621
  %750 = vst [vmem:[%s4 + $0x64] sm:$0xf] %v622
  %751 = vst [vmem:[%s4 + $0x68] sm:$0xf] %v623
  %752 = vst [vmem:[%s4 + $0x6c] sm:$0xf] %v624
  %753 = vst [vmem:[%s4 + $0x70] sm:$0xf] %v625
  %754 = vst [vmem:[%s4 + $0x74] sm:$0xf] %v626
  %755 = vst [vmem:[%s4 + $0x78] sm:$0xf] %v627
  %756 = vst [vmem:[%s4 + $0x7c] sm:$0xf] %v628
  %757 = vst [vmem:[%s4 + $0x80] sm:$0xf] %v629
  %758 = vst [vmem:[%s4 + $0x84] sm:$0xf] %v630
  %759 = vst [vmem:[%s4 + $0x88] sm:$0xf] %v631
  %760 = vst [vmem:[%s4 + $0x8c] sm:$0xf] %v632
  %761 = vst [vmem:[%s4 + $0x90] sm:$0xf] %v633
  %762 = vst [vmem:[%s4 + $0x94] sm:$0xf] %v634
  %763 = vst [vmem:[%s4 + $0x98] sm:$0xf] %v635
  %764 = vst [vmem:[%s4 + $0x9c] sm:$0xf] %v636
  %765 = vst [vmem:[%s4 + $0xa0] sm:$0xf] %v637
  %766 = vst [vmem:[%s4 + $0xa4] sm:$0xf] %v638
  %767 = vst [vmem:[%s4 + $0xa8] sm:$0xf] %v639
  %768 = vst [vmem:[%s4 + $0xac] sm:$0xf] %v640
  %769 = vst [vmem:[%s4 + $0xb0] sm:$0xf] %v641
  %770 = vst [vmem:[%s4 + $0xb4] sm:$0xf] %v642
  %771 = vst [vmem:[%s4 + $0xb8] sm:$0xf] %v643
  %772 = vst [vmem:[%s4 + $0xbc] sm:$0xf] %v644
  %773 = vst [vmem:[%s4 + $0xc0] sm:$0xf] %v645
  %774 = vst [vmem:[%s4 + $0xc4] sm:$0xf] %v646
  %775 = vst [vmem:[%s4 + $0xc8] sm:$0xf] %v647
  %776 = vst [vmem:[%s4 + $0xcc] sm:$0xf] %v648
  %777 = vst [vmem:[%s4 + $0xd0] sm:$0xf] %v649
  %778 = vst [vmem:[%s4 + $0xd4] sm:$0xf] %v650
  %779 = vst [vmem:[%s4 + $0xd8] sm:$0xf] %v651
  %780 = vst [vmem:[%s4 + $0xdc] sm:$0xf] %v652
  %781 = vst [vmem:[%s4 + $0xe0] sm:$0xf] %v653
  %782 = vst [vmem:[%s4 + $0xe4] sm:$0xf] %v654
  %783 = vst [vmem:[%s4 + $0xe8] sm:$0xf] %v655
  %784 = vst [vmem:[%s4 + $0xec] sm:$0xf] %v656
  %785 = vst [vmem:[%s4 + $0xf0] sm:$0xf] %v657
  %786 = vst [vmem:[%s4 + $0xf4] sm:$0xf] %v658
  %787 = vst [vmem:[%s4 + $0xf8] sm:$0xf] %v659
  %788 = vst [vmem:[%s4 + $0xfc] sm:$0xf] %v660
  %v789 = vadd.f32 %v215, %v218
  %v790 = vadd.f32 %v789, %v223
  %v791 = vadd.f32 %v790, %v226
  %v792 = vadd.f32 %v791, %v231
  %v793 = vadd.f32 %v792, %v234
  %v794 = vadd.f32 %v793, %v239
  %v795 = vadd.f32 %v794, %v242
  %v796 = vadd.f32 %v795, %v247
  %v797 = vadd.f32 %v796, %v250
  %v798 = vadd.f32 %v797, %v255
  %v799 = vadd.f32 %v798, %v258
  %v800 = vadd.f32 %v799, %v263
  %v801 = vadd.f32 %v800, %v266
  %v802 = vadd.f32 %v801, %v271
  %v803 = vadd.f32 %v802, %v274
  %v804 = vadd.f32 %v803, %v279
  %v805 = vadd.f32 %v804, %v282
  %v806 = vadd.f32 %v805, %v287
  %v807 = vadd.f32 %v806, %v290
  %v808 = vadd.f32 %v807, %v295
  %v809 = vadd.f32 %v808, %v298
  %v810 = vadd.f32 %v809, %v303
  %v811 = vadd.f32 %v810, %v306
  %v812 = vadd.f32 %v811, %v311
  %v813 = vadd.f32 %v812, %v314
  %v814 = vadd.f32 %v813, %v319
  %v815 = vadd.f32 %v814, %v322
  %v816 = vadd.f32 %v815, %v327
  %v817 = vadd.f32 %v816, %v330
  %v818 = vadd.f32 %v817, %v335
  %v819 = vadd.f32 %v818, %v338
  %v820 = vadd.f32 %v819, %v343
  %v821 = vadd.f32 %v820, %v346
  %v822 = vadd.f32 %v821, %v351
  %v823 = vadd.f32 %v822, %v354
  %v824 = vadd.f32 %v823, %v359
  %v825 = vadd.f32 %v824, %v362
  %v826 = vadd.f32 %v825, %v367
  %v827 = vadd.f32 %v826, %v370
  %v828 = vadd.f32 %v827, %v375
  %v829 = vadd.f32 %v828, %v378
  %v830 = vadd.f32 %v829, %v383
  %v831 = vadd.f32 %v830, %v386
  %v832 = vadd.f32 %v831, %v391
  %v833 = vadd.f32 %v832, %v394
  %v834 = vadd.f32 %v833, %v399
  %v835 = vadd.f32 %v834, %v402
  %v836 = vadd.f32 %v835, %v407
  %v837 = vadd.f32 %v836, %v410
  %v838 = vadd.f32 %v837, %v415
  %v839 = vadd.f32 %v838, %v418
  %v840 = vadd.f32 %v839, %v423
  %v841 = vadd.f32 %v840, %v426
  %v842 = vadd.f32 %v841, %v431
  %v843 = vadd.f32 %v842, %v434
  %v844 = vadd.f32 %v843, %v439
  %v845 = vadd.f32 %v844, %v442
  %v846 = vadd.f32 %v845, %v447
  %v847 = vadd.f32 %v846, %v450
  %v848 = vadd.f32 %v847, %v455
  %v849 = vadd.f32 %v848, %v458
  %v850 = vadd.f32 %v849, %v463
  %v851 = vadd.f32 %v850, %v466
  %v852 = vrot.slane %v851, 4
  %v853 = vadd.f32 %v851, %v852
  %v854 = vrot.slane %v853, 2
  %v855 = vadd.f32 %v853, %v854
  %v856 = vrot.slane %v855, 1
  %v857 = vadd.f32 %v855, %v856
  %v858 = vmul.f32 %v215, %v215
  %v859 = vmul.f32 %v218, %v218
  %v860 = vmul.f32 %v223, %v223
  %v861 = vmul.f32 %v226, %v226
  %v862 = vmul.f32 %v231, %v231
  %v863 = vmul.f32 %v234, %v234
  %v864 = vmul.f32 %v239, %v239
  %v865 = vmul.f32 %v242, %v242
  %v866 = vmul.f32 %v247, %v247
  %v867 = vmul.f32 %v250, %v250
  %v868 = vmul.f32 %v255, %v255
  %v869 = vmul.f32 %v258, %v258
  %v870 = vmul.f32 %v263, %v263
  %v871 = vmul.f32 %v266, %v266
  %v872 = vmul.f32 %v271, %v271
  %v873 = vmul.f32 %v274, %v274
  %v874 = vmul.f32 %v279, %v279
  %v875 = vmul.f32 %v282, %v282
  %v876 = vmul.f32 %v287, %v287
  %v877 = vmul.f32 %v290, %v290
  %v878 = vmul.f32 %v295, %v295
  %v879 = vmul.f32 %v298, %v298
  %v880 = vmul.f32 %v303, %v303
  %v881 = vmul.f32 %v306, %v306
  %v882 = vmul.f32 %v311, %v311
  %v883 = vmul.f32 %v314, %v314
  %v884 = vmul.f32 %v319, %v319
  %v885 = vmul.f32 %v322, %v322
  %v886 = vmul.f32 %v327, %v327
  %v887 = vmul.f32 %v330, %v330
  %v888 = vmul.f32 %v335, %v335
  %v889 = vmul.f32 %v338, %v338
  %v890 = vmul.f32 %v343, %v343
  %v891 = vmul.f32 %v346, %v346
  %v892 = vmul.f32 %v351, %v351
  %v893 = vmul.f32 %v354, %v354
  %v894 = vmul.f32 %v359, %v359
  %v895 = vmul.f32 %v362, %v362
  %v896 = vmul.f32 %v367, %v367
  %v897 = vmul.f32 %v370, %v370
  %v898 = vmul.f32 %v375, %v375
  %v899 = vmul.f32 %v378, %v378
  %v900 = vmul.f32 %v383, %v383
  %v901 = vmul.f32 %v386, %v386
  %v902 = vmul.f32 %v391, %v391
  %v903 = vmul.f32 %v394, %v394
  %v904 = vmul.f32 %v399, %v399
  %v905 = vmul.f32 %v402, %v402
  %v906 = vmul.f32 %v407, %v407
  %v907 = vmul.f32 %v410, %v410
  %v908 = vmul.f32 %v415, %v415
  %v909 = vmul.f32 %v418, %v418
  %v910 = vmul.f32 %v423, %v423
  %v911 = vmul.f32 %v426, %v426
  %v912 = vmul.f32 %v431, %v431
  %v913 = vmul.f32 %v434, %v434
  %v914 = vmul.f32 %v439, %v439
  %v915 = vmul.f32 %v442, %v442
  %v916 = vmul.f32 %v447, %v447
  %v917 = vmul.f32 %v450, %v450
  %v918 = vmul.f32 %v455, %v455
  %v919 = vmul.f32 %v458, %v458
  %v920 = vmul.f32 %v463, %v463
  %v921 = vmul.f32 %v466, %v466
  %v922 = vadd.f32 %v858, %v859
  %v923 = vadd.f32 %v922, %v860
  %v924 = vadd.f32 %v923, %v861
  %v925 = vadd.f32 %v924, %v862
  %v926 = vadd.f32 %v925, %v863
  %v927 = vadd.f32 %v926, %v864
  %v928 = vadd.f32 %v927, %v865
  %v929 = vadd.f32 %v928, %v866
  %v930 = vadd.f32 %v929, %v867
  %v931 = vadd.f32 %v930, %v868
  %v932 = vadd.f32 %v931, %v869
  %v933 = vadd.f32 %v932, %v870
  %v934 = vadd.f32 %v933, %v871
  %v935 = vadd.f32 %v934, %v872
  %v936 = vadd.f32 %v935, %v873
  %v937 = vadd.f32 %v936, %v874
  %v938 = vadd.f32 %v937, %v875
  %v939 = vadd.f32 %v938, %v876
  %v940 = vadd.f32 %v939, %v877
  %v941 = vadd.f32 %v940, %v878
  %v942 = vadd.f32 %v941, %v879
  %v943 = vadd.f32 %v942, %v880
  %v944 = vadd.f32 %v943, %v881
  %v945 = vadd.f32 %v944, %v882
  %v946 = vadd.f32 %v945, %v883
  %v947 = vadd.f32 %v946, %v884
  %v948 = vadd.f32 %v947, %v885
  %v949 = vadd.f32 %v948, %v886
  %v950 = vadd.f32 %v949, %v887
  %v951 = vadd.f32 %v950, %v888
  %v952 = vadd.f32 %v951, %v889
  %v953 = vadd.f32 %v952, %v890
  %v954 = vadd.f32 %v953, %v891
  %v955 = vadd.f32 %v954, %v892
  %v956 = vadd.f32 %v955, %v893
  %v957 = vadd.f32 %v956, %v894
  %v958 = vadd.f32 %v957, %v895
  %v959 = vadd.f32 %v958, %v896
  %v960 = vadd.f32 %v959, %v897
  %v961 = vadd.f32 %v960, %v898
  %v962 = vadd.f32 %v961, %v899
  %v963 = vadd.f32 %v962, %v900
  %v964 = vadd.f32 %v963, %v901
  %v965 = vadd.f32 %v964, %v902
  %v966 = vadd.f32 %v965, %v903
  %v967 = vadd.f32 %v966, %v904
  %v968 = vadd.f32 %v967, %v905
  %v969 = vadd.f32 %v968, %v906
  %v970 = vadd.f32 %v969, %v907
  %v971 = vadd.f32 %v970, %v908
  %v972 = vadd.f32 %v971, %v909
  %v973 = vadd.f32 %v972, %v910
  %v974 = vadd.f32 %v973, %v911
  %v975 = vadd.f32 %v974, %v912
  %v976 = vadd.f32 %v975, %v913
  %v977 = vadd.f32 %v976, %v914
  %v978 = vadd.f32 %v977, %v915
  %v979 = vadd.f32 %v978, %v916
  %v980 = vadd.f32 %v979, %v917
  %v981 = vadd.f32 %v980, %v918
  %v982 = vadd.f32 %v981, %v919
  %v983 = vadd.f32 %v982, %v920
  %v984 = vadd.f32 %v983, %v921
  %v985 = vrot.slane %v984, 4
  %v986 = vadd.f32 %v984, %v985
  %v987 = vrot.slane %v986, 2
  %v988 = vadd.f32 %v986, %v987
  %v989 = vrot.slane %v988, 1
  %v990 = vadd.f32 %v988, %v989
  %vm991 = vcmask 1040384
  %v992 = vsel %vm991, %v857, %v990
  %993 = vst [vmem:[%s5] sm:$0x3] %v992
  // Predicated region
  $region18: #{bottleneck_forward.4} parent=0 // pred_check
    _
  $region19: #{bottleneck_forward.4} parent=0 // pred_check_branch
    %995 = sbr.rel (0) target = $region21
  $region20: #{bottleneck_forward.4} parent=0 // pred_region
    _
  $region21: #{bottleneck_forward.4} parent=0 // pred_fallthru
    _
  // Predicated region
  $region22: #{bottleneck_forward.4} parent=0 // pred_check
    _
  $region23: #{bottleneck_forward.4} parent=0 // pred_check_branch
    %997 = sbr.rel (0) target = $region25
  $region24: #{bottleneck_forward.4} parent=0 // pred_region
    _
  $region25: #{bottleneck_forward.4} parent=0 // pred_fallthru
    _
  // Predicated region
  $region26: #{bottleneck_forward.4} parent=0 // pred_check
    _
  $region27: #{bottleneck_forward.4} parent=0 // pred_check_branch
    %999 = sbr.rel (0) target = $region29
  $region28: #{bottleneck_forward.4} parent=0 // pred_region
    _
  $region29: #{bottleneck_forward.4} parent=0 // pred_fallthru
    _
  // Predicated region
  $region30: #{bottleneck_forward.4} parent=0 // pred_check
    _
  $region31: #{bottleneck_forward.4} parent=0 // pred_check_branch
    %1001 = sbr.rel (0) target = $region33
  $region32: #{bottleneck_forward.4} parent=0 // pred_region
    _
  $region33: #{bottleneck_forward.4} parent=0 // pred_fallthru
    _

// kernel: bottleneck_forward.6
$region0: #{bottleneck_forward.6}
  #allocation0 [shape = 'u32[]', space=smem, size = 0x4, offset = 0x4, fixed_abs, tag = 'smem constant byte address 0x4 - core index']
  #allocation1 [shape = 'u32[144,128]{1,0:T(1,128)}', space=vmem, size = 0x12000, scoped, tag = 'internal scratch']
  %s0 = inlined_call_operand.vmem [shape: bf16[512,128], index: 0, kind: input, shape index: {}]
  %s1 = inlined_call_operand.vmem [shape: f32[1,128], index: 1, kind: input, shape index: {}]
  %s2 = inlined_call_operand.vmem [shape: f32[1,128], index: 2, kind: input, shape index: {}]
  %s3 = inlined_call_operand.vmem [shape: bf16[128,128], index: 3, kind: input, shape index: {}]
  %s4 = inlined_call_operand.vmem [shape: bf16[512,128], index: 4, kind: output, shape index: {0}]
  %s5 = inlined_call_operand.vmem [shape: f32[1,2,128], index: 5, kind: output, shape index: {1}]
  %6 = xla_tuple %s4, %s5
  %s7 = sld [smem:[#allocation0]]
  $region34: #{bottleneck_forward.6} parent=0
    _
  %s9 = ssub.s32 1, %s7
  %s10 = scalar_select 0, %s9, %s7
  // Predicated region
  $region2: #{bottleneck_forward.6} parent=0 // pred_check
    _
  $region3: #{bottleneck_forward.6} parent=0 // pred_check_branch
    %12 = sbr.rel (0) target = $region5
  $region4: #{bottleneck_forward.6} parent=0 // pred_region
    _
  $region5: #{bottleneck_forward.6} parent=0 // pred_fallthru
    _
  // Predicated region
  $region6: #{bottleneck_forward.6} parent=0 // pred_check
    _
  $region7: #{bottleneck_forward.6} parent=0 // pred_check_branch
    %14 = sbr.rel (0) target = $region9
  $region8: #{bottleneck_forward.6} parent=0 // pred_region
    _
  $region9: #{bottleneck_forward.6} parent=0 // pred_fallthru
    _
  // Predicated region
  $region10: #{bottleneck_forward.6} parent=0 // pred_check
    _
  $region11: #{bottleneck_forward.6} parent=0 // pred_check_branch
    %16 = sbr.rel (0) target = $region13
  $region12: #{bottleneck_forward.6} parent=0 // pred_region
    _
  $region13: #{bottleneck_forward.6} parent=0 // pred_fallthru
    _
  // Predicated region
  $region14: #{bottleneck_forward.6} parent=0 // pred_check
    _
  $region15: #{bottleneck_forward.6} parent=0 // pred_check_branch
    %18 = sbr.rel (0) target = $region17
  $region16: #{bottleneck_forward.6} parent=0 // pred_region
    _
  $region17: #{bottleneck_forward.6} parent=0 // pred_fallthru
    _
  %v20 = vld [vmem:[%s0] sm:$0xf]
  %v21 = vld [vmem:[%s0 + $0x4] sm:$0xf]
  %v22 = vld [vmem:[%s0 + $0x8] sm:$0xf]
  %v23 = vld [vmem:[%s0 + $0xc] sm:$0xf]
  %v24 = vld [vmem:[%s0 + $0x10] sm:$0xf]
  %v25 = vld [vmem:[%s0 + $0x14] sm:$0xf]
  %v26 = vld [vmem:[%s0 + $0x18] sm:$0xf]
  %v27 = vld [vmem:[%s0 + $0x1c] sm:$0xf]
  %v28 = vld [vmem:[%s0 + $0x20] sm:$0xf]
  %v29 = vld [vmem:[%s0 + $0x24] sm:$0xf]
  %v30 = vld [vmem:[%s0 + $0x28] sm:$0xf]
  %v31 = vld [vmem:[%s0 + $0x2c] sm:$0xf]
  %v32 = vld [vmem:[%s0 + $0x30] sm:$0xf]
  %v33 = vld [vmem:[%s0 + $0x34] sm:$0xf]
  %v34 = vld [vmem:[%s0 + $0x38] sm:$0xf]
  %v35 = vld [vmem:[%s0 + $0x3c] sm:$0xf]
  %v36 = vld [vmem:[%s0 + $0x40] sm:$0xf]
  %v37 = vld [vmem:[%s0 + $0x44] sm:$0xf]
  %v38 = vld [vmem:[%s0 + $0x48] sm:$0xf]
  %v39 = vld [vmem:[%s0 + $0x4c] sm:$0xf]
  %v40 = vld [vmem:[%s0 + $0x50] sm:$0xf]
  %v41 = vld [vmem:[%s0 + $0x54] sm:$0xf]
  %v42 = vld [vmem:[%s0 + $0x58] sm:$0xf]
  %v43 = vld [vmem:[%s0 + $0x5c] sm:$0xf]
  %v44 = vld [vmem:[%s0 + $0x60] sm:$0xf]
  %v45 = vld [vmem:[%s0 + $0x64] sm:$0xf]
  %v46 = vld [vmem:[%s0 + $0x68] sm:$0xf]
  %v47 = vld [vmem:[%s0 + $0x6c] sm:$0xf]
  %v48 = vld [vmem:[%s0 + $0x70] sm:$0xf]
  %v49 = vld [vmem:[%s0 + $0x74] sm:$0xf]
  %v50 = vld [vmem:[%s0 + $0x78] sm:$0xf]
  %v51 = vld [vmem:[%s0 + $0x7c] sm:$0xf]
  %v52 = vld [vmem:[%s0 + $0x80] sm:$0xf]
  %v53 = vld [vmem:[%s0 + $0x84] sm:$0xf]
  %v54 = vld [vmem:[%s0 + $0x88] sm:$0xf]
  %v55 = vld [vmem:[%s0 + $0x8c] sm:$0xf]
  %v56 = vld [vmem:[%s0 + $0x90] sm:$0xf]
  %v57 = vld [vmem:[%s0 + $0x94] sm:$0xf]
  %v58 = vld [vmem:[%s0 + $0x98] sm:$0xf]
  %v59 = vld [vmem:[%s0 + $0x9c] sm:$0xf]
  %v60 = vld [vmem:[%s0 + $0xa0] sm:$0xf]
  %v61 = vld [vmem:[%s0 + $0xa4] sm:$0xf]
  %v62 = vld [vmem:[%s0 + $0xa8] sm:$0xf]
  %v63 = vld [vmem:[%s0 + $0xac] sm:$0xf]
  %v64 = vld [vmem:[%s0 + $0xb0] sm:$0xf]
  %v65 = vld [vmem:[%s0 + $0xb4] sm:$0xf]
  %v66 = vld [vmem:[%s0 + $0xb8] sm:$0xf]
  %v67 = vld [vmem:[%s0 + $0xbc] sm:$0xf]
  %v68 = vld [vmem:[%s0 + $0xc0] sm:$0xf]
  %v69 = vld [vmem:[%s0 + $0xc4] sm:$0xf]
  %v70 = vld [vmem:[%s0 + $0xc8] sm:$0xf]
  %v71 = vld [vmem:[%s0 + $0xcc] sm:$0xf]
  %v72 = vld [vmem:[%s0 + $0xd0] sm:$0xf]
  %v73 = vld [vmem:[%s0 + $0xd4] sm:$0xf]
  %v74 = vld [vmem:[%s0 + $0xd8] sm:$0xf]
  %v75 = vld [vmem:[%s0 + $0xdc] sm:$0xf]
  %v76 = vld [vmem:[%s0 + $0xe0] sm:$0xf]
  %v77 = vld [vmem:[%s0 + $0xe4] sm:$0xf]
  %v78 = vld [vmem:[%s0 + $0xe8] sm:$0xf]
  %v79 = vld [vmem:[%s0 + $0xec] sm:$0xf]
  %v80 = vld [vmem:[%s0 + $0xf0] sm:$0xf]
  %v81 = vld [vmem:[%s0 + $0xf4] sm:$0xf]
  %v82 = vld [vmem:[%s0 + $0xf8] sm:$0xf]
  %v83 = vld [vmem:[%s0 + $0xfc] sm:$0xf]
  %v84 = vunpack.c.l.bf16 %v20
  %v85 = vunpack.c.l.bf16 %v21
  %v86 = vunpack.c.l.bf16 %v22
  %v87 = vunpack.c.l.bf16 %v23
  %v88 = vunpack.c.l.bf16 %v24
  %v89 = vunpack.c.l.bf16 %v25
  %v90 = vunpack.c.l.bf16 %v26
  %v91 = vunpack.c.l.bf16 %v27
  %v92 = vunpack.c.l.bf16 %v28
  %v93 = vunpack.c.l.bf16 %v29
  %v94 = vunpack.c.l.bf16 %v30
  %v95 = vunpack.c.l.bf16 %v31
  %v96 = vunpack.c.l.bf16 %v32
  %v97 = vunpack.c.l.bf16 %v33
  %v98 = vunpack.c.l.bf16 %v34
  %v99 = vunpack.c.l.bf16 %v35
  %v100 = vunpack.c.l.bf16 %v36
  %v101 = vunpack.c.l.bf16 %v37
  %v102 = vunpack.c.l.bf16 %v38
  %v103 = vunpack.c.l.bf16 %v39
  %v104 = vunpack.c.l.bf16 %v40
  %v105 = vunpack.c.l.bf16 %v41
  %v106 = vunpack.c.l.bf16 %v42
  %v107 = vunpack.c.l.bf16 %v43
  %v108 = vunpack.c.l.bf16 %v44
  %v109 = vunpack.c.l.bf16 %v45
  %v110 = vunpack.c.l.bf16 %v46
  %v111 = vunpack.c.l.bf16 %v47
  %v112 = vunpack.c.l.bf16 %v48
  %v113 = vunpack.c.l.bf16 %v49
  %v114 = vunpack.c.l.bf16 %v50
  %v115 = vunpack.c.l.bf16 %v51
  %v116 = vunpack.c.l.bf16 %v52
  %v117 = vunpack.c.l.bf16 %v53
  %v118 = vunpack.c.l.bf16 %v54
  %v119 = vunpack.c.l.bf16 %v55
  %v120 = vunpack.c.l.bf16 %v56
  %v121 = vunpack.c.l.bf16 %v57
  %v122 = vunpack.c.l.bf16 %v58
  %v123 = vunpack.c.l.bf16 %v59
  %v124 = vunpack.c.l.bf16 %v60
  %v125 = vunpack.c.l.bf16 %v61
  %v126 = vunpack.c.l.bf16 %v62
  %v127 = vunpack.c.l.bf16 %v63
  %v128 = vunpack.c.l.bf16 %v64
  %v129 = vunpack.c.l.bf16 %v65
  %v130 = vunpack.c.l.bf16 %v66
  %v131 = vunpack.c.l.bf16 %v67
  %v132 = vunpack.c.l.bf16 %v68
  %v133 = vunpack.c.l.bf16 %v69
  %v134 = vunpack.c.l.bf16 %v70
  %v135 = vunpack.c.l.bf16 %v71
  %v136 = vunpack.c.l.bf16 %v72
  %v137 = vunpack.c.l.bf16 %v73
  %v138 = vunpack.c.l.bf16 %v74
  %v139 = vunpack.c.l.bf16 %v75
  %v140 = vunpack.c.l.bf16 %v76
  %v141 = vunpack.c.l.bf16 %v77
  %v142 = vunpack.c.l.bf16 %v78
  %v143 = vunpack.c.l.bf16 %v79
  %v144 = vunpack.c.l.bf16 %v80
  %v145 = vunpack.c.l.bf16 %v81
  %v146 = vunpack.c.l.bf16 %v82
  %v147 = vunpack.c.l.bf16 %v83
  %v148 = vld [vmem:[%s1] sm:$0x1]
  %v150 = vlaneseq
  %v151 = vshrl.u32 %v150, 7
  %v152 = vsub.s32 0, %v151
  %v153 = vrot.slane %v148, %v152
  %v155 = vmul.f32 %v84, %v153
  %v156 = vmul.f32 %v85, %v153
  %v157 = vmul.f32 %v86, %v153
  %v158 = vmul.f32 %v87, %v153
  %v159 = vmul.f32 %v88, %v153
  %v160 = vmul.f32 %v89, %v153
  %v161 = vmul.f32 %v90, %v153
  %v162 = vmul.f32 %v91, %v153
  %v163 = vmul.f32 %v92, %v153
  %v164 = vmul.f32 %v93, %v153
  %v165 = vmul.f32 %v94, %v153
  %v166 = vmul.f32 %v95, %v153
  %v167 = vmul.f32 %v96, %v153
  %v168 = vmul.f32 %v97, %v153
  %v169 = vmul.f32 %v98, %v153
  %v170 = vmul.f32 %v99, %v153
  %v171 = vmul.f32 %v100, %v153
  %v172 = vmul.f32 %v101, %v153
  %v173 = vmul.f32 %v102, %v153
  %v174 = vmul.f32 %v103, %v153
  %v175 = vmul.f32 %v104, %v153
  %v176 = vmul.f32 %v105, %v153
  %v177 = vmul.f32 %v106, %v153
  %v178 = vmul.f32 %v107, %v153
  %v179 = vmul.f32 %v108, %v153
  %v180 = vmul.f32 %v109, %v153
  %v181 = vmul.f32 %v110, %v153
  %v182 = vmul.f32 %v111, %v153
  %v183 = vmul.f32 %v112, %v153
  %v184 = vmul.f32 %v113, %v153
  %v185 = vmul.f32 %v114, %v153
  %v186 = vmul.f32 %v115, %v153
  %v187 = vmul.f32 %v116, %v153
  %v188 = vmul.f32 %v117, %v153
  %v189 = vmul.f32 %v118, %v153
  %v190 = vmul.f32 %v119, %v153
  %v191 = vmul.f32 %v120, %v153
  %v192 = vmul.f32 %v121, %v153
  %v193 = vmul.f32 %v122, %v153
  %v194 = vmul.f32 %v123, %v153
  %v195 = vmul.f32 %v124, %v153
  %v196 = vmul.f32 %v125, %v153
  %v197 = vmul.f32 %v126, %v153
  %v198 = vmul.f32 %v127, %v153
  %v199 = vmul.f32 %v128, %v153
  %v200 = vmul.f32 %v129, %v153
  %v201 = vmul.f32 %v130, %v153
  %v202 = vmul.f32 %v131, %v153
  %v203 = vmul.f32 %v132, %v153
  %v204 = vmul.f32 %v133, %v153
  %v205 = vmul.f32 %v134, %v153
  %v206 = vmul.f32 %v135, %v153
  %v207 = vmul.f32 %v136, %v153
  %v208 = vmul.f32 %v137, %v153
  %v209 = vmul.f32 %v138, %v153
  %v210 = vmul.f32 %v139, %v153
  %v211 = vmul.f32 %v140, %v153
  %v212 = vmul.f32 %v141, %v153
  %v213 = vmul.f32 %v142, %v153
  %v214 = vmul.f32 %v143, %v153
  %v215 = vmul.f32 %v144, %v153
  %v216 = vmul.f32 %v145, %v153
  %v217 = vmul.f32 %v146, %v153
  %v218 = vmul.f32 %v147, %v153
  %v219 = vld [vmem:[%s2] sm:$0x1]
  %v221 = vlaneseq
  %v222 = vshrl.u32 %v221, 7
  %v223 = vsub.s32 0, %v222
  %v224 = vrot.slane %v219, %v223
  %v226 = vadd.f32 %v155, %v224
  %v227 = vadd.f32 %v156, %v224
  %v228 = vadd.f32 %v157, %v224
  %v229 = vadd.f32 %v158, %v224
  %v230 = vadd.f32 %v159, %v224
  %v231 = vadd.f32 %v160, %v224
  %v232 = vadd.f32 %v161, %v224
  %v233 = vadd.f32 %v162, %v224
  %v234 = vadd.f32 %v163, %v224
  %v235 = vadd.f32 %v164, %v224
  %v236 = vadd.f32 %v165, %v224
  %v237 = vadd.f32 %v166, %v224
  %v238 = vadd.f32 %v167, %v224
  %v239 = vadd.f32 %v168, %v224
  %v240 = vadd.f32 %v169, %v224
  %v241 = vadd.f32 %v170, %v224
  %v242 = vadd.f32 %v171, %v224
  %v243 = vadd.f32 %v172, %v224
  %v244 = vadd.f32 %v173, %v224
  %v245 = vadd.f32 %v174, %v224
  %v246 = vadd.f32 %v175, %v224
  %v247 = vadd.f32 %v176, %v224
  %v248 = vadd.f32 %v177, %v224
  %v249 = vadd.f32 %v178, %v224
  %v250 = vadd.f32 %v179, %v224
  %v251 = vadd.f32 %v180, %v224
  %v252 = vadd.f32 %v181, %v224
  %v253 = vadd.f32 %v182, %v224
  %v254 = vadd.f32 %v183, %v224
  %v255 = vadd.f32 %v184, %v224
  %v256 = vadd.f32 %v185, %v224
  %v257 = vadd.f32 %v186, %v224
  %v258 = vadd.f32 %v187, %v224
  %v259 = vadd.f32 %v188, %v224
  %v260 = vadd.f32 %v189, %v224
  %v261 = vadd.f32 %v190, %v224
  %v262 = vadd.f32 %v191, %v224
  %v263 = vadd.f32 %v192, %v224
  %v264 = vadd.f32 %v193, %v224
  %v265 = vadd.f32 %v194, %v224
  %v266 = vadd.f32 %v195, %v224
  %v267 = vadd.f32 %v196, %v224
  %v268 = vadd.f32 %v197, %v224
  %v269 = vadd.f32 %v198, %v224
  %v270 = vadd.f32 %v199, %v224
  %v271 = vadd.f32 %v200, %v224
  %v272 = vadd.f32 %v201, %v224
  %v273 = vadd.f32 %v202, %v224
  %v274 = vadd.f32 %v203, %v224
  %v275 = vadd.f32 %v204, %v224
  %v276 = vadd.f32 %v205, %v224
  %v277 = vadd.f32 %v206, %v224
  %v278 = vadd.f32 %v207, %v224
  %v279 = vadd.f32 %v208, %v224
  %v280 = vadd.f32 %v209, %v224
  %v281 = vadd.f32 %v210, %v224
  %v282 = vadd.f32 %v211, %v224
  %v283 = vadd.f32 %v212, %v224
  %v284 = vadd.f32 %v213, %v224
  %v285 = vadd.f32 %v214, %v224
  %v286 = vadd.f32 %v215, %v224
  %v287 = vadd.f32 %v216, %v224
  %v288 = vadd.f32 %v217, %v224
  %v289 = vadd.f32 %v218, %v224
  %v290 = vmax.f32 %v226, 0.0
  %v291 = vmax.f32 %v227, 0.0
  %v292 = vmax.f32 %v228, 0.0
  %v293 = vmax.f32 %v229, 0.0
  %v294 = vmax.f32 %v230, 0.0
  %v295 = vmax.f32 %v231, 0.0
  %v296 = vmax.f32 %v232, 0.0
  %v297 = vmax.f32 %v233, 0.0
  %v298 = vmax.f32 %v234, 0.0
  %v299 = vmax.f32 %v235, 0.0
  %v300 = vmax.f32 %v236, 0.0
  %v301 = vmax.f32 %v237, 0.0
  %v302 = vmax.f32 %v238, 0.0
  %v303 = vmax.f32 %v239, 0.0
  %v304 = vmax.f32 %v240, 0.0
  %v305 = vmax.f32 %v241, 0.0
  %v306 = vmax.f32 %v242, 0.0
  %v307 = vmax.f32 %v243, 0.0
  %v308 = vmax.f32 %v244, 0.0
  %v309 = vmax.f32 %v245, 0.0
  %v310 = vmax.f32 %v246, 0.0
  %v311 = vmax.f32 %v247, 0.0
  %v312 = vmax.f32 %v248, 0.0
  %v313 = vmax.f32 %v249, 0.0
  %v314 = vmax.f32 %v250, 0.0
  %v315 = vmax.f32 %v251, 0.0
  %v316 = vmax.f32 %v252, 0.0
  %v317 = vmax.f32 %v253, 0.0
  %v318 = vmax.f32 %v254, 0.0
  %v319 = vmax.f32 %v255, 0.0
  %v320 = vmax.f32 %v256, 0.0
  %v321 = vmax.f32 %v257, 0.0
  %v322 = vmax.f32 %v258, 0.0
  %v323 = vmax.f32 %v259, 0.0
  %v324 = vmax.f32 %v260, 0.0
  %v325 = vmax.f32 %v261, 0.0
  %v326 = vmax.f32 %v262, 0.0
  %v327 = vmax.f32 %v263, 0.0
  %v328 = vmax.f32 %v264, 0.0
  %v329 = vmax.f32 %v265, 0.0
  %v330 = vmax.f32 %v266, 0.0
  %v331 = vmax.f32 %v267, 0.0
  %v332 = vmax.f32 %v268, 0.0
  %v333 = vmax.f32 %v269, 0.0
  %v334 = vmax.f32 %v270, 0.0
  %v335 = vmax.f32 %v271, 0.0
  %v336 = vmax.f32 %v272, 0.0
  %v337 = vmax.f32 %v273, 0.0
  %v338 = vmax.f32 %v274, 0.0
  %v339 = vmax.f32 %v275, 0.0
  %v340 = vmax.f32 %v276, 0.0
  %v341 = vmax.f32 %v277, 0.0
  %v342 = vmax.f32 %v278, 0.0
  %v343 = vmax.f32 %v279, 0.0
  %v344 = vmax.f32 %v280, 0.0
  %v345 = vmax.f32 %v281, 0.0
  %v346 = vmax.f32 %v282, 0.0
  %v347 = vmax.f32 %v283, 0.0
  %v348 = vmax.f32 %v284, 0.0
  %v349 = vmax.f32 %v285, 0.0
  %v350 = vmax.f32 %v286, 0.0
  %v351 = vmax.f32 %v287, 0.0
  %v352 = vmax.f32 %v288, 0.0
  %v353 = vmax.f32 %v289, 0.0
  %v354 = vpack.c.bf16 %v291, %v290
  %v355 = vpack.c.bf16 %v293, %v292
  %v356 = vpack.c.bf16 %v295, %v294
  %v357 = vpack.c.bf16 %v297, %v296
  %v358 = vpack.c.bf16 %v299, %v298
  %v359 = vpack.c.bf16 %v301, %v300
  %v360 = vpack.c.bf16 %v303, %v302
  %v361 = vpack.c.bf16 %v305, %v304
  %v362 = vpack.c.bf16 %v307, %v306
  %v363 = vpack.c.bf16 %v309, %v308
  %v364 = vpack.c.bf16 %v311, %v310
  %v365 = vpack.c.bf16 %v313, %v312
  %v366 = vpack.c.bf16 %v315, %v314
  %v367 = vpack.c.bf16 %v317, %v316
  %v368 = vpack.c.bf16 %v319, %v318
  %v369 = vpack.c.bf16 %v321, %v320
  %v370 = vpack.c.bf16 %v323, %v322
  %v371 = vpack.c.bf16 %v325, %v324
  %v372 = vpack.c.bf16 %v327, %v326
  %v373 = vpack.c.bf16 %v329, %v328
  %v374 = vpack.c.bf16 %v331, %v330
  %v375 = vpack.c.bf16 %v333, %v332
  %v376 = vpack.c.bf16 %v335, %v334
  %v377 = vpack.c.bf16 %v337, %v336
  %v378 = vpack.c.bf16 %v339, %v338
  %v379 = vpack.c.bf16 %v341, %v340
  %v380 = vpack.c.bf16 %v343, %v342
  %v381 = vpack.c.bf16 %v345, %v344
  %v382 = vpack.c.bf16 %v347, %v346
  %v383 = vpack.c.bf16 %v349, %v348
  %v384 = vpack.c.bf16 %v351, %v350
  %v385 = vpack.c.bf16 %v353, %v352
  %v386 = vld [vmem:[%s3] sm:$0xf]
  %v387 = vld [vmem:[%s3 + $0x4] sm:$0xf]
  %v388 = vld [vmem:[%s3 + $0x8] sm:$0xf]
  %v389 = vld [vmem:[%s3 + $0xc] sm:$0xf]
  %v390 = vld [vmem:[%s3 + $0x10] sm:$0xf]
  %v391 = vld [vmem:[%s3 + $0x14] sm:$0xf]
  %v392 = vld [vmem:[%s3 + $0x18] sm:$0xf]
  %v393 = vld [vmem:[%s3 + $0x1c] sm:$0xf]
  %v394 = vld [vmem:[%s3 + $0x20] sm:$0xf]
  %v395 = vld [vmem:[%s3 + $0x24] sm:$0xf]
  %v396 = vld [vmem:[%s3 + $0x28] sm:$0xf]
  %v397 = vld [vmem:[%s3 + $0x2c] sm:$0xf]
  %v398 = vld [vmem:[%s3 + $0x30] sm:$0xf]
  %v399 = vld [vmem:[%s3 + $0x34] sm:$0xf]
  %v400 = vld [vmem:[%s3 + $0x38] sm:$0xf]
  %v401 = vld [vmem:[%s3 + $0x3c] sm:$0xf]
  %v418 = vunpack.c.l.b16 %v386
  %v419 = vunpack.c.l.b16 %v387
  %v420 = vunpack.c.l.b16 %v388
  %v421 = vunpack.c.l.b16 %v389
  %v422 = vunpack.c.l.b16 %v390
  %v423 = vunpack.c.l.b16 %v391
  %v424 = vunpack.c.l.b16 %v392
  %v425 = vunpack.c.l.b16 %v393
  %v426 = vunpack.c.l.b16 %v394
  %v427 = vunpack.c.l.b16 %v395
  %v428 = vunpack.c.l.b16 %v396
  %v429 = vunpack.c.l.b16 %v397
  %v430 = vunpack.c.l.b16 %v398
  %v431 = vunpack.c.l.b16 %v399
  %v432 = vunpack.c.l.b16 %v400
  %v433 = vunpack.c.l.b16 %v401
  %v434 = vpack.c.b16 %v419, %v418
  %v435 = vpack.c.b16 %v421, %v420
  %v436 = vpack.c.b16 %v423, %v422
  %v437 = vpack.c.b16 %v425, %v424
  %v438 = vpack.c.b16 %v427, %v426
  %v439 = vpack.c.b16 %v429, %v428
  %v440 = vpack.c.b16 %v431, %v430
  %v441 = vpack.c.b16 %v433, %v432
  %450 = vmatprep.subr.bf16.mxu0 0
  %451 = vmatpush1.bf16.msra.mxu0 %v434
  %452 = vmatprep.subr.bf16.mxu0 0
  %453 = vmatpush1.bf16.msra.mxu0 %v435
  %454 = vmatprep.subr.bf16.mxu0 0
  %455 = vmatpush1.bf16.msra.mxu0 %v436
  %456 = vmatprep.subr.bf16.mxu0 0
  %457 = vmatpush1.bf16.msra.mxu0 %v437
  %458 = vmatprep.subr.bf16.mxu0 0
  %459 = vmatpush1.bf16.msra.mxu0 %v438
  %460 = vmatprep.subr.bf16.mxu0 0
  %461 = vmatpush1.bf16.msra.mxu0 %v439
  %462 = vmatprep.subr.bf16.mxu0 0
  %463 = vmatpush1.bf16.msra.mxu0 %v440
  %464 = vmatprep.subr.bf16.mxu0 0
  %465 = vmatpush1.bf16.msra.mxu0 %v441
  %466 = vmatprep.subr.bf16.mxu0 0
  %467 = vmatpush1.bf16.msra.mxu0 0
  %468 = vmatprep.subr.bf16.mxu0 0
  %469 = vmatpush1.bf16.msra.mxu0 0
  %470 = vmatprep.subr.bf16.mxu0 0
  %471 = vmatpush1.bf16.msra.mxu0 0
  %472 = vmatprep.subr.bf16.mxu0 0
  %473 = vmatpush1.bf16.msra.mxu0 0
  %474 = vmatprep.subr.bf16.mxu0 0
  %475 = vmatpush1.bf16.msra.mxu0 0
  %476 = vmatprep.subr.bf16.mxu0 0
  %477 = vmatpush1.bf16.msra.mxu0 0
  %478 = vmatprep.subr.bf16.mxu0 0
  %479 = vmatpush1.bf16.msra.mxu0 0
  %480 = vmatprep.subr.bf16.mxu0 0
  %481 = vmatpush1.bf16.msra.mxu0 0
  %482 = vmatprep.mubr.bf16.mxu0 0
  %483 = vmatmul.mubr.bf16.gmra.mrb[0].mxu0 %v354
  %v484 = vpop.f32.mrb[0].mxu0
  %v485 = vadd.f32 0.0, %v484
  %v486 = vpop.f32.mrb[0].mxu0
  %v487 = vpop.f32.mrb[0].mxu0
  %v488 = vadd.f32 0.0, %v487
  %v489 = vpop.f32.mrb[0].mxu0
  %490 = vmatprep.mubr.bf16.mxu0 0
  %491 = vmatmul.mubr.bf16.gmra.mrb[0].mxu0 %v355
  %v492 = vpop.f32.mrb[0].mxu0
  %v493 = vadd.f32 0.0, %v492
  %v494 = vpop.f32.mrb[0].mxu0
  %v495 = vpop.f32.mrb[0].mxu0
  %v496 = vadd.f32 0.0, %v495
  %v497 = vpop.f32.mrb[0].mxu0
  %498 = vmatprep.mubr.bf16.mxu0 0
  %499 = vmatmul.mubr.bf16.gmra.mrb[0].mxu0 %v356
  %v500 = vpop.f32.mrb[0].mxu0
  %v501 = vadd.f32 0.0, %v500
  %v502 = vpop.f32.mrb[0].mxu0
  %v503 = vpop.f32.mrb[0].mxu0
  %v504 = vadd.f32 0.0, %v503
  %v505 = vpop.f32.mrb[0].mxu0
  %506 = vmatprep.mubr.bf16.mxu0 0
  %507 = vmatmul.mubr.bf16.gmra.mrb[0].mxu0 %v357
  %v508 = vpop.f32.mrb[0].mxu0
  %v509 = vadd.f32 0.0, %v508
  %v510 = vpop.f32.mrb[0].mxu0
  %v511 = vpop.f32.mrb[0].mxu0
  %v512 = vadd.f32 0.0, %v511
  %v513 = vpop.f32.mrb[0].mxu0
  %514 = vmatprep.mubr.bf16.mxu0 0
  %515 = vmatmul.mubr.bf16.gmra.mrb[0].mxu0 %v358
  %v516 = vpop.f32.mrb[0].mxu0
  %v517 = vadd.f32 0.0, %v516
  %v518 = vpop.f32.mrb[0].mxu0
  %v519 = vpop.f32.mrb[0].mxu0
  %v520 = vadd.f32 0.0, %v519
  %v521 = vpop.f32.mrb[0].mxu0
  %522 = vmatprep.mubr.bf16.mxu0 0
  %523 = vmatmul.mubr.bf16.gmra.mrb[0].mxu0 %v359
  %v524 = vpop.f32.mrb[0].mxu0
  %v525 = vadd.f32 0.0, %v524
  %v526 = vpop.f32.mrb[0].mxu0
  %v527 = vpop.f32.mrb[0].mxu0
  %v528 = vadd.f32 0.0, %v527
  %v529 = vpop.f32.mrb[0].mxu0
  %530 = vmatprep.mubr.bf16.mxu0 0
  %531 = vmatmul.mubr.bf16.gmra.mrb[0].mxu0 %v360
  %v532 = vpop.f32.mrb[0].mxu0
  %v533 = vadd.f32 0.0, %v532
  %v534 = vpop.f32.mrb[0].mxu0
  %v535 = vpop.f32.mrb[0].mxu0
  %v536 = vadd.f32 0.0, %v535
  %v537 = vpop.f32.mrb[0].mxu0
  %538 = vmatprep.mubr.bf16.mxu0 0
  %539 = vmatmul.mubr.bf16.gmra.mrb[0].mxu0 %v361
  %v540 = vpop.f32.mrb[0].mxu0
  %v541 = vadd.f32 0.0, %v540
  %v542 = vpop.f32.mrb[0].mxu0
  %v543 = vpop.f32.mrb[0].mxu0
  %v544 = vadd.f32 0.0, %v543
  %v545 = vpop.f32.mrb[0].mxu0
  %546 = vmatprep.mubr.bf16.mxu0 0
  %547 = vmatmul.mubr.bf16.gmra.mrb[0].mxu0 %v362
  %v548 = vpop.f32.mrb[0].mxu0
  %v549 = vadd.f32 0.0, %v548
  %v550 = vpop.f32.mrb[0].mxu0
  %v551 = vpop.f32.mrb[0].mxu0
  %v552 = vadd.f32 0.0, %v551
  %v553 = vpop.f32.mrb[0].mxu0
  %554 = vmatprep.mubr.bf16.mxu0 0
  %555 = vmatmul.mubr.bf16.gmra.mrb[0].mxu0 %v363
  %v556 = vpop.f32.mrb[0].mxu0
  %v557 = vadd.f32 0.0, %v556
  %v558 = vpop.f32.mrb[0].mxu0
  %v559 = vpop.f32.mrb[0].mxu0
  %v560 = vadd.f32 0.0, %v559
  %v561 = vpop.f32.mrb[0].mxu0
  %562 = vmatprep.mubr.bf16.mxu0 0
  %563 = vmatmul.mubr.bf16.gmra.mrb[0].mxu0 %v364
  %v564 = vpop.f32.mrb[0].mxu0
  %v565 = vadd.f32 0.0, %v564
  %v566 = vpop.f32.mrb[0].mxu0
  %v567 = vpop.f32.mrb[0].mxu0
  %v568 = vadd.f32 0.0, %v567
  %v569 = vpop.f32.mrb[0].mxu0
  %570 = vmatprep.mubr.bf16.mxu0 0
  %571 = vmatmul.mubr.bf16.gmra.mrb[0].mxu0 %v365
  %v572 = vpop.f32.mrb[0].mxu0
  %v573 = vadd.f32 0.0, %v572
  %v574 = vpop.f32.mrb[0].mxu0
  %v575 = vpop.f32.mrb[0].mxu0
  %v576 = vadd.f32 0.0, %v575
  %v577 = vpop.f32.mrb[0].mxu0
  %578 = vmatprep.mubr.bf16.mxu0 0
  %579 = vmatmul.mubr.bf16.gmra.mrb[0].mxu0 %v366
  %v580 = vpop.f32.mrb[0].mxu0
  %v581 = vadd.f32 0.0, %v580
  %v582 = vpop.f32.mrb[0].mxu0
  %v583 = vpop.f32.mrb[0].mxu0
  %v584 = vadd.f32 0.0, %v583
  %v585 = vpop.f32.mrb[0].mxu0
  %586 = vmatprep.mubr.bf16.mxu0 0
  %587 = vmatmul.mubr.bf16.gmra.mrb[0].mxu0 %v367
  %v588 = vpop.f32.mrb[0].mxu0
  %v589 = vadd.f32 0.0, %v588
  %v590 = vpop.f32.mrb[0].mxu0
  %v591 = vpop.f32.mrb[0].mxu0
  %v592 = vadd.f32 0.0, %v591
  %v593 = vpop.f32.mrb[0].mxu0
  %594 = vmatprep.mubr.bf16.mxu0 0
  %595 = vmatmul.mubr.bf16.gmra.mrb[0].mxu0 %v368
  %v596 = vpop.f32.mrb[0].mxu0
  %v597 = vadd.f32 0.0, %v596
  %v598 = vpop.f32.mrb[0].mxu0
  %v599 = vpop.f32.mrb[0].mxu0
  %v600 = vadd.f32 0.0, %v599
  %v601 = vpop.f32.mrb[0].mxu0
  %602 = vmatprep.mubr.bf16.mxu0 0
  %603 = vmatmul.mubr.bf16.gmra.mrb[0].mxu0 %v369
  %v604 = vpop.f32.mrb[0].mxu0
  %v605 = vadd.f32 0.0, %v604
  %v606 = vpop.f32.mrb[0].mxu0
  %v607 = vpop.f32.mrb[0].mxu0
  %v608 = vadd.f32 0.0, %v607
  %v609 = vpop.f32.mrb[0].mxu0
  %610 = vmatprep.mubr.bf16.mxu0 0
  %611 = vmatmul.mubr.bf16.gmra.mrb[0].mxu0 %v370
  %v612 = vpop.f32.mrb[0].mxu0
  %v613 = vadd.f32 0.0, %v612
  %v614 = vpop.f32.mrb[0].mxu0
  %v615 = vpop.f32.mrb[0].mxu0
  %v616 = vadd.f32 0.0, %v615
  %v617 = vpop.f32.mrb[0].mxu0
  %618 = vmatprep.mubr.bf16.mxu0 0
  %619 = vmatmul.mubr.bf16.gmra.mrb[0].mxu0 %v371
  %v620 = vpop.f32.mrb[0].mxu0
  %v621 = vadd.f32 0.0, %v620
  %v622 = vpop.f32.mrb[0].mxu0
  %v623 = vpop.f32.mrb[0].mxu0
  %v624 = vadd.f32 0.0, %v623
  %v625 = vpop.f32.mrb[0].mxu0
  %626 = vmatprep.mubr.bf16.mxu0 0
  %627 = vmatmul.mubr.bf16.gmra.mrb[0].mxu0 %v372
  %v628 = vpop.f32.mrb[0].mxu0
  %v629 = vadd.f32 0.0, %v628
  %v630 = vpop.f32.mrb[0].mxu0
  %v631 = vpop.f32.mrb[0].mxu0
  %v632 = vadd.f32 0.0, %v631
  %v633 = vpop.f32.mrb[0].mxu0
  %634 = vmatprep.mubr.bf16.mxu0 0
  %635 = vmatmul.mubr.bf16.gmra.mrb[0].mxu0 %v373
  %v636 = vpop.f32.mrb[0].mxu0
  %v637 = vadd.f32 0.0, %v636
  %v638 = vpop.f32.mrb[0].mxu0
  %v639 = vpop.f32.mrb[0].mxu0
  %v640 = vadd.f32 0.0, %v639
  %v641 = vpop.f32.mrb[0].mxu0
  %642 = vmatprep.mubr.bf16.mxu0 0
  %643 = vmatmul.mubr.bf16.gmra.mrb[0].mxu0 %v374
  %v644 = vpop.f32.mrb[0].mxu0
  %v645 = vadd.f32 0.0, %v644
  %v646 = vpop.f32.mrb[0].mxu0
  %v647 = vpop.f32.mrb[0].mxu0
  %v648 = vadd.f32 0.0, %v647
  %v649 = vpop.f32.mrb[0].mxu0
  %650 = vmatprep.mubr.bf16.mxu0 0
  %651 = vmatmul.mubr.bf16.gmra.mrb[0].mxu0 %v375
  %v652 = vpop.f32.mrb[0].mxu0
  %v653 = vadd.f32 0.0, %v652
  %v654 = vpop.f32.mrb[0].mxu0
  %v655 = vpop.f32.mrb[0].mxu0
  %v656 = vadd.f32 0.0, %v655
  %v657 = vpop.f32.mrb[0].mxu0
  %658 = vmatprep.mubr.bf16.mxu0 0
  %659 = vmatmul.mubr.bf16.gmra.mrb[0].mxu0 %v376
  %v660 = vpop.f32.mrb[0].mxu0
  %v661 = vadd.f32 0.0, %v660
  %v662 = vpop.f32.mrb[0].mxu0
  %v663 = vpop.f32.mrb[0].mxu0
  %v664 = vadd.f32 0.0, %v663
  %v665 = vpop.f32.mrb[0].mxu0
  %666 = vmatprep.mubr.bf16.mxu0 0
  %667 = vmatmul.mubr.bf16.gmra.mrb[0].mxu0 %v377
  %v668 = vpop.f32.mrb[0].mxu0
  %v669 = vadd.f32 0.0, %v668
  %v670 = vpop.f32.mrb[0].mxu0
  %v671 = vpop.f32.mrb[0].mxu0
  %v672 = vadd.f32 0.0, %v671
  %v673 = vpop.f32.mrb[0].mxu0
  %674 = vmatprep.mubr.bf16.mxu0 0
  %675 = vmatmul.mubr.bf16.gmra.mrb[0].mxu0 %v378
  %v676 = vpop.f32.mrb[0].mxu0
  %v677 = vadd.f32 0.0, %v676
  %v678 = vpop.f32.mrb[0].mxu0
  %v679 = vpop.f32.mrb[0].mxu0
  %v680 = vadd.f32 0.0, %v679
  %v681 = vpop.f32.mrb[0].mxu0
  %682 = vmatprep.mubr.bf16.mxu0 0
  %683 = vmatmul.mubr.bf16.gmra.mrb[0].mxu0 %v379
  %v684 = vpop.f32.mrb[0].mxu0
  %v685 = vadd.f32 0.0, %v684
  %v686 = vpop.f32.mrb[0].mxu0
  %v687 = vpop.f32.mrb[0].mxu0
  %v688 = vadd.f32 0.0, %v687
  %v689 = vpop.f32.mrb[0].mxu0
  %690 = vmatprep.mubr.bf16.mxu0 0
  %691 = vmatmul.mubr.bf16.gmra.mrb[0].mxu0 %v380
  %v692 = vpop.f32.mrb[0].mxu0
  %v693 = vadd.f32 0.0, %v692
  %v694 = vpop.f32.mrb[0].mxu0
  %v695 = vpop.f32.mrb[0].mxu0
  %v696 = vadd.f32 0.0, %v695
  %v697 = vpop.f32.mrb[0].mxu0
  %698 = vmatprep.mubr.bf16.mxu0 0
  %699 = vmatmul.mubr.bf16.gmra.mrb[0].mxu0 %v381
  %v700 = vpop.f32.mrb[0].mxu0
  %v701 = vadd.f32 0.0, %v700
  %v702 = vpop.f32.mrb[0].mxu0
  %v703 = vpop.f32.mrb[0].mxu0
  %v704 = vadd.f32 0.0, %v703
  %v705 = vpop.f32.mrb[0].mxu0
  %706 = vmatprep.mubr.bf16.mxu0 0
  %707 = vmatmul.mubr.bf16.gmra.mrb[0].mxu0 %v382
  %v708 = vpop.f32.mrb[0].mxu0
  %v709 = vadd.f32 0.0, %v708
  %v710 = vpop.f32.mrb[0].mxu0
  %v711 = vpop.f32.mrb[0].mxu0
  %v712 = vadd.f32 0.0, %v711
  %v713 = vpop.f32.mrb[0].mxu0
  %714 = vmatprep.mubr.bf16.mxu0 0
  %715 = vmatmul.mubr.bf16.gmra.mrb[0].mxu0 %v383
  %v716 = vpop.f32.mrb[0].mxu0
  %v717 = vadd.f32 0.0, %v716
  %v718 = vpop.f32.mrb[0].mxu0
  %v719 = vpop.f32.mrb[0].mxu0
  %v720 = vadd.f32 0.0, %v719
  %v721 = vpop.f32.mrb[0].mxu0
  %722 = vmatprep.mubr.bf16.mxu0 0
  %723 = vmatmul.mubr.bf16.gmra.mrb[0].mxu0 %v384
  %v724 = vpop.f32.mrb[0].mxu0
  %v725 = vadd.f32 0.0, %v724
  %v726 = vpop.f32.mrb[0].mxu0
  %v727 = vpop.f32.mrb[0].mxu0
  %v728 = vadd.f32 0.0, %v727
  %v729 = vpop.f32.mrb[0].mxu0
  %730 = vmatprep.mubr.bf16.mxu0 0
  %731 = vmatmul.mubr.bf16.gmra.mrb[0].mxu0 %v385
  %v732 = vpop.f32.mrb[0].mxu0
  %v733 = vadd.f32 0.0, %v732
  %v734 = vpop.f32.mrb[0].mxu0
  %v735 = vpop.f32.mrb[0].mxu0
  %v736 = vadd.f32 0.0, %v735
  %v737 = vpop.f32.mrb[0].mxu0
  %738 = vdwg.mxu0
  %v739 = vpack.c.bf16 %v488, %v485
  %v740 = vpack.c.bf16 %v496, %v493
  %v741 = vpack.c.bf16 %v504, %v501
  %v742 = vpack.c.bf16 %v512, %v509
  %v743 = vpack.c.bf16 %v520, %v517
  %v744 = vpack.c.bf16 %v528, %v525
  %v745 = vpack.c.bf16 %v536, %v533
  %v746 = vpack.c.bf16 %v544, %v541
  %v747 = vpack.c.bf16 %v552, %v549
  %v748 = vpack.c.bf16 %v560, %v557
  %v749 = vpack.c.bf16 %v568, %v565
  %v750 = vpack.c.bf16 %v576, %v573
  %v751 = vpack.c.bf16 %v584, %v581
  %v752 = vpack.c.bf16 %v592, %v589
  %v753 = vpack.c.bf16 %v600, %v597
  %v754 = vpack.c.bf16 %v608, %v605
  %v755 = vpack.c.bf16 %v616, %v613
  %v756 = vpack.c.bf16 %v624, %v621
  %v757 = vpack.c.bf16 %v632, %v629
  %v758 = vpack.c.bf16 %v640, %v637
  %v759 = vpack.c.bf16 %v648, %v645
  %v760 = vpack.c.bf16 %v656, %v653
  %v761 = vpack.c.bf16 %v664, %v661
  %v762 = vpack.c.bf16 %v672, %v669
  %v763 = vpack.c.bf16 %v680, %v677
  %v764 = vpack.c.bf16 %v688, %v685
  %v765 = vpack.c.bf16 %v696, %v693
  %v766 = vpack.c.bf16 %v704, %v701
  %v767 = vpack.c.bf16 %v712, %v709
  %v768 = vpack.c.bf16 %v720, %v717
  %v769 = vpack.c.bf16 %v728, %v725
  %v770 = vpack.c.bf16 %v736, %v733
  %v803 = vunpack.c.l.b16 %v739
  %v804 = vunpack.c.h.b16 %v739
  %v805 = vunpack.c.l.b16 %v740
  %v806 = vunpack.c.h.b16 %v740
  %v807 = vunpack.c.l.b16 %v741
  %v808 = vunpack.c.h.b16 %v741
  %v809 = vunpack.c.l.b16 %v742
  %v810 = vunpack.c.h.b16 %v742
  %v811 = vunpack.c.l.b16 %v743
  %v812 = vunpack.c.h.b16 %v743
  %v813 = vunpack.c.l.b16 %v744
  %v814 = vunpack.c.h.b16 %v744
  %v815 = vunpack.c.l.b16 %v745
  %v816 = vunpack.c.h.b16 %v745
  %v817 = vunpack.c.l.b16 %v746
  %v818 = vunpack.c.h.b16 %v746
  %v819 = vunpack.c.l.b16 %v747
  %v820 = vunpack.c.h.b16 %v747
  %v821 = vunpack.c.l.b16 %v748
  %v822 = vunpack.c.h.b16 %v748
  %v823 = vunpack.c.l.b16 %v749
  %v824 = vunpack.c.h.b16 %v749
  %v825 = vunpack.c.l.b16 %v750
  %v826 = vunpack.c.h.b16 %v750
  %v827 = vunpack.c.l.b16 %v751
  %v828 = vunpack.c.h.b16 %v751
  %v829 = vunpack.c.l.b16 %v752
  %v830 = vunpack.c.h.b16 %v752
  %v831 = vunpack.c.l.b16 %v753
  %v832 = vunpack.c.h.b16 %v753
  %v833 = vunpack.c.l.b16 %v754
  %v834 = vunpack.c.h.b16 %v754
  %v835 = vunpack.c.l.b16 %v755
  %v836 = vunpack.c.h.b16 %v755
  %v837 = vunpack.c.l.b16 %v756
  %v838 = vunpack.c.h.b16 %v756
  %v839 = vunpack.c.l.b16 %v757
  %v840 = vunpack.c.h.b16 %v757
  %v841 = vunpack.c.l.b16 %v758
  %v842 = vunpack.c.h.b16 %v758
  %v843 = vunpack.c.l.b16 %v759
  %v844 = vunpack.c.h.b16 %v759
  %v845 = vunpack.c.l.b16 %v760
  %v846 = vunpack.c.h.b16 %v760
  %v847 = vunpack.c.l.b16 %v761
  %v848 = vunpack.c.h.b16 %v761
  %v849 = vunpack.c.l.b16 %v762
  %v850 = vunpack.c.h.b16 %v762
  %v851 = vunpack.c.l.b16 %v763
  %v852 = vunpack.c.h.b16 %v763
  %v853 = vunpack.c.l.b16 %v764
  %v854 = vunpack.c.h.b16 %v764
  %v855 = vunpack.c.l.b16 %v765
  %v856 = vunpack.c.h.b16 %v765
  %v857 = vunpack.c.l.b16 %v766
  %v858 = vunpack.c.h.b16 %v766
  %v859 = vunpack.c.l.b16 %v767
  %v860 = vunpack.c.h.b16 %v767
  %v861 = vunpack.c.l.b16 %v768
  %v862 = vunpack.c.h.b16 %v768
  %v863 = vunpack.c.l.b16 %v769
  %v864 = vunpack.c.h.b16 %v769
  %v865 = vunpack.c.l.b16 %v770
  %v866 = vunpack.c.h.b16 %v770
  %v867 = vpack.c.b16 %v803, %v803
  %v868 = vpack.c.b16 %v804, %v804
  %v869 = vpack.c.b16 %v805, %v805
  %v870 = vpack.c.b16 %v806, %v806
  %v871 = vpack.c.b16 %v807, %v807
  %v872 = vpack.c.b16 %v808, %v808
  %v873 = vpack.c.b16 %v809, %v809
  %v874 = vpack.c.b16 %v810, %v810
  %v875 = vpack.c.b16 %v811, %v811
  %v876 = vpack.c.b16 %v812, %v812
  %v877 = vpack.c.b16 %v813, %v813
  %v878 = vpack.c.b16 %v814, %v814
  %v879 = vpack.c.b16 %v815, %v815
  %v880 = vpack.c.b16 %v816, %v816
  %v881 = vpack.c.b16 %v817, %v817
  %v882 = vpack.c.b16 %v818, %v818
  %v883 = vpack.c.b16 %v819, %v819
  %v884 = vpack.c.b16 %v820, %v820
  %v885 = vpack.c.b16 %v821, %v821
  %v886 = vpack.c.b16 %v822, %v822
  %v887 = vpack.c.b16 %v823, %v823
  %v888 = vpack.c.b16 %v824, %v824
  %v889 = vpack.c.b16 %v825, %v825
  %v890 = vpack.c.b16 %v826, %v826
  %v891 = vpack.c.b16 %v827, %v827
  %v892 = vpack.c.b16 %v828, %v828
  %v893 = vpack.c.b16 %v829, %v829
  %v894 = vpack.c.b16 %v830, %v830
  %v895 = vpack.c.b16 %v831, %v831
  %v896 = vpack.c.b16 %v832, %v832
  %v897 = vpack.c.b16 %v833, %v833
  %v898 = vpack.c.b16 %v834, %v834
  %v899 = vpack.c.b16 %v835, %v835
  %v900 = vpack.c.b16 %v836, %v836
  %v901 = vpack.c.b16 %v837, %v837
  %v902 = vpack.c.b16 %v838, %v838
  %v903 = vpack.c.b16 %v839, %v839
  %v904 = vpack.c.b16 %v840, %v840
  %v905 = vpack.c.b16 %v841, %v841
  %v906 = vpack.c.b16 %v842, %v842
  %v907 = vpack.c.b16 %v843, %v843
  %v908 = vpack.c.b16 %v844, %v844
  %v909 = vpack.c.b16 %v845, %v845
  %v910 = vpack.c.b16 %v846, %v846
  %v911 = vpack.c.b16 %v847, %v847
  %v912 = vpack.c.b16 %v848, %v848
  %v913 = vpack.c.b16 %v849, %v849
  %v914 = vpack.c.b16 %v850, %v850
  %v915 = vpack.c.b16 %v851, %v851
  %v916 = vpack.c.b16 %v852, %v852
  %v917 = vpack.c.b16 %v853, %v853
  %v918 = vpack.c.b16 %v854, %v854
  %v919 = vpack.c.b16 %v855, %v855
  %v920 = vpack.c.b16 %v856, %v856
  %v921 = vpack.c.b16 %v857, %v857
  %v922 = vpack.c.b16 %v858, %v858
  %v923 = vpack.c.b16 %v859, %v859
  %v924 = vpack.c.b16 %v860, %v860
  %v925 = vpack.c.b16 %v861, %v861
  %v926 = vpack.c.b16 %v862, %v862
  %v927 = vpack.c.b16 %v863, %v863
  %v928 = vpack.c.b16 %v864, %v864
  %v929 = vpack.c.b16 %v865, %v865
  %v930 = vpack.c.b16 %v866, %v866
  %995 = vst [vmem:[%s4] sm:$0xf] %v867
  %996 = vst [vmem:[%s4 + $0x4] sm:$0xf] %v868
  %997 = vst [vmem:[%s4 + $0x8] sm:$0xf] %v869
  %998 = vst [vmem:[%s4 + $0xc] sm:$0xf] %v870
  %999 = vst [vmem:[%s4 + $0x10] sm:$0xf] %v871
  %1000 = vst [vmem:[%s4 + $0x14] sm:$0xf] %v872
  %1001 = vst [vmem:[%s4 + $0x18] sm:$0xf] %v873
  %1002 = vst [vmem:[%s4 + $0x1c] sm:$0xf] %v874
  %1003 = vst [vmem:[%s4 + $0x20] sm:$0xf] %v875
  %1004 = vst [vmem:[%s4 + $0x24] sm:$0xf] %v876
  %1005 = vst [vmem:[%s4 + $0x28] sm:$0xf] %v877
  %1006 = vst [vmem:[%s4 + $0x2c] sm:$0xf] %v878
  %1007 = vst [vmem:[%s4 + $0x30] sm:$0xf] %v879
  %1008 = vst [vmem:[%s4 + $0x34] sm:$0xf] %v880
  %1009 = vst [vmem:[%s4 + $0x38] sm:$0xf] %v881
  %1010 = vst [vmem:[%s4 + $0x3c] sm:$0xf] %v882
  %1011 = vst [vmem:[%s4 + $0x40] sm:$0xf] %v883
  %1012 = vst [vmem:[%s4 + $0x44] sm:$0xf] %v884
  %1013 = vst [vmem:[%s4 + $0x48] sm:$0xf] %v885
  %1014 = vst [vmem:[%s4 + $0x4c] sm:$0xf] %v886
  %1015 = vst [vmem:[%s4 + $0x50] sm:$0xf] %v887
  %1016 = vst [vmem:[%s4 + $0x54] sm:$0xf] %v888
  %1017 = vst [vmem:[%s4 + $0x58] sm:$0xf] %v889
  %1018 = vst [vmem:[%s4 + $0x5c] sm:$0xf] %v890
  %1019 = vst [vmem:[%s4 + $0x60] sm:$0xf] %v891
  %1020 = vst [vmem:[%s4 + $0x64] sm:$0xf] %v892
  %1021 = vst [vmem:[%s4 + $0x68] sm:$0xf] %v893
  %1022 = vst [vmem:[%s4 + $0x6c] sm:$0xf] %v894
  %1023 = vst [vmem:[%s4 + $0x70] sm:$0xf] %v895
  %1024 = vst [vmem:[%s4 + $0x74] sm:$0xf] %v896
  %1025 = vst [vmem:[%s4 + $0x78] sm:$0xf] %v897
  %1026 = vst [vmem:[%s4 + $0x7c] sm:$0xf] %v898
  %1027 = vst [vmem:[%s4 + $0x80] sm:$0xf] %v899
  %1028 = vst [vmem:[%s4 + $0x84] sm:$0xf] %v900
  %1029 = vst [vmem:[%s4 + $0x88] sm:$0xf] %v901
  %1030 = vst [vmem:[%s4 + $0x8c] sm:$0xf] %v902
  %1031 = vst [vmem:[%s4 + $0x90] sm:$0xf] %v903
  %1032 = vst [vmem:[%s4 + $0x94] sm:$0xf] %v904
  %1033 = vst [vmem:[%s4 + $0x98] sm:$0xf] %v905
  %1034 = vst [vmem:[%s4 + $0x9c] sm:$0xf] %v906
  %1035 = vst [vmem:[%s4 + $0xa0] sm:$0xf] %v907
  %1036 = vst [vmem:[%s4 + $0xa4] sm:$0xf] %v908
  %1037 = vst [vmem:[%s4 + $0xa8] sm:$0xf] %v909
  %1038 = vst [vmem:[%s4 + $0xac] sm:$0xf] %v910
  %1039 = vst [vmem:[%s4 + $0xb0] sm:$0xf] %v911
  %1040 = vst [vmem:[%s4 + $0xb4] sm:$0xf] %v912
  %1041 = vst [vmem:[%s4 + $0xb8] sm:$0xf] %v913
  %1042 = vst [vmem:[%s4 + $0xbc] sm:$0xf] %v914
  %1043 = vst [vmem:[%s4 + $0xc0] sm:$0xf] %v915
  %1044 = vst [vmem:[%s4 + $0xc4] sm:$0xf] %v916
  %1045 = vst [vmem:[%s4 + $0xc8] sm:$0xf] %v917
  %1046 = vst [vmem:[%s4 + $0xcc] sm:$0xf] %v918
  %1047 = vst [vmem:[%s4 + $0xd0] sm:$0xf] %v919
  %1048 = vst [vmem:[%s4 + $0xd4] sm:$0xf] %v920
  %1049 = vst [vmem:[%s4 + $0xd8] sm:$0xf] %v921
  %1050 = vst [vmem:[%s4 + $0xdc] sm:$0xf] %v922
  %1051 = vst [vmem:[%s4 + $0xe0] sm:$0xf] %v923
  %1052 = vst [vmem:[%s4 + $0xe4] sm:$0xf] %v924
  %1053 = vst [vmem:[%s4 + $0xe8] sm:$0xf] %v925
  %1054 = vst [vmem:[%s4 + $0xec] sm:$0xf] %v926
  %1055 = vst [vmem:[%s4 + $0xf0] sm:$0xf] %v927
  %1056 = vst [vmem:[%s4 + $0xf4] sm:$0xf] %v928
  %1057 = vst [vmem:[%s4 + $0xf8] sm:$0xf] %v929
  %1058 = vst [vmem:[%s4 + $0xfc] sm:$0xf] %v930
  %v1059 = vadd.f32 %v485, %v488
  %v1060 = vadd.f32 %v1059, %v493
  %v1061 = vadd.f32 %v1060, %v496
  %v1062 = vadd.f32 %v1061, %v501
  %v1063 = vadd.f32 %v1062, %v504
  %v1064 = vadd.f32 %v1063, %v509
  %v1065 = vadd.f32 %v1064, %v512
  %v1066 = vadd.f32 %v1065, %v517
  %v1067 = vadd.f32 %v1066, %v520
  %v1068 = vadd.f32 %v1067, %v525
  %v1069 = vadd.f32 %v1068, %v528
  %v1070 = vadd.f32 %v1069, %v533
  %v1071 = vadd.f32 %v1070, %v536
  %v1072 = vadd.f32 %v1071, %v541
  %v1073 = vadd.f32 %v1072, %v544
  %v1074 = vadd.f32 %v1073, %v549
  %v1075 = vadd.f32 %v1074, %v552
  %v1076 = vadd.f32 %v1075, %v557
  %v1077 = vadd.f32 %v1076, %v560
  %v1078 = vadd.f32 %v1077, %v565
  %v1079 = vadd.f32 %v1078, %v568
  %v1080 = vadd.f32 %v1079, %v573
  %v1081 = vadd.f32 %v1080, %v576
  %v1082 = vadd.f32 %v1081, %v581
  %v1083 = vadd.f32 %v1082, %v584
  %v1084 = vadd.f32 %v1083, %v589
  %v1085 = vadd.f32 %v1084, %v592
  %v1086 = vadd.f32 %v1085, %v597
  %v1087 = vadd.f32 %v1086, %v600
  %v1088 = vadd.f32 %v1087, %v605
  %v1089 = vadd.f32 %v1088, %v608
  %v1090 = vadd.f32 %v1089, %v613
  %v1091 = vadd.f32 %v1090, %v616
  %v1092 = vadd.f32 %v1091, %v621
  %v1093 = vadd.f32 %v1092, %v624
  %v1094 = vadd.f32 %v1093, %v629
  %v1095 = vadd.f32 %v1094, %v632
  %v1096 = vadd.f32 %v1095, %v637
  %v1097 = vadd.f32 %v1096, %v640
  %v1098 = vadd.f32 %v1097, %v645
  %v1099 = vadd.f32 %v1098, %v648
  %v1100 = vadd.f32 %v1099, %v653
  %v1101 = vadd.f32 %v1100, %v656
  %v1102 = vadd.f32 %v1101, %v661
  %v1103 = vadd.f32 %v1102, %v664
  %v1104 = vadd.f32 %v1103, %v669
  %v1105 = vadd.f32 %v1104, %v672
  %v1106 = vadd.f32 %v1105, %v677
  %v1107 = vadd.f32 %v1106, %v680
  %v1108 = vadd.f32 %v1107, %v685
  %v1109 = vadd.f32 %v1108, %v688
  %v1110 = vadd.f32 %v1109, %v693
  %v1111 = vadd.f32 %v1110, %v696
  %v1112 = vadd.f32 %v1111, %v701
  %v1113 = vadd.f32 %v1112, %v704
  %v1114 = vadd.f32 %v1113, %v709
  %v1115 = vadd.f32 %v1114, %v712
  %v1116 = vadd.f32 %v1115, %v717
  %v1117 = vadd.f32 %v1116, %v720
  %v1118 = vadd.f32 %v1117, %v725
  %v1119 = vadd.f32 %v1118, %v728
  %v1120 = vadd.f32 %v1119, %v733
  %v1121 = vadd.f32 %v1120, %v736
  %v1122 = vrot.slane %v1121, 4
  %v1123 = vadd.f32 %v1121, %v1122
  %v1124 = vrot.slane %v1123, 2
  %v1125 = vadd.f32 %v1123, %v1124
  %v1126 = vrot.slane %v1125, 1
  %v1127 = vadd.f32 %v1125, %v1126
  %v1128 = vmul.f32 %v485, %v485
  %v1129 = vmul.f32 %v488, %v488
  %v1130 = vmul.f32 %v493, %v493
  %v1131 = vmul.f32 %v496, %v496
  %v1132 = vmul.f32 %v501, %v501
  %v1133 = vmul.f32 %v504, %v504
  %v1134 = vmul.f32 %v509, %v509
  %v1135 = vmul.f32 %v512, %v512
  %v1136 = vmul.f32 %v517, %v517
  %v1137 = vmul.f32 %v520, %v520
  %v1138 = vmul.f32 %v525, %v525
  %v1139 = vmul.f32 %v528, %v528
  %v1140 = vmul.f32 %v533, %v533
  %v1141 = vmul.f32 %v536, %v536
  %v1142 = vmul.f32 %v541, %v541
  %v1143 = vmul.f32 %v544, %v544
  %v1144 = vmul.f32 %v549, %v549
  %v1145 = vmul.f32 %v552, %v552
  %v1146 = vmul.f32 %v557, %v557
  %v1147 = vmul.f32 %v560, %v560
  %v1148 = vmul.f32 %v565, %v565
  %v1149 = vmul.f32 %v568, %v568
  %v1150 = vmul.f32 %v573, %v573
  %v1151 = vmul.f32 %v576, %v576
  %v1152 = vmul.f32 %v581, %v581
  %v1153 = vmul.f32 %v584, %v584
  %v1154 = vmul.f32 %v589, %v589
  %v1155 = vmul.f32 %v592, %v592
  %v1156 = vmul.f32 %v597, %v597
  %v1157 = vmul.f32 %v600, %v600
  %v1158 = vmul.f32 %v605, %v605
  %v1159 = vmul.f32 %v608, %v608
  %v1160 = vmul.f32 %v613, %v613
  %v1161 = vmul.f32 %v616, %v616
  %v1162 = vmul.f32 %v621, %v621
  %v1163 = vmul.f32 %v624, %v624
  %v1164 = vmul.f32 %v629, %v629
  %v1165 = vmul.f32 %v632, %v632
  %v1166 = vmul.f32 %v637, %v637
  %v1167 = vmul.f32 %v640, %v640
  %v1168 = vmul.f32 %v645, %v645
  %v1169 = vmul.f32 %v648, %v648
  %v1170 = vmul.f32 %v653, %v653
  %v1171 = vmul.f32 %v656, %v656
  %v1172 = vmul.f32 %v661, %v661
  %v1173 = vmul.f32 %v664, %v664
  %v1174 = vmul.f32 %v669, %v669
  %v1175 = vmul.f32 %v672, %v672
  %v1176 = vmul.f32 %v677, %v677
  %v1177 = vmul.f32 %v680, %v680
  %v1178 = vmul.f32 %v685, %v685
  %v1179 = vmul.f32 %v688, %v688
  %v1180 = vmul.f32 %v693, %v693
  %v1181 = vmul.f32 %v696, %v696
  %v1182 = vmul.f32 %v701, %v701
  %v1183 = vmul.f32 %v704, %v704
  %v1184 = vmul.f32 %v709, %v709
  %v1185 = vmul.f32 %v712, %v712
  %v1186 = vmul.f32 %v717, %v717
  %v1187 = vmul.f32 %v720, %v720
  %v1188 = vmul.f32 %v725, %v725
  %v1189 = vmul.f32 %v728, %v728
  %v1190 = vmul.f32 %v733, %v733
  %v1191 = vmul.f32 %v736, %v736
  %v1192 = vadd.f32 %v1128, %v1129
  %v1193 = vadd.f32 %v1192, %v1130
  %v1194 = vadd.f32 %v1193, %v1131
  %v1195 = vadd.f32 %v1194, %v1132
  %v1196 = vadd.f32 %v1195, %v1133
  %v1197 = vadd.f32 %v1196, %v1134
  %v1198 = vadd.f32 %v1197, %v1135
  %v1199 = vadd.f32 %v1198, %v1136
  %v1200 = vadd.f32 %v1199, %v1137
  %v1201 = vadd.f32 %v1200, %v1138
  %v1202 = vadd.f32 %v1201, %v1139
  %v1203 = vadd.f32 %v1202, %v1140
  %v1204 = vadd.f32 %v1203, %v1141
  %v1205 = vadd.f32 %v1204, %v1142
  %v1206 = vadd.f32 %v1205, %v1143
  %v1207 = vadd.f32 %v1206, %v1144
  %v1208 = vadd.f32 %v1207, %v1145
  %v1209 = vadd.f32 %v1208, %v1146
  %v1210 = vadd.f32 %v1209, %v1147
  %v1211 = vadd.f32 %v1210, %v1148
  %v1212 = vadd.f32 %v1211, %v1149
  %v1213 = vadd.f32 %v1212, %v1150
  %v1214 = vadd.f32 %v1213, %v1151
  %v1215 = vadd.f32 %v1214, %v1152
  %v1216 = vadd.f32 %v1215, %v1153
  %v1217 = vadd.f32 %v1216, %v1154
  %v1218 = vadd.f32 %v1217, %v1155
  %v1219 = vadd.f32 %v1218, %v1156
  %v1220 = vadd.f32 %v1219, %v1157
  %v1221 = vadd.f32 %v1220, %v1158
  %v1222 = vadd.f32 %v1221, %v1159
  %v1223 = vadd.f32 %v1222, %v1160
  %v1224 = vadd.f32 %v1223, %v1161
  %v1225 = vadd.f32 %v1224, %v1162
  %v1226 = vadd.f32 %v1225, %v1163
  %v1227 = vadd.f32 %v1226, %v1164
  %v1228 = vadd.f32 %v1227, %v1165
  %v1229 = vadd.f32 %v1228, %v1166
  %v1230 = vadd.f32 %v1229, %v1167
  %v1231 = vadd.f32 %v1230, %v1168
  %v1232 = vadd.f32 %v1231, %v1169
  %v1233 = vadd.f32 %v1232, %v1170
  %v1234 = vadd.f32 %v1233, %v1171
  %v1235 = vadd.f32 %v1234, %v1172
  %v1236 = vadd.f32 %v1235, %v1173
  %v1237 = vadd.f32 %v1236, %v1174
  %v1238 = vadd.f32 %v1237, %v1175
  %v1239 = vadd.f32 %v1238, %v1176
  %v1240 = vadd.f32 %v1239, %v1177
  %v1241 = vadd.f32 %v1240, %v1178
  %v1242 = vadd.f32 %v1241, %v1179
  %v1243 = vadd.f32 %v1242, %v1180
  %v1244 = vadd.f32 %v1243, %v1181
  %v1245 = vadd.f32 %v1244, %v1182
  %v1246 = vadd.f32 %v1245, %v1183
  %v1247 = vadd.f32 %v1246, %v1184
  %v1248 = vadd.f32 %v1247, %v1185
  %v1249 = vadd.f32 %v1248, %v1186
  %v1250 = vadd.f32 %v1249, %v1187
  %v1251 = vadd.f32 %v1250, %v1188
  %v1252 = vadd.f32 %v1251, %v1189
  %v1253 = vadd.f32 %v1252, %v1190
  %v1254 = vadd.f32 %v1253, %v1191
  %v1255 = vrot.slane %v1254, 4
  %v1256 = vadd.f32 %v1254, %v1255
  %v1257 = vrot.slane %v1256, 2
  %v1258 = vadd.f32 %v1256, %v1257
  %v1259 = vrot.slane %v1258, 1
  %v1260 = vadd.f32 %v1258, %v1259
  %vm1261 = vcmask 1040384
  %v1262 = vsel %vm1261, %v1127, %v1260
  %1263 = vst [vmem:[%s5] sm:$0x3] %v1262
  // Predicated region
  $region18: #{bottleneck_forward.6} parent=0 // pred_check
    _
  $region19: #{bottleneck_forward.6} parent=0 // pred_check_branch
    %1265 = sbr.rel (0) target = $region21
  $region20: #{bottleneck_forward.6} parent=0 // pred_region
    _
  $region21: #{bottleneck_forward.6} parent=0 // pred_fallthru
    _
  // Predicated region
  $region22: #{bottleneck_forward.6} parent=0 // pred_check
    _
  $region23: #{bottleneck_forward.6} parent=0 // pred_check_branch
    %1267 = sbr.rel (0) target = $region25
  $region24: #{bottleneck_forward.6} parent=0 // pred_region
    _
  $region25: #{bottleneck_forward.6} parent=0 // pred_fallthru
    _
  // Predicated region
  $region26: #{bottleneck_forward.6} parent=0 // pred_check
    _
  $region27: #{bottleneck_forward.6} parent=0 // pred_check_branch
    %1269 = sbr.rel (0) target = $region29
  $region28: #{bottleneck_forward.6} parent=0 // pred_region
    _
  $region29: #{bottleneck_forward.6} parent=0 // pred_fallthru
    _
  // Predicated region
  $region30: #{bottleneck_forward.6} parent=0 // pred_check
    _
  $region31: #{bottleneck_forward.6} parent=0 // pred_check_branch
    %1271 = sbr.rel (0) target = $region33
  $region32: #{bottleneck_forward.6} parent=0 // pred_region
    _
  $region33: #{bottleneck_forward.6} parent=0 // pred_fallthru
    _

// kernel: bottleneck_forward.5
$region0: #{bottleneck_forward.5}
  #allocation0 [shape = 'u32[]', space=smem, size = 0x4, offset = 0x4, fixed_abs, tag = 'smem constant byte address 0x4 - core index']
  #allocation1 [shape = 'u32[144,128]{1,0:T(1,128)}', space=vmem, size = 0x12000, scoped, tag = 'internal scratch']
  #allocation2 [shape = 'bf16[18,18,128]{2,1,0:T(8,128)(2,1)}', space=vmem, size = 0x1b000, scoped, tag = 'scratch operand']
  %s0 = inlined_call_operand.vmem [shape: bf16[2,16,16,128], index: 0, kind: input, shape index: {}]
  %s1 = inlined_call_operand.vmem [shape: f32[1,128], index: 1, kind: input, shape index: {}]
  %s2 = inlined_call_operand.vmem [shape: f32[1,128], index: 2, kind: input, shape index: {}]
  %s3 = inlined_call_operand.vmem [shape: bf16[3,3,128,128], index: 3, kind: input, shape index: {}]
  %s4 = inlined_call_operand.vmem [shape: bf16[2,16,16,128], index: 4, kind: output, shape index: {0}]
  %s5 = inlined_call_operand.vmem [shape: f32[2,2,128], index: 5, kind: output, shape index: {1}]
  %6 = xla_tuple %s4, %s5
  %s7 = sld [smem:[#allocation0]]
  $region57: #{bottleneck_forward.5} parent=0
    _
  %s9 = ssub.s32 1, %s7
  %s10 = scalar_select 0, %s9, %s7
  loop: start=0, step=1, limit=4
  $region2: #{bottleneck_forward.5} parent=0 // loop_pre_header
    _
  $region3: #{bottleneck_forward.5} parent=0 // loop_header
    %s12 = sphi 0, %s16
    %p13 = scmp.ge.s32.totalorder %s12, 4
    %s22 = sphi 0, %s24
    %s25 = sphi 0, %s22
    %s26 = sphi 0, %s25
    %s42 = sphi 0, %s26
    %s46 = sphi 0, %s46
    %s48 = sphi 0, %s46
    %s49 = sphi 0, %s48
    %s63 = sphi 0, %s49
    %s67 = sphi 0, %s67
    %s69 = sphi 0, %s67
    %s70 = sphi 0, %s69
    %s84 = sphi 0, %s70
    %s88 = sphi 0, %s88
    %s90 = sphi 0, %s88
    %s91 = sphi 0, %s90
    %s105 = sphi 0, %s91
    %s111 = sphi 0, %s113
    %s114 = sphi 0, %s111
    %s115 = sphi 0, %s114
    %s131 = sphi 0, %s115
    %s137 = sphi 0, %s139
    %s140 = sphi 0, %s137
    %s141 = sphi 0, %s140
    %s157 = sphi 0, %s141
  $region4: #{bottleneck_forward.5} parent=0 // loop_header_branch
    %15 = sbr.rel (%p13) target = $region8
  $region5: #{bottleneck_forward.5} parent=0 // loop_body
    %s17 = ssub.s32 %s12, 1
    %s18 = ssub.s32 %s12, 2
    %s19 = sadd.s32 %s12, 1
    %s20 = ssub.s32 %s12, %s19
    %p21 = scmp.eq.s32.totalorder %s20, 0
    %s23 = sadd.s32 %s22, 1
    %s24 = scalar_select %p21, %s22, %s23
    %p27 = pneg %p21
    %p28 = scmp.eq.s32.totalorder %s12, 1
    %p29 = por %p27, %p28
    %p30 = scmp.ne.s32.totalorder %s22, %s25
    %p31 = scmp.eq.s32.totalorder %s12, 0
    %p32 = por %p30, %p31
    %p33 = scmp.ne.s32.totalorder %s22, %s25
    %p34 = scmp.eq.s32.totalorder %s17, 1
    %p35 = por %p33, %p34
    %p36 = scmp.ne.s32.totalorder %s25, %s26
    %p37 = scmp.eq.s32.totalorder %s17, 0
    %p38 = por %p36, %p37
    %p39 = scmp.ne.s32.totalorder %s25, %s26
    %p40 = scmp.eq.s32.totalorder %s18, 1
    %p41 = por %p39, %p40
    %p43 = scmp.ne.s32.totalorder %s26, %s42
    %p44 = scmp.eq.s32.totalorder %s18, 0
    %p45 = por %p43, %p44
    %s47 = sadd.s32 %s46, 1
    %p50 = scmp.eq.s32.totalorder %s12, 1
    %p51 = scmp.ne.s32.totalorder %s46, %s48
    %p52 = scmp.eq.s32.totalorder %s12, 0
    %p53 = por %p51, %p52
    %p54 = scmp.ne.s32.totalorder %s46, %s48
    %p55 = scmp.eq.s32.totalorder %s17, 1
    %p56 = por %p54, %p55
    %p57 = scmp.ne.s32.totalorder %s48, %s49
    %p58 = scmp.eq.s32.totalorder %s17, 0
    %p59 = por %p57, %p58
    %p60 = scmp.ne.s32.totalorder %s48, %s49
    %p61 = scmp.eq.s32.totalorder %s18, 1
    %p62 = por %p60, %p61
    %p64 = scmp.ne.s32.totalorder %s49, %s63
    %p65 = scmp.eq.s32.totalorder %s18, 0
    %p66 = por %p64, %p65
    %s68 = sadd.s32 %s67, 1
    %p71 = scmp.eq.s32.totalorder %s12, 1
    %p72 = scmp.ne.s32.totalorder %s67, %s69
    %p73 = scmp.eq.s32.totalorder %s12, 0
    %p74 = por %p72, %p73
    %p75 = scmp.ne.s32.totalorder %s67, %s69
    %p76 = scmp.eq.s32.totalorder %s17, 1
    %p77 = por %p75, %p76
    %p78 = scmp.ne.s32.totalorder %s69, %s70
    %p79 = scmp.eq.s32.totalorder %s17, 0
    %p80 = por %p78, %p79
    %p81 = scmp.ne.s32.totalorder %s69, %s70
    %p82 = scmp.eq.s32.totalorder %s18, 1
    %p83 = por %p81, %p82
    %p85 = scmp.ne.s32.totalorder %s70, %s84
    %p86 = scmp.eq.s32.totalorder %s18, 0
    %p87 = por %p85, %p86
    %s89 = sadd.s32 %s88, 1
    %p92 = scmp.eq.s32.totalorder %s12, 1
    %p93 = scmp.ne.s32.totalorder %s88, %s90
    %p94 = scmp.eq.s32.totalorder %s12, 0
    %p95 = por %p93, %p94
    %p96 = scmp.ne.s32.totalorder %s88, %s90
    %p97 = scmp.eq.s32.totalorder %s17, 1
    %p98 = por %p96, %p97
    %p99 = scmp.ne.s32.totalorder %s90, %s91
    %p100 = scmp.eq.s32.totalorder %s17, 0
    %p101 = por %p99, %p100
    %p102 = scmp.ne.s32.totalorder %s90, %s91
    %p103 = scmp.eq.s32.totalorder %s18, 1
    %p104 = por %p102, %p103
    %p106 = scmp.ne.s32.totalorder %s91, %s105
    %p107 = scmp.eq.s32.totalorder %s18, 0
    %p108 = por %p106, %p107
    %s109 = ssub.s32 %s12, %s19
    %p110 = scmp.eq.s32.totalorder %s109, 0
    %s112 = sadd.s32 %s111, 1
    %s113 = scalar_select %p110, %s111, %s112
    %p116 = pneg %p110
    %p117 = scmp.eq.s32.totalorder %s12, 1
    %p118 = por %p116, %p117
    %p119 = scmp.ne.s32.totalorder %s111, %s114
    %p120 = scmp.eq.s32.totalorder %s12, 0
    %p121 = por %p119, %p120
    %p122 = scmp.ne.s32.totalorder %s111, %s114
    %p123 = scmp.eq.s32.totalorder %s17, 1
    %p124 = por %p122, %p123
    %p125 = scmp.ne.s32.totalorder %s114, %s115
    %p126 = scmp.eq.s32.totalorder %s17, 0
    %p127 = por %p125, %p126
    %p128 = scmp.ne.s32.totalorder %s114, %s115
    %p129 = scmp.eq.s32.totalorder %s18, 1
    %p130 = por %p128, %p129
    %p132 = scmp.ne.s32.totalorder %s115, %s131
    %p133 = scmp.eq.s32.totalorder %s18, 0
    %p134 = por %p132, %p133
    %s135 = ssub.s32 %s12, %s19
    %p136 = scmp.eq.s32.totalorder %s135, 0
    %s138 = sadd.s32 %s137, 1
    %s139 = scalar_select %p136, %s137, %s138
    %p142 = pneg %p136
    %p143 = scmp.eq.s32.totalorder %s12, 1
    %p144 = por %p142, %p143
    %p145 = scmp.ne.s32.totalorder %s137, %s140
    %p146 = scmp.eq.s32.totalorder %s12, 0
    %p147 = por %p145, %p146
    %p148 = scmp.ne.s32.totalorder %s137, %s140
    %p149 = scmp.eq.s32.totalorder %s17, 1
    %p150 = por %p148, %p149
    %p151 = scmp.ne.s32.totalorder %s140, %s141
    %p152 = scmp.eq.s32.totalorder %s17, 0
    %p153 = por %p151, %p152
    %p154 = scmp.ne.s32.totalorder %s140, %s141
    %p155 = scmp.eq.s32.totalorder %s18, 1
    %p156 = por %p154, %p155
    %p158 = scmp.ne.s32.totalorder %s141, %s157
    %p159 = scmp.eq.s32.totalorder %s18, 0
    %p160 = por %p158, %p159
    %p161 = scmp.le.s32.totalorder 1, %s12
    %p162 = scmp.lt.s32.totalorder %s12, 3
    %p163 = pnand %p161, %p162
    %p164 = pneg %p163
    // Predicated region
    $region9: #{bottleneck_forward.5} parent=5 // pred_check
      _
    $region10: #{bottleneck_forward.5} parent=5 // pred_check_branch
      %166 = sbr.rel (%p163) target = $region12
    $region11: #{bottleneck_forward.5} parent=5 // pred_region
      %s167 = ssub.s32 %s12, 1
      // Predicated region
      $region13: #{bottleneck_forward.5} parent=11 // pred_check
        %p168 = pneg %p59
      $region14: #{bottleneck_forward.5} parent=11 // pred_check_branch
        %170 = sbr.rel (%p168) target = $region16
      $region15: #{bottleneck_forward.5} parent=11 // pred_region
        _
      $region16: #{bottleneck_forward.5} parent=11 // pred_fallthru
        _
      // Predicated region
      $region17: #{bottleneck_forward.5} parent=11 // pred_check
        %p171 = pneg %p80
      $region18: #{bottleneck_forward.5} parent=11 // pred_check_branch
        %173 = sbr.rel (%p171) target = $region20
      $region19: #{bottleneck_forward.5} parent=11 // pred_region
        _
      $region20: #{bottleneck_forward.5} parent=11 // pred_fallthru
        _
      // Predicated region
      $region21: #{bottleneck_forward.5} parent=11 // pred_check
        %p174 = pneg %p101
      $region22: #{bottleneck_forward.5} parent=11 // pred_check_branch
        %176 = sbr.rel (%p174) target = $region24
      $region23: #{bottleneck_forward.5} parent=11 // pred_region
        _
      $region24: #{bottleneck_forward.5} parent=11 // pred_fallthru
        _
    $region12: #{bottleneck_forward.5} parent=5 // pred_fallthru
      _
    %p177 = scmp.lt.s32.totalorder %s12, 2
    // Predicated region
    $region25: #{bottleneck_forward.5} parent=5 // pred_check
      %p178 = pneg %p177
    $region26: #{bottleneck_forward.5} parent=5 // pred_check_branch
      %180 = sbr.rel (%p178) target = $region28
    $region27: #{bottleneck_forward.5} parent=5 // pred_region
      // Predicated region
      $region29: #{bottleneck_forward.5} parent=27 // pred_check
        %p181 = pneg %p32
      $region30: #{bottleneck_forward.5} parent=27 // pred_check_branch
        %183 = sbr.rel (%p181) target = $region32
      $region31: #{bottleneck_forward.5} parent=27 // pred_region
        %p184 = scmp.lt.s32.totalorder %s12, 1
        %s185 = scalar_select %p184, %s12, 1
        %s186 = smul.addr %s185, 32
        %s187 = smul.addr %s186, 4
        %s188 = scalar_lea.vmem %s0, %s187
      $region32: #{bottleneck_forward.5} parent=27 // pred_fallthru
        _
    $region28: #{bottleneck_forward.5} parent=5 // pred_fallthru
      _
    %p189 = scmp.le.s32.totalorder 1, %s12
    %p190 = scmp.lt.s32.totalorder %s12, 3
    %p191 = pnand %p189, %p190
    %p192 = pneg %p191
    // Predicated region
    $region33: #{bottleneck_forward.5} parent=5 // pred_check
      _
    $region34: #{bottleneck_forward.5} parent=5 // pred_check_branch
      %194 = sbr.rel (%p191) target = $region36
    $region35: #{bottleneck_forward.5} parent=5 // pred_region
      %s195 = ssub.s32 %s12, 1
      %p196 = scmp.lt.s32.totalorder %s17, 1
      %s197 = scalar_select %p196, %s17, 1
      %s198 = smul.addr %s197, 32
      %s199 = smul.addr %s198, 4
      %s200 = scalar_lea.vmem %s0, %s199
      %p201 = pneg %p38
      %p202 = pneg %p35
      %p203 = pneg %p59
      %p204 = pneg %p56
      %p205 = pneg %p80
      %p206 = pneg %p77
      %p207 = pneg %p101
      %p208 = pneg %p98
      %p209 = pneg %p127
      %p210 = pneg %p124
      %p211 = scmp.lt.s32.totalorder %s17, 1
      %s212 = scalar_select %p211, %s17, 1
      %s213 = smul.addr %s212, 32
      %s214 = smul.addr %s213, 4
      %s215 = scalar_lea.vmem %s4, %s214
      %p216 = pneg %p153
      %p217 = pneg %p150
      %p218 = scmp.lt.s32.totalorder %s17, 1
      %s219 = scalar_select %p218, %s17, 1
      %s220 = smul.addr %s219, 2
      %s221 = scalar_lea.vmem %s5, %s220
      %p222 = scmp.lt.s32.totalorder %s17, 1
      %s223 = scalar_select %p222, %s17, 1
      %s224 = smul.addr %s223, 32
      %s225 = smul.addr %s224, 4
      %s226 = scalar_lea.vmem %s0, %s225
      %p227 = scmp.lt.s32.totalorder %s17, 1
      %s228 = scalar_select %p227, %s17, 1
      %s229 = smul.addr %s228, 32
      %s230 = smul.addr %s229, 4
      %s231 = scalar_lea.vmem %s4, %s230
      %p232 = scmp.lt.s32.totalorder %s17, 1
      %s233 = scalar_select %p232, %s17, 1
      %s234 = smul.addr %s233, 2
      %s235 = scalar_lea.vmem %s5, %s234
      %v237 = vld [vmem:[%s226] sm:$0xf]
      %v238 = vld [vmem:[%s226 + $0x4] sm:$0xf]
      %v239 = vld [vmem:[%s226 + $0x8] sm:$0xf]
      %v240 = vld [vmem:[%s226 + $0xc] sm:$0xf]
      %v241 = vld [vmem:[%s226 + $0x10] sm:$0xf]
      %v242 = vld [vmem:[%s226 + $0x14] sm:$0xf]
      %v243 = vld [vmem:[%s226 + $0x18] sm:$0xf]
      %v244 = vld [vmem:[%s226 + $0x1c] sm:$0xf]
      %v245 = vld [vmem:[%s226 + $0x20] sm:$0xf]
      %v246 = vld [vmem:[%s226 + $0x24] sm:$0xf]
      %v247 = vld [vmem:[%s226 + $0x28] sm:$0xf]
      %v248 = vld [vmem:[%s226 + $0x2c] sm:$0xf]
      %v249 = vld [vmem:[%s226 + $0x30] sm:$0xf]
      %v250 = vld [vmem:[%s226 + $0x34] sm:$0xf]
      %v251 = vld [vmem:[%s226 + $0x38] sm:$0xf]
      %v252 = vld [vmem:[%s226 + $0x3c] sm:$0xf]
      %v253 = vld [vmem:[%s226 + $0x40] sm:$0xf]
      %v254 = vld [vmem:[%s226 + $0x44] sm:$0xf]
      %v255 = vld [vmem:[%s226 + $0x48] sm:$0xf]
      %v256 = vld [vmem:[%s226 + $0x4c] sm:$0xf]
      %v257 = vld [vmem:[%s226 + $0x50] sm:$0xf]
      %v258 = vld [vmem:[%s226 + $0x54] sm:$0xf]
      %v259 = vld [vmem:[%s226 + $0x58] sm:$0xf]
      %v260 = vld [vmem:[%s226 + $0x5c] sm:$0xf]
      %v261 = vld [vmem:[%s226 + $0x60] sm:$0xf]
      %v262 = vld [vmem:[%s226 + $0x64] sm:$0xf]
      %v263 = vld [vmem:[%s226 + $0x68] sm:$0xf]
      %v264 = vld [vmem:[%s226 + $0x6c] sm:$0xf]
      %v265 = vld [vmem:[%s226 + $0x70] sm:$0xf]
      %v266 = vld [vmem:[%s226 + $0x74] sm:$0xf]
      %v267 = vld [vmem:[%s226 + $0x78] sm:$0xf]
      %v268 = vld [vmem:[%s226 + $0x7c] sm:$0xf]
      %v269 = vunpack.c.l.bf16 %v237
      %v270 = vunpack.c.l.bf16 %v238
      %v271 = vunpack.c.l.bf16 %v239
      %v272 = vunpack.c.l.bf16 %v240
      %v273 = vunpack.c.l.bf16 %v241
      %v274 = vunpack.c.l.bf16 %v242
      %v275 = vunpack.c.l.bf16 %v243
      %v276 = vunpack.c.l.bf16 %v244
      %v277 = vunpack.c.l.bf16 %v245
      %v278 = vunpack.c.l.bf16 %v246
      %v279 = vunpack.c.l.bf16 %v247
      %v280 = vunpack.c.l.bf16 %v248
      %v281 = vunpack.c.l.bf16 %v249
      %v282 = vunpack.c.l.bf16 %v250
      %v283 = vunpack.c.l.bf16 %v251
      %v284 = vunpack.c.l.bf16 %v252
      %v285 = vunpack.c.l.bf16 %v253
      %v286 = vunpack.c.l.bf16 %v254
      %v287 = vunpack.c.l.bf16 %v255
      %v288 = vunpack.c.l.bf16 %v256
      %v289 = vunpack.c.l.bf16 %v257
      %v290 = vunpack.c.l.bf16 %v258
      %v291 = vunpack.c.l.bf16 %v259
      %v292 = vunpack.c.l.bf16 %v260
      %v293 = vunpack.c.l.bf16 %v261
      %v294 = vunpack.c.l.bf16 %v262
      %v295 = vunpack.c.l.bf16 %v263
      %v296 = vunpack.c.l.bf16 %v264
      %v297 = vunpack.c.l.bf16 %v265
      %v298 = vunpack.c.l.bf16 %v266
      %v299 = vunpack.c.l.bf16 %v267
      %v300 = vunpack.c.l.bf16 %v268
      %v301 = vld [vmem:[%s1] sm:$0x1]
      %v303 = vlaneseq
      %v304 = vshrl.u32 %v303, 7
      %v305 = vsub.s32 0, %v304
      %v306 = vrot.slane %v301, %v305
      %v308 = vmul.f32 %v269, %v306
      %v309 = vmul.f32 %v270, %v306
      %v310 = vmul.f32 %v271, %v306
      %v311 = vmul.f32 %v272, %v306
      %v312 = vmul.f32 %v273, %v306
      %v313 = vmul.f32 %v274, %v306
      %v314 = vmul.f32 %v275, %v306
      %v315 = vmul.f32 %v276, %v306
      %v316 = vmul.f32 %v277, %v306
      %v317 = vmul.f32 %v278, %v306
      %v318 = vmul.f32 %v279, %v306
      %v319 = vmul.f32 %v280, %v306
      %v320 = vmul.f32 %v281, %v306
      %v321 = vmul.f32 %v282, %v306
      %v322 = vmul.f32 %v283, %v306
      %v323 = vmul.f32 %v284, %v306
      %v324 = vmul.f32 %v285, %v306
      %v325 = vmul.f32 %v286, %v306
      %v326 = vmul.f32 %v287, %v306
      %v327 = vmul.f32 %v288, %v306
      %v328 = vmul.f32 %v289, %v306
      %v329 = vmul.f32 %v290, %v306
      %v330 = vmul.f32 %v291, %v306
      %v331 = vmul.f32 %v292, %v306
      %v332 = vmul.f32 %v293, %v306
      %v333 = vmul.f32 %v294, %v306
      %v334 = vmul.f32 %v295, %v306
      %v335 = vmul.f32 %v296, %v306
      %v336 = vmul.f32 %v297, %v306
      %v337 = vmul.f32 %v298, %v306
      %v338 = vmul.f32 %v299, %v306
      %v339 = vmul.f32 %v300, %v306
      %v340 = vld [vmem:[%s2] sm:$0x1]
      %v342 = vlaneseq
      %v343 = vshrl.u32 %v342, 7
      %v344 = vsub.s32 0, %v343
      %v345 = vrot.slane %v340, %v344
      %v347 = vadd.f32 %v308, %v345
      %v348 = vadd.f32 %v309, %v345
      %v349 = vadd.f32 %v310, %v345
      %v350 = vadd.f32 %v311, %v345
      %v351 = vadd.f32 %v312, %v345
      %v352 = vadd.f32 %v313, %v345
      %v353 = vadd.f32 %v314, %v345
      %v354 = vadd.f32 %v315, %v345
      %v355 = vadd.f32 %v316, %v345
      %v356 = vadd.f32 %v317, %v345
      %v357 = vadd.f32 %v318, %v345
      %v358 = vadd.f32 %v319, %v345
      %v359 = vadd.f32 %v320, %v345
      %v360 = vadd.f32 %v321, %v345
      %v361 = vadd.f32 %v322, %v345
      %v362 = vadd.f32 %v323, %v345
      %v363 = vadd.f32 %v324, %v345
      %v364 = vadd.f32 %v325, %v345
      %v365 = vadd.f32 %v326, %v345
      %v366 = vadd.f32 %v327, %v345
      %v367 = vadd.f32 %v328, %v345
      %v368 = vadd.f32 %v329, %v345
      %v369 = vadd.f32 %v330, %v345
      %v370 = vadd.f32 %v331, %v345
      %v371 = vadd.f32 %v332, %v345
      %v372 = vadd.f32 %v333, %v345
      %v373 = vadd.f32 %v334, %v345
      %v374 = vadd.f32 %v335, %v345
      %v375 = vadd.f32 %v336, %v345
      %v376 = vadd.f32 %v337, %v345
      %v377 = vadd.f32 %v338, %v345
      %v378 = vadd.f32 %v339, %v345
      %v379 = vmax.f32 %v347, 0.0
      %v380 = vmax.f32 %v348, 0.0
      %v381 = vmax.f32 %v349, 0.0
      %v382 = vmax.f32 %v350, 0.0
      %v383 = vmax.f32 %v351, 0.0
      %v384 = vmax.f32 %v352, 0.0
      %v385 = vmax.f32 %v353, 0.0
      %v386 = vmax.f32 %v354, 0.0
      %v387 = vmax.f32 %v355, 0.0
      %v388 = vmax.f32 %v356, 0.0
      %v389 = vmax.f32 %v357, 0.0
      %v390 = vmax.f32 %v358, 0.0
      %v391 = vmax.f32 %v359, 0.0
      %v392 = vmax.f32 %v360, 0.0
      %v393 = vmax.f32 %v361, 0.0
      %v394 = vmax.f32 %v362, 0.0
      %v395 = vmax.f32 %v363, 0.0
      %v396 = vmax.f32 %v364, 0.0
      %v397 = vmax.f32 %v365, 0.0
      %v398 = vmax.f32 %v366, 0.0
      %v399 = vmax.f32 %v367, 0.0
      %v400 = vmax.f32 %v368, 0.0
      %v401 = vmax.f32 %v369, 0.0
      %v402 = vmax.f32 %v370, 0.0
      %v403 = vmax.f32 %v371, 0.0
      %v404 = vmax.f32 %v372, 0.0
      %v405 = vmax.f32 %v373, 0.0
      %v406 = vmax.f32 %v374, 0.0
      %v407 = vmax.f32 %v375, 0.0
      %v408 = vmax.f32 %v376, 0.0
      %v409 = vmax.f32 %v377, 0.0
      %v410 = vmax.f32 %v378, 0.0
      %411 = vst [vmem:[#allocation2] sm:$0xf] 0
      %412 = vst [vmem:[#allocation2 + $0x4] sm:$0xf] 0
      %413 = vst [vmem:[#allocation2 + $0x8] sm:$0x1] 0
      %s414 = scalar_lea.vmem [#allocation2], 204
      %415 = vst [vmem:[%s414] sm:$0xf] 0
      %416 = vst [vmem:[%s414 + $0x4] sm:$0xf] 0
      %417 = vst [vmem:[%s414 + $0x8] sm:$0x1] 0
      %s418 = scalar_lea.vmem [#allocation2], 12
      %vm419 = vcmask 1040384
      %vm420 = vsmask.f32 256
      %vm421 = vmand %vm419, %vm420
      %v422 = vld [vmem:[%s418] sm:$0x1]
      %v423 = vsel %vm421, 0, %v422
      %424 = vst [vmem:[%s418] sm:$0x1] %v423
      %v425 = vld [vmem:[%s418 + $0xc] sm:$0x1]
      %v426 = vsel %vm421, 0, %v425
      %427 = vst [vmem:[%s418 + $0xc] sm:$0x1] %v426
      %v428 = vld [vmem:[%s418 + $0x18] sm:$0x1]
      %v429 = vsel %vm421, 0, %v428
      %430 = vst [vmem:[%s418 + $0x18] sm:$0x1] %v429
      %v431 = vld [vmem:[%s418 + $0x24] sm:$0x1]
      %v432 = vsel %vm421, 0, %v431
      %433 = vst [vmem:[%s418 + $0x24] sm:$0x1] %v432
      %v434 = vld [vmem:[%s418 + $0x30] sm:$0x1]
      %v435 = vsel %vm421, 0, %v434
      %436 = vst [vmem:[%s418 + $0x30] sm:$0x1] %v435
      %v437 = vld [vmem:[%s418 + $0x3c] sm:$0x1]
      %v438 = vsel %vm421, 0, %v437
      %439 = vst [vmem:[%s418 + $0x3c] sm:$0x1] %v438
      %v440 = vld [vmem:[%s418 + $0x48] sm:$0x1]
      %v441 = vsel %vm421, 0, %v440
      %442 = vst [vmem:[%s418 + $0x48] sm:$0x1] %v441
      %v443 = vld [vmem:[%s418 + $0x54] sm:$0x1]
      %v444 = vsel %vm421, 0, %v443
      %445 = vst [vmem:[%s418 + $0x54] sm:$0x1] %v444
      %v446 = vld [vmem:[%s418 + $0x60] sm:$0x1]
      %v447 = vsel %vm421, 0, %v446
      %448 = vst [vmem:[%s418 + $0x60] sm:$0x1] %v447
      %v449 = vld [vmem:[%s418 + $0x6c] sm:$0x1]
      %v450 = vsel %vm421, 0, %v449
      %451 = vst [vmem:[%s418 + $0x6c] sm:$0x1] %v450
      %v452 = vld [vmem:[%s418 + $0x78] sm:$0x1]
      %v453 = vsel %vm421, 0, %v452
      %454 = vst [vmem:[%s418 + $0x78] sm:$0x1] %v453
      %v455 = vld [vmem:[%s418 + $0x84] sm:$0x1]
      %v456 = vsel %vm421, 0, %v455
      %457 = vst [vmem:[%s418 + $0x84] sm:$0x1] %v456
      %v458 = vld [vmem:[%s418 + $0x90] sm:$0x1]
      %v459 = vsel %vm421, 0, %v458
      %460 = vst [vmem:[%s418 + $0x90] sm:$0x1] %v459
      %v461 = vld [vmem:[%s418 + $0x9c] sm:$0x1]
      %v462 = vsel %vm421, 0, %v461
      %463 = vst [vmem:[%s418 + $0x9c] sm:$0x1] %v462
      %v464 = vld [vmem:[%s418 + $0xa8] sm:$0x1]
      %v465 = vsel %vm421, 0, %v464
      %466 = vst [vmem:[%s418 + $0xa8] sm:$0x1] %v465
      %v467 = vld [vmem:[%s418 + $0xb4] sm:$0x1]
      %v468 = vsel %vm421, 0, %v467
      %469 = vst [vmem:[%s418 + $0xb4] sm:$0x1] %v468
      %vm470 = vsmask.f32 7938
      %vm471 = vmand %vm419, %vm470
      %v472 = vld [vmem:[%s418 + $0x8] sm:$0x1]
      %v473 = vsel %vm471, 0, %v472
      %474 = vst [vmem:[%s418 + $0x8] sm:$0x1] %v473
      %v475 = vld [vmem:[%s418 + $0x14] sm:$0x1]
      %v476 = vsel %vm471, 0, %v475
      %477 = vst [vmem:[%s418 + $0x14] sm:$0x1] %v476
      %v478 = vld [vmem:[%s418 + $0x20] sm:$0x1]
      %v479 = vsel %vm471, 0, %v478
      %480 = vst [vmem:[%s418 + $0x20] sm:$0x1] %v479
      %v481 = vld [vmem:[%s418 + $0x2c] sm:$0x1]
      %v482 = vsel %vm471, 0, %v481
      %483 = vst [vmem:[%s418 + $0x2c] sm:$0x1] %v482
      %v484 = vld [vmem:[%s418 + $0x38] sm:$0x1]
      %v485 = vsel %vm471, 0, %v484
      %486 = vst [vmem:[%s418 + $0x38] sm:$0x1] %v485
      %v487 = vld [vmem:[%s418 + $0x44] sm:$0x1]
      %v488 = vsel %vm471, 0, %v487
      %489 = vst [vmem:[%s418 + $0x44] sm:$0x1] %v488
      %v490 = vld [vmem:[%s418 + $0x50] sm:$0x1]
      %v491 = vsel %vm471, 0, %v490
      %492 = vst [vmem:[%s418 + $0x50] sm:$0x1] %v491
      %v493 = vld [vmem:[%s418 + $0x5c] sm:$0x1]
      %v494 = vsel %vm471, 0, %v493
      %495 = vst [vmem:[%s418 + $0x5c] sm:$0x1] %v494
      %v496 = vld [vmem:[%s418 + $0x68] sm:$0x1]
      %v497 = vsel %vm471, 0, %v496
      %498 = vst [vmem:[%s418 + $0x68] sm:$0x1] %v497
      %v499 = vld [vmem:[%s418 + $0x74] sm:$0x1]
      %v500 = vsel %vm471, 0, %v499
      %501 = vst [vmem:[%s418 + $0x74] sm:$0x1] %v500
      %v502 = vld [vmem:[%s418 + $0x80] sm:$0x1]
      %v503 = vsel %vm471, 0, %v502
      %504 = vst [vmem:[%s418 + $0x80] sm:$0x1] %v503
      %v505 = vld [vmem:[%s418 + $0x8c] sm:$0x1]
      %v506 = vsel %vm471, 0, %v505
      %507 = vst [vmem:[%s418 + $0x8c] sm:$0x1] %v506
      %v508 = vld [vmem:[%s418 + $0x98] sm:$0x1]
      %v509 = vsel %vm471, 0, %v508
      %510 = vst [vmem:[%s418 + $0x98] sm:$0x1] %v509
      %v511 = vld [vmem:[%s418 + $0xa4] sm:$0x1]
      %v512 = vsel %vm471, 0, %v511
      %513 = vst [vmem:[%s418 + $0xa4] sm:$0x1] %v512
      %v514 = vld [vmem:[%s418 + $0xb0] sm:$0x1]
      %v515 = vsel %vm471, 0, %v514
      %516 = vst [vmem:[%s418 + $0xb0] sm:$0x1] %v515
      %v517 = vld [vmem:[%s418 + $0xbc] sm:$0x1]
      %v518 = vsel %vm471, 0, %v517
      %519 = vst [vmem:[%s418 + $0xbc] sm:$0x1] %v518
      %v520 = vpack.c.bf16 %v380, %v379
      %v521 = vpack.c.bf16 %v382, %v381
      %v522 = vpack.c.bf16 %v384, %v383
      %v523 = vpack.c.bf16 %v386, %v385
      %v524 = vpack.c.bf16 %v388, %v387
      %v525 = vpack.c.bf16 %v390, %v389
      %v526 = vpack.c.bf16 %v392, %v391
      %v527 = vpack.c.bf16 %v394, %v393
      %v528 = vpack.c.bf16 %v396, %v395
      %v529 = vpack.c.bf16 %v398, %v397
      %v530 = vpack.c.bf16 %v400, %v399
      %v531 = vpack.c.bf16 %v402, %v401
      %v532 = vpack.c.bf16 %v404, %v403
      %v533 = vpack.c.bf16 %v406, %v405
      %v534 = vpack.c.bf16 %v408, %v407
      %v535 = vpack.c.bf16 %v410, %v409
      %v552 = vunpack.c.l.b16 %v520
      %v553 = vunpack.c.h.b16 %v520
      %v554 = vunpack.c.l.b16 %v521
      %v555 = vunpack.c.h.b16 %v521
      %v556 = vunpack.c.l.b16 %v522
      %v557 = vunpack.c.h.b16 %v522
      %v558 = vunpack.c.l.b16 %v523
      %v559 = vunpack.c.h.b16 %v523
      %v560 = vunpack.c.l.b16 %v524
      %v561 = vunpack.c.h.b16 %v524
      %v562 = vunpack.c.l.b16 %v525
      %v563 = vunpack.c.h.b16 %v525
      %v564 = vunpack.c.l.b16 %v526
      %v565 = vunpack.c.h.b16 %v526
      %v566 = vunpack.c.l.b16 %v527
      %v567 = vunpack.c.h.b16 %v527
      %v568 = vunpack.c.l.b16 %v528
      %v569 = vunpack.c.h.b16 %v528
      %v570 = vunpack.c.l.b16 %v529
      %v571 = vunpack.c.h.b16 %v529
      %v572 = vunpack.c.l.b16 %v530
      %v573 = vunpack.c.h.b16 %v530
      %v574 = vunpack.c.l.b16 %v531
      %v575 = vunpack.c.h.b16 %v531
      %v576 = vunpack.c.l.b16 %v532
      %v577 = vunpack.c.h.b16 %v532
      %v578 = vunpack.c.l.b16 %v533
      %v579 = vunpack.c.h.b16 %v533
      %v580 = vunpack.c.l.b16 %v534
      %v581 = vunpack.c.h.b16 %v534
      %v582 = vunpack.c.l.b16 %v535
      %v583 = vunpack.c.h.b16 %v535
      %v584 = vpack.c.b16 %v552, %v552
      %v585 = vpack.c.b16 %v553, %v553
      %v586 = vpack.c.b16 %v554, %v554
      %v587 = vpack.c.b16 %v555, %v555
      %v588 = vpack.c.b16 %v556, %v556
      %v589 = vpack.c.b16 %v557, %v557
      %v590 = vpack.c.b16 %v558, %v558
      %v591 = vpack.c.b16 %v559, %v559
      %v592 = vpack.c.b16 %v560, %v560
      %v593 = vpack.c.b16 %v561, %v561
      %v594 = vpack.c.b16 %v562, %v562
      %v595 = vpack.c.b16 %v563, %v563
      %v596 = vpack.c.b16 %v564, %v564
      %v597 = vpack.c.b16 %v565, %v565
      %v598 = vpack.c.b16 %v566, %v566
      %v599 = vpack.c.b16 %v567, %v567
      %v600 = vpack.c.b16 %v568, %v568
      %v601 = vpack.c.b16 %v569, %v569
      %v602 = vpack.c.b16 %v570, %v570
      %v603 = vpack.c.b16 %v571, %v571
      %v604 = vpack.c.b16 %v572, %v572
      %v605 = vpack.c.b16 %v573, %v573
      %v606 = vpack.c.b16 %v574, %v574
      %v607 = vpack.c.b16 %v575, %v575
      %v608 = vpack.c.b16 %v576, %v576
      %v609 = vpack.c.b16 %v577, %v577
      %v610 = vpack.c.b16 %v578, %v578
      %v611 = vpack.c.b16 %v579, %v579
      %v612 = vpack.c.b16 %v580, %v580
      %v613 = vpack.c.b16 %v581, %v581
      %v614 = vpack.c.b16 %v582, %v582
      %v615 = vpack.c.b16 %v583, %v583
      %vm616 = vsmask.f32 4368
      %vm617 = vmor %vm420, %vm616
      %v619 = vshrl.u32 %v584, 16
      %v621 = vrot.slane %v619, 7
      %v622 = vshll.u32 %v584, 16
      %v624 = vor.u32 %v621, %v622
      %v625 = vrot.slane %v621, 4
      %v627 = vshrl.u32 %v585, 16
      %v629 = vrot.slane %v627, 7
      %v630 = vshll.u32 %v585, 16
      %v632 = vor.u32 %v629, %v630
      %v633 = vsel %vm617, %v625, %v632
      %v634 = vrot.slane %v629, 4
      %v636 = vshrl.u32 %v586, 16
      %v638 = vrot.slane %v636, 7
      %v639 = vshll.u32 %v586, 16
      %v641 = vor.u32 %v638, %v639
      %v642 = vrot.slane %v638, 4
      %v644 = vshrl.u32 %v587, 16
      %v646 = vrot.slane %v644, 7
      %v647 = vshll.u32 %v587, 16
      %v649 = vor.u32 %v646, %v647
      %v650 = vsel %vm617, %v642, %v649
      %v651 = vrot.slane %v646, 4
      %v653 = vshrl.u32 %v588, 16
      %v655 = vrot.slane %v653, 7
      %v656 = vshll.u32 %v588, 16
      %v658 = vor.u32 %v655, %v656
      %v659 = vrot.slane %v655, 4
      %v661 = vshrl.u32 %v589, 16
      %v663 = vrot.slane %v661, 7
      %v664 = vshll.u32 %v589, 16
      %v666 = vor.u32 %v663, %v664
      %v667 = vsel %vm617, %v659, %v666
      %v668 = vrot.slane %v663, 4
      %v670 = vshrl.u32 %v590, 16
      %v672 = vrot.slane %v670, 7
      %v673 = vshll.u32 %v590, 16
      %v675 = vor.u32 %v672, %v673
      %v676 = vrot.slane %v672, 4
      %v678 = vshrl.u32 %v591, 16
      %v680 = vrot.slane %v678, 7
      %v681 = vshll.u32 %v591, 16
      %v683 = vor.u32 %v680, %v681
      %v684 = vsel %vm617, %v676, %v683
      %v685 = vrot.slane %v680, 4
      %v687 = vshrl.u32 %v592, 16
      %v689 = vrot.slane %v687, 7
      %v690 = vshll.u32 %v592, 16
      %v692 = vor.u32 %v689, %v690
      %v693 = vrot.slane %v689, 4
      %v695 = vshrl.u32 %v593, 16
      %v697 = vrot.slane %v695, 7
      %v698 = vshll.u32 %v593, 16
      %v700 = vor.u32 %v697, %v698
      %v701 = vsel %vm617, %v693, %v700
      %v702 = vrot.slane %v697, 4
      %v704 = vshrl.u32 %v594, 16
      %v706 = vrot.slane %v704, 7
      %v707 = vshll.u32 %v594, 16
      %v709 = vor.u32 %v706, %v707
      %v710 = vrot.slane %v706, 4
      %v712 = vshrl.u32 %v595, 16
      %v714 = vrot.slane %v712, 7
      %v715 = vshll.u32 %v595, 16
      %v717 = vor.u32 %v714, %v715
      %v718 = vsel %vm617, %v710, %v717
      %v719 = vrot.slane %v714, 4
      %v721 = vshrl.u32 %v596, 16
      %v723 = vrot.slane %v721, 7
      %v724 = vshll.u32 %v596, 16
      %v726 = vor.u32 %v723, %v724
      %v727 = vrot.slane %v723, 4
      %v729 = vshrl.u32 %v597, 16
      %v731 = vrot.slane %v729, 7
      %v732 = vshll.u32 %v597, 16
      %v734 = vor.u32 %v731, %v732
      %v735 = vsel %vm617, %v727, %v734
      %v736 = vrot.slane %v731, 4
      %v738 = vshrl.u32 %v598, 16
      %v740 = vrot.slane %v738, 7
      %v741 = vshll.u32 %v598, 16
      %v743 = vor.u32 %v740, %v741
      %v744 = vrot.slane %v740, 4
      %v746 = vshrl.u32 %v599, 16
      %v748 = vrot.slane %v746, 7
      %v749 = vshll.u32 %v599, 16
      %v751 = vor.u32 %v748, %v749
      %v752 = vsel %vm617, %v744, %v751
      %v753 = vrot.slane %v748, 4
      %v755 = vshrl.u32 %v600, 16
      %v757 = vrot.slane %v755, 7
      %v758 = vshll.u32 %v600, 16
      %v760 = vor.u32 %v757, %v758
      %v761 = vrot.slane %v757, 4
      %v763 = vshrl.u32 %v601, 16
      %v765 = vrot.slane %v763, 7
      %v766 = vshll.u32 %v601, 16
      %v768 = vor.u32 %v765, %v766
      %v769 = vsel %vm617, %v761, %v768
      %v770 = vrot.slane %v765, 4
      %v772 = vshrl.u32 %v602, 16
      %v774 = vrot.slane %v772, 7
      %v775 = vshll.u32 %v602, 16
      %v777 = vor.u32 %v774, %v775
      %v778 = vrot.slane %v774, 4
      %v780 = vshrl.u32 %v603, 16
      %v782 = vrot.slane %v780, 7
      %v783 = vshll.u32 %v603, 16
      %v785 = vor.u32 %v782, %v783
      %v786 = vsel %vm617, %v778, %v785
      %v787 = vrot.slane %v782, 4
      %v789 = vshrl.u32 %v604, 16
      %v791 = vrot.slane %v789, 7
      %v792 = vshll.u32 %v604, 16
      %v794 = vor.u32 %v791, %v792
      %v795 = vrot.slane %v791, 4
      %v797 = vshrl.u32 %v605, 16
      %v799 = vrot.slane %v797, 7
      %v800 = vshll.u32 %v605, 16
      %v802 = vor.u32 %v799, %v800
      %v803 = vsel %vm617, %v795, %v802
      %v804 = vrot.slane %v799, 4
      %v806 = vshrl.u32 %v606, 16
      %v808 = vrot.slane %v806, 7
      %v809 = vshll.u32 %v606, 16
      %v811 = vor.u32 %v808, %v809
      %v812 = vrot.slane %v808, 4
      %v814 = vshrl.u32 %v607, 16
      %v816 = vrot.slane %v814, 7
      %v817 = vshll.u32 %v607, 16
      %v819 = vor.u32 %v816, %v817
      %v820 = vsel %vm617, %v812, %v819
      %v821 = vrot.slane %v816, 4
      %v823 = vshrl.u32 %v608, 16
      %v825 = vrot.slane %v823, 7
      %v826 = vshll.u32 %v608, 16
      %v828 = vor.u32 %v825, %v826
      %v829 = vrot.slane %v825, 4
      %v831 = vshrl.u32 %v609, 16
      %v833 = vrot.slane %v831, 7
      %v834 = vshll.u32 %v609, 16
      %v836 = vor.u32 %v833, %v834
      %v837 = vsel %vm617, %v829, %v836
      %v838 = vrot.slane %v833, 4
      %v840 = vshrl.u32 %v610, 16
      %v842 = vrot.slane %v840, 7
      %v843 = vshll.u32 %v610, 16
      %v845 = vor.u32 %v842, %v843
      %v846 = vrot.slane %v842, 4
      %v848 = vshrl.u32 %v611, 16
      %v850 = vrot.slane %v848, 7
      %v851 = vshll.u32 %v611, 16
      %v853 = vor.u32 %v850, %v851
      %v854 = vsel %vm617, %v846, %v853
      %v855 = vrot.slane %v850, 4
      %v857 = vshrl.u32 %v612, 16
      %v859 = vrot.slane %v857, 7
      %v860 = vshll.u32 %v612, 16
      %v862 = vor.u32 %v859, %v860
      %v863 = vrot.slane %v859, 4
      %v865 = vshrl.u32 %v613, 16
      %v867 = vrot.slane %v865, 7
      %v868 = vshll.u32 %v613, 16
      %v870 = vor.u32 %v867, %v868
      %v871 = vsel %vm617, %v863, %v870
      %v872 = vrot.slane %v867, 4
      %v874 = vshrl.u32 %v614, 16
      %v876 = vrot.slane %v874, 7
      %v877 = vshll.u32 %v614, 16
      %v879 = vor.u32 %v876, %v877
      %v880 = vrot.slane %v876, 4
      %v882 = vshrl.u32 %v615, 16
      %v884 = vrot.slane %v882, 7
      %v885 = vshll.u32 %v615, 16
      %v887 = vor.u32 %v884, %v885
      %v888 = vsel %vm617, %v880, %v887
      %v889 = vrot.slane %v884, 4
      %vm938 = vcmask 1043456
      %vm939 = vmand %vm938, %vm470
      %v940 = vld [vmem:[%s418] sm:$0xf]
      %v941 = vsel %vm939, %v624, %v940
      %942 = vst [vmem:[%s418] sm:$0xf] %v941
      %943 = vst [vmem:[%s418 + $0x4] sm:$0xf] %v633
      %v944 = vld [vmem:[%s418 + $0x8] sm:$0x1]
      %v945 = vsel %vm421, %v634, %v944
      %946 = vst [vmem:[%s418 + $0x8] sm:$0x1] %v945
      %v947 = vld [vmem:[%s418 + $0xc] sm:$0xf]
      %v948 = vsel %vm939, %v641, %v947
      %949 = vst [vmem:[%s418 + $0xc] sm:$0xf] %v948
      %950 = vst [vmem:[%s418 + $0x10] sm:$0xf] %v650
      %v951 = vld [vmem:[%s418 + $0x14] sm:$0x1]
      %v952 = vsel %vm421, %v651, %v951
      %953 = vst [vmem:[%s418 + $0x14] sm:$0x1] %v952
      %v954 = vld [vmem:[%s418 + $0x18] sm:$0xf]
      %v955 = vsel %vm939, %v658, %v954
      %956 = vst [vmem:[%s418 + $0x18] sm:$0xf] %v955
      %957 = vst [vmem:[%s418 + $0x1c] sm:$0xf] %v667
      %v958 = vld [vmem:[%s418 + $0x20] sm:$0x1]
      %v959 = vsel %vm421, %v668, %v958
      %960 = vst [vmem:[%s418 + $0x20] sm:$0x1] %v959
      %v961 = vld [vmem:[%s418 + $0x24] sm:$0xf]
      %v962 = vsel %vm939, %v675, %v961
      %963 = vst [vmem:[%s418 + $0x24] sm:$0xf] %v962
      %964 = vst [vmem:[%s418 + $0x28] sm:$0xf] %v684
      %v965 = vld [vmem:[%s418 + $0x2c] sm:$0x1]
      %v966 = vsel %vm421, %v685, %v965
      %967 = vst [vmem:[%s418 + $0x2c] sm:$0x1] %v966
      %v968 = vld [vmem:[%s418 + $0x30] sm:$0xf]
      %v969 = vsel %vm939, %v692, %v968
      %970 = vst [vmem:[%s418 + $0x30] sm:$0xf] %v969
      %971 = vst [vmem:[%s418 + $0x34] sm:$0xf] %v701
      %v972 = vld [vmem:[%s418 + $0x38] sm:$0x1]
      %v973 = vsel %vm421, %v702, %v972
      %974 = vst [vmem:[%s418 + $0x38] sm:$0x1] %v973
      %v975 = vld [vmem:[%s418 + $0x3c] sm:$0xf]
      %v976 = vsel %vm939, %v709, %v975
      %977 = vst [vmem:[%s418 + $0x3c] sm:$0xf] %v976
      %978 = vst [vmem:[%s418 + $0x40] sm:$0xf] %v718
      %v979 = vld [vmem:[%s418 + $0x44] sm:$0x1]
      %v980 = vsel %vm421, %v719, %v979
      %981 = vst [vmem:[%s418 + $0x44] sm:$0x1] %v980
      %v982 = vld [vmem:[%s418 + $0x48] sm:$0xf]
      %v983 = vsel %vm939, %v726, %v982
      %984 = vst [vmem:[%s418 + $0x48] sm:$0xf] %v983
      %985 = vst [vmem:[%s418 + $0x4c] sm:$0xf] %v735
      %v986 = vld [vmem:[%s418 + $0x50] sm:$0x1]
      %v987 = vsel %vm421, %v736, %v986
      %988 = vst [vmem:[%s418 + $0x50] sm:$0x1] %v987
      %v989 = vld [vmem:[%s418 + $0x54] sm:$0xf]
      %v990 = vsel %vm939, %v743, %v989
      %991 = vst [vmem:[%s418 + $0x54] sm:$0xf] %v990
      %992 = vst [vmem:[%s418 + $0x58] sm:$0xf] %v752
      %v993 = vld [vmem:[%s418 + $0x5c] sm:$0x1]
      %v994 = vsel %vm421, %v753, %v993
      %995 = vst [vmem:[%s418 + $0x5c] sm:$0x1] %v994
      %v996 = vld [vmem:[%s418 + $0x60] sm:$0xf]
      %v997 = vsel %vm939, %v760, %v996
      %998 = vst [vmem:[%s418 + $0x60] sm:$0xf] %v997
      %999 = vst [vmem:[%s418 + $0x64] sm:$0xf] %v769
      %v1000 = vld [vmem:[%s418 + $0x68] sm:$0x1]
      %v1001 = vsel %vm421, %v770, %v1000
      %1002 = vst [vmem:[%s418 + $0x68] sm:$0x1] %v1001
      %v1003 = vld [vmem:[%s418 + $0x6c] sm:$0xf]
      %v1004 = vsel %vm939, %v777, %v1003
      %1005 = vst [vmem:[%s418 + $0x6c] sm:$0xf] %v1004
      %1006 = vst [vmem:[%s418 + $0x70] sm:$0xf] %v786
      %v1007 = vld [vmem:[%s418 + $0x74] sm:$0x1]
      %v1008 = vsel %vm421, %v787, %v1007
      %1009 = vst [vmem:[%s418 + $0x74] sm:$0x1] %v1008
      %v1010 = vld [vmem:[%s418 + $0x78] sm:$0xf]
      %v1011 = vsel %vm939, %v794, %v1010
      %1012 = vst [vmem:[%s418 + $0x78] sm:$0xf] %v1011
      %1013 = vst [vmem:[%s418 + $0x7c] sm:$0xf] %v803
      %v1014 = vld [vmem:[%s418 + $0x80] sm:$0x1]
      %v1015 = vsel %vm421, %v804, %v1014
      %1016 = vst [vmem:[%s418 + $0x80] sm:$0x1] %v1015
      %v1017 = vld [vmem:[%s418 + $0x84] sm:$0xf]
      %v1018 = vsel %vm939, %v811, %v1017
      %1019 = vst [vmem:[%s418 + $0x84] sm:$0xf] %v1018
      %1020 = vst [vmem:[%s418 + $0x88] sm:$0xf] %v820
      %v1021 = vld [vmem:[%s418 + $0x8c] sm:$0x1]
      %v1022 = vsel %vm421, %v821, %v1021
      %1023 = vst [vmem:[%s418 + $0x8c] sm:$0x1] %v1022
      %v1024 = vld [vmem:[%s418 + $0x90] sm:$0xf]
      %v1025 = vsel %vm939, %v828, %v1024
      %1026 = vst [vmem:[%s418 + $0x90] sm:$0xf] %v1025
      %1027 = vst [vmem:[%s418 + $0x94] sm:$0xf] %v837
      %v1028 = vld [vmem:[%s418 + $0x98] sm:$0x1]
      %v1029 = vsel %vm421, %v838, %v1028
      %1030 = vst [vmem:[%s418 + $0x98] sm:$0x1] %v1029
      %v1031 = vld [vmem:[%s418 + $0x9c] sm:$0xf]
      %v1032 = vsel %vm939, %v845, %v1031
      %1033 = vst [vmem:[%s418 + $0x9c] sm:$0xf] %v1032
      %1034 = vst [vmem:[%s418 + $0xa0] sm:$0xf] %v854
      %v1035 = vld [vmem:[%s418 + $0xa4] sm:$0x1]
      %v1036 = vsel %vm421, %v855, %v1035
      %1037 = vst [vmem:[%s418 + $0xa4] sm:$0x1] %v1036
      %v1038 = vld [vmem:[%s418 + $0xa8] sm:$0xf]
      %v1039 = vsel %vm939, %v862, %v1038
      %1040 = vst [vmem:[%s418 + $0xa8] sm:$0xf] %v1039
      %1041 = vst [vmem:[%s418 + $0xac] sm:$0xf] %v871
      %v1042 = vld [vmem:[%s418 + $0xb0] sm:$0x1]
      %v1043 = vsel %vm421, %v872, %v1042
      %1044 = vst [vmem:[%s418 + $0xb0] sm:$0x1] %v1043
      %v1045 = vld [vmem:[%s418 + $0xb4] sm:$0xf]
      %v1046 = vsel %vm939, %v879, %v1045
      %1047 = vst [vmem:[%s418 + $0xb4] sm:$0xf] %v1046
      %1048 = vst [vmem:[%s418 + $0xb8] sm:$0xf] %v888
      %v1049 = vld [vmem:[%s418 + $0xbc] sm:$0x1]
      %v1050 = vsel %vm421, %v889, %v1049
      %1051 = vst [vmem:[%s418 + $0xbc] sm:$0x1] %v1050
      %v1052 = vld [vmem:[#allocation2] sm:$0xf]
      %v1053 = vld [vmem:[#allocation2 + $0x4] sm:$0xf]
      %v1054 = vld [vmem:[#allocation2 + $0xc] sm:$0xf]
      %v1055 = vld [vmem:[#allocation2 + $0x10] sm:$0xf]
      %v1056 = vld [vmem:[#allocation2 + $0x18] sm:$0xf]
      %v1057 = vld [vmem:[#allocation2 + $0x1c] sm:$0xf]
      %v1058 = vld [vmem:[#allocation2 + $0x24] sm:$0xf]
      %v1059 = vld [vmem:[#allocation2 + $0x28] sm:$0xf]
      %v1060 = vld [vmem:[#allocation2 + $0x30] sm:$0xf]
      %v1061 = vld [vmem:[#allocation2 + $0x34] sm:$0xf]
      %v1062 = vld [vmem:[#allocation2 + $0x3c] sm:$0xf]
      %v1063 = vld [vmem:[#allocation2 + $0x40] sm:$0xf]
      %v1064 = vld [vmem:[#allocation2 + $0x48] sm:$0xf]
      %v1065 = vld [vmem:[#allocation2 + $0x4c] sm:$0xf]
      %v1066 = vld [vmem:[#allocation2 + $0x54] sm:$0xf]
      %v1067 = vld [vmem:[#allocation2 + $0x58] sm:$0xf]
      %v1068 = vld [vmem:[#allocation2 + $0x60] sm:$0xf]
      %v1069 = vld [vmem:[#allocation2 + $0x64] sm:$0xf]
      %v1070 = vld [vmem:[#allocation2 + $0x6c] sm:$0xf]
      %v1071 = vld [vmem:[#allocation2 + $0x70] sm:$0xf]
      %v1072 = vld [vmem:[#allocation2 + $0x78] sm:$0xf]
      %v1073 = vld [vmem:[#allocation2 + $0x7c] sm:$0xf]
      %v1074 = vld [vmem:[#allocation2 + $0x84] sm:$0xf]
      %v1075 = vld [vmem:[#allocation2 + $0x88] sm:$0xf]
      %v1076 = vld [vmem:[#allocation2 + $0x90] sm:$0xf]
      %v1077 = vld [vmem:[#allocation2 + $0x94] sm:$0xf]
      %v1078 = vld [vmem:[#allocation2 + $0x9c] sm:$0xf]
      %v1079 = vld [vmem:[#allocation2 + $0xa0] sm:$0xf]
      %v1080 = vld [vmem:[#allocation2 + $0xa8] sm:$0xf]
      %v1081 = vld [vmem:[#allocation2 + $0xac] sm:$0xf]
      %v1082 = vld [vmem:[#allocation2 + $0xb4] sm:$0xf]
      %v1083 = vld [vmem:[#allocation2 + $0xb8] sm:$0xf]
      %v1084 = vld [vmem:[#allocation2 + $0xc0] sm:$0xf]
      %v1085 = vld [vmem:[#allocation2 + $0xc4] sm:$0xf]
      %v1086 = vld [vmem:[#allocation2 + $0xcc] sm:$0xf]
      %v1087 = vld [vmem:[#allocation2 + $0xd0] sm:$0xf]
      %v1088 = vld [vmem:[%s3] sm:$0xf]
      %v1089 = vld [vmem:[%s3 + $0x4] sm:$0xf]
      %v1090 = vld [vmem:[%s3 + $0x8] sm:$0xf]
      %v1091 = vld [vmem:[%s3 + $0xc] sm:$0xf]
      %v1092 = vld [vmem:[%s3 + $0x10] sm:$0xf]
      %v1093 = vld [vmem:[%s3 + $0x14] sm:$0xf]
      %v1094 = vld [vmem:[%s3 + $0x18] sm:$0xf]
      %v1095 = vld [vmem:[%s3 + $0x1c] sm:$0xf]
      %v1096 = vld [vmem:[%s3 + $0x20] sm:$0xf]
      %v1097 = vld [vmem:[%s3 + $0x24] sm:$0xf]
      %v1098 = vld [vmem:[%s3 + $0x28] sm:$0xf]
      %v1099 = vld [vmem:[%s3 + $0x2c] sm:$0xf]
      %v1100 = vld [vmem:[%s3 + $0x30] sm:$0xf]
      %v1101 = vld [vmem:[%s3 + $0x34] sm:$0xf]
      %v1102 = vld [vmem:[%s3 + $0x38] sm:$0xf]
      %v1103 = vld [vmem:[%s3 + $0x3c] sm:$0xf]
      %s1104 = scalar_lea.vmem %s3, 192
      %v1105 = vld [vmem:[%s1104] sm:$0xf]
      %v1106 = vld [vmem:[%s1104 + $0x4] sm:$0xf]
      %v1107 = vld [vmem:[%s1104 + $0x8] sm:$0xf]
      %v1108 = vld [vmem:[%s1104 + $0xc] sm:$0xf]
      %v1109 = vld [vmem:[%s1104 + $0x10] sm:$0xf]
      %v1110 = vld [vmem:[%s1104 + $0x14] sm:$0xf]
      %v1111 = vld [vmem:[%s1104 + $0x18] sm:$0xf]
      %v1112 = vld [vmem:[%s1104 + $0x1c] sm:$0xf]
      %v1113 = vld [vmem:[%s1104 + $0x20] sm:$0xf]
      %v1114 = vld [vmem:[%s1104 + $0x24] sm:$0xf]
      %v1115 = vld [vmem:[%s1104 + $0x28] sm:$0xf]
      %v1116 = vld [vmem:[%s1104 + $0x2c] sm:$0xf]
      %v1117 = vld [vmem:[%s1104 + $0x30] sm:$0xf]
      %v1118 = vld [vmem:[%s1104 + $0x34] sm:$0xf]
      %v1119 = vld [vmem:[%s1104 + $0x38] sm:$0xf]
      %v1120 = vld [vmem:[%s1104 + $0x3c] sm:$0xf]
      %v1153 = vunpack.c.l.b16 %v1054
      %v1154 = vunpack.c.l.b16 %v1055
      %v1155 = vunpack.c.l.b16 %v1056
      %v1156 = vunpack.c.l.b16 %v1057
      %v1157 = vunpack.c.l.b16 %v1058
      %v1158 = vunpack.c.l.b16 %v1059
      %v1159 = vunpack.c.l.b16 %v1060
      %v1160 = vunpack.c.l.b16 %v1061
      %v1161 = vunpack.c.l.b16 %v1062
      %v1162 = vunpack.c.l.b16 %v1063
      %v1163 = vunpack.c.l.b16 %v1064
      %v1164 = vunpack.c.l.b16 %v1065
      %v1165 = vunpack.c.l.b16 %v1066
      %v1166 = vunpack.c.l.b16 %v1067
      %v1167 = vunpack.c.l.b16 %v1068
      %v1168 = vunpack.c.l.b16 %v1069
      %v1169 = vunpack.c.l.b16 %v1070
      %v1170 = vunpack.c.l.b16 %v1071
      %v1171 = vunpack.c.l.b16 %v1072
      %v1172 = vunpack.c.l.b16 %v1073
      %v1173 = vunpack.c.l.b16 %v1074
      %v1174 = vunpack.c.l.b16 %v1075
      %v1175 = vunpack.c.l.b16 %v1076
      %v1176 = vunpack.c.l.b16 %v1077
      %v1177 = vunpack.c.l.b16 %v1078
      %v1178 = vunpack.c.l.b16 %v1079
      %v1179 = vunpack.c.l.b16 %v1080
      %v1180 = vunpack.c.l.b16 %v1081
      %v1181 = vunpack.c.l.b16 %v1082
      %v1182 = vunpack.c.l.b16 %v1083
      %v1183 = vunpack.c.l.b16 %v1084
      %v1184 = vunpack.c.l.b16 %v1085
      %v1185 = vpack.c.b16 %v1154, %v1153
      %v1186 = vpack.c.b16 %v1156, %v1155
      %v1187 = vpack.c.b16 %v1158, %v1157
      %v1188 = vpack.c.b16 %v1160, %v1159
      %v1189 = vpack.c.b16 %v1162, %v1161
      %v1190 = vpack.c.b16 %v1164, %v1163
      %v1191 = vpack.c.b16 %v1166, %v1165
      %v1192 = vpack.c.b16 %v1168, %v1167
      %v1193 = vpack.c.b16 %v1170, %v1169
      %v1194 = vpack.c.b16 %v1172, %v1171
      %v1195 = vpack.c.b16 %v1174, %v1173
      %v1196 = vpack.c.b16 %v1176, %v1175
      %v1197 = vpack.c.b16 %v1178, %v1177
      %v1198 = vpack.c.b16 %v1180, %v1179
      %v1199 = vpack.c.b16 %v1182, %v1181
      %v1200 = vpack.c.b16 %v1184, %v1183
      %v1233 = vunpack.c.l.b16 %v1105
      %v1234 = vunpack.c.l.b16 %v1106
      %v1235 = vunpack.c.l.b16 %v1107
      %v1236 = vunpack.c.l.b16 %v1108
      %v1237 = vunpack.c.l.b16 %v1109
      %v1238 = vunpack.c.l.b16 %v1110
      %v1239 = vunpack.c.l.b16 %v1111
      %v1240 = vunpack.c.l.b16 %v1112
      %v1241 = vunpack.c.l.b16 %v1113
      %v1242 = vunpack.c.l.b16 %v1114
      %v1243 = vunpack.c.l.b16 %v1115
      %v1244 = vunpack.c.l.b16 %v1116
      %v1245 = vunpack.c.l.b16 %v1117
      %v1246 = vunpack.c.l.b16 %v1118
      %v1247 = vunpack.c.l.b16 %v1119
      %v1248 = vunpack.c.l.b16 %v1120
      %v1249 = vpack.c.b16 %v1234, %v1233
      %v1250 = vpack.c.b16 %v1236, %v1235
      %v1251 = vpack.c.b16 %v1238, %v1237
      %v1252 = vpack.c.b16 %v1240, %v1239
      %v1253 = vpack.c.b16 %v1242, %v1241
      %v1254 = vpack.c.b16 %v1244, %v1243
      %v1255 = vpack.c.b16 %v1246, %v1245
      %v1256 = vpack.c.b16 %v1248, %v1247
      %1265 = vmatprep.subr.bf16.mxu0 0
      %1266 = vmatpush1.bf16.msra.mxu0 %v1249
      %1267 = vmatprep.subr.bf16.mxu0 0
      %1268 = vmatpush1.bf16.msra.mxu0 %v1250
      %1269 = vmatprep.subr.bf16.mxu0 0
      %1270 = vmatpush1.bf16.msra.mxu0 %v1251
      %1271 = vmatprep.subr.bf16.mxu0 0
      %1272 = vmatpush1.bf16.msra.mxu0 %v1252
      %1273 = vmatprep.subr.bf16.mxu0 0
      %1274 = vmatpush1.bf16.msra.mxu0 %v1253
      %1275 = vmatprep.subr.bf16.mxu0 0
      %1276 = vmatpush1.bf16.msra.mxu0 %v1254
      %1277 = vmatprep.subr.bf16.mxu0 0
      %1278 = vmatpush1.bf16.msra.mxu0 %v1255
      %1279 = vmatprep.subr.bf16.mxu0 0
      %1280 = vmatpush1.bf16.msra.mxu0 %v1256
      %1281 = vmatprep.subr.bf16.mxu0 0
      %1282 = vmatpush1.bf16.msra.mxu0 0
      %1283 = vmatprep.subr.bf16.mxu0 0
      %1284 = vmatpush1.bf16.msra.mxu0 0
      %1285 = vmatprep.subr.bf16.mxu0 0
      %1286 = vmatpush1.bf16.msra.mxu0 0
      %1287 = vmatprep.subr.bf16.mxu0 0
      %1288 = vmatpush1.bf16.msra.mxu0 0
      %1289 = vmatprep.subr.bf16.mxu0 0
      %1290 = vmatpush1.bf16.msra.mxu0 0
      %1291 = vmatprep.subr.bf16.mxu0 0
      %1292 = vmatpush1.bf16.msra.mxu0 0
      %1293 = vmatprep.subr.bf16.mxu0 0
      %1294 = vmatpush1.bf16.msra.mxu0 0
      %1295 = vmatprep.subr.bf16.mxu0 0
      %1296 = vmatpush1.bf16.msra.mxu0 0
      %1297 = vmatprep.mubr.bf16.mxu0 0
      %1298 = vmatmul.mubr.bf16.gmra.mrb[0].mxu0 %v1185
      %v1299 = vpop.f32.mrb[0].mxu0
      %v1300 = vadd.f32 0.0, %v1299
      %v1301 = vpop.f32.mrb[0].mxu0
      %v1302 = vpop.f32.mrb[0].mxu0
      %v1303 = vadd.f32 0.0, %v1302
      %v1304 = vpop.f32.mrb[0].mxu0
      %1305 = vmatprep.mubr.bf16.mxu0 0
      %1306 = vmatmul.mubr.bf16.gmra.mrb[0].mxu0 %v1186
      %v1307 = vpop.f32.mrb[0].mxu0
      %v1308 = vadd.f32 0.0, %v1307
      %v1309 = vpop.f32.mrb[0].mxu0
      %v1310 = vpop.f32.mrb[0].mxu0
      %v1311 = vadd.f32 0.0, %v1310
      %v1312 = vpop.f32.mrb[0].mxu0
      %1313 = vmatprep.mubr.bf16.mxu0 0
      %1314 = vmatmul.mubr.bf16.gmra.mrb[0].mxu0 %v1187
      %v1315 = vpop.f32.mrb[0].mxu0
      %v1316 = vadd.f32 0.0, %v1315
      %v1317 = vpop.f32.mrb[0].mxu0
      %v1318 = vpop.f32.mrb[0].mxu0
      %v1319 = vadd.f32 0.0, %v1318
      %v1320 = vpop.f32.mrb[0].mxu0
      %1321 = vmatprep.mubr.bf16.mxu0 0
      %1322 = vmatmul.mubr.bf16.gmra.mrb[0].mxu0 %v1188
      %v1323 = vpop.f32.mrb[0].mxu0
      %v1324 = vadd.f32 0.0, %v1323
      %v1325 = vpop.f32.mrb[0].mxu0
      %v1326 = vpop.f32.mrb[0].mxu0
      %v1327 = vadd.f32 0.0, %v1326
      %v1328 = vpop.f32.mrb[0].mxu0
      %1329 = vmatprep.mubr.bf16.mxu0 0
      %1330 = vmatmul.mubr.bf16.gmra.mrb[0].mxu0 %v1189
      %v1331 = vpop.f32.mrb[0].mxu0
      %v1332 = vadd.f32 0.0, %v1331
      %v1333 = vpop.f32.mrb[0].mxu0
      %v1334 = vpop.f32.mrb[0].mxu0
      %v1335 = vadd.f32 0.0, %v1334
      %v1336 = vpop.f32.mrb[0].mxu0
      %1337 = vmatprep.mubr.bf16.mxu0 0
      %1338 = vmatmul.mubr.bf16.gmra.mrb[0].mxu0 %v1190
      %v1339 = vpop.f32.mrb[0].mxu0
      %v1340 = vadd.f32 0.0, %v1339
      %v1341 = vpop.f32.mrb[0].mxu0
      %v1342 = vpop.f32.mrb[0].mxu0
      %v1343 = vadd.f32 0.0, %v1342
      %v1344 = vpop.f32.mrb[0].mxu0
      %1345 = vmatprep.mubr.bf16.mxu0 0
      %1346 = vmatmul.mubr.bf16.gmra.mrb[0].mxu0 %v1191
      %v1347 = vpop.f32.mrb[0].mxu0
      %v1348 = vadd.f32 0.0, %v1347
      %v1349 = vpop.f32.mrb[0].mxu0
      %v1350 = vpop.f32.mrb[0].mxu0
      %v1351 = vadd.f32 0.0, %v1350
      %v1352 = vpop.f32.mrb[0].mxu0
      %1353 = vmatprep.mubr.bf16.mxu0 0
      %1354 = vmatmul.mubr.bf16.gmra.mrb[0].mxu0 %v1192
      %v1355 = vpop.f32.mrb[0].mxu0
      %v1356 = vadd.f32 0.0, %v1355
      %v1357 = vpop.f32.mrb[0].mxu0
      %v1358 = vpop.f32.mrb[0].mxu0
      %v1359 = vadd.f32 0.0, %v1358
      %v1360 = vpop.f32.mrb[0].mxu0
      %1361 = vmatprep.mubr.bf16.mxu0 0
      %1362 = vmatmul.mubr.bf16.gmra.mrb[0].mxu0 %v1193
      %v1363 = vpop.f32.mrb[0].mxu0
      %v1364 = vadd.f32 0.0, %v1363
      %v1365 = vpop.f32.mrb[0].mxu0
      %v1366 = vpop.f32.mrb[0].mxu0
      %v1367 = vadd.f32 0.0, %v1366
      %v1368 = vpop.f32.mrb[0].mxu0
      %1369 = vmatprep.mubr.bf16.mxu0 0
      %1370 = vmatmul.mubr.bf16.gmra.mrb[0].mxu0 %v1194
      %v1371 = vpop.f32.mrb[0].mxu0
      %v1372 = vadd.f32 0.0, %v1371
      %v1373 = vpop.f32.mrb[0].mxu0
      %v1374 = vpop.f32.mrb[0].mxu0
      %v1375 = vadd.f32 0.0, %v1374
      %v1376 = vpop.f32.mrb[0].mxu0
      %1377 = vmatprep.mubr.bf16.mxu0 0
      %1378 = vmatmul.mubr.bf16.gmra.mrb[0].mxu0 %v1195
      %v1379 = vpop.f32.mrb[0].mxu0
      %v1380 = vadd.f32 0.0, %v1379
      %v1381 = vpop.f32.mrb[0].mxu0
      %v1382 = vpop.f32.mrb[0].mxu0
      %v1383 = vadd.f32 0.0, %v1382
      %v1384 = vpop.f32.mrb[0].mxu0
      %1385 = vmatprep.mubr.bf16.mxu0 0
      %1386 = vmatmul.mubr.bf16.gmra.mrb[0].mxu0 %v1196
      %v1387 = vpop.f32.mrb[0].mxu0
      %v1388 = vadd.f32 0.0, %v1387
      %v1389 = vpop.f32.mrb[0].mxu0
      %v1390 = vpop.f32.mrb[0].mxu0
      %v1391 = vadd.f32 0.0, %v1390
      %v1392 = vpop.f32.mrb[0].mxu0
      %1393 = vmatprep.mubr.bf16.mxu0 0
      %1394 = vmatmul.mubr.bf16.gmra.mrb[0].mxu0 %v1197
      %v1395 = vpop.f32.mrb[0].mxu0
      %v1396 = vadd.f32 0.0, %v1395
      %v1397 = vpop.f32.mrb[0].mxu0
      %v1398 = vpop.f32.mrb[0].mxu0
      %v1399 = vadd.f32 0.0, %v1398
      %v1400 = vpop.f32.mrb[0].mxu0
      %1401 = vmatprep.mubr.bf16.mxu0 0
      %1402 = vmatmul.mubr.bf16.gmra.mrb[0].mxu0 %v1198
      %v1403 = vpop.f32.mrb[0].mxu0
      %v1404 = vadd.f32 0.0, %v1403
      %v1405 = vpop.f32.mrb[0].mxu0
      %v1406 = vpop.f32.mrb[0].mxu0
      %v1407 = vadd.f32 0.0, %v1406
      %v1408 = vpop.f32.mrb[0].mxu0
      %1409 = vmatprep.mubr.bf16.mxu0 0
      %1410 = vmatmul.mubr.bf16.gmra.mrb[0].mxu0 %v1199
      %v1411 = vpop.f32.mrb[0].mxu0
      %v1412 = vadd.f32 0.0, %v1411
      %v1413 = vpop.f32.mrb[0].mxu0
      %v1414 = vpop.f32.mrb[0].mxu0
      %v1415 = vadd.f32 0.0, %v1414
      %v1416 = vpop.f32.mrb[0].mxu0
      %1417 = vmatprep.mubr.bf16.mxu0 0
      %1418 = vmatmul.mubr.bf16.gmra.mrb[0].mxu0 %v1200
      %v1419 = vpop.f32.mrb[0].mxu0
      %v1420 = vadd.f32 0.0, %v1419
      %v1421 = vpop.f32.mrb[0].mxu0
      %v1422 = vpop.f32.mrb[0].mxu0
      %v1423 = vadd.f32 0.0, %v1422
      %v1424 = vpop.f32.mrb[0].mxu0
      %1425 = vdwg.mxu0
      %v1428 = vunpack.c.l.b16 %v1052
      %v1429 = vunpack.c.l.b16 %v1053
      %v1430 = vpack.c.b16 %v1429, %v1428
      %v1448 = vunpack.c.l.b16 %v1088
      %v1449 = vunpack.c.l.b16 %v1089
      %v1450 = vunpack.c.l.b16 %v1090
      %v1451 = vunpack.c.l.b16 %v1091
      %v1452 = vunpack.c.l.b16 %v1092
      %v1453 = vunpack.c.l.b16 %v1093
      %v1454 = vunpack.c.l.b16 %v1094
      %v1455 = vunpack.c.l.b16 %v1095
      %v1456 = vunpack.c.l.b16 %v1096
      %v1457 = vunpack.c.l.b16 %v1097
      %v1458 = vunpack.c.l.b16 %v1098
      %v1459 = vunpack.c.l.b16 %v1099
      %v1460 = vunpack.c.l.b16 %v1100
      %v1461 = vunpack.c.l.b16 %v1101
      %v1462 = vunpack.c.l.b16 %v1102
      %v1463 = vunpack.c.l.b16 %v1103
      %v1464 = vpack.c.b16 %v1449, %v1448
      %v1465 = vpack.c.b16 %v1451, %v1450
      %v1466 = vpack.c.b16 %v1453, %v1452
      %v1467 = vpack.c.b16 %v1455, %v1454
      %v1468 = vpack.c.b16 %v1457, %v1456
      %v1469 = vpack.c.b16 %v1459, %v1458
      %v1470 = vpack.c.b16 %v1461, %v1460
      %v1471 = vpack.c.b16 %v1463, %v1462
      %1480 = vmatprep.subr.bf16.mxu0 0
      %1481 = vmatpush1.bf16.msra.mxu0 %v1464
      %1482 = vmatprep.subr.bf16.mxu0 0
      %1483 = vmatpush1.bf16.msra.mxu0 %v1465
      %1484 = vmatprep.subr.bf16.mxu0 0
      %1485 = vmatpush1.bf16.msra.mxu0 %v1466
      %1486 = vmatprep.subr.bf16.mxu0 0
      %1487 = vmatpush1.bf16.msra.mxu0 %v1467
      %1488 = vmatprep.subr.bf16.mxu0 0
      %1489 = vmatpush1.bf16.msra.mxu0 %v1468
      %1490 = vmatprep.subr.bf16.mxu0 0
      %1491 = vmatpush1.bf16.msra.mxu0 %v1469
      %1492 = vmatprep.subr.bf16.mxu0 0
      %1493 = vmatpush1.bf16.msra.mxu0 %v1470
      %1494 = vmatprep.subr.bf16.mxu0 0
      %1495 = vmatpush1.bf16.msra.mxu0 %v1471
      %1496 = vmatprep.subr.bf16.mxu0 0
      %1497 = vmatpush1.bf16.msra.mxu0 0
      %1498 = vmatprep.subr.bf16.mxu0 0
      %1499 = vmatpush1.bf16.msra.mxu0 0
      %1500 = vmatprep.subr.bf16.mxu0 0
      %1501 = vmatpush1.bf16.msra.mxu0 0
      %1502 = vmatprep.subr.bf16.mxu0 0
      %1503 = vmatpush1.bf16.msra.mxu0 0
      %1504 = vmatprep.subr.bf16.mxu0 0
      %1505 = vmatpush1.bf16.msra.mxu0 0
      %1506 = vmatprep.subr.bf16.mxu0 0
      %1507 = vmatpush1.bf16.msra.mxu0 0
      %1508 = vmatprep.subr.bf16.mxu0 0
      %1509 = vmatpush1.bf16.msra.mxu0 0
      %1510 = vmatprep.subr.bf16.mxu0 0
      %1511 = vmatpush1.bf16.msra.mxu0 0
      %1512 = vmatprep.mubr.bf16.mxu0 0
      %1513 = vmatmul.mubr.bf16.gmra.mrb[0].mxu0 %v1430
      %v1514 = vpop.f32.mrb[0].mxu0
      %v1515 = vadd.f32 %v1300, %v1514
      %v1516 = vpop.f32.mrb[0].mxu0
      %v1517 = vpop.f32.mrb[0].mxu0
      %v1518 = vadd.f32 %v1303, %v1517
      %v1519 = vpop.f32.mrb[0].mxu0
      %1520 = vmatprep.mubr.bf16.mxu0 0
      %1521 = vmatmul.mubr.bf16.gmra.mrb[0].mxu0 %v1185
      %v1522 = vpop.f32.mrb[0].mxu0
      %v1523 = vadd.f32 %v1308, %v1522
      %v1524 = vpop.f32.mrb[0].mxu0
      %v1525 = vpop.f32.mrb[0].mxu0
      %v1526 = vadd.f32 %v1311, %v1525
      %v1527 = vpop.f32.mrb[0].mxu0
      %1528 = vmatprep.mubr.bf16.mxu0 0
      %1529 = vmatmul.mubr.bf16.gmra.mrb[0].mxu0 %v1186
      %v1530 = vpop.f32.mrb[0].mxu0
      %v1531 = vadd.f32 %v1316, %v1530
      %v1532 = vpop.f32.mrb[0].mxu0
      %v1533 = vpop.f32.mrb[0].mxu0
      %v1534 = vadd.f32 %v1319, %v1533
      %v1535 = vpop.f32.mrb[0].mxu0
      %1536 = vmatprep.mubr.bf16.mxu0 0
      %1537 = vmatmul.mubr.bf16.gmra.mrb[0].mxu0 %v1187
      %v1538 = vpop.f32.mrb[0].mxu0
      %v1539 = vadd.f32 %v1324, %v1538
      %v1540 = vpop.f32.mrb[0].mxu0
      %v1541 = vpop.f32.mrb[0].mxu0
      %v1542 = vadd.f32 %v1327, %v1541
      %v1543 = vpop.f32.mrb[0].mxu0
      %1544 = vmatprep.mubr.bf16.mxu0 0
      %1545 = vmatmul.mubr.bf16.gmra.mrb[0].mxu0 %v1188
      %v1546 = vpop.f32.mrb[0].mxu0
      %v1547 = vadd.f32 %v1332, %v1546
      %v1548 = vpop.f32.mrb[0].mxu0
      %v1549 = vpop.f32.mrb[0].mxu0
      %v1550 = vadd.f32 %v1335, %v1549
      %v1551 = vpop.f32.mrb[0].mxu0
      %1552 = vmatprep.mubr.bf16.mxu0 0
      %1553 = vmatmul.mubr.bf16.gmra.mrb[0].mxu0 %v1189
      %v1554 = vpop.f32.mrb[0].mxu0
      %v1555 = vadd.f32 %v1340, %v1554
      %v1556 = vpop.f32.mrb[0].mxu0
      %v1557 = vpop.f32.mrb[0].mxu0
      %v1558 = vadd.f32 %v1343, %v1557
      %v1559 = vpop.f32.mrb[0].mxu0
      %1560 = vmatprep.mubr.bf16.mxu0 0
      %1561 = vmatmul.mubr.bf16.gmra.mrb[0].mxu0 %v1190
      %v1562 = vpop.f32.mrb[0].mxu0
      %v1563 = vadd.f32 %v1348, %v1562
      %v1564 = vpop.f32.mrb[0].mxu0
      %v1565 = vpop.f32.mrb[0].mxu0
      %v1566 = vadd.f32 %v1351, %v1565
      %v1567 = vpop.f32.mrb[0].mxu0
      %1568 = vmatprep.mubr.bf16.mxu0 0
      %1569 = vmatmul.mubr.bf16.gmra.mrb[0].mxu0 %v1191
      %v1570 = vpop.f32.mrb[0].mxu0
      %v1571 = vadd.f32 %v1356, %v1570
      %v1572 = vpop.f32.mrb[0].mxu0
      %v1573 = vpop.f32.mrb[0].mxu0
      %v1574 = vadd.f32 %v1359, %v1573
      %v1575 = vpop.f32.mrb[0].mxu0
      %1576 = vmatprep.mubr.bf16.mxu0 0
      %1577 = vmatmul.mubr.bf16.gmra.mrb[0].mxu0 %v1192
      %v1578 = vpop.f32.mrb[0].mxu0
      %v1579 = vadd.f32 %v1364, %v1578
      %v1580 = vpop.f32.mrb[0].mxu0
      %v1581 = vpop.f32.mrb[0].mxu0
      %v1582 = vadd.f32 %v1367, %v1581
      %v1583 = vpop.f32.mrb[0].mxu0
      %1584 = vmatprep.mubr.bf16.mxu0 0
      %1585 = vmatmul.mubr.bf16.gmra.mrb[0].mxu0 %v1193
      %v1586 = vpop.f32.mrb[0].mxu0
      %v1587 = vadd.f32 %v1372, %v1586
      %v1588 = vpop.f32.mrb[0].mxu0
      %v1589 = vpop.f32.mrb[0].mxu0
      %v1590 = vadd.f32 %v1375, %v1589
      %v1591 = vpop.f32.mrb[0].mxu0
      %1592 = vmatprep.mubr.bf16.mxu0 0
      %1593 = vmatmul.mubr.bf16.gmra.mrb[0].mxu0 %v1194
      %v1594 = vpop.f32.mrb[0].mxu0
      %v1595 = vadd.f32 %v1380, %v1594
      %v1596 = vpop.f32.mrb[0].mxu0
      %v1597 = vpop.f32.mrb[0].mxu0
      %v1598 = vadd.f32 %v1383, %v1597
      %v1599 = vpop.f32.mrb[0].mxu0
      %1600 = vmatprep.mubr.bf16.mxu0 0
      %1601 = vmatmul.mubr.bf16.gmra.mrb[0].mxu0 %v1195
      %v1602 = vpop.f32.mrb[0].mxu0
      %v1603 = vadd.f32 %v1388, %v1602
      %v1604 = vpop.f32.mrb[0].mxu0
      %v1605 = vpop.f32.mrb[0].mxu0
      %v1606 = vadd.f32 %v1391, %v1605
      %v1607 = vpop.f32.mrb[0].mxu0
      %1608 = vmatprep.mubr.bf16.mxu0 0
      %1609 = vmatmul.mubr.bf16.gmra.mrb[0].mxu0 %v1196
      %v1610 = vpop.f32.mrb[0].mxu0
      %v1611 = vadd.f32 %v1396, %v1610
      %v1612 = vpop.f32.mrb[0].mxu0
      %v1613 = vpop.f32.mrb[0].mxu0
      %v1614 = vadd.f32 %v1399, %v1613
      %v1615 = vpop.f32.mrb[0].mxu0
      %1616 = vmatprep.mubr.bf16.mxu0 0
      %1617 = vmatmul.mubr.bf16.gmra.mrb[0].mxu0 %v1197
      %v1618 = vpop.f32.mrb[0].mxu0
      %v1619 = vadd.f32 %v1404, %v1618
      %v1620 = vpop.f32.mrb[0].mxu0
      %v1621 = vpop.f32.mrb[0].mxu0
      %v1622 = vadd.f32 %v1407, %v1621
      %v1623 = vpop.f32.mrb[0].mxu0
      %1624 = vmatprep.mubr.bf16.mxu0 0
      %1625 = vmatmul.mubr.bf16.gmra.mrb[0].mxu0 %v1198
      %v1626 = vpop.f32.mrb[0].mxu0
      %v1627 = vadd.f32 %v1412, %v1626
      %v1628 = vpop.f32.mrb[0].mxu0
      %v1629 = vpop.f32.mrb[0].mxu0
      %v1630 = vadd.f32 %v1415, %v1629
      %v1631 = vpop.f32.mrb[0].mxu0
      %1632 = vmatprep.mubr.bf16.mxu0 0
      %1633 = vmatmul.mubr.bf16.gmra.mrb[0].mxu0 %v1199
      %v1634 = vpop.f32.mrb[0].mxu0
      %v1635 = vadd.f32 %v1420, %v1634
      %v1636 = vpop.f32.mrb[0].mxu0
      %v1637 = vpop.f32.mrb[0].mxu0
      %v1638 = vadd.f32 %v1423, %v1637
      %v1639 = vpop.f32.mrb[0].mxu0
      %1640 = vdwg.mxu0
      %s1641 = scalar_lea.vmem %s3, 384
      %v1642 = vld [vmem:[%s1641] sm:$0xf]
      %v1643 = vld [vmem:[%s1641 + $0x4] sm:$0xf]
      %v1644 = vld [vmem:[%s1641 + $0x8] sm:$0xf]
      %v1645 = vld [vmem:[%s1641 + $0xc] sm:$0xf]
      %v1646 = vld [vmem:[%s1641 + $0x10] sm:$0xf]
      %v1647 = vld [vmem:[%s1641 + $0x14] sm:$0xf]
      %v1648 = vld [vmem:[%s1641 + $0x18] sm:$0xf]
      %v1649 = vld [vmem:[%s1641 + $0x1c] sm:$0xf]
      %v1650 = vld [vmem:[%s1641 + $0x20] sm:$0xf]
      %v1651 = vld [vmem:[%s1641 + $0x24] sm:$0xf]
      %v1652 = vld [vmem:[%s1641 + $0x28] sm:$0xf]
      %v1653 = vld [vmem:[%s1641 + $0x2c] sm:$0xf]
      %v1654 = vld [vmem:[%s1641 + $0x30] sm:$0xf]
      %v1655 = vld [vmem:[%s1641 + $0x34] sm:$0xf]
      %v1656 = vld [vmem:[%s1641 + $0x38] sm:$0xf]
      %v1657 = vld [vmem:[%s1641 + $0x3c] sm:$0xf]
      %v1660 = vunpack.c.l.b16 %v1086
      %v1661 = vunpack.c.l.b16 %v1087
      %v1662 = vpack.c.b16 %v1661, %v1660
      %v1680 = vunpack.c.l.b16 %v1642
      %v1681 = vunpack.c.l.b16 %v1643
      %v1682 = vunpack.c.l.b16 %v1644
      %v1683 = vunpack.c.l.b16 %v1645
      %v1684 = vunpack.c.l.b16 %v1646
      %v1685 = vunpack.c.l.b16 %v1647
      %v1686 = vunpack.c.l.b16 %v1648
      %v1687 = vunpack.c.l.b16 %v1649
      %v1688 = vunpack.c.l.b16 %v1650
      %v1689 = vunpack.c.l.b16 %v1651
      %v1690 = vunpack.c.l.b16 %v1652
      %v1691 = vunpack.c.l.b16 %v1653
      %v1692 = vunpack.c.l.b16 %v1654
      %v1693 = vunpack.c.l.b16 %v1655
      %v1694 = vunpack.c.l.b16 %v1656
      %v1695 = vunpack.c.l.b16 %v1657
      %v1696 = vpack.c.b16 %v1681, %v1680
      %v1697 = vpack.c.b16 %v1683, %v1682
      %v1698 = vpack.c.b16 %v1685, %v1684
      %v1699 = vpack.c.b16 %v1687, %v1686
      %v1700 = vpack.c.b16 %v1689, %v1688
      %v1701 = vpack.c.b16 %v1691, %v1690
      %v1702 = vpack.c.b16 %v1693, %v1692
      %v1703 = vpack.c.b16 %v1695, %v1694
      %1712 = vmatprep.subr.bf16.mxu0 0
      %1713 = vmatpush1.bf16.msra.mxu0 %v1696
      %1714 = vmatprep.subr.bf16.mxu0 0
      %1715 = vmatpush1.bf16.msra.mxu0 %v1697
      %1716 = vmatprep.subr.bf16.mxu0 0
      %1717 = vmatpush1.bf16.msra.mxu0 %v1698
      %1718 = vmatprep.subr.bf16.mxu0 0
      %1719 = vmatpush1.bf16.msra.mxu0 %v1699
      %1720 = vmatprep.subr.bf16.mxu0 0
      %1721 = vmatpush1.bf16.msra.mxu0 %v1700
      %1722 = vmatprep.subr.bf16.mxu0 0
      %1723 = vmatpush1.bf16.msra.mxu0 %v1701
      %1724 = vmatprep.subr.bf16.mxu0 0
      %1725 = vmatpush1.bf16.msra.mxu0 %v1702
      %1726 = vmatprep.subr.bf16.mxu0 0
      %1727 = vmatpush1.bf16.msra.mxu0 %v1703
      %1728 = vmatprep.subr.bf16.mxu0 0
      %1729 = vmatpush1.bf16.msra.mxu0 0
      %1730 = vmatprep.subr.bf16.mxu0 0
      %1731 = vmatpush1.bf16.msra.mxu0 0
      %1732 = vmatprep.subr.bf16.mxu0 0
      %1733 = vmatpush1.bf16.msra.mxu0 0
      %1734 = vmatprep.subr.bf16.mxu0 0
      %1735 = vmatpush1.bf16.msra.mxu0 0
      %1736 = vmatprep.subr.bf16.mxu0 0
      %1737 = vmatpush1.bf16.msra.mxu0 0
      %1738 = vmatprep.subr.bf16.mxu0 0
      %1739 = vmatpush1.bf16.msra.mxu0 0
      %1740 = vmatprep.subr.bf16.mxu0 0
      %1741 = vmatpush1.bf16.msra.mxu0 0
      %1742 = vmatprep.subr.bf16.mxu0 0
      %1743 = vmatpush1.bf16.msra.mxu0 0
      %1744 = vmatprep.mubr.bf16.mxu0 0
      %1745 = vmatmul.mubr.bf16.gmra.mrb[0].mxu0 %v1186
      %v1746 = vpop.f32.mrb[0].mxu0
      %v1747 = vadd.f32 0.0, %v1746
      %v1748 = vpop.f32.mrb[0].mxu0
      %v1749 = vpop.f32.mrb[0].mxu0
      %v1750 = vadd.f32 0.0, %v1749
      %v1751 = vpop.f32.mrb[0].mxu0
      %1752 = vmatprep.mubr.bf16.mxu0 0
      %1753 = vmatmul.mubr.bf16.gmra.mrb[0].mxu0 %v1187
      %v1754 = vpop.f32.mrb[0].mxu0
      %v1755 = vadd.f32 0.0, %v1754
      %v1756 = vpop.f32.mrb[0].mxu0
      %v1757 = vpop.f32.mrb[0].mxu0
      %v1758 = vadd.f32 0.0, %v1757
      %v1759 = vpop.f32.mrb[0].mxu0
      %1760 = vmatprep.mubr.bf16.mxu0 0
      %1761 = vmatmul.mubr.bf16.gmra.mrb[0].mxu0 %v1188
      %v1762 = vpop.f32.mrb[0].mxu0
      %v1763 = vadd.f32 0.0, %v1762
      %v1764 = vpop.f32.mrb[0].mxu0
      %v1765 = vpop.f32.mrb[0].mxu0
      %v1766 = vadd.f32 0.0, %v1765
      %v1767 = vpop.f32.mrb[0].mxu0
      %1768 = vmatprep.mubr.bf16.mxu0 0
      %1769 = vmatmul.mubr.bf16.gmra.mrb[0].mxu0 %v1189
      %v1770 = vpop.f32.mrb[0].mxu0
      %v1771 = vadd.f32 0.0, %v1770
      %v1772 = vpop.f32.mrb[0].mxu0
      %v1773 = vpop.f32.mrb[0].mxu0
      %v1774 = vadd.f32 0.0, %v1773
      %v1775 = vpop.f32.mrb[0].mxu0
      %1776 = vmatprep.mubr.bf16.mxu0 0
      %1777 = vmatmul.mubr.bf16.gmra.mrb[0].mxu0 %v1190
      %v1778 = vpop.f32.mrb[0].mxu0
      %v1779 = vadd.f32 0.0, %v1778
      %v1780 = vpop.f32.mrb[0].mxu0
      %v1781 = vpop.f32.mrb[0].mxu0
      %v1782 = vadd.f32 0.0, %v1781
      %v1783 = vpop.f32.mrb[0].mxu0
      %1784 = vmatprep.mubr.bf16.mxu0 0
      %1785 = vmatmul.mubr.bf16.gmra.mrb[0].mxu0 %v1191
      %v1786 = vpop.f32.mrb[0].mxu0
      %v1787 = vadd.f32 0.0, %v1786
      %v1788 = vpop.f32.mrb[0].mxu0
      %v1789 = vpop.f32.mrb[0].mxu0
      %v1790 = vadd.f32 0.0, %v1789
      %v1791 = vpop.f32.mrb[0].mxu0
      %1792 = vmatprep.mubr.bf16.mxu0 0
      %1793 = vmatmul.mubr.bf16.gmra.mrb[0].mxu0 %v1192
      %v1794 = vpop.f32.mrb[0].mxu0
      %v1795 = vadd.f32 0.0, %v1794
      %v1796 = vpop.f32.mrb[0].mxu0
      %v1797 = vpop.f32.mrb[0].mxu0
      %v1798 = vadd.f32 0.0, %v1797
      %v1799 = vpop.f32.mrb[0].mxu0
      %1800 = vmatprep.mubr.bf16.mxu0 0
      %1801 = vmatmul.mubr.bf16.gmra.mrb[0].mxu0 %v1193
      %v1802 = vpop.f32.mrb[0].mxu0
      %v1803 = vadd.f32 0.0, %v1802
      %v1804 = vpop.f32.mrb[0].mxu0
      %v1805 = vpop.f32.mrb[0].mxu0
      %v1806 = vadd.f32 0.0, %v1805
      %v1807 = vpop.f32.mrb[0].mxu0
      %1808 = vmatprep.mubr.bf16.mxu0 0
      %1809 = vmatmul.mubr.bf16.gmra.mrb[0].mxu0 %v1194
      %v1810 = vpop.f32.mrb[0].mxu0
      %v1811 = vadd.f32 0.0, %v1810
      %v1812 = vpop.f32.mrb[0].mxu0
      %v1813 = vpop.f32.mrb[0].mxu0
      %v1814 = vadd.f32 0.0, %v1813
      %v1815 = vpop.f32.mrb[0].mxu0
      %1816 = vmatprep.mubr.bf16.mxu0 0
      %1817 = vmatmul.mubr.bf16.gmra.mrb[0].mxu0 %v1195
      %v1818 = vpop.f32.mrb[0].mxu0
      %v1819 = vadd.f32 0.0, %v1818
      %v1820 = vpop.f32.mrb[0].mxu0
      %v1821 = vpop.f32.mrb[0].mxu0
      %v1822 = vadd.f32 0.0, %v1821
      %v1823 = vpop.f32.mrb[0].mxu0
      %1824 = vmatprep.mubr.bf16.mxu0 0
      %1825 = vmatmul.mubr.bf16.gmra.mrb[0].mxu0 %v1196
      %v1826 = vpop.f32.mrb[0].mxu0
      %v1827 = vadd.f32 0.0, %v1826
      %v1828 = vpop.f32.mrb[0].mxu0
      %v1829 = vpop.f32.mrb[0].mxu0
      %v1830 = vadd.f32 0.0, %v1829
      %v1831 = vpop.f32.mrb[0].mxu0
      %1832 = vmatprep.mubr.bf16.mxu0 0
      %1833 = vmatmul.mubr.bf16.gmra.mrb[0].mxu0 %v1197
      %v1834 = vpop.f32.mrb[0].mxu0
      %v1835 = vadd.f32 0.0, %v1834
      %v1836 = vpop.f32.mrb[0].mxu0
      %v1837 = vpop.f32.mrb[0].mxu0
      %v1838 = vadd.f32 0.0, %v1837
      %v1839 = vpop.f32.mrb[0].mxu0
      %1840 = vmatprep.mubr.bf16.mxu0 0
      %1841 = vmatmul.mubr.bf16.gmra.mrb[0].mxu0 %v1198
      %v1842 = vpop.f32.mrb[0].mxu0
      %v1843 = vadd.f32 0.0, %v1842
      %v1844 = vpop.f32.mrb[0].mxu0
      %v1845 = vpop.f32.mrb[0].mxu0
      %v1846 = vadd.f32 0.0, %v1845
      %v1847 = vpop.f32.mrb[0].mxu0
      %1848 = vmatprep.mubr.bf16.mxu0 0
      %1849 = vmatmul.mubr.bf16.gmra.mrb[0].mxu0 %v1199
      %v1850 = vpop.f32.mrb[0].mxu0
      %v1851 = vadd.f32 0.0, %v1850
      %v1852 = vpop.f32.mrb[0].mxu0
      %v1853 = vpop.f32.mrb[0].mxu0
      %v1854 = vadd.f32 0.0, %v1853
      %v1855 = vpop.f32.mrb[0].mxu0
      %1856 = vmatprep.mubr.bf16.mxu0 0
      %1857 = vmatmul.mubr.bf16.gmra.mrb[0].mxu0 %v1200
      %v1858 = vpop.f32.mrb[0].mxu0
      %v1859 = vadd.f32 0.0, %v1858
      %v1860 = vpop.f32.mrb[0].mxu0
      %v1861 = vpop.f32.mrb[0].mxu0
      %v1862 = vadd.f32 0.0, %v1861
      %v1863 = vpop.f32.mrb[0].mxu0
      %1864 = vmatprep.mubr.bf16.mxu0 0
      %1865 = vmatmul.mubr.bf16.gmra.mrb[0].mxu0 %v1662
      %v1866 = vpop.f32.mrb[0].mxu0
      %v1867 = vadd.f32 0.0, %v1866
      %v1868 = vpop.f32.mrb[0].mxu0
      %v1869 = vpop.f32.mrb[0].mxu0
      %v1870 = vadd.f32 0.0, %v1869
      %v1871 = vpop.f32.mrb[0].mxu0
      %1872 = vdwg.mxu0
      %v1873 = vadd.f32 %v1515, %v1747
      %v1874 = vadd.f32 %v1518, %v1750
      %v1875 = vadd.f32 %v1523, %v1755
      %v1876 = vadd.f32 %v1526, %v1758
      %v1877 = vadd.f32 %v1531, %v1763
      %v1878 = vadd.f32 %v1534, %v1766
      %v1879 = vadd.f32 %v1539, %v1771
      %v1880 = vadd.f32 %v1542, %v1774
      %v1881 = vadd.f32 %v1547, %v1779
      %v1882 = vadd.f32 %v1550, %v1782
      %v1883 = vadd.f32 %v1555, %v1787
      %v1884 = vadd.f32 %v1558, %v1790
      %v1885 = vadd.f32 %v1563, %v1795
      %v1886 = vadd.f32 %v1566, %v1798
      %v1887 = vadd.f32 %v1571, %v1803
      %v1888 = vadd.f32 %v1574, %v1806
      %v1889 = vadd.f32 %v1579, %v1811
      %v1890 = vadd.f32 %v1582, %v1814
      %v1891 = vadd.f32 %v1587, %v1819
      %v1892 = vadd.f32 %v1590, %v1822
      %v1893 = vadd.f32 %v1595, %v1827
      %v1894 = vadd.f32 %v1598, %v1830
      %v1895 = vadd.f32 %v1603, %v1835
      %v1896 = vadd.f32 %v1606, %v1838
      %v1897 = vadd.f32 %v1611, %v1843
      %v1898 = vadd.f32 %v1614, %v1846
      %v1899 = vadd.f32 %v1619, %v1851
      %v1900 = vadd.f32 %v1622, %v1854
      %v1901 = vadd.f32 %v1627, %v1859
      %v1902 = vadd.f32 %v1630, %v1862
      %v1903 = vadd.f32 %v1635, %v1867
      %v1904 = vadd.f32 %v1638, %v1870
      %v1905 = vld [vmem:[#allocation2] sm:$0xf]
      %v1906 = vld [vmem:[#allocation2 + $0x4] sm:$0xf]
      %v1907 = vld [vmem:[#allocation2 + $0x8] sm:$0x1]
      %v1908 = vld [vmem:[#allocation2 + $0xc] sm:$0xf]
      %v1909 = vld [vmem:[#allocation2 + $0x10] sm:$0xf]
      %v1910 = vld [vmem:[#allocation2 + $0x14] sm:$0x1]
      %v1911 = vld [vmem:[#allocation2 + $0x18] sm:$0xf]
      %v1912 = vld [vmem:[#allocation2 + $0x1c] sm:$0xf]
      %v1913 = vld [vmem:[#allocation2 + $0x20] sm:$0x1]
      %v1914 = vld [vmem:[#allocation2 + $0x24] sm:$0xf]
      %v1915 = vld [vmem:[#allocation2 + $0x28] sm:$0xf]
      %v1916 = vld [vmem:[#allocation2 + $0x2c] sm:$0x1]
      %v1917 = vld [vmem:[#allocation2 + $0x30] sm:$0xf]
      %v1918 = vld [vmem:[#allocation2 + $0x34] sm:$0xf]
      %v1919 = vld [vmem:[#allocation2 + $0x38] sm:$0x1]
      %v1920 = vld [vmem:[#allocation2 + $0x3c] sm:$0xf]
      %v1921 = vld [vmem:[#allocation2 + $0x40] sm:$0xf]
      %v1922 = vld [vmem:[#allocation2 + $0x44] sm:$0x1]
      %v1923 = vld [vmem:[#allocation2 + $0x48] sm:$0xf]
      %v1924 = vld [vmem:[#allocation2 + $0x4c] sm:$0xf]
      %v1925 = vld [vmem:[#allocation2 + $0x50] sm:$0x1]
      %v1926 = vld [vmem:[#allocation2 + $0x54] sm:$0xf]
      %v1927 = vld [vmem:[#allocation2 + $0x58] sm:$0xf]
      %v1928 = vld [vmem:[#allocation2 + $0x5c] sm:$0x1]
      %v1929 = vld [vmem:[#allocation2 + $0x60] sm:$0xf]
      %v1930 = vld [vmem:[#allocation2 + $0x64] sm:$0xf]
      %v1931 = vld [vmem:[#allocation2 + $0x68] sm:$0x1]
      %v1932 = vld [vmem:[#allocation2 + $0x6c] sm:$0xf]
      %v1933 = vld [vmem:[#allocation2 + $0x70] sm:$0xf]
      %v1934 = vld [vmem:[#allocation2 + $0x74] sm:$0x1]
      %v1935 = vld [vmem:[#allocation2 + $0x78] sm:$0xf]
      %v1936 = vld [vmem:[#allocation2 + $0x7c] sm:$0xf]
      %v1937 = vld [vmem:[#allocation2 + $0x80] sm:$0x1]
      %v1938 = vld [vmem:[#allocation2 + $0x84] sm:$0xf]
      %v1939 = vld [vmem:[#allocation2 + $0x88] sm:$0xf]
      %v1940 = vld [vmem:[#allocation2 + $0x8c] sm:$0x1]
      %v1941 = vld [vmem:[#allocation2 + $0x90] sm:$0xf]
      %v1942 = vld [vmem:[#allocation2 + $0x94] sm:$0xf]
      %v1943 = vld [vmem:[#allocation2 + $0x98] sm:$0x1]
      %v1944 = vld [vmem:[#allocation2 + $0x9c] sm:$0xf]
      %v1945 = vld [vmem:[#allocation2 + $0xa0] sm:$0xf]
      %v1946 = vld [vmem:[#allocation2 + $0xa4] sm:$0x1]
      %v1947 = vld [vmem:[#allocation2 + $0xa8] sm:$0xf]
      %v1948 = vld [vmem:[#allocation2 + $0xac] sm:$0xf]
      %v1949 = vld [vmem:[#allocation2 + $0xb0] sm:$0x1]
      %v1950 = vld [vmem:[#allocation2 + $0xb4] sm:$0xf]
      %v1951 = vld [vmem:[#allocation2 + $0xb8] sm:$0xf]
      %v1952 = vld [vmem:[#allocation2 + $0xbc] sm:$0x1]
      %v1953 = vld [vmem:[#allocation2 + $0xc0] sm:$0xf]
      %v1954 = vld [vmem:[#allocation2 + $0xc4] sm:$0xf]
      %v1955 = vld [vmem:[#allocation2 + $0xc8] sm:$0x1]
      %v1956 = vld [vmem:[#allocation2 + $0xcc] sm:$0xf]
      %v1957 = vld [vmem:[#allocation2 + $0xd0] sm:$0xf]
      %v1958 = vld [vmem:[#allocation2 + $0xd4] sm:$0x1]
      %vm1959 = vsmask.f32 3328
      %vm1960 = vsmask.f32 7440
      %vm1961 = vmor %vm1959, %vm1960
      %v1963 = vshrl.u32 %v1905, 16
      %v1965 = vrot.slane %v1963, 4
      %v1966 = vshll.u32 %v1905, 16
      %v1968 = vrot.slane %v1966, 5
      %v1969 = vor.u32 %v1965, %v1968
      %v1970 = vrot.slane %v1969, 4
      %v1972 = vshll.u32 %v1906, 16
      %v1974 = vrot.slane %v1972, 5
      %v1975 = vsel %vm1961, %v1970, %v1974
      %v1976 = vshrl.u32 %v1906, 16
      %v1978 = vrot.slane %v1976, 4
      %v1979 = vor.u32 %v1978, %v1974
      %v1980 = vrot.slane %v1979, 4
      %v1982 = vshll.u32 %v1907, 16
      %v1984 = vrot.slane %v1982, 5
      %v1985 = vsel %vm1961, %v1980, %v1984
      %v1987 = vshrl.u32 %v1908, 16
      %v1989 = vrot.slane %v1987, 4
      %v1990 = vshll.u32 %v1908, 16
      %v1992 = vrot.slane %v1990, 5
      %v1993 = vor.u32 %v1989, %v1992
      %v1994 = vrot.slane %v1993, 4
      %v1996 = vshll.u32 %v1909, 16
      %v1998 = vrot.slane %v1996, 5
      %v1999 = vsel %vm1961, %v1994, %v1998
      %v2000 = vshrl.u32 %v1909, 16
      %v2002 = vrot.slane %v2000, 4
      %v2003 = vor.u32 %v2002, %v1998
      %v2004 = vrot.slane %v2003, 4
      %v2006 = vshll.u32 %v1910, 16
      %v2008 = vrot.slane %v2006, 5
      %v2009 = vsel %vm1961, %v2004, %v2008
      %v2011 = vshrl.u32 %v1911, 16
      %v2013 = vrot.slane %v2011, 4
      %v2014 = vshll.u32 %v1911, 16
      %v2016 = vrot.slane %v2014, 5
      %v2017 = vor.u32 %v2013, %v2016
      %v2018 = vrot.slane %v2017, 4
      %v2020 = vshll.u32 %v1912, 16
      %v2022 = vrot.slane %v2020, 5
      %v2023 = vsel %vm1961, %v2018, %v2022
      %v2024 = vshrl.u32 %v1912, 16
      %v2026 = vrot.slane %v2024, 4
      %v2027 = vor.u32 %v2026, %v2022
      %v2028 = vrot.slane %v2027, 4
      %v2030 = vshll.u32 %v1913, 16
      %v2032 = vrot.slane %v2030, 5
      %v2033 = vsel %vm1961, %v2028, %v2032
      %v2035 = vshrl.u32 %v1914, 16
      %v2037 = vrot.slane %v2035, 4
      %v2038 = vshll.u32 %v1914, 16
      %v2040 = vrot.slane %v2038, 5
      %v2041 = vor.u32 %v2037, %v2040
      %v2042 = vrot.slane %v2041, 4
      %v2044 = vshll.u32 %v1915, 16
      %v2046 = vrot.slane %v2044, 5
      %v2047 = vsel %vm1961, %v2042, %v2046
      %v2048 = vshrl.u32 %v1915, 16
      %v2050 = vrot.slane %v2048, 4
      %v2051 = vor.u32 %v2050, %v2046
      %v2052 = vrot.slane %v2051, 4
      %v2054 = vshll.u32 %v1916, 16
      %v2056 = vrot.slane %v2054, 5
      %v2057 = vsel %vm1961, %v2052, %v2056
      %v2059 = vshrl.u32 %v1917, 16
      %v2061 = vrot.slane %v2059, 4
      %v2062 = vshll.u32 %v1917, 16
      %v2064 = vrot.slane %v2062, 5
      %v2065 = vor.u32 %v2061, %v2064
      %v2066 = vrot.slane %v2065, 4
      %v2068 = vshll.u32 %v1918, 16
      %v2070 = vrot.slane %v2068, 5
      %v2071 = vsel %vm1961, %v2066, %v2070
      %v2072 = vshrl.u32 %v1918, 16
      %v2074 = vrot.slane %v2072, 4
      %v2075 = vor.u32 %v2074, %v2070
      %v2076 = vrot.slane %v2075, 4
      %v2078 = vshll.u32 %v1919, 16
      %v2080 = vrot.slane %v2078, 5
      %v2081 = vsel %vm1961, %v2076, %v2080
      %v2083 = vshrl.u32 %v1920, 16
      %v2085 = vrot.slane %v2083, 4
      %v2086 = vshll.u32 %v1920, 16
      %v2088 = vrot.slane %v2086, 5
      %v2089 = vor.u32 %v2085, %v2088
      %v2090 = vrot.slane %v2089, 4
      %v2092 = vshll.u32 %v1921, 16
      %v2094 = vrot.slane %v2092, 5
      %v2095 = vsel %vm1961, %v2090, %v2094
      %v2096 = vshrl.u32 %v1921, 16
      %v2098 = vrot.slane %v2096, 4
      %v2099 = vor.u32 %v2098, %v2094
      %v2100 = vrot.slane %v2099, 4
      %v2102 = vshll.u32 %v1922, 16
      %v2104 = vrot.slane %v2102, 5
      %v2105 = vsel %vm1961, %v2100, %v2104
      %v2107 = vshrl.u32 %v1923, 16
      %v2109 = vrot.slane %v2107, 4
      %v2110 = vshll.u32 %v1923, 16
      %v2112 = vrot.slane %v2110, 5
      %v2113 = vor.u32 %v2109, %v2112
      %v2114 = vrot.slane %v2113, 4
      %v2116 = vshll.u32 %v1924, 16
      %v2118 = vrot.slane %v2116, 5
      %v2119 = vsel %vm1961, %v2114, %v2118
      %v2120 = vshrl.u32 %v1924, 16
      %v2122 = vrot.slane %v2120, 4
      %v2123 = vor.u32 %v2122, %v2118
      %v2124 = vrot.slane %v2123, 4
      %v2126 = vshll.u32 %v1925, 16
      %v2128 = vrot.slane %v2126, 5
      %v2129 = vsel %vm1961, %v2124, %v2128
      %v2131 = vshrl.u32 %v1926, 16
      %v2133 = vrot.slane %v2131, 4
      %v2134 = vshll.u32 %v1926, 16
      %v2136 = vrot.slane %v2134, 5
      %v2137 = vor.u32 %v2133, %v2136
      %v2138 = vrot.slane %v2137, 4
      %v2140 = vshll.u32 %v1927, 16
      %v2142 = vrot.slane %v2140, 5
      %v2143 = vsel %vm1961, %v2138, %v2142
      %v2144 = vshrl.u32 %v1927, 16
      %v2146 = vrot.slane %v2144, 4
      %v2147 = vor.u32 %v2146, %v2142
      %v2148 = vrot.slane %v2147, 4
      %v2150 = vshll.u32 %v1928, 16
      %v2152 = vrot.slane %v2150, 5
      %v2153 = vsel %vm1961, %v2148, %v2152
      %v2155 = vshrl.u32 %v1929, 16
      %v2157 = vrot.slane %v2155, 4
      %v2158 = vshll.u32 %v1929, 16
      %v2160 = vrot.slane %v2158, 5
      %v2161 = vor.u32 %v2157, %v2160
      %v2162 = vrot.slane %v2161, 4
      %v2164 = vshll.u32 %v1930, 16
      %v2166 = vrot.slane %v2164, 5
      %v2167 = vsel %vm1961, %v2162, %v2166
      %v2168 = vshrl.u32 %v1930, 16
      %v2170 = vrot.slane %v2168, 4
      %v2171 = vor.u32 %v2170, %v2166
      %v2172 = vrot.slane %v2171, 4
      %v2174 = vshll.u32 %v1931, 16
      %v2176 = vrot.slane %v2174, 5
      %v2177 = vsel %vm1961, %v2172, %v2176
      %v2179 = vshrl.u32 %v1932, 16
      %v2181 = vrot.slane %v2179, 4
      %v2182 = vshll.u32 %v1932, 16
      %v2184 = vrot.slane %v2182, 5
      %v2185 = vor.u32 %v2181, %v2184
      %v2186 = vrot.slane %v2185, 4
      %v2188 = vshll.u32 %v1933, 16
      %v2190 = vrot.slane %v2188, 5
      %v2191 = vsel %vm1961, %v2186, %v2190
      %v2192 = vshrl.u32 %v1933, 16
      %v2194 = vrot.slane %v2192, 4
      %v2195 = vor.u32 %v2194, %v2190
      %v2196 = vrot.slane %v2195, 4
      %v2198 = vshll.u32 %v1934, 16
      %v2200 = vrot.slane %v2198, 5
      %v2201 = vsel %vm1961, %v2196, %v2200
      %v2203 = vshrl.u32 %v1935, 16
      %v2205 = vrot.slane %v2203, 4
      %v2206 = vshll.u32 %v1935, 16
      %v2208 = vrot.slane %v2206, 5
      %v2209 = vor.u32 %v2205, %v2208
      %v2210 = vrot.slane %v2209, 4
      %v2212 = vshll.u32 %v1936, 16
      %v2214 = vrot.slane %v2212, 5
      %v2215 = vsel %vm1961, %v2210, %v2214
      %v2216 = vshrl.u32 %v1936, 16
      %v2218 = vrot.slane %v2216, 4
      %v2219 = vor.u32 %v2218, %v2214
      %v2220 = vrot.slane %v2219, 4
      %v2222 = vshll.u32 %v1937, 16
      %v2224 = vrot.slane %v2222, 5
      %v2225 = vsel %vm1961, %v2220, %v2224
      %v2227 = vshrl.u32 %v1938, 16
      %v2229 = vrot.slane %v2227, 4
      %v2230 = vshll.u32 %v1938, 16
      %v2232 = vrot.slane %v2230, 5
      %v2233 = vor.u32 %v2229, %v2232
      %v2234 = vrot.slane %v2233, 4
      %v2236 = vshll.u32 %v1939, 16
      %v2238 = vrot.slane %v2236, 5
      %v2239 = vsel %vm1961, %v2234, %v2238
      %v2240 = vshrl.u32 %v1939, 16
      %v2242 = vrot.slane %v2240, 4
      %v2243 = vor.u32 %v2242, %v2238
      %v2244 = vrot.slane %v2243, 4
      %v2246 = vshll.u32 %v1940, 16
      %v2248 = vrot.slane %v2246, 5
      %v2249 = vsel %vm1961, %v2244, %v2248
      %v2251 = vshrl.u32 %v1941, 16
      %v2253 = vrot.slane %v2251, 4
      %v2254 = vshll.u32 %v1941, 16
      %v2256 = vrot.slane %v2254, 5
      %v2257 = vor.u32 %v2253, %v2256
      %v2258 = vrot.slane %v2257, 4
      %v2260 = vshll.u32 %v1942, 16
      %v2262 = vrot.slane %v2260, 5
      %v2263 = vsel %vm1961, %v2258, %v2262
      %v2264 = vshrl.u32 %v1942, 16
      %v2266 = vrot.slane %v2264, 4
      %v2267 = vor.u32 %v2266, %v2262
      %v2268 = vrot.slane %v2267, 4
      %v2270 = vshll.u32 %v1943, 16
      %v2272 = vrot.slane %v2270, 5
      %v2273 = vsel %vm1961, %v2268, %v2272
      %v2275 = vshrl.u32 %v1944, 16
      %v2277 = vrot.slane %v2275, 4
      %v2278 = vshll.u32 %v1944, 16
      %v2280 = vrot.slane %v2278, 5
      %v2281 = vor.u32 %v2277, %v2280
      %v2282 = vrot.slane %v2281, 4
      %v2284 = vshll.u32 %v1945, 16
      %v2286 = vrot.slane %v2284, 5
      %v2287 = vsel %vm1961, %v2282, %v2286
      %v2288 = vshrl.u32 %v1945, 16
      %v2290 = vrot.slane %v2288, 4
      %v2291 = vor.u32 %v2290, %v2286
      %v2292 = vrot.slane %v2291, 4
      %v2294 = vshll.u32 %v1946, 16
      %v2296 = vrot.slane %v2294, 5
      %v2297 = vsel %vm1961, %v2292, %v2296
      %v2299 = vshrl.u32 %v1947, 16
      %v2301 = vrot.slane %v2299, 4
      %v2302 = vshll.u32 %v1947, 16
      %v2304 = vrot.slane %v2302, 5
      %v2305 = vor.u32 %v2301, %v2304
      %v2306 = vrot.slane %v2305, 4
      %v2308 = vshll.u32 %v1948, 16
      %v2310 = vrot.slane %v2308, 5
      %v2311 = vsel %vm1961, %v2306, %v2310
      %v2312 = vshrl.u32 %v1948, 16
      %v2314 = vrot.slane %v2312, 4
      %v2315 = vor.u32 %v2314, %v2310
      %v2316 = vrot.slane %v2315, 4
      %v2318 = vshll.u32 %v1949, 16
      %v2320 = vrot.slane %v2318, 5
      %v2321 = vsel %vm1961, %v2316, %v2320
      %v2323 = vshrl.u32 %v1950, 16
      %v2325 = vrot.slane %v2323, 4
      %v2326 = vshll.u32 %v1950, 16
      %v2328 = vrot.slane %v2326, 5
      %v2329 = vor.u32 %v2325, %v2328
      %v2330 = vrot.slane %v2329, 4
      %v2332 = vshll.u32 %v1951, 16
      %v2334 = vrot.slane %v2332, 5
      %v2335 = vsel %vm1961, %v2330, %v2334
      %v2336 = vshrl.u32 %v1951, 16
      %v2338 = vrot.slane %v2336, 4
      %v2339 = vor.u32 %v2338, %v2334
      %v2340 = vrot.slane %v2339, 4
      %v2342 = vshll.u32 %v1952, 16
      %v2344 = vrot.slane %v2342, 5
      %v2345 = vsel %vm1961, %v2340, %v2344
      %s2346 = scalar_lea.vmem %s3, 64
      %v2347 = vld [vmem:[%s2346] sm:$0xf]
      %v2348 = vld [vmem:[%s2346 + $0x4] sm:$0xf]
      %v2349 = vld [vmem:[%s2346 + $0x8] sm:$0xf]
      %v2350 = vld [vmem:[%s2346 + $0xc] sm:$0xf]
      %v2351 = vld [vmem:[%s2346 + $0x10] sm:$0xf]
      %v2352 = vld [vmem:[%s2346 + $0x14] sm:$0xf]
      %v2353 = vld [vmem:[%s2346 + $0x18] sm:$0xf]
      %v2354 = vld [vmem:[%s2346 + $0x1c] sm:$0xf]
      %v2355 = vld [vmem:[%s2346 + $0x20] sm:$0xf]
      %v2356 = vld [vmem:[%s2346 + $0x24] sm:$0xf]
      %v2357 = vld [vmem:[%s2346 + $0x28] sm:$0xf]
      %v2358 = vld [vmem:[%s2346 + $0x2c] sm:$0xf]
      %v2359 = vld [vmem:[%s2346 + $0x30] sm:$0xf]
      %v2360 = vld [vmem:[%s2346 + $0x34] sm:$0xf]
      %v2361 = vld [vmem:[%s2346 + $0x38] sm:$0xf]
      %v2362 = vld [vmem:[%s2346 + $0x3c] sm:$0xf]
      %v2363 = vunpack.c.l.b16 %v1975
      %v2364 = vunpack.c.l.b16 %v1985
      %v2365 = vunpack.c.l.b16 %v1999
      %v2366 = vunpack.c.l.b16 %v2009
      %v2367 = vunpack.c.l.b16 %v2023
      %v2368 = vunpack.c.l.b16 %v2033
      %v2369 = vunpack.c.l.b16 %v2047
      %v2370 = vunpack.c.l.b16 %v2057
      %v2371 = vunpack.c.l.b16 %v2071
      %v2372 = vunpack.c.l.b16 %v2081
      %v2373 = vunpack.c.l.b16 %v2095
      %v2374 = vunpack.c.l.b16 %v2105
      %v2375 = vunpack.c.l.b16 %v2119
      %v2376 = vunpack.c.l.b16 %v2129
      %v2377 = vunpack.c.l.b16 %v2143
      %v2378 = vunpack.c.l.b16 %v2153
      %v2379 = vunpack.c.l.b16 %v2167
      %v2380 = vunpack.c.l.b16 %v2177
      %v2381 = vunpack.c.l.b16 %v2191
      %v2382 = vunpack.c.l.b16 %v2201
      %v2383 = vunpack.c.l.b16 %v2215
      %v2384 = vunpack.c.l.b16 %v2225
      %v2385 = vunpack.c.l.b16 %v2239
      %v2386 = vunpack.c.l.b16 %v2249
      %v2387 = vunpack.c.l.b16 %v2263
      %v2388 = vunpack.c.l.b16 %v2273
      %v2389 = vunpack.c.l.b16 %v2287
      %v2390 = vunpack.c.l.b16 %v2297
      %v2391 = vunpack.c.l.b16 %v2311
      %v2392 = vunpack.c.l.b16 %v2321
      %v2393 = vunpack.c.l.b16 %v2335
      %v2394 = vunpack.c.l.b16 %v2345
      %v2395 = vpack.c.b16 %v2364, %v2363
      %v2396 = vpack.c.b16 %v2366, %v2365
      %v2397 = vpack.c.b16 %v2368, %v2367
      %v2398 = vpack.c.b16 %v2370, %v2369
      %v2399 = vpack.c.b16 %v2372, %v2371
      %v2400 = vpack.c.b16 %v2374, %v2373
      %v2401 = vpack.c.b16 %v2376, %v2375
      %v2402 = vpack.c.b16 %v2378, %v2377
      %v2403 = vpack.c.b16 %v2380, %v2379
      %v2404 = vpack.c.b16 %v2382, %v2381
      %v2405 = vpack.c.b16 %v2384, %v2383
      %v2406 = vpack.c.b16 %v2386, %v2385
      %v2407 = vpack.c.b16 %v2388, %v2387
      %v2408 = vpack.c.b16 %v2390, %v2389
      %v2409 = vpack.c.b16 %v2392, %v2391
      %v2410 = vpack.c.b16 %v2394, %v2393
      %v2443 = vunpack.c.l.b16 %v2347
      %v2444 = vunpack.c.l.b16 %v2348
      %v2445 = vunpack.c.l.b16 %v2349
      %v2446 = vunpack.c.l.b16 %v2350
      %v2447 = vunpack.c.l.b16 %v2351
      %v2448 = vunpack.c.l.b16 %v2352
      %v2449 = vunpack.c.l.b16 %v2353
      %v2450 = vunpack.c.l.b16 %v2354
      %v2451 = vunpack.c.l.b16 %v2355
      %v2452 = vunpack.c.l.b16 %v2356
      %v2453 = vunpack.c.l.b16 %v2357
      %v2454 = vunpack.c.l.b16 %v2358
      %v2455 = vunpack.c.l.b16 %v2359
      %v2456 = vunpack.c.l.b16 %v2360
      %v2457 = vunpack.c.l.b16 %v2361
      %v2458 = vunpack.c.l.b16 %v2362
      %v2459 = vpack.c.b16 %v2444, %v2443
      %v2460 = vpack.c.b16 %v2446, %v2445
      %v2461 = vpack.c.b16 %v2448, %v2447
      %v2462 = vpack.c.b16 %v2450, %v2449
      %v2463 = vpack.c.b16 %v2452, %v2451
      %v2464 = vpack.c.b16 %v2454, %v2453
      %v2465 = vpack.c.b16 %v2456, %v2455
      %v2466 = vpack.c.b16 %v2458, %v2457
      %2475 = vmatprep.subr.bf16.mxu0 0
      %2476 = vmatpush1.bf16.msra.mxu0 %v2459
      %2477 = vmatprep.subr.bf16.mxu0 0
      %2478 = vmatpush1.bf16.msra.mxu0 %v2460
      %2479 = vmatprep.subr.bf16.mxu0 0
      %2480 = vmatpush1.bf16.msra.mxu0 %v2461
      %2481 = vmatprep.subr.bf16.mxu0 0
      %2482 = vmatpush1.bf16.msra.mxu0 %v2462
      %2483 = vmatprep.subr.bf16.mxu0 0
      %2484 = vmatpush1.bf16.msra.mxu0 %v2463
      %2485 = vmatprep.subr.bf16.mxu0 0
      %2486 = vmatpush1.bf16.msra.mxu0 %v2464
      %2487 = vmatprep.subr.bf16.mxu0 0
      %2488 = vmatpush1.bf16.msra.mxu0 %v2465
      %2489 = vmatprep.subr.bf16.mxu0 0
      %2490 = vmatpush1.bf16.msra.mxu0 %v2466
      %2491 = vmatprep.subr.bf16.mxu0 0
      %2492 = vmatpush1.bf16.msra.mxu0 0
      %2493 = vmatprep.subr.bf16.mxu0 0
      %2494 = vmatpush1.bf16.msra.mxu0 0
      %2495 = vmatprep.subr.bf16.mxu0 0
      %2496 = vmatpush1.bf16.msra.mxu0 0
      %2497 = vmatprep.subr.bf16.mxu0 0
      %2498 = vmatpush1.bf16.msra.mxu0 0
      %2499 = vmatprep.subr.bf16.mxu0 0
      %2500 = vmatpush1.bf16.msra.mxu0 0
      %2501 = vmatprep.subr.bf16.mxu0 0
      %2502 = vmatpush1.bf16.msra.mxu0 0
      %2503 = vmatprep.subr.bf16.mxu0 0
      %2504 = vmatpush1.bf16.msra.mxu0 0
      %2505 = vmatprep.subr.bf16.mxu0 0
      %2506 = vmatpush1.bf16.msra.mxu0 0
      %2507 = vmatprep.mubr.bf16.mxu0 0
      %2508 = vmatmul.mubr.bf16.gmra.mrb[0].mxu0 %v2395
      %v2509 = vpop.f32.mrb[0].mxu0
      %v2510 = vadd.f32 0.0, %v2509
      %v2511 = vpop.f32.mrb[0].mxu0
      %v2512 = vpop.f32.mrb[0].mxu0
      %v2513 = vadd.f32 0.0, %v2512
      %v2514 = vpop.f32.mrb[0].mxu0
      %2515 = vmatprep.mubr.bf16.mxu0 0
      %2516 = vmatmul.mubr.bf16.gmra.mrb[0].mxu0 %v2396
      %v2517 = vpop.f32.mrb[0].mxu0
      %v2518 = vadd.f32 0.0, %v2517
      %v2519 = vpop.f32.mrb[0].mxu0
      %v2520 = vpop.f32.mrb[0].mxu0
      %v2521 = vadd.f32 0.0, %v2520
      %v2522 = vpop.f32.mrb[0].mxu0
      %2523 = vmatprep.mubr.bf16.mxu0 0
      %2524 = vmatmul.mubr.bf16.gmra.mrb[0].mxu0 %v2397
      %v2525 = vpop.f32.mrb[0].mxu0
      %v2526 = vadd.f32 0.0, %v2525
      %v2527 = vpop.f32.mrb[0].mxu0
      %v2528 = vpop.f32.mrb[0].mxu0
      %v2529 = vadd.f32 0.0, %v2528
      %v2530 = vpop.f32.mrb[0].mxu0
      %2531 = vmatprep.mubr.bf16.mxu0 0
      %2532 = vmatmul.mubr.bf16.gmra.mrb[0].mxu0 %v2398
      %v2533 = vpop.f32.mrb[0].mxu0
      %v2534 = vadd.f32 0.0, %v2533
      %v2535 = vpop.f32.mrb[0].mxu0
      %v2536 = vpop.f32.mrb[0].mxu0
      %v2537 = vadd.f32 0.0, %v2536
      %v2538 = vpop.f32.mrb[0].mxu0
      %2539 = vmatprep.mubr.bf16.mxu0 0
      %2540 = vmatmul.mubr.bf16.gmra.mrb[0].mxu0 %v2399
      %v2541 = vpop.f32.mrb[0].mxu0
      %v2542 = vadd.f32 0.0, %v2541
      %v2543 = vpop.f32.mrb[0].mxu0
      %v2544 = vpop.f32.mrb[0].mxu0
      %v2545 = vadd.f32 0.0, %v2544
      %v2546 = vpop.f32.mrb[0].mxu0
      %2547 = vmatprep.mubr.bf16.mxu0 0
      %2548 = vmatmul.mubr.bf16.gmra.mrb[0].mxu0 %v2400
      %v2549 = vpop.f32.mrb[0].mxu0
      %v2550 = vadd.f32 0.0, %v2549
      %v2551 = vpop.f32.mrb[0].mxu0
      %v2552 = vpop.f32.mrb[0].mxu0
      %v2553 = vadd.f32 0.0, %v2552
      %v2554 = vpop.f32.mrb[0].mxu0
      %2555 = vmatprep.mubr.bf16.mxu0 0
      %2556 = vmatmul.mubr.bf16.gmra.mrb[0].mxu0 %v2401
      %v2557 = vpop.f32.mrb[0].mxu0
      %v2558 = vadd.f32 0.0, %v2557
      %v2559 = vpop.f32.mrb[0].mxu0
      %v2560 = vpop.f32.mrb[0].mxu0
      %v2561 = vadd.f32 0.0, %v2560
      %v2562 = vpop.f32.mrb[0].mxu0
      %2563 = vmatprep.mubr.bf16.mxu0 0
      %2564 = vmatmul.mubr.bf16.gmra.mrb[0].mxu0 %v2402
      %v2565 = vpop.f32.mrb[0].mxu0
      %v2566 = vadd.f32 0.0, %v2565
      %v2567 = vpop.f32.mrb[0].mxu0
      %v2568 = vpop.f32.mrb[0].mxu0
      %v2569 = vadd.f32 0.0, %v2568
      %v2570 = vpop.f32.mrb[0].mxu0
      %2571 = vmatprep.mubr.bf16.mxu0 0
      %2572 = vmatmul.mubr.bf16.gmra.mrb[0].mxu0 %v2403
      %v2573 = vpop.f32.mrb[0].mxu0
      %v2574 = vadd.f32 0.0, %v2573
      %v2575 = vpop.f32.mrb[0].mxu0
      %v2576 = vpop.f32.mrb[0].mxu0
      %v2577 = vadd.f32 0.0, %v2576
      %v2578 = vpop.f32.mrb[0].mxu0
      %2579 = vmatprep.mubr.bf16.mxu0 0
      %2580 = vmatmul.mubr.bf16.gmra.mrb[0].mxu0 %v2404
      %v2581 = vpop.f32.mrb[0].mxu0
      %v2582 = vadd.f32 0.0, %v2581
      %v2583 = vpop.f32.mrb[0].mxu0
      %v2584 = vpop.f32.mrb[0].mxu0
      %v2585 = vadd.f32 0.0, %v2584
      %v2586 = vpop.f32.mrb[0].mxu0
      %2587 = vmatprep.mubr.bf16.mxu0 0
      %2588 = vmatmul.mubr.bf16.gmra.mrb[0].mxu0 %v2405
      %v2589 = vpop.f32.mrb[0].mxu0
      %v2590 = vadd.f32 0.0, %v2589
      %v2591 = vpop.f32.mrb[0].mxu0
      %v2592 = vpop.f32.mrb[0].mxu0
      %v2593 = vadd.f32 0.0, %v2592
      %v2594 = vpop.f32.mrb[0].mxu0
      %2595 = vmatprep.mubr.bf16.mxu0 0
      %2596 = vmatmul.mubr.bf16.gmra.mrb[0].mxu0 %v2406
      %v2597 = vpop.f32.mrb[0].mxu0
      %v2598 = vadd.f32 0.0, %v2597
      %v2599 = vpop.f32.mrb[0].mxu0
      %v2600 = vpop.f32.mrb[0].mxu0
      %v2601 = vadd.f32 0.0, %v2600
      %v2602 = vpop.f32.mrb[0].mxu0
      %2603 = vmatprep.mubr.bf16.mxu0 0
      %2604 = vmatmul.mubr.bf16.gmra.mrb[0].mxu0 %v2407
      %v2605 = vpop.f32.mrb[0].mxu0
      %v2606 = vadd.f32 0.0, %v2605
      %v2607 = vpop.f32.mrb[0].mxu0
      %v2608 = vpop.f32.mrb[0].mxu0
      %v2609 = vadd.f32 0.0, %v2608
      %v2610 = vpop.f32.mrb[0].mxu0
      %2611 = vmatprep.mubr.bf16.mxu0 0
      %2612 = vmatmul.mubr.bf16.gmra.mrb[0].mxu0 %v2408
      %v2613 = vpop.f32.mrb[0].mxu0
      %v2614 = vadd.f32 0.0, %v2613
      %v2615 = vpop.f32.mrb[0].mxu0
      %v2616 = vpop.f32.mrb[0].mxu0
      %v2617 = vadd.f32 0.0, %v2616
      %v2618 = vpop.f32.mrb[0].mxu0
      %2619 = vmatprep.mubr.bf16.mxu0 0
      %2620 = vmatmul.mubr.bf16.gmra.mrb[0].mxu0 %v2409
      %v2621 = vpop.f32.mrb[0].mxu0
      %v2622 = vadd.f32 0.0, %v2621
      %v2623 = vpop.f32.mrb[0].mxu0
      %v2624 = vpop.f32.mrb[0].mxu0
      %v2625 = vadd.f32 0.0, %v2624
      %v2626 = vpop.f32.mrb[0].mxu0
      %2627 = vmatprep.mubr.bf16.mxu0 0
      %2628 = vmatmul.mubr.bf16.gmra.mrb[0].mxu0 %v2410
      %v2629 = vpop.f32.mrb[0].mxu0
      %v2630 = vadd.f32 0.0, %v2629
      %v2631 = vpop.f32.mrb[0].mxu0
      %v2632 = vpop.f32.mrb[0].mxu0
      %v2633 = vadd.f32 0.0, %v2632
      %v2634 = vpop.f32.mrb[0].mxu0
      %2635 = vdwg.mxu0
      %v2636 = vadd.f32 %v1873, %v2510
      %v2637 = vadd.f32 %v1874, %v2513
      %v2638 = vadd.f32 %v1875, %v2518
      %v2639 = vadd.f32 %v1876, %v2521
      %v2640 = vadd.f32 %v1877, %v2526
      %v2641 = vadd.f32 %v1878, %v2529
      %v2642 = vadd.f32 %v1879, %v2534
      %v2643 = vadd.f32 %v1880, %v2537
      %v2644 = vadd.f32 %v1881, %v2542
      %v2645 = vadd.f32 %v1882, %v2545
      %v2646 = vadd.f32 %v1883, %v2550
      %v2647 = vadd.f32 %v1884, %v2553
      %v2648 = vadd.f32 %v1885, %v2558
      %v2649 = vadd.f32 %v1886, %v2561
      %v2650 = vadd.f32 %v1887, %v2566
      %v2651 = vadd.f32 %v1888, %v2569
      %v2652 = vadd.f32 %v1889, %v2574
      %v2653 = vadd.f32 %v1890, %v2577
      %v2654 = vadd.f32 %v1891, %v2582
      %v2655 = vadd.f32 %v1892, %v2585
      %v2656 = vadd.f32 %v1893, %v2590
      %v2657 = vadd.f32 %v1894, %v2593
      %v2658 = vadd.f32 %v1895, %v2598
      %v2659 = vadd.f32 %v1896, %v2601
      %v2660 = vadd.f32 %v1897, %v2606
      %v2661 = vadd.f32 %v1898, %v2609
      %v2662 = vadd.f32 %v1899, %v2614
      %v2663 = vadd.f32 %v1900, %v2617
      %v2664 = vadd.f32 %v1901, %v2622
      %v2665 = vadd.f32 %v1902, %v2625
      %v2666 = vadd.f32 %v1903, %v2630
      %v2667 = vadd.f32 %v1904, %v2633
      %v2669 = vshrl.u32 %v1953, 16
      %v2671 = vrot.slane %v2669, 4
      %v2672 = vshll.u32 %v1953, 16
      %v2674 = vrot.slane %v2672, 5
      %v2675 = vor.u32 %v2671, %v2674
      %v2676 = vrot.slane %v2675, 4
      %v2678 = vshll.u32 %v1954, 16
      %v2680 = vrot.slane %v2678, 5
      %v2681 = vsel %vm1961, %v2676, %v2680
      %v2682 = vshrl.u32 %v1954, 16
      %v2684 = vrot.slane %v2682, 4
      %v2685 = vor.u32 %v2684, %v2680
      %v2686 = vrot.slane %v2685, 4
      %v2688 = vshll.u32 %v1955, 16
      %v2690 = vrot.slane %v2688, 5
      %v2691 = vsel %vm1961, %v2686, %v2690
      %s2692 = scalar_lea.vmem %s3, 256
      %v2693 = vld [vmem:[%s2692] sm:$0xf]
      %v2694 = vld [vmem:[%s2692 + $0x4] sm:$0xf]
      %v2695 = vld [vmem:[%s2692 + $0x8] sm:$0xf]
      %v2696 = vld [vmem:[%s2692 + $0xc] sm:$0xf]
      %v2697 = vld [vmem:[%s2692 + $0x10] sm:$0xf]
      %v2698 = vld [vmem:[%s2692 + $0x14] sm:$0xf]
      %v2699 = vld [vmem:[%s2692 + $0x18] sm:$0xf]
      %v2700 = vld [vmem:[%s2692 + $0x1c] sm:$0xf]
      %v2701 = vld [vmem:[%s2692 + $0x20] sm:$0xf]
      %v2702 = vld [vmem:[%s2692 + $0x24] sm:$0xf]
      %v2703 = vld [vmem:[%s2692 + $0x28] sm:$0xf]
      %v2704 = vld [vmem:[%s2692 + $0x2c] sm:$0xf]
      %v2705 = vld [vmem:[%s2692 + $0x30] sm:$0xf]
      %v2706 = vld [vmem:[%s2692 + $0x34] sm:$0xf]
      %v2707 = vld [vmem:[%s2692 + $0x38] sm:$0xf]
      %v2708 = vld [vmem:[%s2692 + $0x3c] sm:$0xf]
      %v2709 = vunpack.c.l.b16 %v2681
      %v2710 = vunpack.c.l.b16 %v2691
      %v2711 = vpack.c.b16 %v2710, %v2709
      %v2729 = vunpack.c.l.b16 %v2693
      %v2730 = vunpack.c.l.b16 %v2694
      %v2731 = vunpack.c.l.b16 %v2695
      %v2732 = vunpack.c.l.b16 %v2696
      %v2733 = vunpack.c.l.b16 %v2697
      %v2734 = vunpack.c.l.b16 %v2698
      %v2735 = vunpack.c.l.b16 %v2699
      %v2736 = vunpack.c.l.b16 %v2700
      %v2737 = vunpack.c.l.b16 %v2701
      %v2738 = vunpack.c.l.b16 %v2702
      %v2739 = vunpack.c.l.b16 %v2703
      %v2740 = vunpack.c.l.b16 %v2704
      %v2741 = vunpack.c.l.b16 %v2705
      %v2742 = vunpack.c.l.b16 %v2706
      %v2743 = vunpack.c.l.b16 %v2707
      %v2744 = vunpack.c.l.b16 %v2708
      %v2745 = vpack.c.b16 %v2730, %v2729
      %v2746 = vpack.c.b16 %v2732, %v2731
      %v2747 = vpack.c.b16 %v2734, %v2733
      %v2748 = vpack.c.b16 %v2736, %v2735
      %v2749 = vpack.c.b16 %v2738, %v2737
      %v2750 = vpack.c.b16 %v2740, %v2739
      %v2751 = vpack.c.b16 %v2742, %v2741
      %v2752 = vpack.c.b16 %v2744, %v2743
      %2761 = vmatprep.subr.bf16.mxu0 0
      %2762 = vmatpush1.bf16.msra.mxu0 %v2745
      %2763 = vmatprep.subr.bf16.mxu0 0
      %2764 = vmatpush1.bf16.msra.mxu0 %v2746
      %2765 = vmatprep.subr.bf16.mxu0 0
      %2766 = vmatpush1.bf16.msra.mxu0 %v2747
      %2767 = vmatprep.subr.bf16.mxu0 0
      %2768 = vmatpush1.bf16.msra.mxu0 %v2748
      %2769 = vmatprep.subr.bf16.mxu0 0
      %2770 = vmatpush1.bf16.msra.mxu0 %v2749
      %2771 = vmatprep.subr.bf16.mxu0 0
      %2772 = vmatpush1.bf16.msra.mxu0 %v2750
      %2773 = vmatprep.subr.bf16.mxu0 0
      %2774 = vmatpush1.bf16.msra.mxu0 %v2751
      %2775 = vmatprep.subr.bf16.mxu0 0
      %2776 = vmatpush1.bf16.msra.mxu0 %v2752
      %2777 = vmatprep.subr.bf16.mxu0 0
      %2778 = vmatpush1.bf16.msra.mxu0 0
      %2779 = vmatprep.subr.bf16.mxu0 0
      %2780 = vmatpush1.bf16.msra.mxu0 0
      %2781 = vmatprep.subr.bf16.mxu0 0
      %2782 = vmatpush1.bf16.msra.mxu0 0
      %2783 = vmatprep.subr.bf16.mxu0 0
      %2784 = vmatpush1.bf16.msra.mxu0 0
      %2785 = vmatprep.subr.bf16.mxu0 0
      %2786 = vmatpush1.bf16.msra.mxu0 0
      %2787 = vmatprep.subr.bf16.mxu0 0
      %2788 = vmatpush1.bf16.msra.mxu0 0
      %2789 = vmatprep.subr.bf16.mxu0 0
      %2790 = vmatpush1.bf16.msra.mxu0 0
      %2791 = vmatprep.subr.bf16.mxu0 0
      %2792 = vmatpush1.bf16.msra.mxu0 0
      %2793 = vmatprep.mubr.bf16.mxu0 0
      %2794 = vmatmul.mubr.bf16.gmra.mrb[0].mxu0 %v2396
      %v2795 = vpop.f32.mrb[0].mxu0
      %v2796 = vadd.f32 0.0, %v2795
      %v2797 = vpop.f32.mrb[0].mxu0
      %v2798 = vpop.f32.mrb[0].mxu0
      %v2799 = vadd.f32 0.0, %v2798
      %v2800 = vpop.f32.mrb[0].mxu0
      %2801 = vmatprep.mubr.bf16.mxu0 0
      %2802 = vmatmul.mubr.bf16.gmra.mrb[0].mxu0 %v2397
      %v2803 = vpop.f32.mrb[0].mxu0
      %v2804 = vadd.f32 0.0, %v2803
      %v2805 = vpop.f32.mrb[0].mxu0
      %v2806 = vpop.f32.mrb[0].mxu0
      %v2807 = vadd.f32 0.0, %v2806
      %v2808 = vpop.f32.mrb[0].mxu0
      %2809 = vmatprep.mubr.bf16.mxu0 0
      %2810 = vmatmul.mubr.bf16.gmra.mrb[0].mxu0 %v2398
      %v2811 = vpop.f32.mrb[0].mxu0
      %v2812 = vadd.f32 0.0, %v2811
      %v2813 = vpop.f32.mrb[0].mxu0
      %v2814 = vpop.f32.mrb[0].mxu0
      %v2815 = vadd.f32 0.0, %v2814
      %v2816 = vpop.f32.mrb[0].mxu0
      %2817 = vmatprep.mubr.bf16.mxu0 0
      %2818 = vmatmul.mubr.bf16.gmra.mrb[0].mxu0 %v2399
      %v2819 = vpop.f32.mrb[0].mxu0
      %v2820 = vadd.f32 0.0, %v2819
      %v2821 = vpop.f32.mrb[0].mxu0
      %v2822 = vpop.f32.mrb[0].mxu0
      %v2823 = vadd.f32 0.0, %v2822
      %v2824 = vpop.f32.mrb[0].mxu0
      %2825 = vmatprep.mubr.bf16.mxu0 0
      %2826 = vmatmul.mubr.bf16.gmra.mrb[0].mxu0 %v2400
      %v2827 = vpop.f32.mrb[0].mxu0
      %v2828 = vadd.f32 0.0, %v2827
      %v2829 = vpop.f32.mrb[0].mxu0
      %v2830 = vpop.f32.mrb[0].mxu0
      %v2831 = vadd.f32 0.0, %v2830
      %v2832 = vpop.f32.mrb[0].mxu0
      %2833 = vmatprep.mubr.bf16.mxu0 0
      %2834 = vmatmul.mubr.bf16.gmra.mrb[0].mxu0 %v2401
      %v2835 = vpop.f32.mrb[0].mxu0
      %v2836 = vadd.f32 0.0, %v2835
      %v2837 = vpop.f32.mrb[0].mxu0
      %v2838 = vpop.f32.mrb[0].mxu0
      %v2839 = vadd.f32 0.0, %v2838
      %v2840 = vpop.f32.mrb[0].mxu0
      %2841 = vmatprep.mubr.bf16.mxu0 0
      %2842 = vmatmul.mubr.bf16.gmra.mrb[0].mxu0 %v2402
      %v2843 = vpop.f32.mrb[0].mxu0
      %v2844 = vadd.f32 0.0, %v2843
      %v2845 = vpop.f32.mrb[0].mxu0
      %v2846 = vpop.f32.mrb[0].mxu0
      %v2847 = vadd.f32 0.0, %v2846
      %v2848 = vpop.f32.mrb[0].mxu0
      %2849 = vmatprep.mubr.bf16.mxu0 0
      %2850 = vmatmul.mubr.bf16.gmra.mrb[0].mxu0 %v2403
      %v2851 = vpop.f32.mrb[0].mxu0
      %v2852 = vadd.f32 0.0, %v2851
      %v2853 = vpop.f32.mrb[0].mxu0
      %v2854 = vpop.f32.mrb[0].mxu0
      %v2855 = vadd.f32 0.0, %v2854
      %v2856 = vpop.f32.mrb[0].mxu0
      %2857 = vmatprep.mubr.bf16.mxu0 0
      %2858 = vmatmul.mubr.bf16.gmra.mrb[0].mxu0 %v2404
      %v2859 = vpop.f32.mrb[0].mxu0
      %v2860 = vadd.f32 0.0, %v2859
      %v2861 = vpop.f32.mrb[0].mxu0
      %v2862 = vpop.f32.mrb[0].mxu0
      %v2863 = vadd.f32 0.0, %v2862
      %v2864 = vpop.f32.mrb[0].mxu0
      %2865 = vmatprep.mubr.bf16.mxu0 0
      %2866 = vmatmul.mubr.bf16.gmra.mrb[0].mxu0 %v2405
      %v2867 = vpop.f32.mrb[0].mxu0
      %v2868 = vadd.f32 0.0, %v2867
      %v2869 = vpop.f32.mrb[0].mxu0
      %v2870 = vpop.f32.mrb[0].mxu0
      %v2871 = vadd.f32 0.0, %v2870
      %v2872 = vpop.f32.mrb[0].mxu0
      %2873 = vmatprep.mubr.bf16.mxu0 0
      %2874 = vmatmul.mubr.bf16.gmra.mrb[0].mxu0 %v2406
      %v2875 = vpop.f32.mrb[0].mxu0
      %v2876 = vadd.f32 0.0, %v2875
      %v2877 = vpop.f32.mrb[0].mxu0
      %v2878 = vpop.f32.mrb[0].mxu0
      %v2879 = vadd.f32 0.0, %v2878
      %v2880 = vpop.f32.mrb[0].mxu0
      %2881 = vmatprep.mubr.bf16.mxu0 0
      %2882 = vmatmul.mubr.bf16.gmra.mrb[0].mxu0 %v2407
      %v2883 = vpop.f32.mrb[0].mxu0
      %v2884 = vadd.f32 0.0, %v2883
      %v2885 = vpop.f32.mrb[0].mxu0
      %v2886 = vpop.f32.mrb[0].mxu0
      %v2887 = vadd.f32 0.0, %v2886
      %v2888 = vpop.f32.mrb[0].mxu0
      %2889 = vmatprep.mubr.bf16.mxu0 0
      %2890 = vmatmul.mubr.bf16.gmra.mrb[0].mxu0 %v2408
      %v2891 = vpop.f32.mrb[0].mxu0
      %v2892 = vadd.f32 0.0, %v2891
      %v2893 = vpop.f32.mrb[0].mxu0
      %v2894 = vpop.f32.mrb[0].mxu0
      %v2895 = vadd.f32 0.0, %v2894
      %v2896 = vpop.f32.mrb[0].mxu0
      %2897 = vmatprep.mubr.bf16.mxu0 0
      %2898 = vmatmul.mubr.bf16.gmra.mrb[0].mxu0 %v2409
      %v2899 = vpop.f32.mrb[0].mxu0
      %v2900 = vadd.f32 0.0, %v2899
      %v2901 = vpop.f32.mrb[0].mxu0
      %v2902 = vpop.f32.mrb[0].mxu0
      %v2903 = vadd.f32 0.0, %v2902
      %v2904 = vpop.f32.mrb[0].mxu0
      %2905 = vmatprep.mubr.bf16.mxu0 0
      %2906 = vmatmul.mubr.bf16.gmra.mrb[0].mxu0 %v2410
      %v2907 = vpop.f32.mrb[0].mxu0
      %v2908 = vadd.f32 0.0, %v2907
      %v2909 = vpop.f32.mrb[0].mxu0
      %v2910 = vpop.f32.mrb[0].mxu0
      %v2911 = vadd.f32 0.0, %v2910
      %v2912 = vpop.f32.mrb[0].mxu0
      %2913 = vmatprep.mubr.bf16.mxu0 0
      %2914 = vmatmul.mubr.bf16.gmra.mrb[0].mxu0 %v2711
      %v2915 = vpop.f32.mrb[0].mxu0
      %v2916 = vadd.f32 0.0, %v2915
      %v2917 = vpop.f32.mrb[0].mxu0
      %v2918 = vpop.f32.mrb[0].mxu0
      %v2919 = vadd.f32 0.0, %v2918
      %v2920 = vpop.f32.mrb[0].mxu0
      %2921 = vdwg.mxu0
      %v2922 = vadd.f32 %v2636, %v2796
      %v2923 = vadd.f32 %v2637, %v2799
      %v2924 = vadd.f32 %v2638, %v2804
      %v2925 = vadd.f32 %v2639, %v2807
      %v2926 = vadd.f32 %v2640, %v2812
      %v2927 = vadd.f32 %v2641, %v2815
      %v2928 = vadd.f32 %v2642, %v2820
      %v2929 = vadd.f32 %v2643, %v2823
      %v2930 = vadd.f32 %v2644, %v2828
      %v2931 = vadd.f32 %v2645, %v2831
      %v2932 = vadd.f32 %v2646, %v2836
      %v2933 = vadd.f32 %v2647, %v2839
      %v2934 = vadd.f32 %v2648, %v2844
      %v2935 = vadd.f32 %v2649, %v2847
      %v2936 = vadd.f32 %v2650, %v2852
      %v2937 = vadd.f32 %v2651, %v2855
      %v2938 = vadd.f32 %v2652, %v2860
      %v2939 = vadd.f32 %v2653, %v2863
      %v2940 = vadd.f32 %v2654, %v2868
      %v2941 = vadd.f32 %v2655, %v2871
      %v2942 = vadd.f32 %v2656, %v2876
      %v2943 = vadd.f32 %v2657, %v2879
      %v2944 = vadd.f32 %v2658, %v2884
      %v2945 = vadd.f32 %v2659, %v2887
      %v2946 = vadd.f32 %v2660, %v2892
      %v2947 = vadd.f32 %v2661, %v2895
      %v2948 = vadd.f32 %v2662, %v2900
      %v2949 = vadd.f32 %v2663, %v2903
      %v2950 = vadd.f32 %v2664, %v2908
      %v2951 = vadd.f32 %v2665, %v2911
      %v2952 = vadd.f32 %v2666, %v2916
      %v2953 = vadd.f32 %v2667, %v2919
      %v2955 = vshrl.u32 %v1956, 16
      %v2957 = vrot.slane %v2955, 4
      %v2958 = vshll.u32 %v1956, 16
      %v2960 = vrot.slane %v2958, 5
      %v2961 = vor.u32 %v2957, %v2960
      %v2962 = vrot.slane %v2961, 4
      %v2964 = vshll.u32 %v1957, 16
      %v2966 = vrot.slane %v2964, 5
      %v2967 = vsel %vm1961, %v2962, %v2966
      %v2968 = vshrl.u32 %v1957, 16
      %v2970 = vrot.slane %v2968, 4
      %v2971 = vor.u32 %v2970, %v2966
      %v2972 = vrot.slane %v2971, 4
      %v2974 = vshll.u32 %v1958, 16
      %v2976 = vrot.slane %v2974, 5
      %v2977 = vsel %vm1961, %v2972, %v2976
      %s2978 = scalar_lea.vmem %s3, 448
      %v2979 = vld [vmem:[%s2978] sm:$0xf]
      %v2980 = vld [vmem:[%s2978 + $0x4] sm:$0xf]
      %v2981 = vld [vmem:[%s2978 + $0x8] sm:$0xf]
      %v2982 = vld [vmem:[%s2978 + $0xc] sm:$0xf]
      %v2983 = vld [vmem:[%s2978 + $0x10] sm:$0xf]
      %v2984 = vld [vmem:[%s2978 + $0x14] sm:$0xf]
      %v2985 = vld [vmem:[%s2978 + $0x18] sm:$0xf]
      %v2986 = vld [vmem:[%s2978 + $0x1c] sm:$0xf]
      %v2987 = vld [vmem:[%s2978 + $0x20] sm:$0xf]
      %v2988 = vld [vmem:[%s2978 + $0x24] sm:$0xf]
      %v2989 = vld [vmem:[%s2978 + $0x28] sm:$0xf]
      %v2990 = vld [vmem:[%s2978 + $0x2c] sm:$0xf]
      %v2991 = vld [vmem:[%s2978 + $0x30] sm:$0xf]
      %v2992 = vld [vmem:[%s2978 + $0x34] sm:$0xf]
      %v2993 = vld [vmem:[%s2978 + $0x38] sm:$0xf]
      %v2994 = vld [vmem:[%s2978 + $0x3c] sm:$0xf]
      %v2995 = vunpack.c.l.b16 %v2967
      %v2996 = vunpack.c.l.b16 %v2977
      %v2997 = vpack.c.b16 %v2996, %v2995
      %v3015 = vunpack.c.l.b16 %v2979
      %v3016 = vunpack.c.l.b16 %v2980
      %v3017 = vunpack.c.l.b16 %v2981
      %v3018 = vunpack.c.l.b16 %v2982
      %v3019 = vunpack.c.l.b16 %v2983
      %v3020 = vunpack.c.l.b16 %v2984
      %v3021 = vunpack.c.l.b16 %v2985
      %v3022 = vunpack.c.l.b16 %v2986
      %v3023 = vunpack.c.l.b16 %v2987
      %v3024 = vunpack.c.l.b16 %v2988
      %v3025 = vunpack.c.l.b16 %v2989
      %v3026 = vunpack.c.l.b16 %v2990
      %v3027 = vunpack.c.l.b16 %v2991
      %v3028 = vunpack.c.l.b16 %v2992
      %v3029 = vunpack.c.l.b16 %v2993
      %v3030 = vunpack.c.l.b16 %v2994
      %v3031 = vpack.c.b16 %v3016, %v3015
      %v3032 = vpack.c.b16 %v3018, %v3017
      %v3033 = vpack.c.b16 %v3020, %v3019
      %v3034 = vpack.c.b16 %v3022, %v3021
      %v3035 = vpack.c.b16 %v3024, %v3023
      %v3036 = vpack.c.b16 %v3026, %v3025
      %v3037 = vpack.c.b16 %v3028, %v3027
      %v3038 = vpack.c.b16 %v3030, %v3029
      %3047 = vmatprep.subr.bf16.mxu0 0
      %3048 = vmatpush1.bf16.msra.mxu0 %v3031
      %3049 = vmatprep.subr.bf16.mxu0 0
      %3050 = vmatpush1.bf16.msra.mxu0 %v3032
      %3051 = vmatprep.subr.bf16.mxu0 0
      %3052 = vmatpush1.bf16.msra.mxu0 %v3033
      %3053 = vmatprep.subr.bf16.mxu0 0
      %3054 = vmatpush1.bf16.msra.mxu0 %v3034
      %3055 = vmatprep.subr.bf16.mxu0 0
      %3056 = vmatpush1.bf16.msra.mxu0 %v3035
      %3057 = vmatprep.subr.bf16.mxu0 0
      %3058 = vmatpush1.bf16.msra.mxu0 %v3036
      %3059 = vmatprep.subr.bf16.mxu0 0
      %3060 = vmatpush1.bf16.msra.mxu0 %v3037
      %3061 = vmatprep.subr.bf16.mxu0 0
      %3062 = vmatpush1.bf16.msra.mxu0 %v3038
      %3063 = vmatprep.subr.bf16.mxu0 0
      %3064 = vmatpush1.bf16.msra.mxu0 0
      %3065 = vmatprep.subr.bf16.mxu0 0
      %3066 = vmatpush1.bf16.msra.mxu0 0
      %3067 = vmatprep.subr.bf16.mxu0 0
      %3068 = vmatpush1.bf16.msra.mxu0 0
      %3069 = vmatprep.subr.bf16.mxu0 0
      %3070 = vmatpush1.bf16.msra.mxu0 0
      %3071 = vmatprep.subr.bf16.mxu0 0
      %3072 = vmatpush1.bf16.msra.mxu0 0
      %3073 = vmatprep.subr.bf16.mxu0 0
      %3074 = vmatpush1.bf16.msra.mxu0 0
      %3075 = vmatprep.subr.bf16.mxu0 0
      %3076 = vmatpush1.bf16.msra.mxu0 0
      %3077 = vmatprep.subr.bf16.mxu0 0
      %3078 = vmatpush1.bf16.msra.mxu0 0
      %3079 = vmatprep.mubr.bf16.mxu0 0
      %3080 = vmatmul.mubr.bf16.gmra.mrb[0].mxu0 %v2397
      %v3081 = vpop.f32.mrb[0].mxu0
      %v3082 = vadd.f32 0.0, %v3081
      %v3083 = vpop.f32.mrb[0].mxu0
      %v3084 = vpop.f32.mrb[0].mxu0
      %v3085 = vadd.f32 0.0, %v3084
      %v3086 = vpop.f32.mrb[0].mxu0
      %3087 = vmatprep.mubr.bf16.mxu0 0
      %3088 = vmatmul.mubr.bf16.gmra.mrb[0].mxu0 %v2398
      %v3089 = vpop.f32.mrb[0].mxu0
      %v3090 = vadd.f32 0.0, %v3089
      %v3091 = vpop.f32.mrb[0].mxu0
      %v3092 = vpop.f32.mrb[0].mxu0
      %v3093 = vadd.f32 0.0, %v3092
      %v3094 = vpop.f32.mrb[0].mxu0
      %3095 = vmatprep.mubr.bf16.mxu0 0
      %3096 = vmatmul.mubr.bf16.gmra.mrb[0].mxu0 %v2399
      %v3097 = vpop.f32.mrb[0].mxu0
      %v3098 = vadd.f32 0.0, %v3097
      %v3099 = vpop.f32.mrb[0].mxu0
      %v3100 = vpop.f32.mrb[0].mxu0
      %v3101 = vadd.f32 0.0, %v3100
      %v3102 = vpop.f32.mrb[0].mxu0
      %3103 = vmatprep.mubr.bf16.mxu0 0
      %3104 = vmatmul.mubr.bf16.gmra.mrb[0].mxu0 %v2400
      %v3105 = vpop.f32.mrb[0].mxu0
      %v3106 = vadd.f32 0.0, %v3105
      %v3107 = vpop.f32.mrb[0].mxu0
      %v3108 = vpop.f32.mrb[0].mxu0
      %v3109 = vadd.f32 0.0, %v3108
      %v3110 = vpop.f32.mrb[0].mxu0
      %3111 = vmatprep.mubr.bf16.mxu0 0
      %3112 = vmatmul.mubr.bf16.gmra.mrb[0].mxu0 %v2401
      %v3113 = vpop.f32.mrb[0].mxu0
      %v3114 = vadd.f32 0.0, %v3113
      %v3115 = vpop.f32.mrb[0].mxu0
      %v3116 = vpop.f32.mrb[0].mxu0
      %v3117 = vadd.f32 0.0, %v3116
      %v3118 = vpop.f32.mrb[0].mxu0
      %3119 = vmatprep.mubr.bf16.mxu0 0
      %3120 = vmatmul.mubr.bf16.gmra.mrb[0].mxu0 %v2402
      %v3121 = vpop.f32.mrb[0].mxu0
      %v3122 = vadd.f32 0.0, %v3121
      %v3123 = vpop.f32.mrb[0].mxu0
      %v3124 = vpop.f32.mrb[0].mxu0
      %v3125 = vadd.f32 0.0, %v3124
      %v3126 = vpop.f32.mrb[0].mxu0
      %3127 = vmatprep.mubr.bf16.mxu0 0
      %3128 = vmatmul.mubr.bf16.gmra.mrb[0].mxu0 %v2403
      %v3129 = vpop.f32.mrb[0].mxu0
      %v3130 = vadd.f32 0.0, %v3129
      %v3131 = vpop.f32.mrb[0].mxu0
      %v3132 = vpop.f32.mrb[0].mxu0
      %v3133 = vadd.f32 0.0, %v3132
      %v3134 = vpop.f32.mrb[0].mxu0
      %3135 = vmatprep.mubr.bf16.mxu0 0
      %3136 = vmatmul.mubr.bf16.gmra.mrb[0].mxu0 %v2404
      %v3137 = vpop.f32.mrb[0].mxu0
      %v3138 = vadd.f32 0.0, %v3137
      %v3139 = vpop.f32.mrb[0].mxu0
      %v3140 = vpop.f32.mrb[0].mxu0
      %v3141 = vadd.f32 0.0, %v3140
      %v3142 = vpop.f32.mrb[0].mxu0
      %3143 = vmatprep.mubr.bf16.mxu0 0
      %3144 = vmatmul.mubr.bf16.gmra.mrb[0].mxu0 %v2405
      %v3145 = vpop.f32.mrb[0].mxu0
      %v3146 = vadd.f32 0.0, %v3145
      %v3147 = vpop.f32.mrb[0].mxu0
      %v3148 = vpop.f32.mrb[0].mxu0
      %v3149 = vadd.f32 0.0, %v3148
      %v3150 = vpop.f32.mrb[0].mxu0
      %3151 = vmatprep.mubr.bf16.mxu0 0
      %3152 = vmatmul.mubr.bf16.gmra.mrb[0].mxu0 %v2406
      %v3153 = vpop.f32.mrb[0].mxu0
      %v3154 = vadd.f32 0.0, %v3153
      %v3155 = vpop.f32.mrb[0].mxu0
      %v3156 = vpop.f32.mrb[0].mxu0
      %v3157 = vadd.f32 0.0, %v3156
      %v3158 = vpop.f32.mrb[0].mxu0
      %3159 = vmatprep.mubr.bf16.mxu0 0
      %3160 = vmatmul.mubr.bf16.gmra.mrb[0].mxu0 %v2407
      %v3161 = vpop.f32.mrb[0].mxu0
      %v3162 = vadd.f32 0.0, %v3161
      %v3163 = vpop.f32.mrb[0].mxu0
      %v3164 = vpop.f32.mrb[0].mxu0
      %v3165 = vadd.f32 0.0, %v3164
      %v3166 = vpop.f32.mrb[0].mxu0
      %3167 = vmatprep.mubr.bf16.mxu0 0
      %3168 = vmatmul.mubr.bf16.gmra.mrb[0].mxu0 %v2408
      %v3169 = vpop.f32.mrb[0].mxu0
      %v3170 = vadd.f32 0.0, %v3169
      %v3171 = vpop.f32.mrb[0].mxu0
      %v3172 = vpop.f32.mrb[0].mxu0
      %v3173 = vadd.f32 0.0, %v3172
      %v3174 = vpop.f32.mrb[0].mxu0
      %3175 = vmatprep.mubr.bf16.mxu0 0
      %3176 = vmatmul.mubr.bf16.gmra.mrb[0].mxu0 %v2409
      %v3177 = vpop.f32.mrb[0].mxu0
      %v3178 = vadd.f32 0.0, %v3177
      %v3179 = vpop.f32.mrb[0].mxu0
      %v3180 = vpop.f32.mrb[0].mxu0
      %v3181 = vadd.f32 0.0, %v3180
      %v3182 = vpop.f32.mrb[0].mxu0
      %3183 = vmatprep.mubr.bf16.mxu0 0
      %3184 = vmatmul.mubr.bf16.gmra.mrb[0].mxu0 %v2410
      %v3185 = vpop.f32.mrb[0].mxu0
      %v3186 = vadd.f32 0.0, %v3185
      %v3187 = vpop.f32.mrb[0].mxu0
      %v3188 = vpop.f32.mrb[0].mxu0
      %v3189 = vadd.f32 0.0, %v3188
      %v3190 = vpop.f32.mrb[0].mxu0
      %3191 = vmatprep.mubr.bf16.mxu0 0
      %3192 = vmatmul.mubr.bf16.gmra.mrb[0].mxu0 %v2711
      %v3193 = vpop.f32.mrb[0].mxu0
      %v3194 = vadd.f32 0.0, %v3193
      %v3195 = vpop.f32.mrb[0].mxu0
      %v3196 = vpop.f32.mrb[0].mxu0
      %v3197 = vadd.f32 0.0, %v3196
      %v3198 = vpop.f32.mrb[0].mxu0
      %3199 = vmatprep.mubr.bf16.mxu0 0
      %3200 = vmatmul.mubr.bf16.gmra.mrb[0].mxu0 %v2997
      %v3201 = vpop.f32.mrb[0].mxu0
      %v3202 = vadd.f32 0.0, %v3201
      %v3203 = vpop.f32.mrb[0].mxu0
      %v3204 = vpop.f32.mrb[0].mxu0
      %v3205 = vadd.f32 0.0, %v3204
      %v3206 = vpop.f32.mrb[0].mxu0
      %3207 = vdwg.mxu0
      %v3208 = vadd.f32 %v2922, %v3082
      %v3209 = vadd.f32 %v2923, %v3085
      %v3210 = vadd.f32 %v2924, %v3090
      %v3211 = vadd.f32 %v2925, %v3093
      %v3212 = vadd.f32 %v2926, %v3098
      %v3213 = vadd.f32 %v2927, %v3101
      %v3214 = vadd.f32 %v2928, %v3106
      %v3215 = vadd.f32 %v2929, %v3109
      %v3216 = vadd.f32 %v2930, %v3114
      %v3217 = vadd.f32 %v2931, %v3117
      %v3218 = vadd.f32 %v2932, %v3122
      %v3219 = vadd.f32 %v2933, %v3125
      %v3220 = vadd.f32 %v2934, %v3130
      %v3221 = vadd.f32 %v2935, %v3133
      %v3222 = vadd.f32 %v2936, %v3138
      %v3223 = vadd.f32 %v2937, %v3141
      %v3224 = vadd.f32 %v2938, %v3146
      %v3225 = vadd.f32 %v2939, %v3149
      %v3226 = vadd.f32 %v2940, %v3154
      %v3227 = vadd.f32 %v2941, %v3157
      %v3228 = vadd.f32 %v2942, %v3162
      %v3229 = vadd.f32 %v2943, %v3165
      %v3230 = vadd.f32 %v2944, %v3170
      %v3231 = vadd.f32 %v2945, %v3173
      %v3232 = vadd.f32 %v2946, %v3178
      %v3233 = vadd.f32 %v2947, %v3181
      %v3234 = vadd.f32 %v2948, %v3186
      %v3235 = vadd.f32 %v2949, %v3189
      %v3236 = vadd.f32 %v2950, %v3194
      %v3237 = vadd.f32 %v2951, %v3197
      %v3238 = vadd.f32 %v2952, %v3202
      %v3239 = vadd.f32 %v2953, %v3205
      %v3240 = vld [vmem:[#allocation2] sm:$0xe]
      %v3241 = vld [vmem:[#allocation2 + $0xc] sm:$0xe]
      %v3242 = vld [vmem:[#allocation2 + $0x18] sm:$0xe]
      %v3243 = vld [vmem:[#allocation2 + $0x24] sm:$0xe]
      %v3244 = vld [vmem:[#allocation2 + $0x30] sm:$0xe]
      %v3245 = vld [vmem:[#allocation2 + $0x3c] sm:$0xe]
      %v3246 = vld [vmem:[#allocation2 + $0x48] sm:$0xe]
      %v3247 = vld [vmem:[#allocation2 + $0x54] sm:$0xe]
      %v3248 = vld [vmem:[#allocation2 + $0x60] sm:$0xe]
      %v3249 = vld [vmem:[#allocation2 + $0x6c] sm:$0xe]
      %v3250 = vld [vmem:[#allocation2 + $0x78] sm:$0xe]
      %v3251 = vld [vmem:[#allocation2 + $0x84] sm:$0xe]
      %v3252 = vld [vmem:[#allocation2 + $0x90] sm:$0xe]
      %v3253 = vld [vmem:[#allocation2 + $0x9c] sm:$0xe]
      %v3254 = vld [vmem:[#allocation2 + $0xa8] sm:$0xe]
      %v3255 = vld [vmem:[#allocation2 + $0xb4] sm:$0xe]
      %v3256 = vld [vmem:[#allocation2 + $0xc0] sm:$0xe]
      %v3257 = vld [vmem:[#allocation2 + $0xcc] sm:$0xe]
      %vm3306 = vcmask 1042432
      %vm3307 = vcmask 1046532
      %vm3308 = vmor %vm3306, %vm3307
      %v3309 = vrot.slane %v3240, 5
      %v3310 = vrot.slane %v3309, 4
      %v3311 = vrot.slane %v1906, 5
      %v3312 = vsel %vm3308, %v3310, %v3311
      %v3313 = vrot.slane %v3311, 4
      %v3314 = vrot.slane %v1907, 5
      %v3315 = vsel %vm3308, %v3313, %v3314
      %v3316 = vrot.slane %v3241, 5
      %v3317 = vrot.slane %v3316, 4
      %v3318 = vrot.slane %v1909, 5
      %v3319 = vsel %vm3308, %v3317, %v3318
      %v3320 = vrot.slane %v3318, 4
      %v3321 = vrot.slane %v1910, 5
      %v3322 = vsel %vm3308, %v3320, %v3321
      %v3323 = vrot.slane %v3242, 5
      %v3324 = vrot.slane %v3323, 4
      %v3325 = vrot.slane %v1912, 5
      %v3326 = vsel %vm3308, %v3324, %v3325
      %v3327 = vrot.slane %v3325, 4
      %v3328 = vrot.slane %v1913, 5
      %v3329 = vsel %vm3308, %v3327, %v3328
      %v3330 = vrot.slane %v3243, 5
      %v3331 = vrot.slane %v3330, 4
      %v3332 = vrot.slane %v1915, 5
      %v3333 = vsel %vm3308, %v3331, %v3332
      %v3334 = vrot.slane %v3332, 4
      %v3335 = vrot.slane %v1916, 5
      %v3336 = vsel %vm3308, %v3334, %v3335
      %v3337 = vrot.slane %v3244, 5
      %v3338 = vrot.slane %v3337, 4
      %v3339 = vrot.slane %v1918, 5
      %v3340 = vsel %vm3308, %v3338, %v3339
      %v3341 = vrot.slane %v3339, 4
      %v3342 = vrot.slane %v1919, 5
      %v3343 = vsel %vm3308, %v3341, %v3342
      %v3344 = vrot.slane %v3245, 5
      %v3345 = vrot.slane %v3344, 4
      %v3346 = vrot.slane %v1921, 5
      %v3347 = vsel %vm3308, %v3345, %v3346
      %v3348 = vrot.slane %v3346, 4
      %v3349 = vrot.slane %v1922, 5
      %v3350 = vsel %vm3308, %v3348, %v3349
      %v3351 = vrot.slane %v3246, 5
      %v3352 = vrot.slane %v3351, 4
      %v3353 = vrot.slane %v1924, 5
      %v3354 = vsel %vm3308, %v3352, %v3353
      %v3355 = vrot.slane %v3353, 4
      %v3356 = vrot.slane %v1925, 5
      %v3357 = vsel %vm3308, %v3355, %v3356
      %v3358 = vrot.slane %v3247, 5
      %v3359 = vrot.slane %v3358, 4
      %v3360 = vrot.slane %v1927, 5
      %v3361 = vsel %vm3308, %v3359, %v3360
      %v3362 = vrot.slane %v3360, 4
      %v3363 = vrot.slane %v1928, 5
      %v3364 = vsel %vm3308, %v3362, %v3363
      %v3365 = vrot.slane %v3248, 5
      %v3366 = vrot.slane %v3365, 4
      %v3367 = vrot.slane %v1930, 5
      %v3368 = vsel %vm3308, %v3366, %v3367
      %v3369 = vrot.slane %v3367, 4
      %v3370 = vrot.slane %v1931, 5
      %v3371 = vsel %vm3308, %v3369, %v3370
      %v3372 = vrot.slane %v3249, 5
      %v3373 = vrot.slane %v3372, 4
      %v3374 = vrot.slane %v1933, 5
      %v3375 = vsel %vm3308, %v3373, %v3374
      %v3376 = vrot.slane %v3374, 4
      %v3377 = vrot.slane %v1934, 5
      %v3378 = vsel %vm3308, %v3376, %v3377
      %v3379 = vrot.slane %v3250, 5
      %v3380 = vrot.slane %v3379, 4
      %v3381 = vrot.slane %v1936, 5
      %v3382 = vsel %vm3308, %v3380, %v3381
      %v3383 = vrot.slane %v3381, 4
      %v3384 = vrot.slane %v1937, 5
      %v3385 = vsel %vm3308, %v3383, %v3384
      %v3386 = vrot.slane %v3251, 5
      %v3387 = vrot.slane %v3386, 4
      %v3388 = vrot.slane %v1939, 5
      %v3389 = vsel %vm3308, %v3387, %v3388
      %v3390 = vrot.slane %v3388, 4
      %v3391 = vrot.slane %v1940, 5
      %v3392 = vsel %vm3308, %v3390, %v3391
      %v3393 = vrot.slane %v3252, 5
      %v3394 = vrot.slane %v3393, 4
      %v3395 = vrot.slane %v1942, 5
      %v3396 = vsel %vm3308, %v3394, %v3395
      %v3397 = vrot.slane %v3395, 4
      %v3398 = vrot.slane %v1943, 5
      %v3399 = vsel %vm3308, %v3397, %v3398
      %v3400 = vrot.slane %v3253, 5
      %v3401 = vrot.slane %v3400, 4
      %v3402 = vrot.slane %v1945, 5
      %v3403 = vsel %vm3308, %v3401, %v3402
      %v3404 = vrot.slane %v3402, 4
      %v3405 = vrot.slane %v1946, 5
      %v3406 = vsel %vm3308, %v3404, %v3405
      %v3407 = vrot.slane %v3254, 5
      %v3408 = vrot.slane %v3407, 4
      %v3409 = vrot.slane %v1948, 5
      %v3410 = vsel %vm3308, %v3408, %v3409
      %v3411 = vrot.slane %v3409, 4
      %v3412 = vrot.slane %v1949, 5
      %v3413 = vsel %vm3308, %v3411, %v3412
      %v3414 = vrot.slane %v3255, 5
      %v3415 = vrot.slane %v3414, 4
      %v3416 = vrot.slane %v1951, 5
      %v3417 = vsel %vm3308, %v3415, %v3416
      %v3418 = vrot.slane %v3416, 4
      %v3419 = vrot.slane %v1952, 5
      %v3420 = vsel %vm3308, %v3418, %v3419
      %s3421 = scalar_lea.vmem %s3, 128
      %v3422 = vld [vmem:[%s3421] sm:$0xf]
      %v3423 = vld [vmem:[%s3421 + $0x4] sm:$0xf]
      %v3424 = vld [vmem:[%s3421 + $0x8] sm:$0xf]
      %v3425 = vld [vmem:[%s3421 + $0xc] sm:$0xf]
      %v3426 = vld [vmem:[%s3421 + $0x10] sm:$0xf]
      %v3427 = vld [vmem:[%s3421 + $0x14] sm:$0xf]
      %v3428 = vld [vmem:[%s3421 + $0x18] sm:$0xf]
      %v3429 = vld [vmem:[%s3421 + $0x1c] sm:$0xf]
      %v3430 = vld [vmem:[%s3421 + $0x20] sm:$0xf]
      %v3431 = vld [vmem:[%s3421 + $0x24] sm:$0xf]
      %v3432 = vld [vmem:[%s3421 + $0x28] sm:$0xf]
      %v3433 = vld [vmem:[%s3421 + $0x2c] sm:$0xf]
      %v3434 = vld [vmem:[%s3421 + $0x30] sm:$0xf]
      %v3435 = vld [vmem:[%s3421 + $0x34] sm:$0xf]
      %v3436 = vld [vmem:[%s3421 + $0x38] sm:$0xf]
      %v3437 = vld [vmem:[%s3421 + $0x3c] sm:$0xf]
      %v3438 = vunpack.c.l.b16 %v3312
      %v3439 = vunpack.c.l.b16 %v3315
      %v3440 = vunpack.c.l.b16 %v3319
      %v3441 = vunpack.c.l.b16 %v3322
      %v3442 = vunpack.c.l.b16 %v3326
      %v3443 = vunpack.c.l.b16 %v3329
      %v3444 = vunpack.c.l.b16 %v3333
      %v3445 = vunpack.c.l.b16 %v3336
      %v3446 = vunpack.c.l.b16 %v3340
      %v3447 = vunpack.c.l.b16 %v3343
      %v3448 = vunpack.c.l.b16 %v3347
      %v3449 = vunpack.c.l.b16 %v3350
      %v3450 = vunpack.c.l.b16 %v3354
      %v3451 = vunpack.c.l.b16 %v3357
      %v3452 = vunpack.c.l.b16 %v3361
      %v3453 = vunpack.c.l.b16 %v3364
      %v3454 = vunpack.c.l.b16 %v3368
      %v3455 = vunpack.c.l.b16 %v3371
      %v3456 = vunpack.c.l.b16 %v3375
      %v3457 = vunpack.c.l.b16 %v3378
      %v3458 = vunpack.c.l.b16 %v3382
      %v3459 = vunpack.c.l.b16 %v3385
      %v3460 = vunpack.c.l.b16 %v3389
      %v3461 = vunpack.c.l.b16 %v3392
      %v3462 = vunpack.c.l.b16 %v3396
      %v3463 = vunpack.c.l.b16 %v3399
      %v3464 = vunpack.c.l.b16 %v3403
      %v3465 = vunpack.c.l.b16 %v3406
      %v3466 = vunpack.c.l.b16 %v3410
      %v3467 = vunpack.c.l.b16 %v3413
      %v3468 = vunpack.c.l.b16 %v3417
      %v3469 = vunpack.c.l.b16 %v3420
      %v3470 = vpack.c.b16 %v3439, %v3438
      %v3471 = vpack.c.b16 %v3441, %v3440
      %v3472 = vpack.c.b16 %v3443, %v3442
      %v3473 = vpack.c.b16 %v3445, %v3444
      %v3474 = vpack.c.b16 %v3447, %v3446
      %v3475 = vpack.c.b16 %v3449, %v3448
      %v3476 = vpack.c.b16 %v3451, %v3450
      %v3477 = vpack.c.b16 %v3453, %v3452
      %v3478 = vpack.c.b16 %v3455, %v3454
      %v3479 = vpack.c.b16 %v3457, %v3456
      %v3480 = vpack.c.b16 %v3459, %v3458
      %v3481 = vpack.c.b16 %v3461, %v3460
      %v3482 = vpack.c.b16 %v3463, %v3462
      %v3483 = vpack.c.b16 %v3465, %v3464
      %v3484 = vpack.c.b16 %v3467, %v3466
      %v3485 = vpack.c.b16 %v3469, %v3468
      %v3518 = vunpack.c.l.b16 %v3422
      %v3519 = vunpack.c.l.b16 %v3423
      %v3520 = vunpack.c.l.b16 %v3424
      %v3521 = vunpack.c.l.b16 %v3425
      %v3522 = vunpack.c.l.b16 %v3426
      %v3523 = vunpack.c.l.b16 %v3427
      %v3524 = vunpack.c.l.b16 %v3428
      %v3525 = vunpack.c.l.b16 %v3429
      %v3526 = vunpack.c.l.b16 %v3430
      %v3527 = vunpack.c.l.b16 %v3431
      %v3528 = vunpack.c.l.b16 %v3432
      %v3529 = vunpack.c.l.b16 %v3433
      %v3530 = vunpack.c.l.b16 %v3434
      %v3531 = vunpack.c.l.b16 %v3435
      %v3532 = vunpack.c.l.b16 %v3436
      %v3533 = vunpack.c.l.b16 %v3437
      %v3534 = vpack.c.b16 %v3519, %v3518
      %v3535 = vpack.c.b16 %v3521, %v3520
      %v3536 = vpack.c.b16 %v3523, %v3522
      %v3537 = vpack.c.b16 %v3525, %v3524
      %v3538 = vpack.c.b16 %v3527, %v3526
      %v3539 = vpack.c.b16 %v3529, %v3528
      %v3540 = vpack.c.b16 %v3531, %v3530
      %v3541 = vpack.c.b16 %v3533, %v3532
      %3550 = vmatprep.subr.bf16.mxu0 0
      %3551 = vmatpush1.bf16.msra.mxu0 %v3534
      %3552 = vmatprep.subr.bf16.mxu0 0
      %3553 = vmatpush1.bf16.msra.mxu0 %v3535
      %3554 = vmatprep.subr.bf16.mxu0 0
      %3555 = vmatpush1.bf16.msra.mxu0 %v3536
      %3556 = vmatprep.subr.bf16.mxu0 0
      %3557 = vmatpush1.bf16.msra.mxu0 %v3537
      %3558 = vmatprep.subr.bf16.mxu0 0
      %3559 = vmatpush1.bf16.msra.mxu0 %v3538
      %3560 = vmatprep.subr.bf16.mxu0 0
      %3561 = vmatpush1.bf16.msra.mxu0 %v3539
      %3562 = vmatprep.subr.bf16.mxu0 0
      %3563 = vmatpush1.bf16.msra.mxu0 %v3540
      %3564 = vmatprep.subr.bf16.mxu0 0
      %3565 = vmatpush1.bf16.msra.mxu0 %v3541
      %3566 = vmatprep.subr.bf16.mxu0 0
      %3567 = vmatpush1.bf16.msra.mxu0 0
      %3568 = vmatprep.subr.bf16.mxu0 0
      %3569 = vmatpush1.bf16.msra.mxu0 0
      %3570 = vmatprep.subr.bf16.mxu0 0
      %3571 = vmatpush1.bf16.msra.mxu0 0
      %3572 = vmatprep.subr.bf16.mxu0 0
      %3573 = vmatpush1.bf16.msra.mxu0 0
      %3574 = vmatprep.subr.bf16.mxu0 0
      %3575 = vmatpush1.bf16.msra.mxu0 0
      %3576 = vmatprep.subr.bf16.mxu0 0
      %3577 = vmatpush1.bf16.msra.mxu0 0
      %3578 = vmatprep.subr.bf16.mxu0 0
      %3579 = vmatpush1.bf16.msra.mxu0 0
      %3580 = vmatprep.subr.bf16.mxu0 0
      %3581 = vmatpush1.bf16.msra.mxu0 0
      %3582 = vmatprep.mubr.bf16.mxu0 0
      %3583 = vmatmul.mubr.bf16.gmra.mrb[0].mxu0 %v3470
      %v3584 = vpop.f32.mrb[0].mxu0
      %v3585 = vadd.f32 0.0, %v3584
      %v3586 = vpop.f32.mrb[0].mxu0
      %v3587 = vpop.f32.mrb[0].mxu0
      %v3588 = vadd.f32 0.0, %v3587
      %v3589 = vpop.f32.mrb[0].mxu0
      %3590 = vmatprep.mubr.bf16.mxu0 0
      %3591 = vmatmul.mubr.bf16.gmra.mrb[0].mxu0 %v3471
      %v3592 = vpop.f32.mrb[0].mxu0
      %v3593 = vadd.f32 0.0, %v3592
      %v3594 = vpop.f32.mrb[0].mxu0
      %v3595 = vpop.f32.mrb[0].mxu0
      %v3596 = vadd.f32 0.0, %v3595
      %v3597 = vpop.f32.mrb[0].mxu0
      %3598 = vmatprep.mubr.bf16.mxu0 0
      %3599 = vmatmul.mubr.bf16.gmra.mrb[0].mxu0 %v3472
      %v3600 = vpop.f32.mrb[0].mxu0
      %v3601 = vadd.f32 0.0, %v3600
      %v3602 = vpop.f32.mrb[0].mxu0
      %v3603 = vpop.f32.mrb[0].mxu0
      %v3604 = vadd.f32 0.0, %v3603
      %v3605 = vpop.f32.mrb[0].mxu0
      %3606 = vmatprep.mubr.bf16.mxu0 0
      %3607 = vmatmul.mubr.bf16.gmra.mrb[0].mxu0 %v3473
      %v3608 = vpop.f32.mrb[0].mxu0
      %v3609 = vadd.f32 0.0, %v3608
      %v3610 = vpop.f32.mrb[0].mxu0
      %v3611 = vpop.f32.mrb[0].mxu0
      %v3612 = vadd.f32 0.0, %v3611
      %v3613 = vpop.f32.mrb[0].mxu0
      %3614 = vmatprep.mubr.bf16.mxu0 0
      %3615 = vmatmul.mubr.bf16.gmra.mrb[0].mxu0 %v3474
      %v3616 = vpop.f32.mrb[0].mxu0
      %v3617 = vadd.f32 0.0, %v3616
      %v3618 = vpop.f32.mrb[0].mxu0
      %v3619 = vpop.f32.mrb[0].mxu0
      %v3620 = vadd.f32 0.0, %v3619
      %v3621 = vpop.f32.mrb[0].mxu0
      %3622 = vmatprep.mubr.bf16.mxu0 0
      %3623 = vmatmul.mubr.bf16.gmra.mrb[0].mxu0 %v3475
      %v3624 = vpop.f32.mrb[0].mxu0
      %v3625 = vadd.f32 0.0, %v3624
      %v3626 = vpop.f32.mrb[0].mxu0
      %v3627 = vpop.f32.mrb[0].mxu0
      %v3628 = vadd.f32 0.0, %v3627
      %v3629 = vpop.f32.mrb[0].mxu0
      %3630 = vmatprep.mubr.bf16.mxu0 0
      %3631 = vmatmul.mubr.bf16.gmra.mrb[0].mxu0 %v3476
      %v3632 = vpop.f32.mrb[0].mxu0
      %v3633 = vadd.f32 0.0, %v3632
      %v3634 = vpop.f32.mrb[0].mxu0
      %v3635 = vpop.f32.mrb[0].mxu0
      %v3636 = vadd.f32 0.0, %v3635
      %v3637 = vpop.f32.mrb[0].mxu0
      %3638 = vmatprep.mubr.bf16.mxu0 0
      %3639 = vmatmul.mubr.bf16.gmra.mrb[0].mxu0 %v3477
      %v3640 = vpop.f32.mrb[0].mxu0
      %v3641 = vadd.f32 0.0, %v3640
      %v3642 = vpop.f32.mrb[0].mxu0
      %v3643 = vpop.f32.mrb[0].mxu0
      %v3644 = vadd.f32 0.0, %v3643
      %v3645 = vpop.f32.mrb[0].mxu0
      %3646 = vmatprep.mubr.bf16.mxu0 0
      %3647 = vmatmul.mubr.bf16.gmra.mrb[0].mxu0 %v3478
      %v3648 = vpop.f32.mrb[0].mxu0
      %v3649 = vadd.f32 0.0, %v3648
      %v3650 = vpop.f32.mrb[0].mxu0
      %v3651 = vpop.f32.mrb[0].mxu0
      %v3652 = vadd.f32 0.0, %v3651
      %v3653 = vpop.f32.mrb[0].mxu0
      %3654 = vmatprep.mubr.bf16.mxu0 0
      %3655 = vmatmul.mubr.bf16.gmra.mrb[0].mxu0 %v3479
      %v3656 = vpop.f32.mrb[0].mxu0
      %v3657 = vadd.f32 0.0, %v3656
      %v3658 = vpop.f32.mrb[0].mxu0
      %v3659 = vpop.f32.mrb[0].mxu0
      %v3660 = vadd.f32 0.0, %v3659
      %v3661 = vpop.f32.mrb[0].mxu0
      %3662 = vmatprep.mubr.bf16.mxu0 0
      %3663 = vmatmul.mubr.bf16.gmra.mrb[0].mxu0 %v3480
      %v3664 = vpop.f32.mrb[0].mxu0
      %v3665 = vadd.f32 0.0, %v3664
      %v3666 = vpop.f32.mrb[0].mxu0
      %v3667 = vpop.f32.mrb[0].mxu0
      %v3668 = vadd.f32 0.0, %v3667
      %v3669 = vpop.f32.mrb[0].mxu0
      %3670 = vmatprep.mubr.bf16.mxu0 0
      %3671 = vmatmul.mubr.bf16.gmra.mrb[0].mxu0 %v3481
      %v3672 = vpop.f32.mrb[0].mxu0
      %v3673 = vadd.f32 0.0, %v3672
      %v3674 = vpop.f32.mrb[0].mxu0
      %v3675 = vpop.f32.mrb[0].mxu0
      %v3676 = vadd.f32 0.0, %v3675
      %v3677 = vpop.f32.mrb[0].mxu0
      %3678 = vmatprep.mubr.bf16.mxu0 0
      %3679 = vmatmul.mubr.bf16.gmra.mrb[0].mxu0 %v3482
      %v3680 = vpop.f32.mrb[0].mxu0
      %v3681 = vadd.f32 0.0, %v3680
      %v3682 = vpop.f32.mrb[0].mxu0
      %v3683 = vpop.f32.mrb[0].mxu0
      %v3684 = vadd.f32 0.0, %v3683
      %v3685 = vpop.f32.mrb[0].mxu0
      %3686 = vmatprep.mubr.bf16.mxu0 0
      %3687 = vmatmul.mubr.bf16.gmra.mrb[0].mxu0 %v3483
      %v3688 = vpop.f32.mrb[0].mxu0
      %v3689 = vadd.f32 0.0, %v3688
      %v3690 = vpop.f32.mrb[0].mxu0
      %v3691 = vpop.f32.mrb[0].mxu0
      %v3692 = vadd.f32 0.0, %v3691
      %v3693 = vpop.f32.mrb[0].mxu0
      %3694 = vmatprep.mubr.bf16.mxu0 0
      %3695 = vmatmul.mubr.bf16.gmra.mrb[0].mxu0 %v3484
      %v3696 = vpop.f32.mrb[0].mxu0
      %v3697 = vadd.f32 0.0, %v3696
      %v3698 = vpop.f32.mrb[0].mxu0
      %v3699 = vpop.f32.mrb[0].mxu0
      %v3700 = vadd.f32 0.0, %v3699
      %v3701 = vpop.f32.mrb[0].mxu0
      %3702 = vmatprep.mubr.bf16.mxu0 0
      %3703 = vmatmul.mubr.bf16.gmra.mrb[0].mxu0 %v3485
      %v3704 = vpop.f32.mrb[0].mxu0
      %v3705 = vadd.f32 0.0, %v3704
      %v3706 = vpop.f32.mrb[0].mxu0
      %v3707 = vpop.f32.mrb[0].mxu0
      %v3708 = vadd.f32 0.0, %v3707
      %v3709 = vpop.f32.mrb[0].mxu0
      %3710 = vdwg.mxu0
      %v3711 = vadd.f32 %v3208, %v3585
      %v3712 = vadd.f32 %v3209, %v3588
      %v3713 = vadd.f32 %v3210, %v3593
      %v3714 = vadd.f32 %v3211, %v3596
      %v3715 = vadd.f32 %v3212, %v3601
      %v3716 = vadd.f32 %v3213, %v3604
      %v3717 = vadd.f32 %v3214, %v3609
      %v3718 = vadd.f32 %v3215, %v3612
      %v3719 = vadd.f32 %v3216, %v3617
      %v3720 = vadd.f32 %v3217, %v3620
      %v3721 = vadd.f32 %v3218, %v3625
      %v3722 = vadd.f32 %v3219, %v3628
      %v3723 = vadd.f32 %v3220, %v3633
      %v3724 = vadd.f32 %v3221, %v3636
      %v3725 = vadd.f32 %v3222, %v3641
      %v3726 = vadd.f32 %v3223, %v3644
      %v3727 = vadd.f32 %v3224, %v3649
      %v3728 = vadd.f32 %v3225, %v3652
      %v3729 = vadd.f32 %v3226, %v3657
      %v3730 = vadd.f32 %v3227, %v3660
      %v3731 = vadd.f32 %v3228, %v3665
      %v3732 = vadd.f32 %v3229, %v3668
      %v3733 = vadd.f32 %v3230, %v3673
      %v3734 = vadd.f32 %v3231, %v3676
      %v3735 = vadd.f32 %v3232, %v3681
      %v3736 = vadd.f32 %v3233, %v3684
      %v3737 = vadd.f32 %v3234, %v3689
      %v3738 = vadd.f32 %v3235, %v3692
      %v3739 = vadd.f32 %v3236, %v3697
      %v3740 = vadd.f32 %v3237, %v3700
      %v3741 = vadd.f32 %v3238, %v3705
      %v3742 = vadd.f32 %v3239, %v3708
      %v3746 = vrot.slane %v3256, 5
      %v3747 = vrot.slane %v3746, 4
      %v3748 = vrot.slane %v1954, 5
      %v3749 = vsel %vm3308, %v3747, %v3748
      %v3750 = vrot.slane %v3748, 4
      %v3751 = vrot.slane %v1955, 5
      %v3752 = vsel %vm3308, %v3750, %v3751
      %s3753 = scalar_lea.vmem %s3, 320
      %v3754 = vld [vmem:[%s3753] sm:$0xf]
      %v3755 = vld [vmem:[%s3753 + $0x4] sm:$0xf]
      %v3756 = vld [vmem:[%s3753 + $0x8] sm:$0xf]
      %v3757 = vld [vmem:[%s3753 + $0xc] sm:$0xf]
      %v3758 = vld [vmem:[%s3753 + $0x10] sm:$0xf]
      %v3759 = vld [vmem:[%s3753 + $0x14] sm:$0xf]
      %v3760 = vld [vmem:[%s3753 + $0x18] sm:$0xf]
      %v3761 = vld [vmem:[%s3753 + $0x1c] sm:$0xf]
      %v3762 = vld [vmem:[%s3753 + $0x20] sm:$0xf]
      %v3763 = vld [vmem:[%s3753 + $0x24] sm:$0xf]
      %v3764 = vld [vmem:[%s3753 + $0x28] sm:$0xf]
      %v3765 = vld [vmem:[%s3753 + $0x2c] sm:$0xf]
      %v3766 = vld [vmem:[%s3753 + $0x30] sm:$0xf]
      %v3767 = vld [vmem:[%s3753 + $0x34] sm:$0xf]
      %v3768 = vld [vmem:[%s3753 + $0x38] sm:$0xf]
      %v3769 = vld [vmem:[%s3753 + $0x3c] sm:$0xf]
      %v3770 = vunpack.c.l.b16 %v3749
      %v3771 = vunpack.c.l.b16 %v3752
      %v3772 = vpack.c.b16 %v3771, %v3770
      %v3790 = vunpack.c.l.b16 %v3754
      %v3791 = vunpack.c.l.b16 %v3755
      %v3792 = vunpack.c.l.b16 %v3756
      %v3793 = vunpack.c.l.b16 %v3757
      %v3794 = vunpack.c.l.b16 %v3758
      %v3795 = vunpack.c.l.b16 %v3759
      %v3796 = vunpack.c.l.b16 %v3760
      %v3797 = vunpack.c.l.b16 %v3761
      %v3798 = vunpack.c.l.b16 %v3762
      %v3799 = vunpack.c.l.b16 %v3763
      %v3800 = vunpack.c.l.b16 %v3764
      %v3801 = vunpack.c.l.b16 %v3765
      %v3802 = vunpack.c.l.b16 %v3766
      %v3803 = vunpack.c.l.b16 %v3767
      %v3804 = vunpack.c.l.b16 %v3768
      %v3805 = vunpack.c.l.b16 %v3769
      %v3806 = vpack.c.b16 %v3791, %v3790
      %v3807 = vpack.c.b16 %v3793, %v3792
      %v3808 = vpack.c.b16 %v3795, %v3794
      %v3809 = vpack.c.b16 %v3797, %v3796
      %v3810 = vpack.c.b16 %v3799, %v3798
      %v3811 = vpack.c.b16 %v3801, %v3800
      %v3812 = vpack.c.b16 %v3803, %v3802
      %v3813 = vpack.c.b16 %v3805, %v3804
      %3822 = vmatprep.subr.bf16.mxu0 0
      %3823 = vmatpush1.bf16.msra.mxu0 %v3806
      %3824 = vmatprep.subr.bf16.mxu0 0
      %3825 = vmatpush1.bf16.msra.mxu0 %v3807
      %3826 = vmatprep.subr.bf16.mxu0 0
      %3827 = vmatpush1.bf16.msra.mxu0 %v3808
      %3828 = vmatprep.subr.bf16.mxu0 0
      %3829 = vmatpush1.bf16.msra.mxu0 %v3809
      %3830 = vmatprep.subr.bf16.mxu0 0
      %3831 = vmatpush1.bf16.msra.mxu0 %v3810
      %3832 = vmatprep.subr.bf16.mxu0 0
      %3833 = vmatpush1.bf16.msra.mxu0 %v3811
      %3834 = vmatprep.subr.bf16.mxu0 0
      %3835 = vmatpush1.bf16.msra.mxu0 %v3812
      %3836 = vmatprep.subr.bf16.mxu0 0
      %3837 = vmatpush1.bf16.msra.mxu0 %v3813
      %3838 = vmatprep.subr.bf16.mxu0 0
      %3839 = vmatpush1.bf16.msra.mxu0 0
      %3840 = vmatprep.subr.bf16.mxu0 0
      %3841 = vmatpush1.bf16.msra.mxu0 0
      %3842 = vmatprep.subr.bf16.mxu0 0
      %3843 = vmatpush1.bf16.msra.mxu0 0
      %3844 = vmatprep.subr.bf16.mxu0 0
      %3845 = vmatpush1.bf16.msra.mxu0 0
      %3846 = vmatprep.subr.bf16.mxu0 0
      %3847 = vmatpush1.bf16.msra.mxu0 0
      %3848 = vmatprep.subr.bf16.mxu0 0
      %3849 = vmatpush1.bf16.msra.mxu0 0
      %3850 = vmatprep.subr.bf16.mxu0 0
      %3851 = vmatpush1.bf16.msra.mxu0 0
      %3852 = vmatprep.subr.bf16.mxu0 0
      %3853 = vmatpush1.bf16.msra.mxu0 0
      %3854 = vmatprep.mubr.bf16.mxu0 0
      %3855 = vmatmul.mubr.bf16.gmra.mrb[0].mxu0 %v3471
      %v3856 = vpop.f32.mrb[0].mxu0
      %v3857 = vadd.f32 0.0, %v3856
      %v3858 = vpop.f32.mrb[0].mxu0
      %v3859 = vpop.f32.mrb[0].mxu0
      %v3860 = vadd.f32 0.0, %v3859
      %v3861 = vpop.f32.mrb[0].mxu0
      %3862 = vmatprep.mubr.bf16.mxu0 0
      %3863 = vmatmul.mubr.bf16.gmra.mrb[0].mxu0 %v3472
      %v3864 = vpop.f32.mrb[0].mxu0
      %v3865 = vadd.f32 0.0, %v3864
      %v3866 = vpop.f32.mrb[0].mxu0
      %v3867 = vpop.f32.mrb[0].mxu0
      %v3868 = vadd.f32 0.0, %v3867
      %v3869 = vpop.f32.mrb[0].mxu0
      %3870 = vmatprep.mubr.bf16.mxu0 0
      %3871 = vmatmul.mubr.bf16.gmra.mrb[0].mxu0 %v3473
      %v3872 = vpop.f32.mrb[0].mxu0
      %v3873 = vadd.f32 0.0, %v3872
      %v3874 = vpop.f32.mrb[0].mxu0
      %v3875 = vpop.f32.mrb[0].mxu0
      %v3876 = vadd.f32 0.0, %v3875
      %v3877 = vpop.f32.mrb[0].mxu0
      %3878 = vmatprep.mubr.bf16.mxu0 0
      %3879 = vmatmul.mubr.bf16.gmra.mrb[0].mxu0 %v3474
      %v3880 = vpop.f32.mrb[0].mxu0
      %v3881 = vadd.f32 0.0, %v3880
      %v3882 = vpop.f32.mrb[0].mxu0
      %v3883 = vpop.f32.mrb[0].mxu0
      %v3884 = vadd.f32 0.0, %v3883
      %v3885 = vpop.f32.mrb[0].mxu0
      %3886 = vmatprep.mubr.bf16.mxu0 0
      %3887 = vmatmul.mubr.bf16.gmra.mrb[0].mxu0 %v3475
      %v3888 = vpop.f32.mrb[0].mxu0
      %v3889 = vadd.f32 0.0, %v3888
      %v3890 = vpop.f32.mrb[0].mxu0
      %v3891 = vpop.f32.mrb[0].mxu0
      %v3892 = vadd.f32 0.0, %v3891
      %v3893 = vpop.f32.mrb[0].mxu0
      %3894 = vmatprep.mubr.bf16.mxu0 0
      %3895 = vmatmul.mubr.bf16.gmra.mrb[0].mxu0 %v3476
      %v3896 = vpop.f32.mrb[0].mxu0
      %v3897 = vadd.f32 0.0, %v3896
      %v3898 = vpop.f32.mrb[0].mxu0
      %v3899 = vpop.f32.mrb[0].mxu0
      %v3900 = vadd.f32 0.0, %v3899
      %v3901 = vpop.f32.mrb[0].mxu0
      %3902 = vmatprep.mubr.bf16.mxu0 0
      %3903 = vmatmul.mubr.bf16.gmra.mrb[0].mxu0 %v3477
      %v3904 = vpop.f32.mrb[0].mxu0
      %v3905 = vadd.f32 0.0, %v3904
      %v3906 = vpop.f32.mrb[0].mxu0
      %v3907 = vpop.f32.mrb[0].mxu0
      %v3908 = vadd.f32 0.0, %v3907
      %v3909 = vpop.f32.mrb[0].mxu0
      %3910 = vmatprep.mubr.bf16.mxu0 0
      %3911 = vmatmul.mubr.bf16.gmra.mrb[0].mxu0 %v3478
      %v3912 = vpop.f32.mrb[0].mxu0
      %v3913 = vadd.f32 0.0, %v3912
      %v3914 = vpop.f32.mrb[0].mxu0
      %v3915 = vpop.f32.mrb[0].mxu0
      %v3916 = vadd.f32 0.0, %v3915
      %v3917 = vpop.f32.mrb[0].mxu0
      %3918 = vmatprep.mubr.bf16.mxu0 0
      %3919 = vmatmul.mubr.bf16.gmra.mrb[0].mxu0 %v3479
      %v3920 = vpop.f32.mrb[0].mxu0
      %v3921 = vadd.f32 0.0, %v3920
      %v3922 = vpop.f32.mrb[0].mxu0
      %v3923 = vpop.f32.mrb[0].mxu0
      %v3924 = vadd.f32 0.0, %v3923
      %v3925 = vpop.f32.mrb[0].mxu0
      %3926 = vmatprep.mubr.bf16.mxu0 0
      %3927 = vmatmul.mubr.bf16.gmra.mrb[0].mxu0 %v3480
      %v3928 = vpop.f32.mrb[0].mxu0
      %v3929 = vadd.f32 0.0, %v3928
      %v3930 = vpop.f32.mrb[0].mxu0
      %v3931 = vpop.f32.mrb[0].mxu0
      %v3932 = vadd.f32 0.0, %v3931
      %v3933 = vpop.f32.mrb[0].mxu0
      %3934 = vmatprep.mubr.bf16.mxu0 0
      %3935 = vmatmul.mubr.bf16.gmra.mrb[0].mxu0 %v3481
      %v3936 = vpop.f32.mrb[0].mxu0
      %v3937 = vadd.f32 0.0, %v3936
      %v3938 = vpop.f32.mrb[0].mxu0
      %v3939 = vpop.f32.mrb[0].mxu0
      %v3940 = vadd.f32 0.0, %v3939
      %v3941 = vpop.f32.mrb[0].mxu0
      %3942 = vmatprep.mubr.bf16.mxu0 0
      %3943 = vmatmul.mubr.bf16.gmra.mrb[0].mxu0 %v3482
      %v3944 = vpop.f32.mrb[0].mxu0
      %v3945 = vadd.f32 0.0, %v3944
      %v3946 = vpop.f32.mrb[0].mxu0
      %v3947 = vpop.f32.mrb[0].mxu0
      %v3948 = vadd.f32 0.0, %v3947
      %v3949 = vpop.f32.mrb[0].mxu0
      %3950 = vmatprep.mubr.bf16.mxu0 0
      %3951 = vmatmul.mubr.bf16.gmra.mrb[0].mxu0 %v3483
      %v3952 = vpop.f32.mrb[0].mxu0
      %v3953 = vadd.f32 0.0, %v3952
      %v3954 = vpop.f32.mrb[0].mxu0
      %v3955 = vpop.f32.mrb[0].mxu0
      %v3956 = vadd.f32 0.0, %v3955
      %v3957 = vpop.f32.mrb[0].mxu0
      %3958 = vmatprep.mubr.bf16.mxu0 0
      %3959 = vmatmul.mubr.bf16.gmra.mrb[0].mxu0 %v3484
      %v3960 = vpop.f32.mrb[0].mxu0
      %v3961 = vadd.f32 0.0, %v3960
      %v3962 = vpop.f32.mrb[0].mxu0
      %v3963 = vpop.f32.mrb[0].mxu0
      %v3964 = vadd.f32 0.0, %v3963
      %v3965 = vpop.f32.mrb[0].mxu0
      %3966 = vmatprep.mubr.bf16.mxu0 0
      %3967 = vmatmul.mubr.bf16.gmra.mrb[0].mxu0 %v3485
      %v3968 = vpop.f32.mrb[0].mxu0
      %v3969 = vadd.f32 0.0, %v3968
      %v3970 = vpop.f32.mrb[0].mxu0
      %v3971 = vpop.f32.mrb[0].mxu0
      %v3972 = vadd.f32 0.0, %v3971
      %v3973 = vpop.f32.mrb[0].mxu0
      %3974 = vmatprep.mubr.bf16.mxu0 0
      %3975 = vmatmul.mubr.bf16.gmra.mrb[0].mxu0 %v3772
      %v3976 = vpop.f32.mrb[0].mxu0
      %v3977 = vadd.f32 0.0, %v3976
      %v3978 = vpop.f32.mrb[0].mxu0
      %v3979 = vpop.f32.mrb[0].mxu0
      %v3980 = vadd.f32 0.0, %v3979
      %v3981 = vpop.f32.mrb[0].mxu0
      %3982 = vdwg.mxu0
      %v3983 = vadd.f32 %v3711, %v3857
      %v3984 = vadd.f32 %v3712, %v3860
      %v3985 = vadd.f32 %v3713, %v3865
      %v3986 = vadd.f32 %v3714, %v3868
      %v3987 = vadd.f32 %v3715, %v3873
      %v3988 = vadd.f32 %v3716, %v3876
      %v3989 = vadd.f32 %v3717, %v3881
      %v3990 = vadd.f32 %v3718, %v3884
      %v3991 = vadd.f32 %v3719, %v3889
      %v3992 = vadd.f32 %v3720, %v3892
      %v3993 = vadd.f32 %v3721, %v3897
      %v3994 = vadd.f32 %v3722, %v3900
      %v3995 = vadd.f32 %v3723, %v3905
      %v3996 = vadd.f32 %v3724, %v3908
      %v3997 = vadd.f32 %v3725, %v3913
      %v3998 = vadd.f32 %v3726, %v3916
      %v3999 = vadd.f32 %v3727, %v3921
      %v4000 = vadd.f32 %v3728, %v3924
      %v4001 = vadd.f32 %v3729, %v3929
      %v4002 = vadd.f32 %v3730, %v3932
      %v4003 = vadd.f32 %v3731, %v3937
      %v4004 = vadd.f32 %v3732, %v3940
      %v4005 = vadd.f32 %v3733, %v3945
      %v4006 = vadd.f32 %v3734, %v3948
      %v4007 = vadd.f32 %v3735, %v3953
      %v4008 = vadd.f32 %v3736, %v3956
      %v4009 = vadd.f32 %v3737, %v3961
      %v4010 = vadd.f32 %v3738, %v3964
      %v4011 = vadd.f32 %v3739, %v3969
      %v4012 = vadd.f32 %v3740, %v3972
      %v4013 = vadd.f32 %v3741, %v3977
      %v4014 = vadd.f32 %v3742, %v3980
      %v4018 = vrot.slane %v3257, 5
      %v4019 = vrot.slane %v4018, 4
      %v4020 = vrot.slane %v1957, 5
      %v4021 = vsel %vm3308, %v4019, %v4020
      %v4022 = vrot.slane %v4020, 4
      %v4023 = vrot.slane %v1958, 5
      %v4024 = vsel %vm3308, %v4022, %v4023
      %s4025 = scalar_lea.vmem %s3, 512
      %v4026 = vld [vmem:[%s4025] sm:$0xf]
      %v4027 = vld [vmem:[%s4025 + $0x4] sm:$0xf]
      %v4028 = vld [vmem:[%s4025 + $0x8] sm:$0xf]
      %v4029 = vld [vmem:[%s4025 + $0xc] sm:$0xf]
      %v4030 = vld [vmem:[%s4025 + $0x10] sm:$0xf]
      %v4031 = vld [vmem:[%s4025 + $0x14] sm:$0xf]
      %v4032 = vld [vmem:[%s4025 + $0x18] sm:$0xf]
      %v4033 = vld [vmem:[%s4025 + $0x1c] sm:$0xf]
      %v4034 = vld [vmem:[%s4025 + $0x20] sm:$0xf]
      %v4035 = vld [vmem:[%s4025 + $0x24] sm:$0xf]
      %v4036 = vld [vmem:[%s4025 + $0x28] sm:$0xf]
      %v4037 = vld [vmem:[%s4025 + $0x2c] sm:$0xf]
      %v4038 = vld [vmem:[%s4025 + $0x30] sm:$0xf]
      %v4039 = vld [vmem:[%s4025 + $0x34] sm:$0xf]
      %v4040 = vld [vmem:[%s4025 + $0x38] sm:$0xf]
      %v4041 = vld [vmem:[%s4025 + $0x3c] sm:$0xf]
      %v4042 = vunpack.c.l.b16 %v4021
      %v4043 = vunpack.c.l.b16 %v4024
      %v4044 = vpack.c.b16 %v4043, %v4042
      %v4062 = vunpack.c.l.b16 %v4026
      %v4063 = vunpack.c.l.b16 %v4027
      %v4064 = vunpack.c.l.b16 %v4028
      %v4065 = vunpack.c.l.b16 %v4029
      %v4066 = vunpack.c.l.b16 %v4030
      %v4067 = vunpack.c.l.b16 %v4031
      %v4068 = vunpack.c.l.b16 %v4032
      %v4069 = vunpack.c.l.b16 %v4033
      %v4070 = vunpack.c.l.b16 %v4034
      %v4071 = vunpack.c.l.b16 %v4035
      %v4072 = vunpack.c.l.b16 %v4036
      %v4073 = vunpack.c.l.b16 %v4037
      %v4074 = vunpack.c.l.b16 %v4038
      %v4075 = vunpack.c.l.b16 %v4039
      %v4076 = vunpack.c.l.b16 %v4040
      %v4077 = vunpack.c.l.b16 %v4041
      %v4078 = vpack.c.b16 %v4063, %v4062
      %v4079 = vpack.c.b16 %v4065, %v4064
      %v4080 = vpack.c.b16 %v4067, %v4066
      %v4081 = vpack.c.b16 %v4069, %v4068
      %v4082 = vpack.c.b16 %v4071, %v4070
      %v4083 = vpack.c.b16 %v4073, %v4072
      %v4084 = vpack.c.b16 %v4075, %v4074
      %v4085 = vpack.c.b16 %v4077, %v4076
      %4094 = vmatprep.subr.bf16.mxu0 0
      %4095 = vmatpush1.bf16.msra.mxu0 %v4078
      %4096 = vmatprep.subr.bf16.mxu0 0
      %4097 = vmatpush1.bf16.msra.mxu0 %v4079
      %4098 = vmatprep.subr.bf16.mxu0 0
      %4099 = vmatpush1.bf16.msra.mxu0 %v4080
      %4100 = vmatprep.subr.bf16.mxu0 0
      %4101 = vmatpush1.bf16.msra.mxu0 %v4081
      %4102 = vmatprep.subr.bf16.mxu0 0
      %4103 = vmatpush1.bf16.msra.mxu0 %v4082
      %4104 = vmatprep.subr.bf16.mxu0 0
      %4105 = vmatpush1.bf16.msra.mxu0 %v4083
      %4106 = vmatprep.subr.bf16.mxu0 0
      %4107 = vmatpush1.bf16.msra.mxu0 %v4084
      %4108 = vmatprep.subr.bf16.mxu0 0
      %4109 = vmatpush1.bf16.msra.mxu0 %v4085
      %4110 = vmatprep.subr.bf16.mxu0 0
      %4111 = vmatpush1.bf16.msra.mxu0 0
      %4112 = vmatprep.subr.bf16.mxu0 0
      %4113 = vmatpush1.bf16.msra.mxu0 0
      %4114 = vmatprep.subr.bf16.mxu0 0
      %4115 = vmatpush1.bf16.msra.mxu0 0
      %4116 = vmatprep.subr.bf16.mxu0 0
      %4117 = vmatpush1.bf16.msra.mxu0 0
      %4118 = vmatprep.subr.bf16.mxu0 0
      %4119 = vmatpush1.bf16.msra.mxu0 0
      %4120 = vmatprep.subr.bf16.mxu0 0
      %4121 = vmatpush1.bf16.msra.mxu0 0
      %4122 = vmatprep.subr.bf16.mxu0 0
      %4123 = vmatpush1.bf16.msra.mxu0 0
      %4124 = vmatprep.subr.bf16.mxu0 0
      %4125 = vmatpush1.bf16.msra.mxu0 0
      %4126 = vmatprep.mubr.bf16.mxu0 0
      %4127 = vmatmul.mubr.bf16.gmra.mrb[0].mxu0 %v3472
      %v4128 = vpop.f32.mrb[0].mxu0
      %v4129 = vadd.f32 0.0, %v4128
      %v4130 = vpop.f32.mrb[0].mxu0
      %v4131 = vpop.f32.mrb[0].mxu0
      %v4132 = vadd.f32 0.0, %v4131
      %v4133 = vpop.f32.mrb[0].mxu0
      %4134 = vmatprep.mubr.bf16.mxu0 0
      %4135 = vmatmul.mubr.bf16.gmra.mrb[0].mxu0 %v3473
      %v4136 = vpop.f32.mrb[0].mxu0
      %v4137 = vadd.f32 0.0, %v4136
      %v4138 = vpop.f32.mrb[0].mxu0
      %v4139 = vpop.f32.mrb[0].mxu0
      %v4140 = vadd.f32 0.0, %v4139
      %v4141 = vpop.f32.mrb[0].mxu0
      %4142 = vmatprep.mubr.bf16.mxu0 0
      %4143 = vmatmul.mubr.bf16.gmra.mrb[0].mxu0 %v3474
      %v4144 = vpop.f32.mrb[0].mxu0
      %v4145 = vadd.f32 0.0, %v4144
      %v4146 = vpop.f32.mrb[0].mxu0
      %v4147 = vpop.f32.mrb[0].mxu0
      %v4148 = vadd.f32 0.0, %v4147
      %v4149 = vpop.f32.mrb[0].mxu0
      %4150 = vmatprep.mubr.bf16.mxu0 0
      %4151 = vmatmul.mubr.bf16.gmra.mrb[0].mxu0 %v3475
      %v4152 = vpop.f32.mrb[0].mxu0
      %v4153 = vadd.f32 0.0, %v4152
      %v4154 = vpop.f32.mrb[0].mxu0
      %v4155 = vpop.f32.mrb[0].mxu0
      %v4156 = vadd.f32 0.0, %v4155
      %v4157 = vpop.f32.mrb[0].mxu0
      %4158 = vmatprep.mubr.bf16.mxu0 0
      %4159 = vmatmul.mubr.bf16.gmra.mrb[0].mxu0 %v3476
      %v4160 = vpop.f32.mrb[0].mxu0
      %v4161 = vadd.f32 0.0, %v4160
      %v4162 = vpop.f32.mrb[0].mxu0
      %v4163 = vpop.f32.mrb[0].mxu0
      %v4164 = vadd.f32 0.0, %v4163
      %v4165 = vpop.f32.mrb[0].mxu0
      %4166 = vmatprep.mubr.bf16.mxu0 0
      %4167 = vmatmul.mubr.bf16.gmra.mrb[0].mxu0 %v3477
      %v4168 = vpop.f32.mrb[0].mxu0
      %v4169 = vadd.f32 0.0, %v4168
      %v4170 = vpop.f32.mrb[0].mxu0
      %v4171 = vpop.f32.mrb[0].mxu0
      %v4172 = vadd.f32 0.0, %v4171
      %v4173 = vpop.f32.mrb[0].mxu0
      %4174 = vmatprep.mubr.bf16.mxu0 0
      %4175 = vmatmul.mubr.bf16.gmra.mrb[0].mxu0 %v3478
      %v4176 = vpop.f32.mrb[0].mxu0
      %v4177 = vadd.f32 0.0, %v4176
      %v4178 = vpop.f32.mrb[0].mxu0
      %v4179 = vpop.f32.mrb[0].mxu0
      %v4180 = vadd.f32 0.0, %v4179
      %v4181 = vpop.f32.mrb[0].mxu0
      %4182 = vmatprep.mubr.bf16.mxu0 0
      %4183 = vmatmul.mubr.bf16.gmra.mrb[0].mxu0 %v3479
      %v4184 = vpop.f32.mrb[0].mxu0
      %v4185 = vadd.f32 0.0, %v4184
      %v4186 = vpop.f32.mrb[0].mxu0
      %v4187 = vpop.f32.mrb[0].mxu0
      %v4188 = vadd.f32 0.0, %v4187
      %v4189 = vpop.f32.mrb[0].mxu0
      %4190 = vmatprep.mubr.bf16.mxu0 0
      %4191 = vmatmul.mubr.bf16.gmra.mrb[0].mxu0 %v3480
      %v4192 = vpop.f32.mrb[0].mxu0
      %v4193 = vadd.f32 0.0, %v4192
      %v4194 = vpop.f32.mrb[0].mxu0
      %v4195 = vpop.f32.mrb[0].mxu0
      %v4196 = vadd.f32 0.0, %v4195
      %v4197 = vpop.f32.mrb[0].mxu0
      %4198 = vmatprep.mubr.bf16.mxu0 0
      %4199 = vmatmul.mubr.bf16.gmra.mrb[0].mxu0 %v3481
      %v4200 = vpop.f32.mrb[0].mxu0
      %v4201 = vadd.f32 0.0, %v4200
      %v4202 = vpop.f32.mrb[0].mxu0
      %v4203 = vpop.f32.mrb[0].mxu0
      %v4204 = vadd.f32 0.0, %v4203
      %v4205 = vpop.f32.mrb[0].mxu0
      %4206 = vmatprep.mubr.bf16.mxu0 0
      %4207 = vmatmul.mubr.bf16.gmra.mrb[0].mxu0 %v3482
      %v4208 = vpop.f32.mrb[0].mxu0
      %v4209 = vadd.f32 0.0, %v4208
      %v4210 = vpop.f32.mrb[0].mxu0
      %v4211 = vpop.f32.mrb[0].mxu0
      %v4212 = vadd.f32 0.0, %v4211
      %v4213 = vpop.f32.mrb[0].mxu0
      %4214 = vmatprep.mubr.bf16.mxu0 0
      %4215 = vmatmul.mubr.bf16.gmra.mrb[0].mxu0 %v3483
      %v4216 = vpop.f32.mrb[0].mxu0
      %v4217 = vadd.f32 0.0, %v4216
      %v4218 = vpop.f32.mrb[0].mxu0
      %v4219 = vpop.f32.mrb[0].mxu0
      %v4220 = vadd.f32 0.0, %v4219
      %v4221 = vpop.f32.mrb[0].mxu0
      %4222 = vmatprep.mubr.bf16.mxu0 0
      %4223 = vmatmul.mubr.bf16.gmra.mrb[0].mxu0 %v3484
      %v4224 = vpop.f32.mrb[0].mxu0
      %v4225 = vadd.f32 0.0, %v4224
      %v4226 = vpop.f32.mrb[0].mxu0
      %v4227 = vpop.f32.mrb[0].mxu0
      %v4228 = vadd.f32 0.0, %v4227
      %v4229 = vpop.f32.mrb[0].mxu0
      %4230 = vmatprep.mubr.bf16.mxu0 0
      %4231 = vmatmul.mubr.bf16.gmra.mrb[0].mxu0 %v3485
      %v4232 = vpop.f32.mrb[0].mxu0
      %v4233 = vadd.f32 0.0, %v4232
      %v4234 = vpop.f32.mrb[0].mxu0
      %v4235 = vpop.f32.mrb[0].mxu0
      %v4236 = vadd.f32 0.0, %v4235
      %v4237 = vpop.f32.mrb[0].mxu0
      %4238 = vmatprep.mubr.bf16.mxu0 0
      %4239 = vmatmul.mubr.bf16.gmra.mrb[0].mxu0 %v3772
      %v4240 = vpop.f32.mrb[0].mxu0
      %v4241 = vadd.f32 0.0, %v4240
      %v4242 = vpop.f32.mrb[0].mxu0
      %v4243 = vpop.f32.mrb[0].mxu0
      %v4244 = vadd.f32 0.0, %v4243
      %v4245 = vpop.f32.mrb[0].mxu0
      %4246 = vmatprep.mubr.bf16.mxu0 0
      %4247 = vmatmul.mubr.bf16.gmra.mrb[0].mxu0 %v4044
      %v4248 = vpop.f32.mrb[0].mxu0
      %v4249 = vadd.f32 0.0, %v4248
      %v4250 = vpop.f32.mrb[0].mxu0
      %v4251 = vpop.f32.mrb[0].mxu0
      %v4252 = vadd.f32 0.0, %v4251
      %v4253 = vpop.f32.mrb[0].mxu0
      %4254 = vdwg.mxu0
      %v4255 = vadd.f32 %v3983, %v4129
      %v4256 = vadd.f32 %v3984, %v4132
      %v4257 = vadd.f32 %v3985, %v4137
      %v4258 = vadd.f32 %v3986, %v4140
      %v4259 = vadd.f32 %v3987, %v4145
      %v4260 = vadd.f32 %v3988, %v4148
      %v4261 = vadd.f32 %v3989, %v4153
      %v4262 = vadd.f32 %v3990, %v4156
      %v4263 = vadd.f32 %v3991, %v4161
      %v4264 = vadd.f32 %v3992, %v4164
      %v4265 = vadd.f32 %v3993, %v4169
      %v4266 = vadd.f32 %v3994, %v4172
      %v4267 = vadd.f32 %v3995, %v4177
      %v4268 = vadd.f32 %v3996, %v4180
      %v4269 = vadd.f32 %v3997, %v4185
      %v4270 = vadd.f32 %v3998, %v4188
      %v4271 = vadd.f32 %v3999, %v4193
      %v4272 = vadd.f32 %v4000, %v4196
      %v4273 = vadd.f32 %v4001, %v4201
      %v4274 = vadd.f32 %v4002, %v4204
      %v4275 = vadd.f32 %v4003, %v4209
      %v4276 = vadd.f32 %v4004, %v4212
      %v4277 = vadd.f32 %v4005, %v4217
      %v4278 = vadd.f32 %v4006, %v4220
      %v4279 = vadd.f32 %v4007, %v4225
      %v4280 = vadd.f32 %v4008, %v4228
      %v4281 = vadd.f32 %v4009, %v4233
      %v4282 = vadd.f32 %v4010, %v4236
      %v4283 = vadd.f32 %v4011, %v4241
      %v4284 = vadd.f32 %v4012, %v4244
      %v4285 = vadd.f32 %v4013, %v4249
      %v4286 = vadd.f32 %v4014, %v4252
      %v4287 = vpack.c.bf16 %v4256, %v4255
      %v4288 = vpack.c.bf16 %v4258, %v4257
      %v4289 = vpack.c.bf16 %v4260, %v4259
      %v4290 = vpack.c.bf16 %v4262, %v4261
      %v4291 = vpack.c.bf16 %v4264, %v4263
      %v4292 = vpack.c.bf16 %v4266, %v4265
      %v4293 = vpack.c.bf16 %v4268, %v4267
      %v4294 = vpack.c.bf16 %v4270, %v4269
      %v4295 = vpack.c.bf16 %v4272, %v4271
      %v4296 = vpack.c.bf16 %v4274, %v4273
      %v4297 = vpack.c.bf16 %v4276, %v4275
      %v4298 = vpack.c.bf16 %v4278, %v4277
      %v4299 = vpack.c.bf16 %v4280, %v4279
      %v4300 = vpack.c.bf16 %v4282, %v4281
      %v4301 = vpack.c.bf16 %v4284, %v4283
      %v4302 = vpack.c.bf16 %v4286, %v4285
      %v4319 = vunpack.c.l.b16 %v4287
      %v4320 = vunpack.c.h.b16 %v4287
      %v4321 = vunpack.c.l.b16 %v4288
      %v4322 = vunpack.c.h.b16 %v4288
      %v4323 = vunpack.c.l.b16 %v4289
      %v4324 = vunpack.c.h.b16 %v4289
      %v4325 = vunpack.c.l.b16 %v4290
      %v4326 = vunpack.c.h.b16 %v4290
      %v4327 = vunpack.c.l.b16 %v4291
      %v4328 = vunpack.c.h.b16 %v4291
      %v4329 = vunpack.c.l.b16 %v4292
      %v4330 = vunpack.c.h.b16 %v4292
      %v4331 = vunpack.c.l.b16 %v4293
      %v4332 = vunpack.c.h.b16 %v4293
      %v4333 = vunpack.c.l.b16 %v4294
      %v4334 = vunpack.c.h.b16 %v4294
      %v4335 = vunpack.c.l.b16 %v4295
      %v4336 = vunpack.c.h.b16 %v4295
      %v4337 = vunpack.c.l.b16 %v4296
      %v4338 = vunpack.c.h.b16 %v4296
      %v4339 = vunpack.c.l.b16 %v4297
      %v4340 = vunpack.c.h.b16 %v4297
      %v4341 = vunpack.c.l.b16 %v4298
      %v4342 = vunpack.c.h.b16 %v4298
      %v4343 = vunpack.c.l.b16 %v4299
      %v4344 = vunpack.c.h.b16 %v4299
      %v4345 = vunpack.c.l.b16 %v4300
      %v4346 = vunpack.c.h.b16 %v4300
      %v4347 = vunpack.c.l.b16 %v4301
      %v4348 = vunpack.c.h.b16 %v4301
      %v4349 = vunpack.c.l.b16 %v4302
      %v4350 = vunpack.c.h.b16 %v4302
      %v4351 = vpack.c.b16 %v4319, %v4319
      %v4352 = vpack.c.b16 %v4320, %v4320
      %v4353 = vpack.c.b16 %v4321, %v4321
      %v4354 = vpack.c.b16 %v4322, %v4322
      %v4355 = vpack.c.b16 %v4323, %v4323
      %v4356 = vpack.c.b16 %v4324, %v4324
      %v4357 = vpack.c.b16 %v4325, %v4325
      %v4358 = vpack.c.b16 %v4326, %v4326
      %v4359 = vpack.c.b16 %v4327, %v4327
      %v4360 = vpack.c.b16 %v4328, %v4328
      %v4361 = vpack.c.b16 %v4329, %v4329
      %v4362 = vpack.c.b16 %v4330, %v4330
      %v4363 = vpack.c.b16 %v4331, %v4331
      %v4364 = vpack.c.b16 %v4332, %v4332
      %v4365 = vpack.c.b16 %v4333, %v4333
      %v4366 = vpack.c.b16 %v4334, %v4334
      %v4367 = vpack.c.b16 %v4335, %v4335
      %v4368 = vpack.c.b16 %v4336, %v4336
      %v4369 = vpack.c.b16 %v4337, %v4337
      %v4370 = vpack.c.b16 %v4338, %v4338
      %v4371 = vpack.c.b16 %v4339, %v4339
      %v4372 = vpack.c.b16 %v4340, %v4340
      %v4373 = vpack.c.b16 %v4341, %v4341
      %v4374 = vpack.c.b16 %v4342, %v4342
      %v4375 = vpack.c.b16 %v4343, %v4343
      %v4376 = vpack.c.b16 %v4344, %v4344
      %v4377 = vpack.c.b16 %v4345, %v4345
      %v4378 = vpack.c.b16 %v4346, %v4346
      %v4379 = vpack.c.b16 %v4347, %v4347
      %v4380 = vpack.c.b16 %v4348, %v4348
      %v4381 = vpack.c.b16 %v4349, %v4349
      %v4382 = vpack.c.b16 %v4350, %v4350
      %4415 = vst [vmem:[%s231] sm:$0xf] %v4351
      %4416 = vst [vmem:[%s231 + $0x4] sm:$0xf] %v4352
      %4417 = vst [vmem:[%s231 + $0x8] sm:$0xf] %v4353
      %4418 = vst [vmem:[%s231 + $0xc] sm:$0xf] %v4354
      %4419 = vst [vmem:[%s231 + $0x10] sm:$0xf] %v4355
      %4420 = vst [vmem:[%s231 + $0x14] sm:$0xf] %v4356
      %4421 = vst [vmem:[%s231 + $0x18] sm:$0xf] %v4357
      %4422 = vst [vmem:[%s231 + $0x1c] sm:$0xf] %v4358
      %4423 = vst [vmem:[%s231 + $0x20] sm:$0xf] %v4359
      %4424 = vst [vmem:[%s231 + $0x24] sm:$0xf] %v4360
      %4425 = vst [vmem:[%s231 + $0x28] sm:$0xf] %v4361
      %4426 = vst [vmem:[%s231 + $0x2c] sm:$0xf] %v4362
      %4427 = vst [vmem:[%s231 + $0x30] sm:$0xf] %v4363
      %4428 = vst [vmem:[%s231 + $0x34] sm:$0xf] %v4364
      %4429 = vst [vmem:[%s231 + $0x38] sm:$0xf] %v4365
      %4430 = vst [vmem:[%s231 + $0x3c] sm:$0xf] %v4366
      %4431 = vst [vmem:[%s231 + $0x40] sm:$0xf] %v4367
      %4432 = vst [vmem:[%s231 + $0x44] sm:$0xf] %v4368
      %4433 = vst [vmem:[%s231 + $0x48] sm:$0xf] %v4369
      %4434 = vst [vmem:[%s231 + $0x4c] sm:$0xf] %v4370
      %4435 = vst [vmem:[%s231 + $0x50] sm:$0xf] %v4371
      %4436 = vst [vmem:[%s231 + $0x54] sm:$0xf] %v4372
      %4437 = vst [vmem:[%s231 + $0x58] sm:$0xf] %v4373
      %4438 = vst [vmem:[%s231 + $0x5c] sm:$0xf] %v4374
      %4439 = vst [vmem:[%s231 + $0x60] sm:$0xf] %v4375
      %4440 = vst [vmem:[%s231 + $0x64] sm:$0xf] %v4376
      %4441 = vst [vmem:[%s231 + $0x68] sm:$0xf] %v4377
      %4442 = vst [vmem:[%s231 + $0x6c] sm:$0xf] %v4378
      %4443 = vst [vmem:[%s231 + $0x70] sm:$0xf] %v4379
      %4444 = vst [vmem:[%s231 + $0x74] sm:$0xf] %v4380
      %4445 = vst [vmem:[%s231 + $0x78] sm:$0xf] %v4381
      %4446 = vst [vmem:[%s231 + $0x7c] sm:$0xf] %v4382
      %v4447 = vadd.f32 %v4255, %v4256
      %v4448 = vadd.f32 %v4447, %v4257
      %v4449 = vadd.f32 %v4448, %v4258
      %v4450 = vadd.f32 %v4449, %v4259
      %v4451 = vadd.f32 %v4450, %v4260
      %v4452 = vadd.f32 %v4451, %v4261
      %v4453 = vadd.f32 %v4452, %v4262
      %v4454 = vadd.f32 %v4453, %v4263
      %v4455 = vadd.f32 %v4454, %v4264
      %v4456 = vadd.f32 %v4455, %v4265
      %v4457 = vadd.f32 %v4456, %v4266
      %v4458 = vadd.f32 %v4457, %v4267
      %v4459 = vadd.f32 %v4458, %v4268
      %v4460 = vadd.f32 %v4459, %v4269
      %v4461 = vadd.f32 %v4460, %v4270
      %v4462 = vadd.f32 %v4461, %v4271
      %v4463 = vadd.f32 %v4462, %v4272
      %v4464 = vadd.f32 %v4463, %v4273
      %v4465 = vadd.f32 %v4464, %v4274
      %v4466 = vadd.f32 %v4465, %v4275
      %v4467 = vadd.f32 %v4466, %v4276
      %v4468 = vadd.f32 %v4467, %v4277
      %v4469 = vadd.f32 %v4468, %v4278
      %v4470 = vadd.f32 %v4469, %v4279
      %v4471 = vadd.f32 %v4470, %v4280
      %v4472 = vadd.f32 %v4471, %v4281
      %v4473 = vadd.f32 %v4472, %v4282
      %v4474 = vadd.f32 %v4473, %v4283
      %v4475 = vadd.f32 %v4474, %v4284
      %v4476 = vadd.f32 %v4475, %v4285
      %v4477 = vadd.f32 %v4476, %v4286
      %v4478 = vrot.slane %v4477, 4
      %v4479 = vadd.f32 %v4477, %v4478
      %v4480 = vrot.slane %v4479, 2
      %v4481 = vadd.f32 %v4479, %v4480
      %v4482 = vrot.slane %v4481, 1
      %v4483 = vadd.f32 %v4481, %v4482
      %v4484 = vmul.f32 %v4255, %v4255
      %v4485 = vmul.f32 %v4256, %v4256
      %v4486 = vmul.f32 %v4257, %v4257
      %v4487 = vmul.f32 %v4258, %v4258
      %v4488 = vmul.f32 %v4259, %v4259
      %v4489 = vmul.f32 %v4260, %v4260
      %v4490 = vmul.f32 %v4261, %v4261
      %v4491 = vmul.f32 %v4262, %v4262
      %v4492 = vmul.f32 %v4263, %v4263
      %v4493 = vmul.f32 %v4264, %v4264
      %v4494 = vmul.f32 %v4265, %v4265
      %v4495 = vmul.f32 %v4266, %v4266
      %v4496 = vmul.f32 %v4267, %v4267
      %v4497 = vmul.f32 %v4268, %v4268
      %v4498 = vmul.f32 %v4269, %v4269
      %v4499 = vmul.f32 %v4270, %v4270
      %v4500 = vmul.f32 %v4271, %v4271
      %v4501 = vmul.f32 %v4272, %v4272
      %v4502 = vmul.f32 %v4273, %v4273
      %v4503 = vmul.f32 %v4274, %v4274
      %v4504 = vmul.f32 %v4275, %v4275
      %v4505 = vmul.f32 %v4276, %v4276
      %v4506 = vmul.f32 %v4277, %v4277
      %v4507 = vmul.f32 %v4278, %v4278
      %v4508 = vmul.f32 %v4279, %v4279
      %v4509 = vmul.f32 %v4280, %v4280
      %v4510 = vmul.f32 %v4281, %v4281
      %v4511 = vmul.f32 %v4282, %v4282
      %v4512 = vmul.f32 %v4283, %v4283
      %v4513 = vmul.f32 %v4284, %v4284
      %v4514 = vmul.f32 %v4285, %v4285
      %v4515 = vmul.f32 %v4286, %v4286
      %v4516 = vadd.f32 %v4484, %v4485
      %v4517 = vadd.f32 %v4516, %v4486
      %v4518 = vadd.f32 %v4517, %v4487
      %v4519 = vadd.f32 %v4518, %v4488
      %v4520 = vadd.f32 %v4519, %v4489
      %v4521 = vadd.f32 %v4520, %v4490
      %v4522 = vadd.f32 %v4521, %v4491
      %v4523 = vadd.f32 %v4522, %v4492
      %v4524 = vadd.f32 %v4523, %v4493
      %v4525 = vadd.f32 %v4524, %v4494
      %v4526 = vadd.f32 %v4525, %v4495
      %v4527 = vadd.f32 %v4526, %v4496
      %v4528 = vadd.f32 %v4527, %v4497
      %v4529 = vadd.f32 %v4528, %v4498
      %v4530 = vadd.f32 %v4529, %v4499
      %v4531 = vadd.f32 %v4530, %v4500
      %v4532 = vadd.f32 %v4531, %v4501
      %v4533 = vadd.f32 %v4532, %v4502
      %v4534 = vadd.f32 %v4533, %v4503
      %v4535 = vadd.f32 %v4534, %v4504
      %v4536 = vadd.f32 %v4535, %v4505
      %v4537 = vadd.f32 %v4536, %v4506
      %v4538 = vadd.f32 %v4537, %v4507
      %v4539 = vadd.f32 %v4538, %v4508
      %v4540 = vadd.f32 %v4539, %v4509
      %v4541 = vadd.f32 %v4540, %v4510
      %v4542 = vadd.f32 %v4541, %v4511
      %v4543 = vadd.f32 %v4542, %v4512
      %v4544 = vadd.f32 %v4543, %v4513
      %v4545 = vadd.f32 %v4544, %v4514
      %v4546 = vadd.f32 %v4545, %v4515
      %v4547 = vrot.slane %v4546, 4
      %v4548 = vadd.f32 %v4546, %v4547
      %v4549 = vrot.slane %v4548, 2
      %v4550 = vadd.f32 %v4548, %v4549
      %v4551 = vrot.slane %v4550, 1
      %v4552 = vadd.f32 %v4550, %v4551
      %vm4553 = vcmask 1040384
      %v4554 = vsel %vm4553, %v4483, %v4552
      %4555 = vst [vmem:[%s235] sm:$0x3] %v4554
      %p4556 = scmp.lt.s32.totalorder %s17, 1
      %s4557 = scalar_select %p4556, %s17, 1
      %s4558 = smul.addr %s4557, 32
      %s4559 = smul.addr %s4558, 4
      %s4560 = scalar_lea.vmem %s4, %s4559
      %p4561 = scmp.lt.s32.totalorder %s17, 1
      %s4562 = scalar_select %p4561, %s17, 1
      %s4563 = smul.addr %s4562, 2
      %s4564 = scalar_lea.vmem %s5, %s4563
      // Predicated region
      $region37: #{bottleneck_forward.5} parent=35 // pred_check
        %p4565 = pneg %p124
      $region38: #{bottleneck_forward.5} parent=35 // pred_check_branch
        %4567 = sbr.rel (%p4565) target = $region40
      $region39: #{bottleneck_forward.5} parent=35 // pred_region
        _
      $region40: #{bottleneck_forward.5} parent=35 // pred_fallthru
        _
      // Predicated region
      $region41: #{bottleneck_forward.5} parent=35 // pred_check
        %p4568 = pneg %p150
      $region42: #{bottleneck_forward.5} parent=35 // pred_check_branch
        %4570 = sbr.rel (%p4568) target = $region44
      $region43: #{bottleneck_forward.5} parent=35 // pred_region
        _
      $region44: #{bottleneck_forward.5} parent=35 // pred_fallthru
        _
    $region36: #{bottleneck_forward.5} parent=5 // pred_fallthru
      _
    %p4571 = scmp.le.s32.totalorder 2, %s12
    // Predicated region
    $region45: #{bottleneck_forward.5} parent=5 // pred_check
      %p4572 = pneg %p4571
    $region46: #{bottleneck_forward.5} parent=5 // pred_check_branch
      %4574 = sbr.rel (%p4572) target = $region48
    $region47: #{bottleneck_forward.5} parent=5 // pred_region
      %s4575 = ssub.s32 %s12, 2
      // Predicated region
      $region49: #{bottleneck_forward.5} parent=47 // pred_check
        %p4576 = pneg %p130
      $region50: #{bottleneck_forward.5} parent=47 // pred_check_branch
        %4578 = sbr.rel (%p4576) target = $region52
      $region51: #{bottleneck_forward.5} parent=47 // pred_region
        %p4579 = scmp.lt.s32.totalorder %s18, 1
        %s4580 = scalar_select %p4579, %s18, 1
        %s4581 = smul.addr %s4580, 32
        %s4582 = smul.addr %s4581, 4
        %s4583 = scalar_lea.vmem %s4, %s4582
      $region52: #{bottleneck_forward.5} parent=47 // pred_fallthru
        _
      // Predicated region
      $region53: #{bottleneck_forward.5} parent=47 // pred_check
        %p4584 = pneg %p156
      $region54: #{bottleneck_forward.5} parent=47 // pred_check_branch
        %4586 = sbr.rel (%p4584) target = $region56
      $region55: #{bottleneck_forward.5} parent=47 // pred_region
        %p4587 = scmp.lt.s32.totalorder %s18, 1
        %s4588 = scalar_select %p4587, %s18, 1
        %s4589 = smul.addr %s4588, 2
        %s4590 = scalar_lea.vmem %s5, %s4589
      $region56: #{bottleneck_forward.5} parent=47 // pred_fallthru
        _
    $region48: #{bottleneck_forward.5} parent=5 // pred_fallthru
      _
  $region6: #{bottleneck_forward.5} parent=0 // loop_footer
    %s16 = sadd.s32 1, %s12
  $region7: #{bottleneck_forward.5} parent=0 // loop_footer_branch
    %11 = sbr.rel target = $region3
  $region8: #{bottleneck_forward.5} parent=0 // loop_exit
    _

</llo_original>
